<compile_context>
chip_gen: v5e
topology: v5e:2x2
jax: 0.10.0
libtpu: 0.0.40
codegen_flags: <defaults>
</compile_context>

<pallas_src>
import functools

import jax
import jax.numpy as jnp
from jax import lax
from jax.experimental import pallas as pl
from jax.experimental.pallas import tpu as pltpu


# ---------------------------------------------------------------------------
# In-kernel helpers (all shapes are static Python ints; loops unroll at trace time).
# ---------------------------------------------------------------------------

def _run_stream(x_ref, w_ref, b_ref, scr_ref, cfg, seq_len):
    """Run one stream of ResDepSep blocks fully in VMEM.

    x_ref   : (seq_len, width) f32 activations (channels of all stacked batch slots on lanes).
    w_ref   : (n_taps_total*width, width) bf16 packed block-diagonal folded weights
              (block-major / tap-minor order).
    b_ref   : (n_blocks, width) f32 per-block biases (shortcut + bias terms pre-folded).
    scr_ref : (rows, width) f32 VMEM scratch used to stage zero-padded activations so conv
              taps become plain shifted / strided vector loads (no gather matmuls).
    cfg     : tuple of (kernel_size, stride) per block (static).
    Returns the AdaptiveAvgPool1d(1) result, shape (1, width) f32.
    """
    width = x_ref.shape[1]
    act = x_ref[...]                                          # (L, width) f32, stays on-chip
    L = seq_len
    off = 0
    for bi, (K, stride) in enumerate(cfg):
        pad = K // 2
        L_out = (L + 2 * pad - K) // stride + 1
        # Stage zero-padded activations.  Pad rows are re-zeroed every block (L shrinks);
        # rows past pad+L+pad are never read because the max tap row is L + 2*pad - 1.
        if pad > 0:
            scr_ref[0:pad, :] = jnp.zeros((pad, width), jnp.float32)
            scr_ref[pad + L:pad + L + pad, :] = jnp.zeros((pad, width), jnp.float32)
        scr_ref[pad:pad + L, :] = act
        # im2col slab: K shifted / strided tap reads placed side by side on the lane axis.
        taps = []
        for k in range(K):
            if stride == 1:
                taps.append(scr_ref[k:k + L_out, :])
            else:
                taps.append(scr_ref[pl.ds(k, L_out, stride), :])
        slab = jnp.concatenate(taps, axis=1) if K > 1 else taps[0]      # (L_out, K*width)
        w_blk = w_ref[off:off + K * width, :]                           # (K*width, width) bf16
        off += K * width
        acc = jnp.dot(slab.astype(jnp.bfloat16), w_blk,
                      preferred_element_type=jnp.float32)               # one fat MXU dot
        act = jnp.maximum(acc + b_ref[bi:bi + 1, :], 0.0)               # bias + folded res + ReLU
        L = L_out
    # AdaptiveAvgPool1d(1): mean over the length (sublane) axis; 1/L is a compile-time const.
    return jnp.sum(act, axis=0, keepdims=True) * (1.0 / L)              # (1, width)


def _head(eeg_pool, nirs_pool, w1e_ref, w1n_ref, b1_ref, w2_ref, b2_ref, g_ref):
    """Batched Linear->ReLU->Linear->Softmax via pack-time block-diagonal head weights.

    Produces one (1, batch*n_classes) row; the wrapper reshapes it to (batch, n_classes).
    """
    h = (jnp.dot(eeg_pool, w1e_ref[...], preferred_element_type=jnp.float32)
         + jnp.dot(nirs_pool, w1n_ref[...], preferred_element_type=jnp.float32)
         + b1_ref[...])
    h = jnp.maximum(h, 0.0)                                             # (1, batch*hid)
    logits = jnp.dot(h, w2_ref[...], preferred_element_type=jnp.float32) + b2_ref[...]
    # Grouped softmax on the packed row: subtracting one global max is a per-group constant
    # shift (softmax-invariant); per-group denominators come from one tiny 0/1-matrix dot.
    m = jnp.max(logits, axis=-1, keepdims=True)
    e = jnp.exp(logits - m)
    denom = jnp.dot(e, g_ref[...], preferred_element_type=jnp.float32)
    return e * pl.reciprocal(denom, approx=True)                        # (1, batch*n_classes)


def _fused_forward_kernel(eeg_x_ref, nirs_x_ref, eeg_w_ref, eeg_b_ref,
                          nirs_w_hbm_ref, nirs_b_ref,
                          w1e_ref, w1n_ref, b1_ref, w2_ref, b2_ref, g_ref,
                          out_ref,
                          eeg_scr, nirs_scr, nirs_w_vmem, dma_sem, *,
                          eeg_cfg, nirs_cfg, len_eeg, len_nirs):
    # Overlap the dominant nirs weight DMA (HBM -> VMEM) with the EEG stream compute.
    cp = pltpu.make_async_copy(nirs_w_hbm_ref, nirs_w_vmem, dma_sem)
    cp.start()
    eeg_pool = _run_stream(eeg_x_ref, eeg_w_ref, eeg_b_ref, eeg_scr, eeg_cfg, len_eeg)
    cp.wait()
    nirs_pool = _run_stream(nirs_x_ref, nirs_w_vmem, nirs_b_ref, nirs_scr, nirs_cfg, len_nirs)
    out_ref[...] = _head(eeg_pool, nirs_pool, w1e_ref, w1n_ref, b1_ref, w2_ref, b2_ref, g_ref)


# ---------------------------------------------------------------------------
# Pallas wrapper
# ---------------------------------------------------------------------------

def _vmem_spec():
    return pl.BlockSpec(memory_space=pltpu.MemorySpace.VMEM)


def _scratch_rows(cfg, seq_len):
    rows, L = 0, seq_len
    for K, s in cfg:
        p = K // 2
        rows = max(rows, L + 2 * p)
        L = (L + 2 * p - K) // s + 1
    return ((rows + 7) // 8) * 8


def _stream_flops(cfg, seq_len, width):
    fl, L = 0, seq_len
    for K, s in cfg:
        p = K // 2
        L_out = (L + 2 * p - K) // s + 1
        fl += 2 * L_out * K * width * width
        L = L_out
    return fl


def pallas_forward(meta, weights, eeg_x, nirs_oxy_x, nirs_deoxy_x):
    """Inputs are PyTorch-style NCL: (B, C, L).  One pallas_call for the whole model."""
    batch, eeg_c, len_eeg = eeg_x.shape
    _, nirs_c, len_nirs = nirs_oxy_x.shape
    assert batch == meta["batch"], "weights were packed for a different batch size"
    eeg_width, nirs_width = meta["eeg_width"], meta["nirs_width"]
    n_classes = meta["n_classes"]

    # (B, C, L) -> (L, B*C): channels of all stacked batch slots on the lane axis,
    # zero-padded up to the stream's lane width (tiny boundary glue; all else is fused).
    eeg2d = jnp.transpose(eeg_x, (2, 0, 1)).reshape(len_eeg, batch * eeg_c)
    eeg2d = jnp.pad(eeg2d, ((0, 0), (0, eeg_width - batch * eeg_c)))
    nirs = jnp.concatenate([nirs_oxy_x, nirs_deoxy_x], axis=0)           # stack oxy + deoxy
    nirs2d = jnp.transpose(nirs, (2, 0, 1)).reshape(len_nirs, 2 * batch * nirs_c)
    nirs2d = jnp.pad(nirs2d, ((0, 0), (0, nirs_width - 2 * batch * nirs_c)))

    kernel = functools.partial(
        _fused_forward_kernel,
        eeg_cfg=meta["eeg_cfg"], nirs_cfg=meta["nirs_cfg"],
        len_eeg=len_eeg, len_nirs=len_nirs)

    ins = (eeg2d, nirs2d, weights["eeg_w"], weights["eeg_b"], weights["nirs_w"],
           weights["nirs_b"], weights["w1e"], weights["w1n"], weights["b1"],
           weights["w2"], weights["b2"], weights["g"])
    in_specs = [_vmem_spec()] * len(ins)
    in_specs[4] = pl.BlockSpec(memory_space=pl.ANY)   # nirs_w stays in HBM, DMAed in-kernel

    flops = (_stream_flops(meta["eeg_cfg"], len_eeg, eeg_width)
             + _stream_flops(meta["nirs_cfg"], len_nirs, nirs_width)
             + 2 * (eeg_width + nirs_width) * weights["w1e"].shape[1]
             + 2 * weights["w2"].shape[0] * weights["w2"].shape[1])
    bytes_accessed = (sum(int(a.size) * a.dtype.itemsize for a in ins)
                      + batch * n_classes * 4)

    out_row = pl.pallas_call(
        kernel,
        out_shape=jax.ShapeDtypeStruct((1, batch * n_classes), jnp.float32),
        in_specs=in_specs,
        out_specs=_vmem_spec(),
        scratch_shapes=[
            pltpu.VMEM((_scratch_rows(meta["eeg_cfg"], len_eeg), eeg_width), jnp.float32),
            pltpu.VMEM((_scratch_rows(meta["nirs_cfg"], len_nirs), nirs_width), jnp.float32),
            pltpu.VMEM(weights["nirs_w"].shape, jnp.bfloat16),
            pltpu.SemaphoreType.DMA,
        ],
        compiler_params=pltpu.CompilerParams(vmem_limit_bytes=32 * 1024 * 1024),
        cost_estimate=pl.CostEstimate(flops=int(flops),
                                      transcendentals=int(4 * batch * n_classes),
                                      bytes_accessed=int(bytes_accessed)),
    )(*ins)
    return out_row.reshape(batch, n_classes)


# ---------------------------------------------------------------------------
# Parameter init (folded ResDepSepBlock algebra) and packing.
# ---------------------------------------------------------------------------

def init_block_params(key, c_in, c_out, K, stride):
    """Fold depthwise + pointwise + shortcut 1x1 conv into one (K*C_in, C_out) matrix."""
    k1, k2, k3, k4, k5, k6 = jax.random.split(key, 6)
    s = 0.1
    dw_w = jax.random.normal(k1, (K, c_in), jnp.float32) * s        # depthwise weight[k, c]
    dw_b = jax.random.normal(k2, (c_in,), jnp.float32) * s
    pw_w = jax.random.normal(k3, (c_in, c_out), jnp.float32) * s    # pointwise (1x1) weight
    pw_b = jax.random.normal(k4, (c_out,), jnp.float32) * s
    if stride != 1 or c_in != c_out:
        sc_w = jax.random.normal(k5, (c_in, c_out), jnp.float32) * s  # 1x1 strided conv shortcut
        sc_b = jax.random.normal(k6, (c_out,), jnp.float32) * s
    else:
        sc_w = jnp.eye(c_in, dtype=jnp.float32)                        # identity shortcut
        sc_b = jnp.zeros((c_out,), jnp.float32)
    pad = K // 2
    W = (dw_w[:, :, None] * pw_w[None, :, :]).reshape(K * c_in, c_out)
    W = W.at[pad * c_in:(pad + 1) * c_in].add(sc_w)   # shortcut reads x[t*stride] == tap k=pad
    # Snap folded weights to bf16-representable values so the bf16 kernel packing is lossless
    # and the f32 reference uses bit-identical weights.
    W = W.astype(jnp.bfloat16).astype(jnp.float32)
    b = dw_b @ pw_w + pw_b + sc_b
    return (W, b, K, stride)


def init_net(key, cfg):
    keys = jax.random.split(key, len(cfg))
    return [init_block_params(k, ci, co, K, s) for k, (ci, co, K, s) in zip(keys, cfg)]


def init_head(key, in_f, hid, out_f):
    k1, k2, k3, k4 = jax.random.split(key, 4)
    w1 = jax.random.normal(k1, (in_f, hid), jnp.float32) * 0.1
    b1 = jax.random.normal(k2, (hid,), jnp.float32) * 0.1
    w2 = jax.random.normal(k3, (hid, out_f), jnp.float32) * 0.1
    b2 = jax.random.normal(k4, (out_f,), jnp.float32) * 0.1
    return (w1, b1, w2, b2)


def _block_diag(mats):
    rows = sum(m.shape[0] for m in mats)
    cols = sum(m.shape[1] for m in mats)
    out = jnp.zeros((rows, cols), jnp.float32)
    r = c = 0
    for m in mats:
        out = out.at[r:r + m.shape[0], c:c + m.shape[1]].set(m)
        r += m.shape[0]
        c += m.shape[1]
    return out


def _pack_stream(slot_blocks, width):
    """Fold every conv tap into a block-diagonal (width, width) lane-dense bf16 slab."""
    n_blocks = len(slot_blocks[0])
    w_parts, b_rows, cfg = [], [], []
    for bi in range(n_blocks):
        W0, _, K, stride = slot_blocks[0][bi]
        c_in = W0.shape[0] // K
        for k in range(K):
            mats = [sb[bi][0][k * c_in:(k + 1) * c_in, :] for sb in slot_blocks]
            bd = _block_diag(mats)                               # (n_slots*c_in, n_slots*c_out)
            w_parts.append(jnp.zeros((width, width), jnp.float32)
                           .at[:bd.shape[0], :bd.shape[1]].set(bd))
        bb = jnp.concatenate([sb[bi][1] for sb in slot_blocks])
        b_rows.append(jnp.zeros((width,), jnp.float32).at[:bb.shape[0]].set(bb))
        cfg.append((K, stride))
    w = jnp.concatenate(w_parts, axis=0).astype(jnp.bfloat16)    # lossless: W snapped at init
    return w, jnp.stack(b_rows, axis=0), tuple(cfg)


def pack_params(params, batch):
    """Eager one-time packing: stacked streams, bf16 weight slabs, block-diagonal batched head."""
    eeg_blocks, oxy_blocks, deoxy_blocks, (w1, b1, w2, b2) = params

    def max_ch(blocks):
        return max(max(blk[0].shape[0] // blk[2], blk[0].shape[1]) for blk in blocks)

    eeg_width = batch * max_ch(eeg_blocks)
    nirs_width = 2 * batch * max_ch(oxy_blocks)
    eeg_w, eeg_b, eeg_cfg = _pack_stream([eeg_blocks] * batch, eeg_width)
    nirs_w, nirs_b, nirs_cfg = _pack_stream([oxy_blocks] * batch + [deoxy_blocks] * batch,
                                            nirs_width)

    c_eeg = eeg_blocks[-1][0].shape[1]
    c_nirs = oxy_blocks[-1][0].shape[1]
    hid = w1.shape[1]
    n_classes = w2.shape[1]
    w1_e = w1[0:c_eeg]
    w1_o = w1[c_eeg:c_eeg + c_nirs]
    w1_d = w1[c_eeg + c_nirs:c_eeg + 2 * c_nirs]
    w1e_bd = jnp.zeros((eeg_width, batch * hid), jnp.float32)
    w1n_bd = jnp.zeros((nirs_width, batch * hid), jnp.float32)
    w2_bd = jnp.zeros((batch * hid, batch * n_classes), jnp.float32)
    for b in range(batch):
        w1e_bd = w1e_bd.at[b * c_eeg:(b + 1) * c_eeg, b * hid:(b + 1) * hid].set(w1_e)
        w1n_bd = w1n_bd.at[b * c_nirs:(b + 1) * c_nirs, b * hid:(b + 1) * hid].set(w1_o)
        w1n_bd = w1n_bd.at[(batch + b) * c_nirs:(batch + b + 1) * c_nirs,
                           b * hid:(b + 1) * hid].set(w1_d)
        w2_bd = w2_bd.at[b * hid:(b + 1) * hid, b * n_classes:(b + 1) * n_classes].set(w2)
    idx = jnp.arange(batch * n_classes)
    group = (idx[:, None] // n_classes == idx[None, :] // n_classes).astype(jnp.float32)

    weights = dict(eeg_w=eeg_w, eeg_b=eeg_b, nirs_w=nirs_w, nirs_b=nirs_b,
                   w1e=w1e_bd, w1n=w1n_bd, b1=jnp.tile(b1.reshape(1, -1), (1, batch)),
                   w2=w2_bd, b2=jnp.tile(b2.reshape(1, -1), (1, batch)), g=group)
    meta = dict(batch=batch, eeg_width=eeg_width, nirs_width=nirs_width,
                eeg_cfg=eeg_cfg, nirs_cfg=nirs_cfg,
                c_eeg=c_eeg, c_nirs=c_nirs, n_classes=n_classes)
    return weights, meta


# ---------------------------------------------------------------------------
# Pure-JAX f32 reference (unfused, im2col style) for correctness checking.
# ---------------------------------------------------------------------------

def _ref_block(x, blk):
    W, b, K, stride = blk
    Bn, L, c_in = x.shape
    pad = K // 2
    L_out = (L + 2 * pad - K) // stride + 1
    xp = jnp.pad(x, ((0, 0), (pad, pad), (0, 0)))
    taps = [lax.slice(xp, (0, k, 0), (Bn, k + stride * (L_out - 1) + 1, c_in), (1, stride, 1))
            for k in range(K)]
    cols = jnp.concatenate(taps, axis=-1).reshape(Bn * L_out, K * c_in)
    y = jnp.maximum(cols @ W + b[None, :], 0.0)
    return y.reshape(Bn, L_out, W.shape[1])


def _ref_stream(x_ncl, blocks):
    x = jnp.transpose(x_ncl, (0, 2, 1))
    for blk in blocks:
        x = _ref_block(x, blk)
    return jnp.mean(x, axis=1)


def forward_reference(params, eeg_x, oxy_x, deoxy_x):
    eeg_blocks, oxy_blocks, deoxy_blocks, (w1, b1, w2, b2) = params
    x = jnp.concatenate([_ref_stream(eeg_x, eeg_blocks),
                         _ref_stream(oxy_x, oxy_blocks),
                         _ref_stream(deoxy_x, deoxy_blocks)], axis=1)
    h = jnp.maximum(x @ w1 + b1[None, :], 0.0)
    logits = h @ w2 + b2[None, :]
    return jax.nn.softmax(logits, axis=-1)


# ---------------------------------------------------------------------------
# main
# ---------------------------------------------------------------------------

if __name__ == "__main__":
    B, E, N = 2, 4, 4          # batch, EEG channels, NIRS channels
    L_EEG, L_NIRS = 128, 32    # sequence lengths

    key = jax.random.PRNGKey(0)
    k_eeg, k_oxy, k_deoxy, k_params = jax.random.split(key, 4)
    EEG_x = jax.random.normal(k_eeg, (B, E, L_EEG), jnp.float32)
    NIRS_oxy_x = jax.random.normal(k_oxy, (B, N, L_NIRS), jnp.float32)
    NIRS_deoxy_x = jax.random.normal(k_deoxy, (B, N, L_NIRS), jnp.float32)

    eeg_cfg = [
        (E, 2 * E, 5, 4), (2 * E, 2 * E, 3, 1), (2 * E, 2 * E, 3, 1),
        (2 * E, 4 * E, 5, 4), (4 * E, 4 * E, 3, 1), (4 * E, 4 * E, 3, 1),
        (4 * E, 8 * E, 3, 2), (8 * E, 8 * E, 3, 1), (8 * E, 8 * E, 3, 1),
        (8 * E, 8 * E, 3, 2), (8 * E, 8 * E, 3, 1), (8 * E, 8 * E, 3, 1),
    ]
    nirs_cfg = [
        (N, 2 * N, 3, 2), (2 * N, 2 * N, 3, 1), (2 * N, 2 * N, 3, 1),
        (2 * N, 4 * N, 3, 1), (4 * N, 4 * N, 3, 1), (4 * N, 4 * N, 3, 1),
        (4 * N, 8 * N, 3, 2), (8 * N, 8 * N, 3, 1), (8 * N, 8 * N, 3, 1),
        (8 * N, 8 * N, 3, 1), (8 * N, 8 * N, 3, 1), (8 * N, 8 * N, 3, 1),
    ]

    k0, k1, k2, k3 = jax.random.split(k_params, 4)
    params = (
        init_net(k0, eeg_cfg),
        init_net(k1, nirs_cfg),
        init_net(k2, nirs_cfg),
        init_head(k3, 8 * E + 8 * N + 8 * N, 128, 2),
    )

    weights, meta = pack_params(params, B)          # one-time, eager packing
    fwd = jax.jit(functools.partial(pallas_forward, meta))
    out = jax.block_until_ready(fwd(weights, EEG_x, NIRS_oxy_x, NIRS_deoxy_x))

    ref = forward_reference(params, EEG_x, NIRS_oxy_x, NIRS_deoxy_x)

    assert out.shape == (B, 2), out.shape
    assert bool(jnp.all(jnp.isfinite(out)))
    assert bool(jnp.allclose(jnp.sum(out, axis=-1), 1.0, atol=1e-2))
    # bf16 stream matmuls vs f32 reference (identical bf16-snapped weights): loose tolerance.
    assert bool(jnp.allclose(out, ref, atol=2e-2, rtol=2e-2)), (out, ref)
    print("KERNEL_OK")
</pallas_src>

<mosaic_0001>
module attributes {stable_mosaic.version = 11 : i64} {
  func.func @_fused_forward_kernel(%arg0: memref<128x64xf32, #tpu.memory_space<vmem>>, %arg1: memref<32x128xf32, #tpu.memory_space<vmem>>, %arg2: memref<2560x64xbf16, #tpu.memory_space<vmem>>, %arg3: memref<12x64xf32, #tpu.memory_space<vmem>>, %arg4: memref<4608x128xbf16, #tpu.memory_space<any>>, %arg5: memref<12x128xf32, #tpu.memory_space<vmem>>, %arg6: memref<64x256xf32, #tpu.memory_space<vmem>>, %arg7: memref<128x256xf32, #tpu.memory_space<vmem>>, %arg8: memref<1x256xf32, #tpu.memory_space<vmem>>, %arg9: memref<256x4xf32, #tpu.memory_space<vmem>>, %arg10: memref<1x4xf32, #tpu.memory_space<vmem>>, %arg11: memref<4x4xf32, #tpu.memory_space<vmem>>, %arg12: memref<1x4xf32, #tpu.memory_space<vmem>>, %arg13: memref<136x64xf32, #tpu.memory_space<vmem>>, %arg14: memref<40x128xf32, #tpu.memory_space<vmem>>, %arg15: memref<4608x128xbf16, #tpu.memory_space<vmem>>, %arg16: memref<!tpu.dma_semaphore, #tpu.memory_space<semaphore_mem>>) attributes {dimension_semantics = [], scalar_prefetch = 0 : i64, scratch_operands = 4 : i64, tpu.core_type = #tpu.core_type<tc>} {
    tpu.enqueue_dma source(%arg4 : memref<4608x128xbf16, #tpu.memory_space<any>>) target(%arg15 : memref<4608x128xbf16, #tpu.memory_space<vmem>>) target_semaphore(%arg16 : memref<!tpu.dma_semaphore, #tpu.memory_space<semaphore_mem>>)
    %c0 = arith.constant 0 : index
    %c0_0 = arith.constant 0 : index
    %0 = vector.load %arg0[%c0, %c0_0] : memref<128x64xf32, #tpu.memory_space<vmem>>, vector<128x64xf32>
    %cst = arith.constant 0.000000e+00 : f32
    %1 = vector.broadcast %cst : f32 to vector<2x64xf32>
    %c0_1 = arith.constant 0 : index
    %c0_2 = arith.constant 0 : index
    %2 = vector.load %arg13[%c0_1, %c0_2] : memref<136x64xf32, #tpu.memory_space<vmem>>, vector<2x64xf32>
    tpu.vector_store %arg13[%c0_1, %c0_2], %1 {strides = array<i32>} : memref<136x64xf32, #tpu.memory_space<vmem>>, vector<2x64xf32>,
    %cst_3 = arith.constant 0.000000e+00 : f32
    %3 = vector.broadcast %cst_3 : f32 to vector<2x64xf32>
    %c130 = arith.constant 130 : index
    %c0_4 = arith.constant 0 : index
    %4 = vector.load %arg13[%c130, %c0_4] : memref<136x64xf32, #tpu.memory_space<vmem>>, vector<2x64xf32>
    tpu.vector_store %arg13[%c130, %c0_4], %3 {strides = array<i32>} : memref<136x64xf32, #tpu.memory_space<vmem>>, vector<2x64xf32>,
    %c2 = arith.constant 2 : index
    %c0_5 = arith.constant 0 : index
    %5 = vector.load %arg13[%c2, %c0_5] : memref<136x64xf32, #tpu.memory_space<vmem>>, vector<128x64xf32>
    tpu.vector_store %arg13[%c2, %c0_5], %0 {strides = array<i32>} : memref<136x64xf32, #tpu.memory_space<vmem>>, vector<128x64xf32>,
    %c0_6 = arith.constant 0 : index
    %c0_7 = arith.constant 0 : index
    %6 = tpu.strided_load %arg13[%c0_6, %c0_7] {strides = array<i32: 4, 1>} : memref<136x64xf32, #tpu.memory_space<vmem>>, vector<32x64xf32>
    %c1 = arith.constant 1 : index
    %c0_8 = arith.constant 0 : index
    %7 = tpu.strided_load %arg13[%c1, %c0_8] {strides = array<i32: 4, 1>} : memref<136x64xf32, #tpu.memory_space<vmem>>, vector<32x64xf32>
    %c2_9 = arith.constant 2 : index
    %c0_10 = arith.constant 0 : index
    %8 = tpu.strided_load %arg13[%c2_9, %c0_10] {strides = array<i32: 4, 1>} : memref<136x64xf32, #tpu.memory_space<vmem>>, vector<32x64xf32>
    %c3 = arith.constant 3 : index
    %c0_11 = arith.constant 0 : index
    %9 = tpu.strided_load %arg13[%c3, %c0_11] {strides = array<i32: 4, 1>} : memref<136x64xf32, #tpu.memory_space<vmem>>, vector<32x64xf32>
    %c4 = arith.constant 4 : index
    %c0_12 = arith.constant 0 : index
    %10 = tpu.strided_load %arg13[%c4, %c0_12] {strides = array<i32: 4, 1>} : memref<136x64xf32, #tpu.memory_space<vmem>>, vector<32x64xf32>
    %11 = tpu.concatenate %6, %7, %8, %9, %10 in 1 : vector<32x64xf32>, vector<32x64xf32>, vector<32x64xf32>, vector<32x64xf32>, vector<32x64xf32> -> vector<32x320xf32>
    %c0_13 = arith.constant 0 : index
    %c0_14 = arith.constant 0 : index
    %12 = vector.load %arg2[%c0_13, %c0_14] : memref<2560x64xbf16, #tpu.memory_space<vmem>>, vector<320x64xbf16>
    %13 = arith.truncf %11 : vector<32x320xf32> to vector<32x320xbf16>
    %cst_15 = arith.constant dense<0.000000e+00> : vector<32x64xf32>
    %14 = tpu.matmul %13, %12, %cst_15 {dimension_numbers = #tpu.dot_dimension_numbers<[1], [0], [0], [1], [0, 0, 1, 1], [], []>} : vector<32x320xbf16>, vector<320x64xbf16>, vector<32x64xf32> -> vector<32x64xf32>
    %c0_16 = arith.constant 0 : index
    %c0_17 = arith.constant 0 : index
    %15 = vector.load %arg3[%c0_16, %c0_17] : memref<12x64xf32, #tpu.memory_space<vmem>>, vector<1x64xf32>
    %16 = vector.broadcast %15 : vector<1x64xf32> to vector<32x64xf32>
    %17 = arith.addf %14, %16 : vector<32x64xf32>
    %cst_18 = arith.constant 0.000000e+00 : f32
    %18 = vector.broadcast %cst_18 : f32 to vector<32x64xf32>
    %19 = arith.maximumf %17, %18 : vector<32x64xf32>
    %cst_19 = arith.constant 0.000000e+00 : f32
    %20 = vector.broadcast %cst_19 : f32 to vector<1x64xf32>
    %c0_20 = arith.constant 0 : index
    %c0_21 = arith.constant 0 : index
    %21 = vector.load %arg13[%c0_20, %c0_21] : memref<136x64xf32, #tpu.memory_space<vmem>>, vector<1x64xf32>
    tpu.vector_store %arg13[%c0_20, %c0_21], %20 {strides = array<i32>} : memref<136x64xf32, #tpu.memory_space<vmem>>, vector<1x64xf32>,
    %cst_22 = arith.constant 0.000000e+00 : f32
    %22 = vector.broadcast %cst_22 : f32 to vector<1x64xf32>
    %c33 = arith.constant 33 : index
    %c0_23 = arith.constant 0 : index
    %23 = vector.load %arg13[%c33, %c0_23] : memref<136x64xf32, #tpu.memory_space<vmem>>, vector<1x64xf32>
    tpu.vector_store %arg13[%c33, %c0_23], %22 {strides = array<i32>} : memref<136x64xf32, #tpu.memory_space<vmem>>, vector<1x64xf32>,
    %c1_24 = arith.constant 1 : index
    %c0_25 = arith.constant 0 : index
    %24 = vector.load %arg13[%c1_24, %c0_25] : memref<136x64xf32, #tpu.memory_space<vmem>>, vector<32x64xf32>
    tpu.vector_store %arg13[%c1_24, %c0_25], %19 {strides = array<i32>} : memref<136x64xf32, #tpu.memory_space<vmem>>, vector<32x64xf32>,
    %c0_26 = arith.constant 0 : index
    %c0_27 = arith.constant 0 : index
    %25 = vector.load %arg13[%c0_26, %c0_27] : memref<136x64xf32, #tpu.memory_space<vmem>>, vector<32x64xf32>
    %c1_28 = arith.constant 1 : index
    %c0_29 = arith.constant 0 : index
    %26 = vector.load %arg13[%c1_28, %c0_29] : memref<136x64xf32, #tpu.memory_space<vmem>>, vector<32x64xf32>
    %c2_30 = arith.constant 2 : index
    %c0_31 = arith.constant 0 : index
    %27 = vector.load %arg13[%c2_30, %c0_31] : memref<136x64xf32, #tpu.memory_space<vmem>>, vector<32x64xf32>
    %28 = tpu.concatenate %25, %26, %27 in 1 : vector<32x64xf32>, vector<32x64xf32>, vector<32x64xf32> -> vector<32x192xf32>
    %c320 = arith.constant 320 : index
    %c0_32 = arith.constant 0 : index
    %29 = vector.load %arg2[%c320, %c0_32] : memref<2560x64xbf16, #tpu.memory_space<vmem>>, vector<192x64xbf16>
    %30 = arith.truncf %28 : vector<32x192xf32> to vector<32x192xbf16>
    %cst_33 = arith.constant dense<0.000000e+00> : vector<32x64xf32>
    %31 = tpu.matmul %30, %29, %cst_33 {dimension_numbers = #tpu.dot_dimension_numbers<[1], [0], [0], [1], [0, 0, 1, 1], [], []>} : vector<32x192xbf16>, vector<192x64xbf16>, vector<32x64xf32> -> vector<32x64xf32>
    %c1_34 = arith.constant 1 : index
    %c0_35 = arith.constant 0 : index
    %32 = vector.load %arg3[%c1_34, %c0_35] : memref<12x64xf32, #tpu.memory_space<vmem>>, vector<1x64xf32>
    %33 = vector.broadcast %32 : vector<1x64xf32> to vector<32x64xf32>
    %34 = arith.addf %31, %33 : vector<32x64xf32>
    %cst_36 = arith.constant 0.000000e+00 : f32
    %35 = vector.broadcast %cst_36 : f32 to vector<32x64xf32>
    %36 = arith.maximumf %34, %35 : vector<32x64xf32>
    %cst_37 = arith.constant 0.000000e+00 : f32
    %37 = vector.broadcast %cst_37 : f32 to vector<1x64xf32>
    %c0_38 = arith.constant 0 : index
    %c0_39 = arith.constant 0 : index
    %38 = vector.load %arg13[%c0_38, %c0_39] : memref<136x64xf32, #tpu.memory_space<vmem>>, vector<1x64xf32>
    tpu.vector_store %arg13[%c0_38, %c0_39], %37 {strides = array<i32>} : memref<136x64xf32, #tpu.memory_space<vmem>>, vector<1x64xf32>,
    %cst_40 = arith.constant 0.000000e+00 : f32
    %39 = vector.broadcast %cst_40 : f32 to vector<1x64xf32>
    %c33_41 = arith.constant 33 : index
    %c0_42 = arith.constant 0 : index
    %40 = vector.load %arg13[%c33_41, %c0_42] : memref<136x64xf32, #tpu.memory_space<vmem>>, vector<1x64xf32>
    tpu.vector_store %arg13[%c33_41, %c0_42], %39 {strides = array<i32>} : memref<136x64xf32, #tpu.memory_space<vmem>>, vector<1x64xf32>,
    %c1_43 = arith.constant 1 : index
    %c0_44 = arith.constant 0 : index
    %41 = vector.load %arg13[%c1_43, %c0_44] : memref<136x64xf32, #tpu.memory_space<vmem>>, vector<32x64xf32>
    tpu.vector_store %arg13[%c1_43, %c0_44], %36 {strides = array<i32>} : memref<136x64xf32, #tpu.memory_space<vmem>>, vector<32x64xf32>,
    %c0_45 = arith.constant 0 : index
    %c0_46 = arith.constant 0 : index
    %42 = vector.load %arg13[%c0_45, %c0_46] : memref<136x64xf32, #tpu.memory_space<vmem>>, vector<32x64xf32>
    %c1_47 = arith.constant 1 : index
    %c0_48 = arith.constant 0 : index
    %43 = vector.load %arg13[%c1_47, %c0_48] : memref<136x64xf32, #tpu.memory_space<vmem>>, vector<32x64xf32>
    %c2_49 = arith.constant 2 : index
    %c0_50 = arith.constant 0 : index
    %44 = vector.load %arg13[%c2_49, %c0_50] : memref<136x64xf32, #tpu.memory_space<vmem>>, vector<32x64xf32>
    %45 = tpu.concatenate %42, %43, %44 in 1 : vector<32x64xf32>, vector<32x64xf32>, vector<32x64xf32> -> vector<32x192xf32>
    %c512 = arith.constant 512 : index
    %c0_51 = arith.constant 0 : index
    %46 = vector.load %arg2[%c512, %c0_51] : memref<2560x64xbf16, #tpu.memory_space<vmem>>, vector<192x64xbf16>
    %47 = arith.truncf %45 : vector<32x192xf32> to vector<32x192xbf16>
    %cst_52 = arith.constant dense<0.000000e+00> : vector<32x64xf32>
    %48 = tpu.matmul %47, %46, %cst_52 {dimension_numbers = #tpu.dot_dimension_numbers<[1], [0], [0], [1], [0, 0, 1, 1], [], []>} : vector<32x192xbf16>, vector<192x64xbf16>, vector<32x64xf32> -> vector<32x64xf32>
    %c2_53 = arith.constant 2 : index
    %c0_54 = arith.constant 0 : index
    %49 = vector.load %arg3[%c2_53, %c0_54] : memref<12x64xf32, #tpu.memory_space<vmem>>, vector<1x64xf32>
    %50 = vector.broadcast %49 : vector<1x64xf32> to vector<32x64xf32>
    %51 = arith.addf %48, %50 : vector<32x64xf32>
    %cst_55 = arith.constant 0.000000e+00 : f32
    %52 = vector.broadcast %cst_55 : f32 to vector<32x64xf32>
    %53 = arith.maximumf %51, %52 : vector<32x64xf32>
    %cst_56 = arith.constant 0.000000e+00 : f32
    %54 = vector.broadcast %cst_56 : f32 to vector<2x64xf32>
    %c0_57 = arith.constant 0 : index
    %c0_58 = arith.constant 0 : index
    %55 = vector.load %arg13[%c0_57, %c0_58] : memref<136x64xf32, #tpu.memory_space<vmem>>, vector<2x64xf32>
    tpu.vector_store %arg13[%c0_57, %c0_58], %54 {strides = array<i32>} : memref<136x64xf32, #tpu.memory_space<vmem>>, vector<2x64xf32>,
    %cst_59 = arith.constant 0.000000e+00 : f32
    %56 = vector.broadcast %cst_59 : f32 to vector<2x64xf32>
    %c34 = arith.constant 34 : index
    %c0_60 = arith.constant 0 : index
    %57 = vector.load %arg13[%c34, %c0_60] : memref<136x64xf32, #tpu.memory_space<vmem>>, vector<2x64xf32>
    tpu.vector_store %arg13[%c34, %c0_60], %56 {strides = array<i32>} : memref<136x64xf32, #tpu.memory_space<vmem>>, vector<2x64xf32>,
    %c2_61 = arith.constant 2 : index
    %c0_62 = arith.constant 0 : index
    %58 = vector.load %arg13[%c2_61, %c0_62] : memref<136x64xf32, #tpu.memory_space<vmem>>, vector<32x64xf32>
    tpu.vector_store %arg13[%c2_61, %c0_62], %53 {strides = array<i32>} : memref<136x64xf32, #tpu.memory_space<vmem>>, vector<32x64xf32>,
    %c0_63 = arith.constant 0 : index
    %c0_64 = arith.constant 0 : index
    %59 = tpu.strided_load %arg13[%c0_63, %c0_64] {strides = array<i32: 4, 1>} : memref<136x64xf32, #tpu.memory_space<vmem>>, vector<8x64xf32>
    %c1_65 = arith.constant 1 : index
    %c0_66 = arith.constant 0 : index
    %60 = tpu.strided_load %arg13[%c1_65, %c0_66] {strides = array<i32: 4, 1>} : memref<136x64xf32, #tpu.memory_space<vmem>>, vector<8x64xf32>
    %c2_67 = arith.constant 2 : index
    %c0_68 = arith.constant 0 : index
    %61 = tpu.strided_load %arg13[%c2_67, %c0_68] {strides = array<i32: 4, 1>} : memref<136x64xf32, #tpu.memory_space<vmem>>, vector<8x64xf32>
    %c3_69 = arith.constant 3 : index
    %c0_70 = arith.constant 0 : index
    %62 = tpu.strided_load %arg13[%c3_69, %c0_70] {strides = array<i32: 4, 1>} : memref<136x64xf32, #tpu.memory_space<vmem>>, vector<8x64xf32>
    %c4_71 = arith.constant 4 : index
    %c0_72 = arith.constant 0 : index
    %63 = tpu.strided_load %arg13[%c4_71, %c0_72] {strides = array<i32: 4, 1>} : memref<136x64xf32, #tpu.memory_space<vmem>>, vector<8x64xf32>
    %64 = tpu.concatenate %59, %60, %61, %62, %63 in 1 : vector<8x64xf32>, vector<8x64xf32>, vector<8x64xf32>, vector<8x64xf32>, vector<8x64xf32> -> vector<8x320xf32>
    %c704 = arith.constant 704 : index
    %c0_73 = arith.constant 0 : index
    %65 = vector.load %arg2[%c704, %c0_73] : memref<2560x64xbf16, #tpu.memory_space<vmem>>, vector<320x64xbf16>
    %66 = arith.truncf %64 : vector<8x320xf32> to vector<8x320xbf16>
    %cst_74 = arith.constant dense<0.000000e+00> : vector<8x64xf32>
    %67 = tpu.matmul %66, %65, %cst_74 {dimension_numbers = #tpu.dot_dimension_numbers<[1], [0], [0], [1], [0, 0, 1, 1], [], []>} : vector<8x320xbf16>, vector<320x64xbf16>, vector<8x64xf32> -> vector<8x64xf32>
    %c3_75 = arith.constant 3 : index
    %c0_76 = arith.constant 0 : index
    %68 = vector.load %arg3[%c3_75, %c0_76] : memref<12x64xf32, #tpu.memory_space<vmem>>, vector<1x64xf32>
    %69 = vector.broadcast %68 : vector<1x64xf32> to vector<8x64xf32>
    %70 = arith.addf %67, %69 : vector<8x64xf32>
    %cst_77 = arith.constant 0.000000e+00 : f32
    %71 = vector.broadcast %cst_77 : f32 to vector<8x64xf32>
    %72 = arith.maximumf %70, %71 : vector<8x64xf32>
    %cst_78 = arith.constant 0.000000e+00 : f32
    %73 = vector.broadcast %cst_78 : f32 to vector<1x64xf32>
    %c0_79 = arith.constant 0 : index
    %c0_80 = arith.constant 0 : index
    %74 = vector.load %arg13[%c0_79, %c0_80] : memref<136x64xf32, #tpu.memory_space<vmem>>, vector<1x64xf32>
    tpu.vector_store %arg13[%c0_79, %c0_80], %73 {strides = array<i32>} : memref<136x64xf32, #tpu.memory_space<vmem>>, vector<1x64xf32>,
    %cst_81 = arith.constant 0.000000e+00 : f32
    %75 = vector.broadcast %cst_81 : f32 to vector<1x64xf32>
    %c9 = arith.constant 9 : index
    %c0_82 = arith.constant 0 : index
    %76 = vector.load %arg13[%c9, %c0_82] : memref<136x64xf32, #tpu.memory_space<vmem>>, vector<1x64xf32>
    tpu.vector_store %arg13[%c9, %c0_82], %75 {strides = array<i32>} : memref<136x64xf32, #tpu.memory_space<vmem>>, vector<1x64xf32>,
    %c1_83 = arith.constant 1 : index
    %c0_84 = arith.constant 0 : index
    %77 = vector.load %arg13[%c1_83, %c0_84] : memref<136x64xf32, #tpu.memory_space<vmem>>, vector<8x64xf32>
    tpu.vector_store %arg13[%c1_83, %c0_84], %72 {strides = array<i32>} : memref<136x64xf32, #tpu.memory_space<vmem>>, vector<8x64xf32>,
    %c0_85 = arith.constant 0 : index
    %c0_86 = arith.constant 0 : index
    %78 = vector.load %arg13[%c0_85, %c0_86] : memref<136x64xf32, #tpu.memory_space<vmem>>, vector<8x64xf32>
    %c1_87 = arith.constant 1 : index
    %c0_88 = arith.constant 0 : index
    %79 = vector.load %arg13[%c1_87, %c0_88] : memref<136x64xf32, #tpu.memory_space<vmem>>, vector<8x64xf32>
    %c2_89 = arith.constant 2 : index
    %c0_90 = arith.constant 0 : index
    %80 = vector.load %arg13[%c2_89, %c0_90] : memref<136x64xf32, #tpu.memory_space<vmem>>, vector<8x64xf32>
    %81 = tpu.concatenate %78, %79, %80 in 1 : vector<8x64xf32>, vector<8x64xf32>, vector<8x64xf32> -> vector<8x192xf32>
    %c1024 = arith.constant 1024 : index
    %c0_91 = arith.constant 0 : index
    %82 = vector.load %arg2[%c1024, %c0_91] : memref<2560x64xbf16, #tpu.memory_space<vmem>>, vector<192x64xbf16>
    %83 = arith.truncf %81 : vector<8x192xf32> to vector<8x192xbf16>
    %cst_92 = arith.constant dense<0.000000e+00> : vector<8x64xf32>
    %84 = tpu.matmul %83, %82, %cst_92 {dimension_numbers = #tpu.dot_dimension_numbers<[1], [0], [0], [1], [0, 0, 1, 1], [], []>} : vector<8x192xbf16>, vector<192x64xbf16>, vector<8x64xf32> -> vector<8x64xf32>
    %c4_93 = arith.constant 4 : index
    %c0_94 = arith.constant 0 : index
    %85 = vector.load %arg3[%c4_93, %c0_94] : memref<12x64xf32, #tpu.memory_space<vmem>>, vector<1x64xf32>
    %86 = vector.broadcast %85 : vector<1x64xf32> to vector<8x64xf32>
    %87 = arith.addf %84, %86 : vector<8x64xf32>
    %cst_95 = arith.constant 0.000000e+00 : f32
    %88 = vector.broadcast %cst_95 : f32 to vector<8x64xf32>
    %89 = arith.maximumf %87, %88 : vector<8x64xf32>
    %cst_96 = arith.constant 0.000000e+00 : f32
    %90 = vector.broadcast %cst_96 : f32 to vector<1x64xf32>
    %c0_97 = arith.constant 0 : index
    %c0_98 = arith.constant 0 : index
    %91 = vector.load %arg13[%c0_97, %c0_98] : memref<136x64xf32, #tpu.memory_space<vmem>>, vector<1x64xf32>
    tpu.vector_store %arg13[%c0_97, %c0_98], %90 {strides = array<i32>} : memref<136x64xf32, #tpu.memory_space<vmem>>, vector<1x64xf32>,
    %cst_99 = arith.constant 0.000000e+00 : f32
    %92 = vector.broadcast %cst_99 : f32 to vector<1x64xf32>
    %c9_100 = arith.constant 9 : index
    %c0_101 = arith.constant 0 : index
    %93 = vector.load %arg13[%c9_100, %c0_101] : memref<136x64xf32, #tpu.memory_space<vmem>>, vector<1x64xf32>
    tpu.vector_store %arg13[%c9_100, %c0_101], %92 {strides = array<i32>} : memref<136x64xf32, #tpu.memory_space<vmem>>, vector<1x64xf32>,
    %c1_102 = arith.constant 1 : index
    %c0_103 = arith.constant 0 : index
    %94 = vector.load %arg13[%c1_102, %c0_103] : memref<136x64xf32, #tpu.memory_space<vmem>>, vector<8x64xf32>
    tpu.vector_store %arg13[%c1_102, %c0_103], %89 {strides = array<i32>} : memref<136x64xf32, #tpu.memory_space<vmem>>, vector<8x64xf32>,
    %c0_104 = arith.constant 0 : index
    %c0_105 = arith.constant 0 : index
    %95 = vector.load %arg13[%c0_104, %c0_105] : memref<136x64xf32, #tpu.memory_space<vmem>>, vector<8x64xf32>
    %c1_106 = arith.constant 1 : index
    %c0_107 = arith.constant 0 : index
    %96 = vector.load %arg13[%c1_106, %c0_107] : memref<136x64xf32, #tpu.memory_space<vmem>>, vector<8x64xf32>
    %c2_108 = arith.constant 2 : index
    %c0_109 = arith.constant 0 : index
    %97 = vector.load %arg13[%c2_108, %c0_109] : memref<136x64xf32, #tpu.memory_space<vmem>>, vector<8x64xf32>
    %98 = tpu.concatenate %95, %96, %97 in 1 : vector<8x64xf32>, vector<8x64xf32>, vector<8x64xf32> -> vector<8x192xf32>
    %c1216 = arith.constant 1216 : index
    %c0_110 = arith.constant 0 : index
    %99 = vector.load %arg2[%c1216, %c0_110] : memref<2560x64xbf16, #tpu.memory_space<vmem>>, vector<192x64xbf16>
    %100 = arith.truncf %98 : vector<8x192xf32> to vector<8x192xbf16>
    %cst_111 = arith.constant dense<0.000000e+00> : vector<8x64xf32>
    %101 = tpu.matmul %100, %99, %cst_111 {dimension_numbers = #tpu.dot_dimension_numbers<[1], [0], [0], [1], [0, 0, 1, 1], [], []>} : vector<8x192xbf16>, vector<192x64xbf16>, vector<8x64xf32> -> vector<8x64xf32>
    %c5 = arith.constant 5 : index
    %c0_112 = arith.constant 0 : index
    %102 = vector.load %arg3[%c5, %c0_112] : memref<12x64xf32, #tpu.memory_space<vmem>>, vector<1x64xf32>
    %103 = vector.broadcast %102 : vector<1x64xf32> to vector<8x64xf32>
    %104 = arith.addf %101, %103 : vector<8x64xf32>
    %cst_113 = arith.constant 0.000000e+00 : f32
    %105 = vector.broadcast %cst_113 : f32 to vector<8x64xf32>
    %106 = arith.maximumf %104, %105 : vector<8x64xf32>
    %cst_114 = arith.constant 0.000000e+00 : f32
    %107 = vector.broadcast %cst_114 : f32 to vector<1x64xf32>
    %c0_115 = arith.constant 0 : index
    %c0_116 = arith.constant 0 : index
    %108 = vector.load %arg13[%c0_115, %c0_116] : memref<136x64xf32, #tpu.memory_space<vmem>>, vector<1x64xf32>
    tpu.vector_store %arg13[%c0_115, %c0_116], %107 {strides = array<i32>} : memref<136x64xf32, #tpu.memory_space<vmem>>, vector<1x64xf32>,
    %cst_117 = arith.constant 0.000000e+00 : f32
    %109 = vector.broadcast %cst_117 : f32 to vector<1x64xf32>
    %c9_118 = arith.constant 9 : index
    %c0_119 = arith.constant 0 : index
    %110 = vector.load %arg13[%c9_118, %c0_119] : memref<136x64xf32, #tpu.memory_space<vmem>>, vector<1x64xf32>
    tpu.vector_store %arg13[%c9_118, %c0_119], %109 {strides = array<i32>} : memref<136x64xf32, #tpu.memory_space<vmem>>, vector<1x64xf32>,
    %c1_120 = arith.constant 1 : index
    %c0_121 = arith.constant 0 : index
    %111 = vector.load %arg13[%c1_120, %c0_121] : memref<136x64xf32, #tpu.memory_space<vmem>>, vector<8x64xf32>
    tpu.vector_store %arg13[%c1_120, %c0_121], %106 {strides = array<i32>} : memref<136x64xf32, #tpu.memory_space<vmem>>, vector<8x64xf32>,
    %c0_122 = arith.constant 0 : index
    %c0_123 = arith.constant 0 : index
    %112 = tpu.strided_load %arg13[%c0_122, %c0_123] {strides = array<i32: 2, 1>} : memref<136x64xf32, #tpu.memory_space<vmem>>, vector<4x64xf32>
    %c1_124 = arith.constant 1 : index
    %c0_125 = arith.constant 0 : index
    %113 = tpu.strided_load %arg13[%c1_124, %c0_125] {strides = array<i32: 2, 1>} : memref<136x64xf32, #tpu.memory_space<vmem>>, vector<4x64xf32>
    %c2_126 = arith.constant 2 : index
    %c0_127 = arith.constant 0 : index
    %114 = tpu.strided_load %arg13[%c2_126, %c0_127] {strides = array<i32: 2, 1>} : memref<136x64xf32, #tpu.memory_space<vmem>>, vector<4x64xf32>
    %115 = tpu.concatenate %112, %113, %114 in 1 : vector<4x64xf32>, vector<4x64xf32>, vector<4x64xf32> -> vector<4x192xf32>
    %c1408 = arith.constant 1408 : index
    %c0_128 = arith.constant 0 : index
    %116 = vector.load %arg2[%c1408, %c0_128] : memref<2560x64xbf16, #tpu.memory_space<vmem>>, vector<192x64xbf16>
    %117 = arith.truncf %115 : vector<4x192xf32> to vector<4x192xbf16>
    %cst_129 = arith.constant dense<0.000000e+00> : vector<4x64xf32>
    %118 = tpu.matmul %117, %116, %cst_129 {dimension_numbers = #tpu.dot_dimension_numbers<[1], [0], [0], [1], [0, 0, 1, 1], [], []>} : vector<4x192xbf16>, vector<192x64xbf16>, vector<4x64xf32> -> vector<4x64xf32>
    %c6 = arith.constant 6 : index
    %c0_130 = arith.constant 0 : index
    %119 = vector.load %arg3[%c6, %c0_130] : memref<12x64xf32, #tpu.memory_space<vmem>>, vector<1x64xf32>
    %120 = vector.broadcast %119 : vector<1x64xf32> to vector<4x64xf32>
    %121 = arith.addf %118, %120 : vector<4x64xf32>
    %cst_131 = arith.constant 0.000000e+00 : f32
    %122 = vector.broadcast %cst_131 : f32 to vector<4x64xf32>
    %123 = arith.maximumf %121, %122 : vector<4x64xf32>
    %cst_132 = arith.constant 0.000000e+00 : f32
    %124 = vector.broadcast %cst_132 : f32 to vector<1x64xf32>
    %c0_133 = arith.constant 0 : index
    %c0_134 = arith.constant 0 : index
    %125 = vector.load %arg13[%c0_133, %c0_134] : memref<136x64xf32, #tpu.memory_space<vmem>>, vector<1x64xf32>
    tpu.vector_store %arg13[%c0_133, %c0_134], %124 {strides = array<i32>} : memref<136x64xf32, #tpu.memory_space<vmem>>, vector<1x64xf32>,
    %cst_135 = arith.constant 0.000000e+00 : f32
    %126 = vector.broadcast %cst_135 : f32 to vector<1x64xf32>
    %c5_136 = arith.constant 5 : index
    %c0_137 = arith.constant 0 : index
    %127 = vector.load %arg13[%c5_136, %c0_137] : memref<136x64xf32, #tpu.memory_space<vmem>>, vector<1x64xf32>
    tpu.vector_store %arg13[%c5_136, %c0_137], %126 {strides = array<i32>} : memref<136x64xf32, #tpu.memory_space<vmem>>, vector<1x64xf32>,
    %c1_138 = arith.constant 1 : index
    %c0_139 = arith.constant 0 : index
    %128 = vector.load %arg13[%c1_138, %c0_139] : memref<136x64xf32, #tpu.memory_space<vmem>>, vector<4x64xf32>
    tpu.vector_store %arg13[%c1_138, %c0_139], %123 {strides = array<i32>} : memref<136x64xf32, #tpu.memory_space<vmem>>, vector<4x64xf32>,
    %c0_140 = arith.constant 0 : index
    %c0_141 = arith.constant 0 : index
    %129 = vector.load %arg13[%c0_140, %c0_141] : memref<136x64xf32, #tpu.memory_space<vmem>>, vector<4x64xf32>
    %c1_142 = arith.constant 1 : index
    %c0_143 = arith.constant 0 : index
    %130 = vector.load %arg13[%c1_142, %c0_143] : memref<136x64xf32, #tpu.memory_space<vmem>>, vector<4x64xf32>
    %c2_144 = arith.constant 2 : index
    %c0_145 = arith.constant 0 : index
    %131 = vector.load %arg13[%c2_144, %c0_145] : memref<136x64xf32, #tpu.memory_space<vmem>>, vector<4x64xf32>
    %132 = tpu.concatenate %129, %130, %131 in 1 : vector<4x64xf32>, vector<4x64xf32>, vector<4x64xf32> -> vector<4x192xf32>
    %c1600 = arith.constant 1600 : index
    %c0_146 = arith.constant 0 : index
    %133 = vector.load %arg2[%c1600, %c0_146] : memref<2560x64xbf16, #tpu.memory_space<vmem>>, vector<192x64xbf16>
    %134 = arith.truncf %132 : vector<4x192xf32> to vector<4x192xbf16>
    %cst_147 = arith.constant dense<0.000000e+00> : vector<4x64xf32>
    %135 = tpu.matmul %134, %133, %cst_147 {dimension_numbers = #tpu.dot_dimension_numbers<[1], [0], [0], [1], [0, 0, 1, 1], [], []>} : vector<4x192xbf16>, vector<192x64xbf16>, vector<4x64xf32> -> vector<4x64xf32>
    %c7 = arith.constant 7 : index
    %c0_148 = arith.constant 0 : index
    %136 = vector.load %arg3[%c7, %c0_148] : memref<12x64xf32, #tpu.memory_space<vmem>>, vector<1x64xf32>
    %137 = vector.broadcast %136 : vector<1x64xf32> to vector<4x64xf32>
    %138 = arith.addf %135, %137 : vector<4x64xf32>
    %cst_149 = arith.constant 0.000000e+00 : f32
    %139 = vector.broadcast %cst_149 : f32 to vector<4x64xf32>
    %140 = arith.maximumf %138, %139 : vector<4x64xf32>
    %cst_150 = arith.constant 0.000000e+00 : f32
    %141 = vector.broadcast %cst_150 : f32 to vector<1x64xf32>
    %c0_151 = arith.constant 0 : index
    %c0_152 = arith.constant 0 : index
    %142 = vector.load %arg13[%c0_151, %c0_152] : memref<136x64xf32, #tpu.memory_space<vmem>>, vector<1x64xf32>
    tpu.vector_store %arg13[%c0_151, %c0_152], %141 {strides = array<i32>} : memref<136x64xf32, #tpu.memory_space<vmem>>, vector<1x64xf32>,
    %cst_153 = arith.constant 0.000000e+00 : f32
    %143 = vector.broadcast %cst_153 : f32 to vector<1x64xf32>
    %c5_154 = arith.constant 5 : index
    %c0_155 = arith.constant 0 : index
    %144 = vector.load %arg13[%c5_154, %c0_155] : memref<136x64xf32, #tpu.memory_space<vmem>>, vector<1x64xf32>
    tpu.vector_store %arg13[%c5_154, %c0_155], %143 {strides = array<i32>} : memref<136x64xf32, #tpu.memory_space<vmem>>, vector<1x64xf32>,
    %c1_156 = arith.constant 1 : index
    %c0_157 = arith.constant 0 : index
    %145 = vector.load %arg13[%c1_156, %c0_157] : memref<136x64xf32, #tpu.memory_space<vmem>>, vector<4x64xf32>
    tpu.vector_store %arg13[%c1_156, %c0_157], %140 {strides = array<i32>} : memref<136x64xf32, #tpu.memory_space<vmem>>, vector<4x64xf32>,
    %c0_158 = arith.constant 0 : index
    %c0_159 = arith.constant 0 : index
    %146 = vector.load %arg13[%c0_158, %c0_159] : memref<136x64xf32, #tpu.memory_space<vmem>>, vector<4x64xf32>
    %c1_160 = arith.constant 1 : index
    %c0_161 = arith.constant 0 : index
    %147 = vector.load %arg13[%c1_160, %c0_161] : memref<136x64xf32, #tpu.memory_space<vmem>>, vector<4x64xf32>
    %c2_162 = arith.constant 2 : index
    %c0_163 = arith.constant 0 : index
    %148 = vector.load %arg13[%c2_162, %c0_163] : memref<136x64xf32, #tpu.memory_space<vmem>>, vector<4x64xf32>
    %149 = tpu.concatenate %146, %147, %148 in 1 : vector<4x64xf32>, vector<4x64xf32>, vector<4x64xf32> -> vector<4x192xf32>
    %c1792 = arith.constant 1792 : index
    %c0_164 = arith.constant 0 : index
    %150 = vector.load %arg2[%c1792, %c0_164] : memref<2560x64xbf16, #tpu.memory_space<vmem>>, vector<192x64xbf16>
    %151 = arith.truncf %149 : vector<4x192xf32> to vector<4x192xbf16>
    %cst_165 = arith.constant dense<0.000000e+00> : vector<4x64xf32>
    %152 = tpu.matmul %151, %150, %cst_165 {dimension_numbers = #tpu.dot_dimension_numbers<[1], [0], [0], [1], [0, 0, 1, 1], [], []>} : vector<4x192xbf16>, vector<192x64xbf16>, vector<4x64xf32> -> vector<4x64xf32>
    %c8 = arith.constant 8 : index
    %c0_166 = arith.constant 0 : index
    %153 = vector.load %arg3[%c8, %c0_166] : memref<12x64xf32, #tpu.memory_space<vmem>>, vector<1x64xf32>
    %154 = vector.broadcast %153 : vector<1x64xf32> to vector<4x64xf32>
    %155 = arith.addf %152, %154 : vector<4x64xf32>
    %cst_167 = arith.constant 0.000000e+00 : f32
    %156 = vector.broadcast %cst_167 : f32 to vector<4x64xf32>
    %157 = arith.maximumf %155, %156 : vector<4x64xf32>
    %cst_168 = arith.constant 0.000000e+00 : f32
    %158 = vector.broadcast %cst_168 : f32 to vector<1x64xf32>
    %c0_169 = arith.constant 0 : index
    %c0_170 = arith.constant 0 : index
    %159 = vector.load %arg13[%c0_169, %c0_170] : memref<136x64xf32, #tpu.memory_space<vmem>>, vector<1x64xf32>
    tpu.vector_store %arg13[%c0_169, %c0_170], %158 {strides = array<i32>} : memref<136x64xf32, #tpu.memory_space<vmem>>, vector<1x64xf32>,
    %cst_171 = arith.constant 0.000000e+00 : f32
    %160 = vector.broadcast %cst_171 : f32 to vector<1x64xf32>
    %c5_172 = arith.constant 5 : index
    %c0_173 = arith.constant 0 : index
    %161 = vector.load %arg13[%c5_172, %c0_173] : memref<136x64xf32, #tpu.memory_space<vmem>>, vector<1x64xf32>
    tpu.vector_store %arg13[%c5_172, %c0_173], %160 {strides = array<i32>} : memref<136x64xf32, #tpu.memory_space<vmem>>, vector<1x64xf32>,
    %c1_174 = arith.constant 1 : index
    %c0_175 = arith.constant 0 : index
    %162 = vector.load %arg13[%c1_174, %c0_175] : memref<136x64xf32, #tpu.memory_space<vmem>>, vector<4x64xf32>
    tpu.vector_store %arg13[%c1_174, %c0_175], %157 {strides = array<i32>} : memref<136x64xf32, #tpu.memory_space<vmem>>, vector<4x64xf32>,
    %c0_176 = arith.constant 0 : index
    %c0_177 = arith.constant 0 : index
    %163 = tpu.strided_load %arg13[%c0_176, %c0_177] {strides = array<i32: 2, 1>} : memref<136x64xf32, #tpu.memory_space<vmem>>, vector<2x64xf32>
    %c1_178 = arith.constant 1 : index
    %c0_179 = arith.constant 0 : index
    %164 = tpu.strided_load %arg13[%c1_178, %c0_179] {strides = array<i32: 2, 1>} : memref<136x64xf32, #tpu.memory_space<vmem>>, vector<2x64xf32>
    %c2_180 = arith.constant 2 : index
    %c0_181 = arith.constant 0 : index
    %165 = tpu.strided_load %arg13[%c2_180, %c0_181] {strides = array<i32: 2, 1>} : memref<136x64xf32, #tpu.memory_space<vmem>>, vector<2x64xf32>
    %166 = tpu.concatenate %163, %164, %165 in 1 : vector<2x64xf32>, vector<2x64xf32>, vector<2x64xf32> -> vector<2x192xf32>
    %c1984 = arith.constant 1984 : index
    %c0_182 = arith.constant 0 : index
    %167 = vector.load %arg2[%c1984, %c0_182] : memref<2560x64xbf16, #tpu.memory_space<vmem>>, vector<192x64xbf16>
    %168 = arith.truncf %166 : vector<2x192xf32> to vector<2x192xbf16>
    %cst_183 = arith.constant dense<0.000000e+00> : vector<2x64xf32>
    %169 = tpu.matmul %168, %167, %cst_183 {dimension_numbers = #tpu.dot_dimension_numbers<[1], [0], [0], [1], [0, 0, 1, 1], [], []>} : vector<2x192xbf16>, vector<192x64xbf16>, vector<2x64xf32> -> vector<2x64xf32>
    %c9_184 = arith.constant 9 : index
    %c0_185 = arith.constant 0 : index
    %170 = vector.load %arg3[%c9_184, %c0_185] : memref<12x64xf32, #tpu.memory_space<vmem>>, vector<1x64xf32>
    %171 = vector.broadcast %170 : vector<1x64xf32> to vector<2x64xf32>
    %172 = arith.addf %169, %171 : vector<2x64xf32>
    %cst_186 = arith.constant 0.000000e+00 : f32
    %173 = vector.broadcast %cst_186 : f32 to vector<2x64xf32>
    %174 = arith.maximumf %172, %173 : vector<2x64xf32>
    %cst_187 = arith.constant 0.000000e+00 : f32
    %175 = vector.broadcast %cst_187 : f32 to vector<1x64xf32>
    %c0_188 = arith.constant 0 : index
    %c0_189 = arith.constant 0 : index
    %176 = vector.load %arg13[%c0_188, %c0_189] : memref<136x64xf32, #tpu.memory_space<vmem>>, vector<1x64xf32>
    tpu.vector_store %arg13[%c0_188, %c0_189], %175 {strides = array<i32>} : memref<136x64xf32, #tpu.memory_space<vmem>>, vector<1x64xf32>,
    %cst_190 = arith.constant 0.000000e+00 : f32
    %177 = vector.broadcast %cst_190 : f32 to vector<1x64xf32>
    %c3_191 = arith.constant 3 : index
    %c0_192 = arith.constant 0 : index
    %178 = vector.load %arg13[%c3_191, %c0_192] : memref<136x64xf32, #tpu.memory_space<vmem>>, vector<1x64xf32>
    tpu.vector_store %arg13[%c3_191, %c0_192], %177 {strides = array<i32>} : memref<136x64xf32, #tpu.memory_space<vmem>>, vector<1x64xf32>,
    %c1_193 = arith.constant 1 : index
    %c0_194 = arith.constant 0 : index
    %179 = vector.load %arg13[%c1_193, %c0_194] : memref<136x64xf32, #tpu.memory_space<vmem>>, vector<2x64xf32>
    tpu.vector_store %arg13[%c1_193, %c0_194], %174 {strides = array<i32>} : memref<136x64xf32, #tpu.memory_space<vmem>>, vector<2x64xf32>,
    %c0_195 = arith.constant 0 : index
    %c0_196 = arith.constant 0 : index
    %180 = vector.load %arg13[%c0_195, %c0_196] : memref<136x64xf32, #tpu.memory_space<vmem>>, vector<2x64xf32>
    %c1_197 = arith.constant 1 : index
    %c0_198 = arith.constant 0 : index
    %181 = vector.load %arg13[%c1_197, %c0_198] : memref<136x64xf32, #tpu.memory_space<vmem>>, vector<2x64xf32>
    %c2_199 = arith.constant 2 : index
    %c0_200 = arith.constant 0 : index
    %182 = vector.load %arg13[%c2_199, %c0_200] : memref<136x64xf32, #tpu.memory_space<vmem>>, vector<2x64xf32>
    %183 = tpu.concatenate %180, %181, %182 in 1 : vector<2x64xf32>, vector<2x64xf32>, vector<2x64xf32> -> vector<2x192xf32>
    %c2176 = arith.constant 2176 : index
    %c0_201 = arith.constant 0 : index
    %184 = vector.load %arg2[%c2176, %c0_201] : memref<2560x64xbf16, #tpu.memory_space<vmem>>, vector<192x64xbf16>
    %185 = arith.truncf %183 : vector<2x192xf32> to vector<2x192xbf16>
    %cst_202 = arith.constant dense<0.000000e+00> : vector<2x64xf32>
    %186 = tpu.matmul %185, %184, %cst_202 {dimension_numbers = #tpu.dot_dimension_numbers<[1], [0], [0], [1], [0, 0, 1, 1], [], []>} : vector<2x192xbf16>, vector<192x64xbf16>, vector<2x64xf32> -> vector<2x64xf32>
    %c10 = arith.constant 10 : index
    %c0_203 = arith.constant 0 : index
    %187 = vector.load %arg3[%c10, %c0_203] : memref<12x64xf32, #tpu.memory_space<vmem>>, vector<1x64xf32>
    %188 = vector.broadcast %187 : vector<1x64xf32> to vector<2x64xf32>
    %189 = arith.addf %186, %188 : vector<2x64xf32>
    %cst_204 = arith.constant 0.000000e+00 : f32
    %190 = vector.broadcast %cst_204 : f32 to vector<2x64xf32>
    %191 = arith.maximumf %189, %190 : vector<2x64xf32>
    %cst_205 = arith.constant 0.000000e+00 : f32
    %192 = vector.broadcast %cst_205 : f32 to vector<1x64xf32>
    %c0_206 = arith.constant 0 : index
    %c0_207 = arith.constant 0 : index
    %193 = vector.load %arg13[%c0_206, %c0_207] : memref<136x64xf32, #tpu.memory_space<vmem>>, vector<1x64xf32>
    tpu.vector_store %arg13[%c0_206, %c0_207], %192 {strides = array<i32>} : memref<136x64xf32, #tpu.memory_space<vmem>>, vector<1x64xf32>,
    %cst_208 = arith.constant 0.000000e+00 : f32
    %194 = vector.broadcast %cst_208 : f32 to vector<1x64xf32>
    %c3_209 = arith.constant 3 : index
    %c0_210 = arith.constant 0 : index
    %195 = vector.load %arg13[%c3_209, %c0_210] : memref<136x64xf32, #tpu.memory_space<vmem>>, vector<1x64xf32>
    tpu.vector_store %arg13[%c3_209, %c0_210], %194 {strides = array<i32>} : memref<136x64xf32, #tpu.memory_space<vmem>>, vector<1x64xf32>,
    %c1_211 = arith.constant 1 : index
    %c0_212 = arith.constant 0 : index
    %196 = vector.load %arg13[%c1_211, %c0_212] : memref<136x64xf32, #tpu.memory_space<vmem>>, vector<2x64xf32>
    tpu.vector_store %arg13[%c1_211, %c0_212], %191 {strides = array<i32>} : memref<136x64xf32, #tpu.memory_space<vmem>>, vector<2x64xf32>,
    %c0_213 = arith.constant 0 : index
    %c0_214 = arith.constant 0 : index
    %197 = vector.load %arg13[%c0_213, %c0_214] : memref<136x64xf32, #tpu.memory_space<vmem>>, vector<2x64xf32>
    %c1_215 = arith.constant 1 : index
    %c0_216 = arith.constant 0 : index
    %198 = vector.load %arg13[%c1_215, %c0_216] : memref<136x64xf32, #tpu.memory_space<vmem>>, vector<2x64xf32>
    %c2_217 = arith.constant 2 : index
    %c0_218 = arith.constant 0 : index
    %199 = vector.load %arg13[%c2_217, %c0_218] : memref<136x64xf32, #tpu.memory_space<vmem>>, vector<2x64xf32>
    %200 = tpu.concatenate %197, %198, %199 in 1 : vector<2x64xf32>, vector<2x64xf32>, vector<2x64xf32> -> vector<2x192xf32>
    %c2368 = arith.constant 2368 : index
    %c0_219 = arith.constant 0 : index
    %201 = vector.load %arg2[%c2368, %c0_219] : memref<2560x64xbf16, #tpu.memory_space<vmem>>, vector<192x64xbf16>
    %202 = arith.truncf %200 : vector<2x192xf32> to vector<2x192xbf16>
    %cst_220 = arith.constant dense<0.000000e+00> : vector<2x64xf32>
    %203 = tpu.matmul %202, %201, %cst_220 {dimension_numbers = #tpu.dot_dimension_numbers<[1], [0], [0], [1], [0, 0, 1, 1], [], []>} : vector<2x192xbf16>, vector<192x64xbf16>, vector<2x64xf32> -> vector<2x64xf32>
    %c11 = arith.constant 11 : index
    %c0_221 = arith.constant 0 : index
    %204 = vector.load %arg3[%c11, %c0_221] : memref<12x64xf32, #tpu.memory_space<vmem>>, vector<1x64xf32>
    %205 = vector.broadcast %204 : vector<1x64xf32> to vector<2x64xf32>
    %206 = arith.addf %203, %205 : vector<2x64xf32>
    %cst_222 = arith.constant 0.000000e+00 : f32
    %207 = vector.broadcast %cst_222 : f32 to vector<2x64xf32>
    %208 = arith.maximumf %206, %207 : vector<2x64xf32>
    %cst_223 = arith.constant dense<0.000000e+00> : vector<64xf32>
    %209 = vector.multi_reduction <add>, %208, %cst_223 [0] : vector<2x64xf32> to vector<64xf32>
    %210 = vector.shape_cast %209 : vector<64xf32> to vector<1x64xf32>
    %cst_224 = arith.constant 5.000000e-01 : f32
    %211 = vector.broadcast %cst_224 : f32 to vector<1x64xf32>
    %212 = arith.mulf %210, %211 : vector<1x64xf32>
    tpu.wait_dma2 semaphore(%arg16 : memref<!tpu.dma_semaphore, #tpu.memory_space<semaphore_mem>>) src(%arg4 : memref<4608x128xbf16, #tpu.memory_space<any>>) dst(%arg15 : memref<4608x128xbf16, #tpu.memory_space<vmem>>)
    %c0_225 = arith.constant 0 : index
    %c0_226 = arith.constant 0 : index
    %213 = vector.load %arg1[%c0_225, %c0_226] : memref<32x128xf32, #tpu.memory_space<vmem>>, vector<32x128xf32>
    %cst_227 = arith.constant 0.000000e+00 : f32
    %214 = vector.broadcast %cst_227 : f32 to vector<1x128xf32>
    %c0_228 = arith.constant 0 : index
    %c0_229 = arith.constant 0 : index
    %215 = vector.load %arg14[%c0_228, %c0_229] : memref<40x128xf32, #tpu.memory_space<vmem>>, vector<1x128xf32>
    tpu.vector_store %arg14[%c0_228, %c0_229], %214 {strides = array<i32>} : memref<40x128xf32, #tpu.memory_space<vmem>>, vector<1x128xf32>,
    %cst_230 = arith.constant 0.000000e+00 : f32
    %216 = vector.broadcast %cst_230 : f32 to vector<1x128xf32>
    %c33_231 = arith.constant 33 : index
    %c0_232 = arith.constant 0 : index
    %217 = vector.load %arg14[%c33_231, %c0_232] : memref<40x128xf32, #tpu.memory_space<vmem>>, vector<1x128xf32>
    tpu.vector_store %arg14[%c33_231, %c0_232], %216 {strides = array<i32>} : memref<40x128xf32, #tpu.memory_space<vmem>>, vector<1x128xf32>,
    %c1_233 = arith.constant 1 : index
    %c0_234 = arith.constant 0 : index
    %218 = vector.load %arg14[%c1_233, %c0_234] : memref<40x128xf32, #tpu.memory_space<vmem>>, vector<32x128xf32>
    tpu.vector_store %arg14[%c1_233, %c0_234], %213 {strides = array<i32>} : memref<40x128xf32, #tpu.memory_space<vmem>>, vector<32x128xf32>,
    %c0_235 = arith.constant 0 : index
    %c0_236 = arith.constant 0 : index
    %219 = tpu.strided_load %arg14[%c0_235, %c0_236] {strides = array<i32: 2, 1>} : memref<40x128xf32, #tpu.memory_space<vmem>>, vector<16x128xf32>
    %c1_237 = arith.constant 1 : index
    %c0_238 = arith.constant 0 : index
    %220 = tpu.strided_load %arg14[%c1_237, %c0_238] {strides = array<i32: 2, 1>} : memref<40x128xf32, #tpu.memory_space<vmem>>, vector<16x128xf32>
    %c2_239 = arith.constant 2 : index
    %c0_240 = arith.constant 0 : index
    %221 = tpu.strided_load %arg14[%c2_239, %c0_240] {strides = array<i32: 2, 1>} : memref<40x128xf32, #tpu.memory_space<vmem>>, vector<16x128xf32>
    %222 = tpu.concatenate %219, %220, %221 in 1 : vector<16x128xf32>, vector<16x128xf32>, vector<16x128xf32> -> vector<16x384xf32>
    %c0_241 = arith.constant 0 : index
    %c0_242 = arith.constant 0 : index
    %223 = vector.load %arg15[%c0_241, %c0_242] : memref<4608x128xbf16, #tpu.memory_space<vmem>>, vector<384x128xbf16>
    %224 = arith.truncf %222 : vector<16x384xf32> to vector<16x384xbf16>
    %cst_243 = arith.constant dense<0.000000e+00> : vector<16x128xf32>
    %225 = tpu.matmul %224, %223, %cst_243 {dimension_numbers = #tpu.dot_dimension_numbers<[1], [0], [0], [1], [0, 0, 1, 1], [], []>} : vector<16x384xbf16>, vector<384x128xbf16>, vector<16x128xf32> -> vector<16x128xf32>
    %c0_244 = arith.constant 0 : index
    %c0_245 = arith.constant 0 : index
    %226 = vector.load %arg5[%c0_244, %c0_245] : memref<12x128xf32, #tpu.memory_space<vmem>>, vector<1x128xf32>
    %227 = vector.broadcast %226 : vector<1x128xf32> to vector<16x128xf32>
    %228 = arith.addf %225, %227 : vector<16x128xf32>
    %cst_246 = arith.constant 0.000000e+00 : f32
    %229 = vector.broadcast %cst_246 : f32 to vector<16x128xf32>
    %230 = arith.maximumf %228, %229 : vector<16x128xf32>
    %cst_247 = arith.constant 0.000000e+00 : f32
    %231 = vector.broadcast %cst_247 : f32 to vector<1x128xf32>
    %c0_248 = arith.constant 0 : index
    %c0_249 = arith.constant 0 : index
    %232 = vector.load %arg14[%c0_248, %c0_249] : memref<40x128xf32, #tpu.memory_space<vmem>>, vector<1x128xf32>
    tpu.vector_store %arg14[%c0_248, %c0_249], %231 {strides = array<i32>} : memref<40x128xf32, #tpu.memory_space<vmem>>, vector<1x128xf32>,
    %cst_250 = arith.constant 0.000000e+00 : f32
    %233 = vector.broadcast %cst_250 : f32 to vector<1x128xf32>
    %c17 = arith.constant 17 : index
    %c0_251 = arith.constant 0 : index
    %234 = vector.load %arg14[%c17, %c0_251] : memref<40x128xf32, #tpu.memory_space<vmem>>, vector<1x128xf32>
    tpu.vector_store %arg14[%c17, %c0_251], %233 {strides = array<i32>} : memref<40x128xf32, #tpu.memory_space<vmem>>, vector<1x128xf32>,
    %c1_252 = arith.constant 1 : index
    %c0_253 = arith.constant 0 : index
    %235 = vector.load %arg14[%c1_252, %c0_253] : memref<40x128xf32, #tpu.memory_space<vmem>>, vector<16x128xf32>
    tpu.vector_store %arg14[%c1_252, %c0_253], %230 {strides = array<i32>} : memref<40x128xf32, #tpu.memory_space<vmem>>, vector<16x128xf32>,
    %c0_254 = arith.constant 0 : index
    %c0_255 = arith.constant 0 : index
    %236 = vector.load %arg14[%c0_254, %c0_255] : memref<40x128xf32, #tpu.memory_space<vmem>>, vector<16x128xf32>
    %c1_256 = arith.constant 1 : index
    %c0_257 = arith.constant 0 : index
    %237 = vector.load %arg14[%c1_256, %c0_257] : memref<40x128xf32, #tpu.memory_space<vmem>>, vector<16x128xf32>
    %c2_258 = arith.constant 2 : index
    %c0_259 = arith.constant 0 : index
    %238 = vector.load %arg14[%c2_258, %c0_259] : memref<40x128xf32, #tpu.memory_space<vmem>>, vector<16x128xf32>
    %239 = tpu.concatenate %236, %237, %238 in 1 : vector<16x128xf32>, vector<16x128xf32>, vector<16x128xf32> -> vector<16x384xf32>
    %c384 = arith.constant 384 : index
    %c0_260 = arith.constant 0 : index
    %240 = vector.load %arg15[%c384, %c0_260] : memref<4608x128xbf16, #tpu.memory_space<vmem>>, vector<384x128xbf16>
    %241 = arith.truncf %239 : vector<16x384xf32> to vector<16x384xbf16>
    %cst_261 = arith.constant dense<0.000000e+00> : vector<16x128xf32>
    %242 = tpu.matmul %241, %240, %cst_261 {dimension_numbers = #tpu.dot_dimension_numbers<[1], [0], [0], [1], [0, 0, 1, 1], [], []>} : vector<16x384xbf16>, vector<384x128xbf16>, vector<16x128xf32> -> vector<16x128xf32>
    %c1_262 = arith.constant 1 : index
    %c0_263 = arith.constant 0 : index
    %243 = vector.load %arg5[%c1_262, %c0_263] : memref<12x128xf32, #tpu.memory_space<vmem>>, vector<1x128xf32>
    %244 = vector.broadcast %243 : vector<1x128xf32> to vector<16x128xf32>
    %245 = arith.addf %242, %244 : vector<16x128xf32>
    %cst_264 = arith.constant 0.000000e+00 : f32
    %246 = vector.broadcast %cst_264 : f32 to vector<16x128xf32>
    %247 = arith.maximumf %245, %246 : vector<16x128xf32>
    %cst_265 = arith.constant 0.000000e+00 : f32
    %248 = vector.broadcast %cst_265 : f32 to vector<1x128xf32>
    %c0_266 = arith.constant 0 : index
    %c0_267 = arith.constant 0 : index
    %249 = vector.load %arg14[%c0_266, %c0_267] : memref<40x128xf32, #tpu.memory_space<vmem>>, vector<1x128xf32>
    tpu.vector_store %arg14[%c0_266, %c0_267], %248 {strides = array<i32>} : memref<40x128xf32, #tpu.memory_space<vmem>>, vector<1x128xf32>,
    %cst_268 = arith.constant 0.000000e+00 : f32
    %250 = vector.broadcast %cst_268 : f32 to vector<1x128xf32>
    %c17_269 = arith.constant 17 : index
    %c0_270 = arith.constant 0 : index
    %251 = vector.load %arg14[%c17_269, %c0_270] : memref<40x128xf32, #tpu.memory_space<vmem>>, vector<1x128xf32>
    tpu.vector_store %arg14[%c17_269, %c0_270], %250 {strides = array<i32>} : memref<40x128xf32, #tpu.memory_space<vmem>>, vector<1x128xf32>,
    %c1_271 = arith.constant 1 : index
    %c0_272 = arith.constant 0 : index
    %252 = vector.load %arg14[%c1_271, %c0_272] : memref<40x128xf32, #tpu.memory_space<vmem>>, vector<16x128xf32>
    tpu.vector_store %arg14[%c1_271, %c0_272], %247 {strides = array<i32>} : memref<40x128xf32, #tpu.memory_space<vmem>>, vector<16x128xf32>,
    %c0_273 = arith.constant 0 : index
    %c0_274 = arith.constant 0 : index
    %253 = vector.load %arg14[%c0_273, %c0_274] : memref<40x128xf32, #tpu.memory_space<vmem>>, vector<16x128xf32>
    %c1_275 = arith.constant 1 : index
    %c0_276 = arith.constant 0 : index
    %254 = vector.load %arg14[%c1_275, %c0_276] : memref<40x128xf32, #tpu.memory_space<vmem>>, vector<16x128xf32>
    %c2_277 = arith.constant 2 : index
    %c0_278 = arith.constant 0 : index
    %255 = vector.load %arg14[%c2_277, %c0_278] : memref<40x128xf32, #tpu.memory_space<vmem>>, vector<16x128xf32>
    %256 = tpu.concatenate %253, %254, %255 in 1 : vector<16x128xf32>, vector<16x128xf32>, vector<16x128xf32> -> vector<16x384xf32>
    %c768 = arith.constant 768 : index
    %c0_279 = arith.constant 0 : index
    %257 = vector.load %arg15[%c768, %c0_279] : memref<4608x128xbf16, #tpu.memory_space<vmem>>, vector<384x128xbf16>
    %258 = arith.truncf %256 : vector<16x384xf32> to vector<16x384xbf16>
    %cst_280 = arith.constant dense<0.000000e+00> : vector<16x128xf32>
    %259 = tpu.matmul %258, %257, %cst_280 {dimension_numbers = #tpu.dot_dimension_numbers<[1], [0], [0], [1], [0, 0, 1, 1], [], []>} : vector<16x384xbf16>, vector<384x128xbf16>, vector<16x128xf32> -> vector<16x128xf32>
    %c2_281 = arith.constant 2 : index
    %c0_282 = arith.constant 0 : index
    %260 = vector.load %arg5[%c2_281, %c0_282] : memref<12x128xf32, #tpu.memory_space<vmem>>, vector<1x128xf32>
    %261 = vector.broadcast %260 : vector<1x128xf32> to vector<16x128xf32>
    %262 = arith.addf %259, %261 : vector<16x128xf32>
    %cst_283 = arith.constant 0.000000e+00 : f32
    %263 = vector.broadcast %cst_283 : f32 to vector<16x128xf32>
    %264 = arith.maximumf %262, %263 : vector<16x128xf32>
    %cst_284 = arith.constant 0.000000e+00 : f32
    %265 = vector.broadcast %cst_284 : f32 to vector<1x128xf32>
    %c0_285 = arith.constant 0 : index
    %c0_286 = arith.constant 0 : index
    %266 = vector.load %arg14[%c0_285, %c0_286] : memref<40x128xf32, #tpu.memory_space<vmem>>, vector<1x128xf32>
    tpu.vector_store %arg14[%c0_285, %c0_286], %265 {strides = array<i32>} : memref<40x128xf32, #tpu.memory_space<vmem>>, vector<1x128xf32>,
    %cst_287 = arith.constant 0.000000e+00 : f32
    %267 = vector.broadcast %cst_287 : f32 to vector<1x128xf32>
    %c17_288 = arith.constant 17 : index
    %c0_289 = arith.constant 0 : index
    %268 = vector.load %arg14[%c17_288, %c0_289] : memref<40x128xf32, #tpu.memory_space<vmem>>, vector<1x128xf32>
    tpu.vector_store %arg14[%c17_288, %c0_289], %267 {strides = array<i32>} : memref<40x128xf32, #tpu.memory_space<vmem>>, vector<1x128xf32>,
    %c1_290 = arith.constant 1 : index
    %c0_291 = arith.constant 0 : index
    %269 = vector.load %arg14[%c1_290, %c0_291] : memref<40x128xf32, #tpu.memory_space<vmem>>, vector<16x128xf32>
    tpu.vector_store %arg14[%c1_290, %c0_291], %264 {strides = array<i32>} : memref<40x128xf32, #tpu.memory_space<vmem>>, vector<16x128xf32>,
    %c0_292 = arith.constant 0 : index
    %c0_293 = arith.constant 0 : index
    %270 = vector.load %arg14[%c0_292, %c0_293] : memref<40x128xf32, #tpu.memory_space<vmem>>, vector<16x128xf32>
    %c1_294 = arith.constant 1 : index
    %c0_295 = arith.constant 0 : index
    %271 = vector.load %arg14[%c1_294, %c0_295] : memref<40x128xf32, #tpu.memory_space<vmem>>, vector<16x128xf32>
    %c2_296 = arith.constant 2 : index
    %c0_297 = arith.constant 0 : index
    %272 = vector.load %arg14[%c2_296, %c0_297] : memref<40x128xf32, #tpu.memory_space<vmem>>, vector<16x128xf32>
    %273 = tpu.concatenate %270, %271, %272 in 1 : vector<16x128xf32>, vector<16x128xf32>, vector<16x128xf32> -> vector<16x384xf32>
    %c1152 = arith.constant 1152 : index
    %c0_298 = arith.constant 0 : index
    %274 = vector.load %arg15[%c1152, %c0_298] : memref<4608x128xbf16, #tpu.memory_space<vmem>>, vector<384x128xbf16>
    %275 = arith.truncf %273 : vector<16x384xf32> to vector<16x384xbf16>
    %cst_299 = arith.constant dense<0.000000e+00> : vector<16x128xf32>
    %276 = tpu.matmul %275, %274, %cst_299 {dimension_numbers = #tpu.dot_dimension_numbers<[1], [0], [0], [1], [0, 0, 1, 1], [], []>} : vector<16x384xbf16>, vector<384x128xbf16>, vector<16x128xf32> -> vector<16x128xf32>
    %c3_300 = arith.constant 3 : index
    %c0_301 = arith.constant 0 : index
    %277 = vector.load %arg5[%c3_300, %c0_301] : memref<12x128xf32, #tpu.memory_space<vmem>>, vector<1x128xf32>
    %278 = vector.broadcast %277 : vector<1x128xf32> to vector<16x128xf32>
    %279 = arith.addf %276, %278 : vector<16x128xf32>
    %cst_302 = arith.constant 0.000000e+00 : f32
    %280 = vector.broadcast %cst_302 : f32 to vector<16x128xf32>
    %281 = arith.maximumf %279, %280 : vector<16x128xf32>
    %cst_303 = arith.constant 0.000000e+00 : f32
    %282 = vector.broadcast %cst_303 : f32 to vector<1x128xf32>
    %c0_304 = arith.constant 0 : index
    %c0_305 = arith.constant 0 : index
    %283 = vector.load %arg14[%c0_304, %c0_305] : memref<40x128xf32, #tpu.memory_space<vmem>>, vector<1x128xf32>
    tpu.vector_store %arg14[%c0_304, %c0_305], %282 {strides = array<i32>} : memref<40x128xf32, #tpu.memory_space<vmem>>, vector<1x128xf32>,
    %cst_306 = arith.constant 0.000000e+00 : f32
    %284 = vector.broadcast %cst_306 : f32 to vector<1x128xf32>
    %c17_307 = arith.constant 17 : index
    %c0_308 = arith.constant 0 : index
    %285 = vector.load %arg14[%c17_307, %c0_308] : memref<40x128xf32, #tpu.memory_space<vmem>>, vector<1x128xf32>
    tpu.vector_store %arg14[%c17_307, %c0_308], %284 {strides = array<i32>} : memref<40x128xf32, #tpu.memory_space<vmem>>, vector<1x128xf32>,
    %c1_309 = arith.constant 1 : index
    %c0_310 = arith.constant 0 : index
    %286 = vector.load %arg14[%c1_309, %c0_310] : memref<40x128xf32, #tpu.memory_space<vmem>>, vector<16x128xf32>
    tpu.vector_store %arg14[%c1_309, %c0_310], %281 {strides = array<i32>} : memref<40x128xf32, #tpu.memory_space<vmem>>, vector<16x128xf32>,
    %c0_311 = arith.constant 0 : index
    %c0_312 = arith.constant 0 : index
    %287 = vector.load %arg14[%c0_311, %c0_312] : memref<40x128xf32, #tpu.memory_space<vmem>>, vector<16x128xf32>
    %c1_313 = arith.constant 1 : index
    %c0_314 = arith.constant 0 : index
    %288 = vector.load %arg14[%c1_313, %c0_314] : memref<40x128xf32, #tpu.memory_space<vmem>>, vector<16x128xf32>
    %c2_315 = arith.constant 2 : index
    %c0_316 = arith.constant 0 : index
    %289 = vector.load %arg14[%c2_315, %c0_316] : memref<40x128xf32, #tpu.memory_space<vmem>>, vector<16x128xf32>
    %290 = tpu.concatenate %287, %288, %289 in 1 : vector<16x128xf32>, vector<16x128xf32>, vector<16x128xf32> -> vector<16x384xf32>
    %c1536 = arith.constant 1536 : index
    %c0_317 = arith.constant 0 : index
    %291 = vector.load %arg15[%c1536, %c0_317] : memref<4608x128xbf16, #tpu.memory_space<vmem>>, vector<384x128xbf16>
    %292 = arith.truncf %290 : vector<16x384xf32> to vector<16x384xbf16>
    %cst_318 = arith.constant dense<0.000000e+00> : vector<16x128xf32>
    %293 = tpu.matmul %292, %291, %cst_318 {dimension_numbers = #tpu.dot_dimension_numbers<[1], [0], [0], [1], [0, 0, 1, 1], [], []>} : vector<16x384xbf16>, vector<384x128xbf16>, vector<16x128xf32> -> vector<16x128xf32>
    %c4_319 = arith.constant 4 : index
    %c0_320 = arith.constant 0 : index
    %294 = vector.load %arg5[%c4_319, %c0_320] : memref<12x128xf32, #tpu.memory_space<vmem>>, vector<1x128xf32>
    %295 = vector.broadcast %294 : vector<1x128xf32> to vector<16x128xf32>
    %296 = arith.addf %293, %295 : vector<16x128xf32>
    %cst_321 = arith.constant 0.000000e+00 : f32
    %297 = vector.broadcast %cst_321 : f32 to vector<16x128xf32>
    %298 = arith.maximumf %296, %297 : vector<16x128xf32>
    %cst_322 = arith.constant 0.000000e+00 : f32
    %299 = vector.broadcast %cst_322 : f32 to vector<1x128xf32>
    %c0_323 = arith.constant 0 : index
    %c0_324 = arith.constant 0 : index
    %300 = vector.load %arg14[%c0_323, %c0_324] : memref<40x128xf32, #tpu.memory_space<vmem>>, vector<1x128xf32>
    tpu.vector_store %arg14[%c0_323, %c0_324], %299 {strides = array<i32>} : memref<40x128xf32, #tpu.memory_space<vmem>>, vector<1x128xf32>,
    %cst_325 = arith.constant 0.000000e+00 : f32
    %301 = vector.broadcast %cst_325 : f32 to vector<1x128xf32>
    %c17_326 = arith.constant 17 : index
    %c0_327 = arith.constant 0 : index
    %302 = vector.load %arg14[%c17_326, %c0_327] : memref<40x128xf32, #tpu.memory_space<vmem>>, vector<1x128xf32>
    tpu.vector_store %arg14[%c17_326, %c0_327], %301 {strides = array<i32>} : memref<40x128xf32, #tpu.memory_space<vmem>>, vector<1x128xf32>,
    %c1_328 = arith.constant 1 : index
    %c0_329 = arith.constant 0 : index
    %303 = vector.load %arg14[%c1_328, %c0_329] : memref<40x128xf32, #tpu.memory_space<vmem>>, vector<16x128xf32>
    tpu.vector_store %arg14[%c1_328, %c0_329], %298 {strides = array<i32>} : memref<40x128xf32, #tpu.memory_space<vmem>>, vector<16x128xf32>,
    %c0_330 = arith.constant 0 : index
    %c0_331 = arith.constant 0 : index
    %304 = vector.load %arg14[%c0_330, %c0_331] : memref<40x128xf32, #tpu.memory_space<vmem>>, vector<16x128xf32>
    %c1_332 = arith.constant 1 : index
    %c0_333 = arith.constant 0 : index
    %305 = vector.load %arg14[%c1_332, %c0_333] : memref<40x128xf32, #tpu.memory_space<vmem>>, vector<16x128xf32>
    %c2_334 = arith.constant 2 : index
    %c0_335 = arith.constant 0 : index
    %306 = vector.load %arg14[%c2_334, %c0_335] : memref<40x128xf32, #tpu.memory_space<vmem>>, vector<16x128xf32>
    %307 = tpu.concatenate %304, %305, %306 in 1 : vector<16x128xf32>, vector<16x128xf32>, vector<16x128xf32> -> vector<16x384xf32>
    %c1920 = arith.constant 1920 : index
    %c0_336 = arith.constant 0 : index
    %308 = vector.load %arg15[%c1920, %c0_336] : memref<4608x128xbf16, #tpu.memory_space<vmem>>, vector<384x128xbf16>
    %309 = arith.truncf %307 : vector<16x384xf32> to vector<16x384xbf16>
    %cst_337 = arith.constant dense<0.000000e+00> : vector<16x128xf32>
    %310 = tpu.matmul %309, %308, %cst_337 {dimension_numbers = #tpu.dot_dimension_numbers<[1], [0], [0], [1], [0, 0, 1, 1], [], []>} : vector<16x384xbf16>, vector<384x128xbf16>, vector<16x128xf32> -> vector<16x128xf32>
    %c5_338 = arith.constant 5 : index
    %c0_339 = arith.constant 0 : index
    %311 = vector.load %arg5[%c5_338, %c0_339] : memref<12x128xf32, #tpu.memory_space<vmem>>, vector<1x128xf32>
    %312 = vector.broadcast %311 : vector<1x128xf32> to vector<16x128xf32>
    %313 = arith.addf %310, %312 : vector<16x128xf32>
    %cst_340 = arith.constant 0.000000e+00 : f32
    %314 = vector.broadcast %cst_340 : f32 to vector<16x128xf32>
    %315 = arith.maximumf %313, %314 : vector<16x128xf32>
    %cst_341 = arith.constant 0.000000e+00 : f32
    %316 = vector.broadcast %cst_341 : f32 to vector<1x128xf32>
    %c0_342 = arith.constant 0 : index
    %c0_343 = arith.constant 0 : index
    %317 = vector.load %arg14[%c0_342, %c0_343] : memref<40x128xf32, #tpu.memory_space<vmem>>, vector<1x128xf32>
    tpu.vector_store %arg14[%c0_342, %c0_343], %316 {strides = array<i32>} : memref<40x128xf32, #tpu.memory_space<vmem>>, vector<1x128xf32>,
    %cst_344 = arith.constant 0.000000e+00 : f32
    %318 = vector.broadcast %cst_344 : f32 to vector<1x128xf32>
    %c17_345 = arith.constant 17 : index
    %c0_346 = arith.constant 0 : index
    %319 = vector.load %arg14[%c17_345, %c0_346] : memref<40x128xf32, #tpu.memory_space<vmem>>, vector<1x128xf32>
    tpu.vector_store %arg14[%c17_345, %c0_346], %318 {strides = array<i32>} : memref<40x128xf32, #tpu.memory_space<vmem>>, vector<1x128xf32>,
    %c1_347 = arith.constant 1 : index
    %c0_348 = arith.constant 0 : index
    %320 = vector.load %arg14[%c1_347, %c0_348] : memref<40x128xf32, #tpu.memory_space<vmem>>, vector<16x128xf32>
    tpu.vector_store %arg14[%c1_347, %c0_348], %315 {strides = array<i32>} : memref<40x128xf32, #tpu.memory_space<vmem>>, vector<16x128xf32>,
    %c0_349 = arith.constant 0 : index
    %c0_350 = arith.constant 0 : index
    %321 = tpu.strided_load %arg14[%c0_349, %c0_350] {strides = array<i32: 2, 1>} : memref<40x128xf32, #tpu.memory_space<vmem>>, vector<8x128xf32>
    %c1_351 = arith.constant 1 : index
    %c0_352 = arith.constant 0 : index
    %322 = tpu.strided_load %arg14[%c1_351, %c0_352] {strides = array<i32: 2, 1>} : memref<40x128xf32, #tpu.memory_space<vmem>>, vector<8x128xf32>
    %c2_353 = arith.constant 2 : index
    %c0_354 = arith.constant 0 : index
    %323 = tpu.strided_load %arg14[%c2_353, %c0_354] {strides = array<i32: 2, 1>} : memref<40x128xf32, #tpu.memory_space<vmem>>, vector<8x128xf32>
    %324 = tpu.concatenate %321, %322, %323 in 1 : vector<8x128xf32>, vector<8x128xf32>, vector<8x128xf32> -> vector<8x384xf32>
    %c2304 = arith.constant 2304 : index
    %c0_355 = arith.constant 0 : index
    %325 = vector.load %arg15[%c2304, %c0_355] : memref<4608x128xbf16, #tpu.memory_space<vmem>>, vector<384x128xbf16>
    %326 = arith.truncf %324 : vector<8x384xf32> to vector<8x384xbf16>
    %cst_356 = arith.constant dense<0.000000e+00> : vector<8x128xf32>
    %327 = tpu.matmul %326, %325, %cst_356 {dimension_numbers = #tpu.dot_dimension_numbers<[1], [0], [0], [1], [0, 0, 1, 1], [], []>} : vector<8x384xbf16>, vector<384x128xbf16>, vector<8x128xf32> -> vector<8x128xf32>
    %c6_357 = arith.constant 6 : index
    %c0_358 = arith.constant 0 : index
    %328 = vector.load %arg5[%c6_357, %c0_358] : memref<12x128xf32, #tpu.memory_space<vmem>>, vector<1x128xf32>
    %329 = vector.broadcast %328 : vector<1x128xf32> to vector<8x128xf32>
    %330 = arith.addf %327, %329 : vector<8x128xf32>
    %cst_359 = arith.constant 0.000000e+00 : f32
    %331 = vector.broadcast %cst_359 : f32 to vector<8x128xf32>
    %332 = arith.maximumf %330, %331 : vector<8x128xf32>
    %cst_360 = arith.constant 0.000000e+00 : f32
    %333 = vector.broadcast %cst_360 : f32 to vector<1x128xf32>
    %c0_361 = arith.constant 0 : index
    %c0_362 = arith.constant 0 : index
    %334 = vector.load %arg14[%c0_361, %c0_362] : memref<40x128xf32, #tpu.memory_space<vmem>>, vector<1x128xf32>
    tpu.vector_store %arg14[%c0_361, %c0_362], %333 {strides = array<i32>} : memref<40x128xf32, #tpu.memory_space<vmem>>, vector<1x128xf32>,
    %cst_363 = arith.constant 0.000000e+00 : f32
    %335 = vector.broadcast %cst_363 : f32 to vector<1x128xf32>
    %c9_364 = arith.constant 9 : index
    %c0_365 = arith.constant 0 : index
    %336 = vector.load %arg14[%c9_364, %c0_365] : memref<40x128xf32, #tpu.memory_space<vmem>>, vector<1x128xf32>
    tpu.vector_store %arg14[%c9_364, %c0_365], %335 {strides = array<i32>} : memref<40x128xf32, #tpu.memory_space<vmem>>, vector<1x128xf32>,
    %c1_366 = arith.constant 1 : index
    %c0_367 = arith.constant 0 : index
    %337 = vector.load %arg14[%c1_366, %c0_367] : memref<40x128xf32, #tpu.memory_space<vmem>>, vector<8x128xf32>
    tpu.vector_store %arg14[%c1_366, %c0_367], %332 {strides = array<i32>} : memref<40x128xf32, #tpu.memory_space<vmem>>, vector<8x128xf32>,
    %c0_368 = arith.constant 0 : index
    %c0_369 = arith.constant 0 : index
    %338 = vector.load %arg14[%c0_368, %c0_369] : memref<40x128xf32, #tpu.memory_space<vmem>>, vector<8x128xf32>
    %c1_370 = arith.constant 1 : index
    %c0_371 = arith.constant 0 : index
    %339 = vector.load %arg14[%c1_370, %c0_371] : memref<40x128xf32, #tpu.memory_space<vmem>>, vector<8x128xf32>
    %c2_372 = arith.constant 2 : index
    %c0_373 = arith.constant 0 : index
    %340 = vector.load %arg14[%c2_372, %c0_373] : memref<40x128xf32, #tpu.memory_space<vmem>>, vector<8x128xf32>
    %341 = tpu.concatenate %338, %339, %340 in 1 : vector<8x128xf32>, vector<8x128xf32>, vector<8x128xf32> -> vector<8x384xf32>
    %c2688 = arith.constant 2688 : index
    %c0_374 = arith.constant 0 : index
    %342 = vector.load %arg15[%c2688, %c0_374] : memref<4608x128xbf16, #tpu.memory_space<vmem>>, vector<384x128xbf16>
    %343 = arith.truncf %341 : vector<8x384xf32> to vector<8x384xbf16>
    %cst_375 = arith.constant dense<0.000000e+00> : vector<8x128xf32>
    %344 = tpu.matmul %343, %342, %cst_375 {dimension_numbers = #tpu.dot_dimension_numbers<[1], [0], [0], [1], [0, 0, 1, 1], [], []>} : vector<8x384xbf16>, vector<384x128xbf16>, vector<8x128xf32> -> vector<8x128xf32>
    %c7_376 = arith.constant 7 : index
    %c0_377 = arith.constant 0 : index
    %345 = vector.load %arg5[%c7_376, %c0_377] : memref<12x128xf32, #tpu.memory_space<vmem>>, vector<1x128xf32>
    %346 = vector.broadcast %345 : vector<1x128xf32> to vector<8x128xf32>
    %347 = arith.addf %344, %346 : vector<8x128xf32>
    %cst_378 = arith.constant 0.000000e+00 : f32
    %348 = vector.broadcast %cst_378 : f32 to vector<8x128xf32>
    %349 = arith.maximumf %347, %348 : vector<8x128xf32>
    %cst_379 = arith.constant 0.000000e+00 : f32
    %350 = vector.broadcast %cst_379 : f32 to vector<1x128xf32>
    %c0_380 = arith.constant 0 : index
    %c0_381 = arith.constant 0 : index
    %351 = vector.load %arg14[%c0_380, %c0_381] : memref<40x128xf32, #tpu.memory_space<vmem>>, vector<1x128xf32>
    tpu.vector_store %arg14[%c0_380, %c0_381], %350 {strides = array<i32>} : memref<40x128xf32, #tpu.memory_space<vmem>>, vector<1x128xf32>,
    %cst_382 = arith.constant 0.000000e+00 : f32
    %352 = vector.broadcast %cst_382 : f32 to vector<1x128xf32>
    %c9_383 = arith.constant 9 : index
    %c0_384 = arith.constant 0 : index
    %353 = vector.load %arg14[%c9_383, %c0_384] : memref<40x128xf32, #tpu.memory_space<vmem>>, vector<1x128xf32>
    tpu.vector_store %arg14[%c9_383, %c0_384], %352 {strides = array<i32>} : memref<40x128xf32, #tpu.memory_space<vmem>>, vector<1x128xf32>,
    %c1_385 = arith.constant 1 : index
    %c0_386 = arith.constant 0 : index
    %354 = vector.load %arg14[%c1_385, %c0_386] : memref<40x128xf32, #tpu.memory_space<vmem>>, vector<8x128xf32>
    tpu.vector_store %arg14[%c1_385, %c0_386], %349 {strides = array<i32>} : memref<40x128xf32, #tpu.memory_space<vmem>>, vector<8x128xf32>,
    %c0_387 = arith.constant 0 : index
    %c0_388 = arith.constant 0 : index
    %355 = vector.load %arg14[%c0_387, %c0_388] : memref<40x128xf32, #tpu.memory_space<vmem>>, vector<8x128xf32>
    %c1_389 = arith.constant 1 : index
    %c0_390 = arith.constant 0 : index
    %356 = vector.load %arg14[%c1_389, %c0_390] : memref<40x128xf32, #tpu.memory_space<vmem>>, vector<8x128xf32>
    %c2_391 = arith.constant 2 : index
    %c0_392 = arith.constant 0 : index
    %357 = vector.load %arg14[%c2_391, %c0_392] : memref<40x128xf32, #tpu.memory_space<vmem>>, vector<8x128xf32>
    %358 = tpu.concatenate %355, %356, %357 in 1 : vector<8x128xf32>, vector<8x128xf32>, vector<8x128xf32> -> vector<8x384xf32>
    %c3072 = arith.constant 3072 : index
    %c0_393 = arith.constant 0 : index
    %359 = vector.load %arg15[%c3072, %c0_393] : memref<4608x128xbf16, #tpu.memory_space<vmem>>, vector<384x128xbf16>
    %360 = arith.truncf %358 : vector<8x384xf32> to vector<8x384xbf16>
    %cst_394 = arith.constant dense<0.000000e+00> : vector<8x128xf32>
    %361 = tpu.matmul %360, %359, %cst_394 {dimension_numbers = #tpu.dot_dimension_numbers<[1], [0], [0], [1], [0, 0, 1, 1], [], []>} : vector<8x384xbf16>, vector<384x128xbf16>, vector<8x128xf32> -> vector<8x128xf32>
    %c8_395 = arith.constant 8 : index
    %c0_396 = arith.constant 0 : index
    %362 = vector.load %arg5[%c8_395, %c0_396] : memref<12x128xf32, #tpu.memory_space<vmem>>, vector<1x128xf32>
    %363 = vector.broadcast %362 : vector<1x128xf32> to vector<8x128xf32>
    %364 = arith.addf %361, %363 : vector<8x128xf32>
    %cst_397 = arith.constant 0.000000e+00 : f32
    %365 = vector.broadcast %cst_397 : f32 to vector<8x128xf32>
    %366 = arith.maximumf %364, %365 : vector<8x128xf32>
    %cst_398 = arith.constant 0.000000e+00 : f32
    %367 = vector.broadcast %cst_398 : f32 to vector<1x128xf32>
    %c0_399 = arith.constant 0 : index
    %c0_400 = arith.constant 0 : index
    %368 = vector.load %arg14[%c0_399, %c0_400] : memref<40x128xf32, #tpu.memory_space<vmem>>, vector<1x128xf32>
    tpu.vector_store %arg14[%c0_399, %c0_400], %367 {strides = array<i32>} : memref<40x128xf32, #tpu.memory_space<vmem>>, vector<1x128xf32>,
    %cst_401 = arith.constant 0.000000e+00 : f32
    %369 = vector.broadcast %cst_401 : f32 to vector<1x128xf32>
    %c9_402 = arith.constant 9 : index
    %c0_403 = arith.constant 0 : index
    %370 = vector.load %arg14[%c9_402, %c0_403] : memref<40x128xf32, #tpu.memory_space<vmem>>, vector<1x128xf32>
    tpu.vector_store %arg14[%c9_402, %c0_403], %369 {strides = array<i32>} : memref<40x128xf32, #tpu.memory_space<vmem>>, vector<1x128xf32>,
    %c1_404 = arith.constant 1 : index
    %c0_405 = arith.constant 0 : index
    %371 = vector.load %arg14[%c1_404, %c0_405] : memref<40x128xf32, #tpu.memory_space<vmem>>, vector<8x128xf32>
    tpu.vector_store %arg14[%c1_404, %c0_405], %366 {strides = array<i32>} : memref<40x128xf32, #tpu.memory_space<vmem>>, vector<8x128xf32>,
    %c0_406 = arith.constant 0 : index
    %c0_407 = arith.constant 0 : index
    %372 = vector.load %arg14[%c0_406, %c0_407] : memref<40x128xf32, #tpu.memory_space<vmem>>, vector<8x128xf32>
    %c1_408 = arith.constant 1 : index
    %c0_409 = arith.constant 0 : index
    %373 = vector.load %arg14[%c1_408, %c0_409] : memref<40x128xf32, #tpu.memory_space<vmem>>, vector<8x128xf32>
    %c2_410 = arith.constant 2 : index
    %c0_411 = arith.constant 0 : index
    %374 = vector.load %arg14[%c2_410, %c0_411] : memref<40x128xf32, #tpu.memory_space<vmem>>, vector<8x128xf32>
    %375 = tpu.concatenate %372, %373, %374 in 1 : vector<8x128xf32>, vector<8x128xf32>, vector<8x128xf32> -> vector<8x384xf32>
    %c3456 = arith.constant 3456 : index
    %c0_412 = arith.constant 0 : index
    %376 = vector.load %arg15[%c3456, %c0_412] : memref<4608x128xbf16, #tpu.memory_space<vmem>>, vector<384x128xbf16>
    %377 = arith.truncf %375 : vector<8x384xf32> to vector<8x384xbf16>
    %cst_413 = arith.constant dense<0.000000e+00> : vector<8x128xf32>
    %378 = tpu.matmul %377, %376, %cst_413 {dimension_numbers = #tpu.dot_dimension_numbers<[1], [0], [0], [1], [0, 0, 1, 1], [], []>} : vector<8x384xbf16>, vector<384x128xbf16>, vector<8x128xf32> -> vector<8x128xf32>
    %c9_414 = arith.constant 9 : index
    %c0_415 = arith.constant 0 : index
    %379 = vector.load %arg5[%c9_414, %c0_415] : memref<12x128xf32, #tpu.memory_space<vmem>>, vector<1x128xf32>
    %380 = vector.broadcast %379 : vector<1x128xf32> to vector<8x128xf32>
    %381 = arith.addf %378, %380 : vector<8x128xf32>
    %cst_416 = arith.constant 0.000000e+00 : f32
    %382 = vector.broadcast %cst_416 : f32 to vector<8x128xf32>
    %383 = arith.maximumf %381, %382 : vector<8x128xf32>
    %cst_417 = arith.constant 0.000000e+00 : f32
    %384 = vector.broadcast %cst_417 : f32 to vector<1x128xf32>
    %c0_418 = arith.constant 0 : index
    %c0_419 = arith.constant 0 : index
    %385 = vector.load %arg14[%c0_418, %c0_419] : memref<40x128xf32, #tpu.memory_space<vmem>>, vector<1x128xf32>
    tpu.vector_store %arg14[%c0_418, %c0_419], %384 {strides = array<i32>} : memref<40x128xf32, #tpu.memory_space<vmem>>, vector<1x128xf32>,
    %cst_420 = arith.constant 0.000000e+00 : f32
    %386 = vector.broadcast %cst_420 : f32 to vector<1x128xf32>
    %c9_421 = arith.constant 9 : index
    %c0_422 = arith.constant 0 : index
    %387 = vector.load %arg14[%c9_421, %c0_422] : memref<40x128xf32, #tpu.memory_space<vmem>>, vector<1x128xf32>
    tpu.vector_store %arg14[%c9_421, %c0_422], %386 {strides = array<i32>} : memref<40x128xf32, #tpu.memory_space<vmem>>, vector<1x128xf32>,
    %c1_423 = arith.constant 1 : index
    %c0_424 = arith.constant 0 : index
    %388 = vector.load %arg14[%c1_423, %c0_424] : memref<40x128xf32, #tpu.memory_space<vmem>>, vector<8x128xf32>
    tpu.vector_store %arg14[%c1_423, %c0_424], %383 {strides = array<i32>} : memref<40x128xf32, #tpu.memory_space<vmem>>, vector<8x128xf32>,
    %c0_425 = arith.constant 0 : index
    %c0_426 = arith.constant 0 : index
    %389 = vector.load %arg14[%c0_425, %c0_426] : memref<40x128xf32, #tpu.memory_space<vmem>>, vector<8x128xf32>
    %c1_427 = arith.constant 1 : index
    %c0_428 = arith.constant 0 : index
    %390 = vector.load %arg14[%c1_427, %c0_428] : memref<40x128xf32, #tpu.memory_space<vmem>>, vector<8x128xf32>
    %c2_429 = arith.constant 2 : index
    %c0_430 = arith.constant 0 : index
    %391 = vector.load %arg14[%c2_429, %c0_430] : memref<40x128xf32, #tpu.memory_space<vmem>>, vector<8x128xf32>
    %392 = tpu.concatenate %389, %390, %391 in 1 : vector<8x128xf32>, vector<8x128xf32>, vector<8x128xf32> -> vector<8x384xf32>
    %c3840 = arith.constant 3840 : index
    %c0_431 = arith.constant 0 : index
    %393 = vector.load %arg15[%c3840, %c0_431] : memref<4608x128xbf16, #tpu.memory_space<vmem>>, vector<384x128xbf16>
    %394 = arith.truncf %392 : vector<8x384xf32> to vector<8x384xbf16>
    %cst_432 = arith.constant dense<0.000000e+00> : vector<8x128xf32>
    %395 = tpu.matmul %394, %393, %cst_432 {dimension_numbers = #tpu.dot_dimension_numbers<[1], [0], [0], [1], [0, 0, 1, 1], [], []>} : vector<8x384xbf16>, vector<384x128xbf16>, vector<8x128xf32> -> vector<8x128xf32>
    %c10_433 = arith.constant 10 : index
    %c0_434 = arith.constant 0 : index
    %396 = vector.load %arg5[%c10_433, %c0_434] : memref<12x128xf32, #tpu.memory_space<vmem>>, vector<1x128xf32>
    %397 = vector.broadcast %396 : vector<1x128xf32> to vector<8x128xf32>
    %398 = arith.addf %395, %397 : vector<8x128xf32>
    %cst_435 = arith.constant 0.000000e+00 : f32
    %399 = vector.broadcast %cst_435 : f32 to vector<8x128xf32>
    %400 = arith.maximumf %398, %399 : vector<8x128xf32>
    %cst_436 = arith.constant 0.000000e+00 : f32
    %401 = vector.broadcast %cst_436 : f32 to vector<1x128xf32>
    %c0_437 = arith.constant 0 : index
    %c0_438 = arith.constant 0 : index
    %402 = vector.load %arg14[%c0_437, %c0_438] : memref<40x128xf32, #tpu.memory_space<vmem>>, vector<1x128xf32>
    tpu.vector_store %arg14[%c0_437, %c0_438], %401 {strides = array<i32>} : memref<40x128xf32, #tpu.memory_space<vmem>>, vector<1x128xf32>,
    %cst_439 = arith.constant 0.000000e+00 : f32
    %403 = vector.broadcast %cst_439 : f32 to vector<1x128xf32>
    %c9_440 = arith.constant 9 : index
    %c0_441 = arith.constant 0 : index
    %404 = vector.load %arg14[%c9_440, %c0_441] : memref<40x128xf32, #tpu.memory_space<vmem>>, vector<1x128xf32>
    tpu.vector_store %arg14[%c9_440, %c0_441], %403 {strides = array<i32>} : memref<40x128xf32, #tpu.memory_space<vmem>>, vector<1x128xf32>,
    %c1_442 = arith.constant 1 : index
    %c0_443 = arith.constant 0 : index
    %405 = vector.load %arg14[%c1_442, %c0_443] : memref<40x128xf32, #tpu.memory_space<vmem>>, vector<8x128xf32>
    tpu.vector_store %arg14[%c1_442, %c0_443], %400 {strides = array<i32>} : memref<40x128xf32, #tpu.memory_space<vmem>>, vector<8x128xf32>,
    %c0_444 = arith.constant 0 : index
    %c0_445 = arith.constant 0 : index
    %406 = vector.load %arg14[%c0_444, %c0_445] : memref<40x128xf32, #tpu.memory_space<vmem>>, vector<8x128xf32>
    %c1_446 = arith.constant 1 : index
    %c0_447 = arith.constant 0 : index
    %407 = vector.load %arg14[%c1_446, %c0_447] : memref<40x128xf32, #tpu.memory_space<vmem>>, vector<8x128xf32>
    %c2_448 = arith.constant 2 : index
    %c0_449 = arith.constant 0 : index
    %408 = vector.load %arg14[%c2_448, %c0_449] : memref<40x128xf32, #tpu.memory_space<vmem>>, vector<8x128xf32>
    %409 = tpu.concatenate %406, %407, %408 in 1 : vector<8x128xf32>, vector<8x128xf32>, vector<8x128xf32> -> vector<8x384xf32>
    %c4224 = arith.constant 4224 : index
    %c0_450 = arith.constant 0 : index
    %410 = vector.load %arg15[%c4224, %c0_450] : memref<4608x128xbf16, #tpu.memory_space<vmem>>, vector<384x128xbf16>
    %411 = arith.truncf %409 : vector<8x384xf32> to vector<8x384xbf16>
    %cst_451 = arith.constant dense<0.000000e+00> : vector<8x128xf32>
    %412 = tpu.matmul %411, %410, %cst_451 {dimension_numbers = #tpu.dot_dimension_numbers<[1], [0], [0], [1], [0, 0, 1, 1], [], []>} : vector<8x384xbf16>, vector<384x128xbf16>, vector<8x128xf32> -> vector<8x128xf32>
    %c11_452 = arith.constant 11 : index
    %c0_453 = arith.constant 0 : index
    %413 = vector.load %arg5[%c11_452, %c0_453] : memref<12x128xf32, #tpu.memory_space<vmem>>, vector<1x128xf32>
    %414 = vector.broadcast %413 : vector<1x128xf32> to vector<8x128xf32>
    %415 = arith.addf %412, %414 : vector<8x128xf32>
    %cst_454 = arith.constant 0.000000e+00 : f32
    %416 = vector.broadcast %cst_454 : f32 to vector<8x128xf32>
    %417 = arith.maximumf %415, %416 : vector<8x128xf32>
    %cst_455 = arith.constant dense<0.000000e+00> : vector<128xf32>
    %418 = vector.multi_reduction <add>, %417, %cst_455 [0] : vector<8x128xf32> to vector<128xf32>
    %419 = vector.shape_cast %418 : vector<128xf32> to vector<1x128xf32>
    %cst_456 = arith.constant 1.250000e-01 : f32
    %420 = vector.broadcast %cst_456 : f32 to vector<1x128xf32>
    %421 = arith.mulf %419, %420 : vector<1x128xf32>
    %c0_457 = arith.constant 0 : index
    %c0_458 = arith.constant 0 : index
    %422 = vector.load %arg6[%c0_457, %c0_458] : memref<64x256xf32, #tpu.memory_space<vmem>>, vector<64x256xf32>
    %cst_459 = arith.constant dense<0.000000e+00> : vector<1x256xf32>
    %423 = tpu.matmul %212, %422, %cst_459 {dimension_numbers = #tpu.dot_dimension_numbers<[1], [0], [0], [1], [0, 0, 1, 1], [], []>} : vector<1x64xf32>, vector<64x256xf32>, vector<1x256xf32> -> vector<1x256xf32>
    %c0_460 = arith.constant 0 : index
    %c0_461 = arith.constant 0 : index
    %424 = vector.load %arg7[%c0_460, %c0_461] : memref<128x256xf32, #tpu.memory_space<vmem>>, vector<128x256xf32>
    %cst_462 = arith.constant dense<0.000000e+00> : vector<1x256xf32>
    %425 = tpu.matmul %421, %424, %cst_462 {dimension_numbers = #tpu.dot_dimension_numbers<[1], [0], [0], [1], [0, 0, 1, 1], [], []>} : vector<1x128xf32>, vector<128x256xf32>, vector<1x256xf32> -> vector<1x256xf32>
    %426 = arith.addf %423, %425 : vector<1x256xf32>
    %c0_463 = arith.constant 0 : index
    %c0_464 = arith.constant 0 : index
    %427 = vector.load %arg8[%c0_463, %c0_464] : memref<1x256xf32, #tpu.memory_space<vmem>>, vector<1x256xf32>
    %428 = arith.addf %426, %427 : vector<1x256xf32>
    %cst_465 = arith.constant 0.000000e+00 : f32
    %429 = vector.broadcast %cst_465 : f32 to vector<1x256xf32>
    %430 = arith.maximumf %428, %429 : vector<1x256xf32>
    %c0_466 = arith.constant 0 : index
    %c0_467 = arith.constant 0 : index
    %431 = vector.load %arg9[%c0_466, %c0_467] : memref<256x4xf32, #tpu.memory_space<vmem>>, vector<256x4xf32>
    %cst_468 = arith.constant dense<0.000000e+00> : vector<1x4xf32>
    %432 = tpu.matmul %430, %431, %cst_468 {dimension_numbers = #tpu.dot_dimension_numbers<[1], [0], [0], [1], [0, 0, 1, 1], [], []>} : vector<1x256xf32>, vector<256x4xf32>, vector<1x4xf32> -> vector<1x4xf32>
    %c0_469 = arith.constant 0 : index
    %c0_470 = arith.constant 0 : index
    %433 = vector.load %arg10[%c0_469, %c0_470] : memref<1x4xf32, #tpu.memory_space<vmem>>, vector<1x4xf32>
    %434 = arith.addf %432, %433 : vector<1x4xf32>
    %cst_471 = arith.constant dense<0xFF800000> : vector<1xf32>
    %435 = vector.multi_reduction <maximumf>, %434, %cst_471 [1] : vector<1x4xf32> to vector<1xf32>
    %436 = vector.shape_cast %435 : vector<1xf32> to vector<1x1xf32>
    %437 = vector.broadcast %436 : vector<1x1xf32> to vector<1x4xf32>
    %438 = arith.subf %434, %437 : vector<1x4xf32>
    %439 = math.exp %438 : vector<1x4xf32>
    %c0_472 = arith.constant 0 : index
    %c0_473 = arith.constant 0 : index
    %440 = vector.load %arg11[%c0_472, %c0_473] : memref<4x4xf32, #tpu.memory_space<vmem>>, vector<4x4xf32>
    %cst_474 = arith.constant dense<0.000000e+00> : vector<1x4xf32>
    %441 = tpu.matmul %439, %440, %cst_474 {dimension_numbers = #tpu.dot_dimension_numbers<[1], [0], [0], [1], [0, 0, 1, 1], [], []>} : vector<1x4xf32>, vector<4x4xf32>, vector<1x4xf32> -> vector<1x4xf32>
    %442 = tpu.reciprocal %441 {approx = true} : vector<1x4xf32> -> vector<1x4xf32>
    %443 = arith.mulf %439, %442 : vector<1x4xf32>
    %c0_475 = arith.constant 0 : index
    %c0_476 = arith.constant 0 : index
    %444 = vector.load %arg12[%c0_475, %c0_476] : memref<1x4xf32, #tpu.memory_space<vmem>>, vector<1x4xf32>
    tpu.vector_store %arg12[%c0_475, %c0_476], %443 {strides = array<i32>} : memref<1x4xf32, #tpu.memory_space<vmem>>, vector<1x4xf32>,
    return
  }
}

</mosaic_0001>

<llo_original>
// kernel: pallas_forward.1
$region0: #{pallas_forward.1}
  #allocation0 [shape = 'u32[]', space=smem, size = 0x4, offset = 0x4, fixed_abs, tag = 'smem constant byte address 0x4 - core index']
  #allocation1 [shape = 'u32[72,128]{1,0:T(1,128)}', space=vmem, size = 0x9000, scoped, tag = 'internal scratch']
  #allocation2 [shape = 'f32[136,64]{1,0:T(8,128)}', space=vmem, size = 0x11000, scoped, tag = 'scratch operand']
  #allocation3 [shape = 'f32[40,128]{1,0:T(8,128)}', space=vmem, size = 0x5000, scoped, tag = 'scratch operand']
  #allocation4 [shape = 'bf16[4608,128]{1,0:T(8,128)(2,1)}', space=vmem, size = 0x120000, scoped, tag = 'scratch operand']
  #allocation5 [shape = 's32[1]{0}', space=sflag, size = 0x4, scoped, tag = 'scratch operand']
  #allocation6 [shape = 's32[]', space=sflag, size = 0x4, offset = 0, fixed_abs, tag = 'sflag constant byte address 0x0 - dummy sync flag']
  %s0 = inlined_call_operand.vmem [shape: f32[128,64], index: 0, kind: input, shape index: {}]
  %s1 = inlined_call_operand.vmem [shape: f32[32,128], index: 1, kind: input, shape index: {}]
  %s2 = inlined_call_operand.vmem [shape: bf16[2560,64], index: 2, kind: input, shape index: {}]
  %s3 = inlined_call_operand.vmem [shape: f32[12,64], index: 3, kind: input, shape index: {}]
  %s4 = inlined_call_operand.vmem [shape: bf16[4608,128], index: 4, kind: input, shape index: {}]
  %s5 = inlined_call_operand.vmem [shape: f32[12,128], index: 5, kind: input, shape index: {}]
  %s6 = inlined_call_operand.vmem [shape: f32[64,256], index: 6, kind: input, shape index: {}]
  %s7 = inlined_call_operand.vmem [shape: f32[128,256], index: 7, kind: input, shape index: {}]
  %s8 = inlined_call_operand.vmem [shape: f32[1,256], index: 8, kind: input, shape index: {}]
  %s9 = inlined_call_operand.vmem [shape: f32[256,4], index: 9, kind: input, shape index: {}]
  %s10 = inlined_call_operand.vmem [shape: f32[1,4], index: 10, kind: input, shape index: {}]
  %s11 = inlined_call_operand.vmem [shape: f32[4,4], index: 11, kind: input, shape index: {}]
  %s12 = inlined_call_operand.vmem [shape: f32[1,4], index: 12, kind: output, shape index: {}]
  %s13 = sld [smem:[#allocation0]]
  $region73: #{pallas_forward.1} parent=0
    _
  %s15 = ssub.s32 1, %s13
  %s16 = scalar_select 0, %s15, %s13
  // Predicated region
  $region2: #{pallas_forward.1} parent=0 // pred_check
    _
  $region3: #{pallas_forward.1} parent=0 // pred_check_branch
    %18 = sbr.rel (0) target = $region5
  $region4: #{pallas_forward.1} parent=0 // pred_region
    _
  $region5: #{pallas_forward.1} parent=0 // pred_fallthru
    _
  // Predicated region
  $region6: #{pallas_forward.1} parent=0 // pred_check
    _
  $region7: #{pallas_forward.1} parent=0 // pred_check_branch
    %20 = sbr.rel (0) target = $region9
  $region8: #{pallas_forward.1} parent=0 // pred_region
    _
  $region9: #{pallas_forward.1} parent=0 // pred_fallthru
    _
  // Predicated region
  $region10: #{pallas_forward.1} parent=0 // pred_check
    _
  $region11: #{pallas_forward.1} parent=0 // pred_check_branch
    %22 = sbr.rel (0) target = $region13
  $region12: #{pallas_forward.1} parent=0 // pred_region
    _
  $region13: #{pallas_forward.1} parent=0 // pred_fallthru
    _
  // Predicated region
  $region14: #{pallas_forward.1} parent=0 // pred_check
    _
  $region15: #{pallas_forward.1} parent=0 // pred_check_branch
    %24 = sbr.rel (0) target = $region17
  $region16: #{pallas_forward.1} parent=0 // pred_region
    _
  $region17: #{pallas_forward.1} parent=0 // pred_fallthru
    _
  // Predicated region
  $region18: #{pallas_forward.1} parent=0 // pred_check
    _
  $region19: #{pallas_forward.1} parent=0 // pred_check_branch
    %26 = sbr.rel (0) target = $region21
  $region20: #{pallas_forward.1} parent=0 // pred_region
    _
  $region21: #{pallas_forward.1} parent=0 // pred_fallthru
    _
  // Predicated region
  $region22: #{pallas_forward.1} parent=0 // pred_check
    _
  $region23: #{pallas_forward.1} parent=0 // pred_check_branch
    %28 = sbr.rel (0) target = $region25
  $region24: #{pallas_forward.1} parent=0 // pred_region
    _
  $region25: #{pallas_forward.1} parent=0 // pred_fallthru
    _
  // Predicated region
  $region26: #{pallas_forward.1} parent=0 // pred_check
    _
  $region27: #{pallas_forward.1} parent=0 // pred_check_branch
    %30 = sbr.rel (0) target = $region29
  $region28: #{pallas_forward.1} parent=0 // pred_region
    _
  $region29: #{pallas_forward.1} parent=0 // pred_fallthru
    _
  // Predicated region
  $region30: #{pallas_forward.1} parent=0 // pred_check
    _
  $region31: #{pallas_forward.1} parent=0 // pred_check_branch
    %32 = sbr.rel (0) target = $region33
  $region32: #{pallas_forward.1} parent=0 // pred_region
    _
  $region33: #{pallas_forward.1} parent=0 // pred_fallthru
    _
  // Predicated region
  $region34: #{pallas_forward.1} parent=0 // pred_check
    _
  $region35: #{pallas_forward.1} parent=0 // pred_check_branch
    %34 = sbr.rel (0) target = $region37
  $region36: #{pallas_forward.1} parent=0 // pred_region
    _
  $region37: #{pallas_forward.1} parent=0 // pred_fallthru
    _
  // Predicated region
  $region38: #{pallas_forward.1} parent=0 // pred_check
    _
  $region39: #{pallas_forward.1} parent=0 // pred_check_branch
    %36 = sbr.rel (0) target = $region41
  $region40: #{pallas_forward.1} parent=0 // pred_region
    _
  $region41: #{pallas_forward.1} parent=0 // pred_fallthru
    _
  // Predicated region
  $region42: #{pallas_forward.1} parent=0 // pred_check
    _
  $region43: #{pallas_forward.1} parent=0 // pred_check_branch
    %38 = sbr.rel (0) target = $region45
  $region44: #{pallas_forward.1} parent=0 // pred_region
    _
  $region45: #{pallas_forward.1} parent=0 // pred_fallthru
    _
  // Predicated region
  $region46: #{pallas_forward.1} parent=0 // pred_check
    _
  $region47: #{pallas_forward.1} parent=0 // pred_check_branch
    %41 = sbr.rel (0) target = $region49
  $region48: #{pallas_forward.1} parent=0 // pred_region
    loop: start=0, step=1, limit=1
    $region50: #{pallas_forward.1} parent=48 // loop_pre_header
      _
    $region51: #{pallas_forward.1} parent=48 // loop_header
      %s43 = sphi 0, %s47
      %p44 = scmp.ge.s32.totalorder %s43, 1
      %s48 = sphi %s4, %s4
      %s49 = sphi [#allocation4], [#allocation4]
    $region52: #{pallas_forward.1} parent=48 // loop_header_branch
      %46 = sbr.rel (%p44) target = $region56
    $region53: #{pallas_forward.1} parent=48 // loop_body
      %v50 = vld [vmem:[%s48] sm:$0xff]
      %51 = vst [vmem:[%s49] sm:$0xff] %v50
      %v52 = vld [vmem:[%s48 + $0x8] sm:$0xff]
      %53 = vst [vmem:[%s49 + $0x8] sm:$0xff] %v52
      %v54 = vld [vmem:[%s48 + $0x10] sm:$0xff]
      %55 = vst [vmem:[%s49 + $0x10] sm:$0xff] %v54
      %v56 = vld [vmem:[%s48 + $0x18] sm:$0xff]
      %57 = vst [vmem:[%s49 + $0x18] sm:$0xff] %v56
      %v58 = vld [vmem:[%s48 + $0x20] sm:$0xff]
      %59 = vst [vmem:[%s49 + $0x20] sm:$0xff] %v58
      %v60 = vld [vmem:[%s48 + $0x28] sm:$0xff]
      %61 = vst [vmem:[%s49 + $0x28] sm:$0xff] %v60
      %v62 = vld [vmem:[%s48 + $0x30] sm:$0xff]
      %63 = vst [vmem:[%s49 + $0x30] sm:$0xff] %v62
      %v64 = vld [vmem:[%s48 + $0x38] sm:$0xff]
      %65 = vst [vmem:[%s49 + $0x38] sm:$0xff] %v64
      %v66 = vld [vmem:[%s48 + $0x40] sm:$0xff]
      %67 = vst [vmem:[%s49 + $0x40] sm:$0xff] %v66
      %v68 = vld [vmem:[%s48 + $0x48] sm:$0xff]
      %69 = vst [vmem:[%s49 + $0x48] sm:$0xff] %v68
      %v70 = vld [vmem:[%s48 + $0x50] sm:$0xff]
      %71 = vst [vmem:[%s49 + $0x50] sm:$0xff] %v70
      %v72 = vld [vmem:[%s48 + $0x58] sm:$0xff]
      %73 = vst [vmem:[%s49 + $0x58] sm:$0xff] %v72
      %v74 = vld [vmem:[%s48 + $0x60] sm:$0xff]
      %75 = vst [vmem:[%s49 + $0x60] sm:$0xff] %v74
      %v76 = vld [vmem:[%s48 + $0x68] sm:$0xff]
      %77 = vst [vmem:[%s49 + $0x68] sm:$0xff] %v76
      %v78 = vld [vmem:[%s48 + $0x70] sm:$0xff]
      %79 = vst [vmem:[%s49 + $0x70] sm:$0xff] %v78
      %v80 = vld [vmem:[%s48 + $0x78] sm:$0xff]
      %81 = vst [vmem:[%s49 + $0x78] sm:$0xff] %v80
      %v82 = vld [vmem:[%s48 + $0x80] sm:$0xff]
      %83 = vst [vmem:[%s49 + $0x80] sm:$0xff] %v82
      %v84 = vld [vmem:[%s48 + $0x88] sm:$0xff]
      %85 = vst [vmem:[%s49 + $0x88] sm:$0xff] %v84
      %v86 = vld [vmem:[%s48 + $0x90] sm:$0xff]
      %87 = vst [vmem:[%s49 + $0x90] sm:$0xff] %v86
      %v88 = vld [vmem:[%s48 + $0x98] sm:$0xff]
      %89 = vst [vmem:[%s49 + $0x98] sm:$0xff] %v88
      %v90 = vld [vmem:[%s48 + $0xa0] sm:$0xff]
      %91 = vst [vmem:[%s49 + $0xa0] sm:$0xff] %v90
      %v92 = vld [vmem:[%s48 + $0xa8] sm:$0xff]
      %93 = vst [vmem:[%s49 + $0xa8] sm:$0xff] %v92
      %v94 = vld [vmem:[%s48 + $0xb0] sm:$0xff]
      %95 = vst [vmem:[%s49 + $0xb0] sm:$0xff] %v94
      %v96 = vld [vmem:[%s48 + $0xb8] sm:$0xff]
      %97 = vst [vmem:[%s49 + $0xb8] sm:$0xff] %v96
      %v98 = vld [vmem:[%s48 + $0xc0] sm:$0xff]
      %99 = vst [vmem:[%s49 + $0xc0] sm:$0xff] %v98
      %v100 = vld [vmem:[%s48 + $0xc8] sm:$0xff]
      %101 = vst [vmem:[%s49 + $0xc8] sm:$0xff] %v100
      %v102 = vld [vmem:[%s48 + $0xd0] sm:$0xff]
      %103 = vst [vmem:[%s49 + $0xd0] sm:$0xff] %v102
      %v104 = vld [vmem:[%s48 + $0xd8] sm:$0xff]
      %105 = vst [vmem:[%s49 + $0xd8] sm:$0xff] %v104
      %v106 = vld [vmem:[%s48 + $0xe0] sm:$0xff]
      %107 = vst [vmem:[%s49 + $0xe0] sm:$0xff] %v106
      %v108 = vld [vmem:[%s48 + $0xe8] sm:$0xff]
      %109 = vst [vmem:[%s49 + $0xe8] sm:$0xff] %v108
      %v110 = vld [vmem:[%s48 + $0xf0] sm:$0xff]
      %111 = vst [vmem:[%s49 + $0xf0] sm:$0xff] %v110
      %v112 = vld [vmem:[%s48 + $0xf8] sm:$0xff]
      %113 = vst [vmem:[%s49 + $0xf8] sm:$0xff] %v112
      %v114 = vld [vmem:[%s48 + $0x100] sm:$0xff]
      %115 = vst [vmem:[%s49 + $0x100] sm:$0xff] %v114
      %v116 = vld [vmem:[%s48 + $0x108] sm:$0xff]
      %117 = vst [vmem:[%s49 + $0x108] sm:$0xff] %v116
      %v118 = vld [vmem:[%s48 + $0x110] sm:$0xff]
      %119 = vst [vmem:[%s49 + $0x110] sm:$0xff] %v118
      %v120 = vld [vmem:[%s48 + $0x118] sm:$0xff]
      %121 = vst [vmem:[%s49 + $0x118] sm:$0xff] %v120
      %v122 = vld [vmem:[%s48 + $0x120] sm:$0xff]
      %123 = vst [vmem:[%s49 + $0x120] sm:$0xff] %v122
      %v124 = vld [vmem:[%s48 + $0x128] sm:$0xff]
      %125 = vst [vmem:[%s49 + $0x128] sm:$0xff] %v124
      %v126 = vld [vmem:[%s48 + $0x130] sm:$0xff]
      %127 = vst [vmem:[%s49 + $0x130] sm:$0xff] %v126
      %v128 = vld [vmem:[%s48 + $0x138] sm:$0xff]
      %129 = vst [vmem:[%s49 + $0x138] sm:$0xff] %v128
      %v130 = vld [vmem:[%s48 + $0x140] sm:$0xff]
      %131 = vst [vmem:[%s49 + $0x140] sm:$0xff] %v130
      %v132 = vld [vmem:[%s48 + $0x148] sm:$0xff]
      %133 = vst [vmem:[%s49 + $0x148] sm:$0xff] %v132
      %v134 = vld [vmem:[%s48 + $0x150] sm:$0xff]
      %135 = vst [vmem:[%s49 + $0x150] sm:$0xff] %v134
      %v136 = vld [vmem:[%s48 + $0x158] sm:$0xff]
      %137 = vst [vmem:[%s49 + $0x158] sm:$0xff] %v136
      %v138 = vld [vmem:[%s48 + $0x160] sm:$0xff]
      %139 = vst [vmem:[%s49 + $0x160] sm:$0xff] %v138
      %v140 = vld [vmem:[%s48 + $0x168] sm:$0xff]
      %141 = vst [vmem:[%s49 + $0x168] sm:$0xff] %v140
      %v142 = vld [vmem:[%s48 + $0x170] sm:$0xff]
      %143 = vst [vmem:[%s49 + $0x170] sm:$0xff] %v142
      %v144 = vld [vmem:[%s48 + $0x178] sm:$0xff]
      %145 = vst [vmem:[%s49 + $0x178] sm:$0xff] %v144
      %v146 = vld [vmem:[%s48 + $0x180] sm:$0xff]
      %147 = vst [vmem:[%s49 + $0x180] sm:$0xff] %v146
      %v148 = vld [vmem:[%s48 + $0x188] sm:$0xff]
      %149 = vst [vmem:[%s49 + $0x188] sm:$0xff] %v148
      %v150 = vld [vmem:[%s48 + $0x190] sm:$0xff]
      %151 = vst [vmem:[%s49 + $0x190] sm:$0xff] %v150
      %v152 = vld [vmem:[%s48 + $0x198] sm:$0xff]
      %153 = vst [vmem:[%s49 + $0x198] sm:$0xff] %v152
      %v154 = vld [vmem:[%s48 + $0x1a0] sm:$0xff]
      %155 = vst [vmem:[%s49 + $0x1a0] sm:$0xff] %v154
      %v156 = vld [vmem:[%s48 + $0x1a8] sm:$0xff]
      %157 = vst [vmem:[%s49 + $0x1a8] sm:$0xff] %v156
      %v158 = vld [vmem:[%s48 + $0x1b0] sm:$0xff]
      %159 = vst [vmem:[%s49 + $0x1b0] sm:$0xff] %v158
      %v160 = vld [vmem:[%s48 + $0x1b8] sm:$0xff]
      %161 = vst [vmem:[%s49 + $0x1b8] sm:$0xff] %v160
      %v162 = vld [vmem:[%s48 + $0x1c0] sm:$0xff]
      %163 = vst [vmem:[%s49 + $0x1c0] sm:$0xff] %v162
      %v164 = vld [vmem:[%s48 + $0x1c8] sm:$0xff]
      %165 = vst [vmem:[%s49 + $0x1c8] sm:$0xff] %v164
      %v166 = vld [vmem:[%s48 + $0x1d0] sm:$0xff]
      %167 = vst [vmem:[%s49 + $0x1d0] sm:$0xff] %v166
      %v168 = vld [vmem:[%s48 + $0x1d8] sm:$0xff]
      %169 = vst [vmem:[%s49 + $0x1d8] sm:$0xff] %v168
      %v170 = vld [vmem:[%s48 + $0x1e0] sm:$0xff]
      %171 = vst [vmem:[%s49 + $0x1e0] sm:$0xff] %v170
      %v172 = vld [vmem:[%s48 + $0x1e8] sm:$0xff]
      %173 = vst [vmem:[%s49 + $0x1e8] sm:$0xff] %v172
      %v174 = vld [vmem:[%s48 + $0x1f0] sm:$0xff]
      %175 = vst [vmem:[%s49 + $0x1f0] sm:$0xff] %v174
      %v176 = vld [vmem:[%s48 + $0x1f8] sm:$0xff]
      %177 = vst [vmem:[%s49 + $0x1f8] sm:$0xff] %v176
      %v178 = vld [vmem:[%s48 + $0x200] sm:$0xff]
      %179 = vst [vmem:[%s49 + $0x200] sm:$0xff] %v178
      %v180 = vld [vmem:[%s48 + $0x208] sm:$0xff]
      %181 = vst [vmem:[%s49 + $0x208] sm:$0xff] %v180
      %v182 = vld [vmem:[%s48 + $0x210] sm:$0xff]
      %183 = vst [vmem:[%s49 + $0x210] sm:$0xff] %v182
      %v184 = vld [vmem:[%s48 + $0x218] sm:$0xff]
      %185 = vst [vmem:[%s49 + $0x218] sm:$0xff] %v184
      %v186 = vld [vmem:[%s48 + $0x220] sm:$0xff]
      %187 = vst [vmem:[%s49 + $0x220] sm:$0xff] %v186
      %v188 = vld [vmem:[%s48 + $0x228] sm:$0xff]
      %189 = vst [vmem:[%s49 + $0x228] sm:$0xff] %v188
      %v190 = vld [vmem:[%s48 + $0x230] sm:$0xff]
      %191 = vst [vmem:[%s49 + $0x230] sm:$0xff] %v190
      %v192 = vld [vmem:[%s48 + $0x238] sm:$0xff]
      %193 = vst [vmem:[%s49 + $0x238] sm:$0xff] %v192
      %v194 = vld [vmem:[%s48 + $0x240] sm:$0xff]
      %195 = vst [vmem:[%s49 + $0x240] sm:$0xff] %v194
      %v196 = vld [vmem:[%s48 + $0x248] sm:$0xff]
      %197 = vst [vmem:[%s49 + $0x248] sm:$0xff] %v196
      %v198 = vld [vmem:[%s48 + $0x250] sm:$0xff]
      %199 = vst [vmem:[%s49 + $0x250] sm:$0xff] %v198
      %v200 = vld [vmem:[%s48 + $0x258] sm:$0xff]
      %201 = vst [vmem:[%s49 + $0x258] sm:$0xff] %v200
      %v202 = vld [vmem:[%s48 + $0x260] sm:$0xff]
      %203 = vst [vmem:[%s49 + $0x260] sm:$0xff] %v202
      %v204 = vld [vmem:[%s48 + $0x268] sm:$0xff]
      %205 = vst [vmem:[%s49 + $0x268] sm:$0xff] %v204
      %v206 = vld [vmem:[%s48 + $0x270] sm:$0xff]
      %207 = vst [vmem:[%s49 + $0x270] sm:$0xff] %v206
      %v208 = vld [vmem:[%s48 + $0x278] sm:$0xff]
      %209 = vst [vmem:[%s49 + $0x278] sm:$0xff] %v208
      %v210 = vld [vmem:[%s48 + $0x280] sm:$0xff]
      %211 = vst [vmem:[%s49 + $0x280] sm:$0xff] %v210
      %v212 = vld [vmem:[%s48 + $0x288] sm:$0xff]
      %213 = vst [vmem:[%s49 + $0x288] sm:$0xff] %v212
      %v214 = vld [vmem:[%s48 + $0x290] sm:$0xff]
      %215 = vst [vmem:[%s49 + $0x290] sm:$0xff] %v214
      %v216 = vld [vmem:[%s48 + $0x298] sm:$0xff]
      %217 = vst [vmem:[%s49 + $0x298] sm:$0xff] %v216
      %v218 = vld [vmem:[%s48 + $0x2a0] sm:$0xff]
      %219 = vst [vmem:[%s49 + $0x2a0] sm:$0xff] %v218
      %v220 = vld [vmem:[%s48 + $0x2a8] sm:$0xff]
      %221 = vst [vmem:[%s49 + $0x2a8] sm:$0xff] %v220
      %v222 = vld [vmem:[%s48 + $0x2b0] sm:$0xff]
      %223 = vst [vmem:[%s49 + $0x2b0] sm:$0xff] %v222
      %v224 = vld [vmem:[%s48 + $0x2b8] sm:$0xff]
      %225 = vst [vmem:[%s49 + $0x2b8] sm:$0xff] %v224
      %v226 = vld [vmem:[%s48 + $0x2c0] sm:$0xff]
      %227 = vst [vmem:[%s49 + $0x2c0] sm:$0xff] %v226
      %v228 = vld [vmem:[%s48 + $0x2c8] sm:$0xff]
      %229 = vst [vmem:[%s49 + $0x2c8] sm:$0xff] %v228
      %v230 = vld [vmem:[%s48 + $0x2d0] sm:$0xff]
      %231 = vst [vmem:[%s49 + $0x2d0] sm:$0xff] %v230
      %v232 = vld [vmem:[%s48 + $0x2d8] sm:$0xff]
      %233 = vst [vmem:[%s49 + $0x2d8] sm:$0xff] %v232
      %v234 = vld [vmem:[%s48 + $0x2e0] sm:$0xff]
      %235 = vst [vmem:[%s49 + $0x2e0] sm:$0xff] %v234
      %v236 = vld [vmem:[%s48 + $0x2e8] sm:$0xff]
      %237 = vst [vmem:[%s49 + $0x2e8] sm:$0xff] %v236
      %v238 = vld [vmem:[%s48 + $0x2f0] sm:$0xff]
      %239 = vst [vmem:[%s49 + $0x2f0] sm:$0xff] %v238
      %v240 = vld [vmem:[%s48 + $0x2f8] sm:$0xff]
      %241 = vst [vmem:[%s49 + $0x2f8] sm:$0xff] %v240
      %v242 = vld [vmem:[%s48 + $0x300] sm:$0xff]
      %243 = vst [vmem:[%s49 + $0x300] sm:$0xff] %v242
      %v244 = vld [vmem:[%s48 + $0x308] sm:$0xff]
      %245 = vst [vmem:[%s49 + $0x308] sm:$0xff] %v244
      %v246 = vld [vmem:[%s48 + $0x310] sm:$0xff]
      %247 = vst [vmem:[%s49 + $0x310] sm:$0xff] %v246
      %v248 = vld [vmem:[%s48 + $0x318] sm:$0xff]
      %249 = vst [vmem:[%s49 + $0x318] sm:$0xff] %v248
      %v250 = vld [vmem:[%s48 + $0x320] sm:$0xff]
      %251 = vst [vmem:[%s49 + $0x320] sm:$0xff] %v250
      %v252 = vld [vmem:[%s48 + $0x328] sm:$0xff]
      %253 = vst [vmem:[%s49 + $0x328] sm:$0xff] %v252
      %v254 = vld [vmem:[%s48 + $0x330] sm:$0xff]
      %255 = vst [vmem:[%s49 + $0x330] sm:$0xff] %v254
      %v256 = vld [vmem:[%s48 + $0x338] sm:$0xff]
      %257 = vst [vmem:[%s49 + $0x338] sm:$0xff] %v256
      %v258 = vld [vmem:[%s48 + $0x340] sm:$0xff]
      %259 = vst [vmem:[%s49 + $0x340] sm:$0xff] %v258
      %v260 = vld [vmem:[%s48 + $0x348] sm:$0xff]
      %261 = vst [vmem:[%s49 + $0x348] sm:$0xff] %v260
      %v262 = vld [vmem:[%s48 + $0x350] sm:$0xff]
      %263 = vst [vmem:[%s49 + $0x350] sm:$0xff] %v262
      %v264 = vld [vmem:[%s48 + $0x358] sm:$0xff]
      %265 = vst [vmem:[%s49 + $0x358] sm:$0xff] %v264
      %v266 = vld [vmem:[%s48 + $0x360] sm:$0xff]
      %267 = vst [vmem:[%s49 + $0x360] sm:$0xff] %v266
      %v268 = vld [vmem:[%s48 + $0x368] sm:$0xff]
      %269 = vst [vmem:[%s49 + $0x368] sm:$0xff] %v268
      %v270 = vld [vmem:[%s48 + $0x370] sm:$0xff]
      %271 = vst [vmem:[%s49 + $0x370] sm:$0xff] %v270
      %v272 = vld [vmem:[%s48 + $0x378] sm:$0xff]
      %273 = vst [vmem:[%s49 + $0x378] sm:$0xff] %v272
      %v274 = vld [vmem:[%s48 + $0x380] sm:$0xff]
      %275 = vst [vmem:[%s49 + $0x380] sm:$0xff] %v274
      %v276 = vld [vmem:[%s48 + $0x388] sm:$0xff]
      %277 = vst [vmem:[%s49 + $0x388] sm:$0xff] %v276
      %v278 = vld [vmem:[%s48 + $0x390] sm:$0xff]
      %279 = vst [vmem:[%s49 + $0x390] sm:$0xff] %v278
      %v280 = vld [vmem:[%s48 + $0x398] sm:$0xff]
      %281 = vst [vmem:[%s49 + $0x398] sm:$0xff] %v280
      %v282 = vld [vmem:[%s48 + $0x3a0] sm:$0xff]
      %283 = vst [vmem:[%s49 + $0x3a0] sm:$0xff] %v282
      %v284 = vld [vmem:[%s48 + $0x3a8] sm:$0xff]
      %285 = vst [vmem:[%s49 + $0x3a8] sm:$0xff] %v284
      %v286 = vld [vmem:[%s48 + $0x3b0] sm:$0xff]
      %287 = vst [vmem:[%s49 + $0x3b0] sm:$0xff] %v286
      %v288 = vld [vmem:[%s48 + $0x3b8] sm:$0xff]
      %289 = vst [vmem:[%s49 + $0x3b8] sm:$0xff] %v288
      %v290 = vld [vmem:[%s48 + $0x3c0] sm:$0xff]
      %291 = vst [vmem:[%s49 + $0x3c0] sm:$0xff] %v290
      %v292 = vld [vmem:[%s48 + $0x3c8] sm:$0xff]
      %293 = vst [vmem:[%s49 + $0x3c8] sm:$0xff] %v292
      %v294 = vld [vmem:[%s48 + $0x3d0] sm:$0xff]
      %295 = vst [vmem:[%s49 + $0x3d0] sm:$0xff] %v294
      %v296 = vld [vmem:[%s48 + $0x3d8] sm:$0xff]
      %297 = vst [vmem:[%s49 + $0x3d8] sm:$0xff] %v296
      %v298 = vld [vmem:[%s48 + $0x3e0] sm:$0xff]
      %299 = vst [vmem:[%s49 + $0x3e0] sm:$0xff] %v298
      %v300 = vld [vmem:[%s48 + $0x3e8] sm:$0xff]
      %301 = vst [vmem:[%s49 + $0x3e8] sm:$0xff] %v300
      %v302 = vld [vmem:[%s48 + $0x3f0] sm:$0xff]
      %303 = vst [vmem:[%s49 + $0x3f0] sm:$0xff] %v302
      %v304 = vld [vmem:[%s48 + $0x3f8] sm:$0xff]
      %305 = vst [vmem:[%s49 + $0x3f8] sm:$0xff] %v304
      %v306 = vld [vmem:[%s48 + $0x400] sm:$0xff]
      %307 = vst [vmem:[%s49 + $0x400] sm:$0xff] %v306
      %v308 = vld [vmem:[%s48 + $0x408] sm:$0xff]
      %309 = vst [vmem:[%s49 + $0x408] sm:$0xff] %v308
      %v310 = vld [vmem:[%s48 + $0x410] sm:$0xff]
      %311 = vst [vmem:[%s49 + $0x410] sm:$0xff] %v310
      %v312 = vld [vmem:[%s48 + $0x418] sm:$0xff]
      %313 = vst [vmem:[%s49 + $0x418] sm:$0xff] %v312
      %v314 = vld [vmem:[%s48 + $0x420] sm:$0xff]
      %315 = vst [vmem:[%s49 + $0x420] sm:$0xff] %v314
      %v316 = vld [vmem:[%s48 + $0x428] sm:$0xff]
      %317 = vst [vmem:[%s49 + $0x428] sm:$0xff] %v316
      %v318 = vld [vmem:[%s48 + $0x430] sm:$0xff]
      %319 = vst [vmem:[%s49 + $0x430] sm:$0xff] %v318
      %v320 = vld [vmem:[%s48 + $0x438] sm:$0xff]
      %321 = vst [vmem:[%s49 + $0x438] sm:$0xff] %v320
      %v322 = vld [vmem:[%s48 + $0x440] sm:$0xff]
      %323 = vst [vmem:[%s49 + $0x440] sm:$0xff] %v322
      %v324 = vld [vmem:[%s48 + $0x448] sm:$0xff]
      %325 = vst [vmem:[%s49 + $0x448] sm:$0xff] %v324
      %v326 = vld [vmem:[%s48 + $0x450] sm:$0xff]
      %327 = vst [vmem:[%s49 + $0x450] sm:$0xff] %v326
      %v328 = vld [vmem:[%s48 + $0x458] sm:$0xff]
      %329 = vst [vmem:[%s49 + $0x458] sm:$0xff] %v328
      %v330 = vld [vmem:[%s48 + $0x460] sm:$0xff]
      %331 = vst [vmem:[%s49 + $0x460] sm:$0xff] %v330
      %v332 = vld [vmem:[%s48 + $0x468] sm:$0xff]
      %333 = vst [vmem:[%s49 + $0x468] sm:$0xff] %v332
      %v334 = vld [vmem:[%s48 + $0x470] sm:$0xff]
      %335 = vst [vmem:[%s49 + $0x470] sm:$0xff] %v334
      %v336 = vld [vmem:[%s48 + $0x478] sm:$0xff]
      %337 = vst [vmem:[%s49 + $0x478] sm:$0xff] %v336
      %v338 = vld [vmem:[%s48 + $0x480] sm:$0xff]
      %339 = vst [vmem:[%s49 + $0x480] sm:$0xff] %v338
      %v340 = vld [vmem:[%s48 + $0x488] sm:$0xff]
      %341 = vst [vmem:[%s49 + $0x488] sm:$0xff] %v340
      %v342 = vld [vmem:[%s48 + $0x490] sm:$0xff]
      %343 = vst [vmem:[%s49 + $0x490] sm:$0xff] %v342
      %v344 = vld [vmem:[%s48 + $0x498] sm:$0xff]
      %345 = vst [vmem:[%s49 + $0x498] sm:$0xff] %v344
      %v346 = vld [vmem:[%s48 + $0x4a0] sm:$0xff]
      %347 = vst [vmem:[%s49 + $0x4a0] sm:$0xff] %v346
      %v348 = vld [vmem:[%s48 + $0x4a8] sm:$0xff]
      %349 = vst [vmem:[%s49 + $0x4a8] sm:$0xff] %v348
      %v350 = vld [vmem:[%s48 + $0x4b0] sm:$0xff]
      %351 = vst [vmem:[%s49 + $0x4b0] sm:$0xff] %v350
      %v352 = vld [vmem:[%s48 + $0x4b8] sm:$0xff]
      %353 = vst [vmem:[%s49 + $0x4b8] sm:$0xff] %v352
      %v354 = vld [vmem:[%s48 + $0x4c0] sm:$0xff]
      %355 = vst [vmem:[%s49 + $0x4c0] sm:$0xff] %v354
      %v356 = vld [vmem:[%s48 + $0x4c8] sm:$0xff]
      %357 = vst [vmem:[%s49 + $0x4c8] sm:$0xff] %v356
      %v358 = vld [vmem:[%s48 + $0x4d0] sm:$0xff]
      %359 = vst [vmem:[%s49 + $0x4d0] sm:$0xff] %v358
      %v360 = vld [vmem:[%s48 + $0x4d8] sm:$0xff]
      %361 = vst [vmem:[%s49 + $0x4d8] sm:$0xff] %v360
      %v362 = vld [vmem:[%s48 + $0x4e0] sm:$0xff]
      %363 = vst [vmem:[%s49 + $0x4e0] sm:$0xff] %v362
      %v364 = vld [vmem:[%s48 + $0x4e8] sm:$0xff]
      %365 = vst [vmem:[%s49 + $0x4e8] sm:$0xff] %v364
      %v366 = vld [vmem:[%s48 + $0x4f0] sm:$0xff]
      %367 = vst [vmem:[%s49 + $0x4f0] sm:$0xff] %v366
      %v368 = vld [vmem:[%s48 + $0x4f8] sm:$0xff]
      %369 = vst [vmem:[%s49 + $0x4f8] sm:$0xff] %v368
      %v370 = vld [vmem:[%s48 + $0x500] sm:$0xff]
      %371 = vst [vmem:[%s49 + $0x500] sm:$0xff] %v370
      %v372 = vld [vmem:[%s48 + $0x508] sm:$0xff]
      %373 = vst [vmem:[%s49 + $0x508] sm:$0xff] %v372
      %v374 = vld [vmem:[%s48 + $0x510] sm:$0xff]
      %375 = vst [vmem:[%s49 + $0x510] sm:$0xff] %v374
      %v376 = vld [vmem:[%s48 + $0x518] sm:$0xff]
      %377 = vst [vmem:[%s49 + $0x518] sm:$0xff] %v376
      %v378 = vld [vmem:[%s48 + $0x520] sm:$0xff]
      %379 = vst [vmem:[%s49 + $0x520] sm:$0xff] %v378
      %v380 = vld [vmem:[%s48 + $0x528] sm:$0xff]
      %381 = vst [vmem:[%s49 + $0x528] sm:$0xff] %v380
      %v382 = vld [vmem:[%s48 + $0x530] sm:$0xff]
      %383 = vst [vmem:[%s49 + $0x530] sm:$0xff] %v382
      %v384 = vld [vmem:[%s48 + $0x538] sm:$0xff]
      %385 = vst [vmem:[%s49 + $0x538] sm:$0xff] %v384
      %v386 = vld [vmem:[%s48 + $0x540] sm:$0xff]
      %387 = vst [vmem:[%s49 + $0x540] sm:$0xff] %v386
      %v388 = vld [vmem:[%s48 + $0x548] sm:$0xff]
      %389 = vst [vmem:[%s49 + $0x548] sm:$0xff] %v388
      %v390 = vld [vmem:[%s48 + $0x550] sm:$0xff]
      %391 = vst [vmem:[%s49 + $0x550] sm:$0xff] %v390
      %v392 = vld [vmem:[%s48 + $0x558] sm:$0xff]
      %393 = vst [vmem:[%s49 + $0x558] sm:$0xff] %v392
      %v394 = vld [vmem:[%s48 + $0x560] sm:$0xff]
      %395 = vst [vmem:[%s49 + $0x560] sm:$0xff] %v394
      %v396 = vld [vmem:[%s48 + $0x568] sm:$0xff]
      %397 = vst [vmem:[%s49 + $0x568] sm:$0xff] %v396
      %v398 = vld [vmem:[%s48 + $0x570] sm:$0xff]
      %399 = vst [vmem:[%s49 + $0x570] sm:$0xff] %v398
      %v400 = vld [vmem:[%s48 + $0x578] sm:$0xff]
      %401 = vst [vmem:[%s49 + $0x578] sm:$0xff] %v400
      %v402 = vld [vmem:[%s48 + $0x580] sm:$0xff]
      %403 = vst [vmem:[%s49 + $0x580] sm:$0xff] %v402
      %v404 = vld [vmem:[%s48 + $0x588] sm:$0xff]
      %405 = vst [vmem:[%s49 + $0x588] sm:$0xff] %v404
      %v406 = vld [vmem:[%s48 + $0x590] sm:$0xff]
      %407 = vst [vmem:[%s49 + $0x590] sm:$0xff] %v406
      %v408 = vld [vmem:[%s48 + $0x598] sm:$0xff]
      %409 = vst [vmem:[%s49 + $0x598] sm:$0xff] %v408
      %v410 = vld [vmem:[%s48 + $0x5a0] sm:$0xff]
      %411 = vst [vmem:[%s49 + $0x5a0] sm:$0xff] %v410
      %v412 = vld [vmem:[%s48 + $0x5a8] sm:$0xff]
      %413 = vst [vmem:[%s49 + $0x5a8] sm:$0xff] %v412
      %v414 = vld [vmem:[%s48 + $0x5b0] sm:$0xff]
      %415 = vst [vmem:[%s49 + $0x5b0] sm:$0xff] %v414
      %v416 = vld [vmem:[%s48 + $0x5b8] sm:$0xff]
      %417 = vst [vmem:[%s49 + $0x5b8] sm:$0xff] %v416
      %v418 = vld [vmem:[%s48 + $0x5c0] sm:$0xff]
      %419 = vst [vmem:[%s49 + $0x5c0] sm:$0xff] %v418
      %v420 = vld [vmem:[%s48 + $0x5c8] sm:$0xff]
      %421 = vst [vmem:[%s49 + $0x5c8] sm:$0xff] %v420
      %v422 = vld [vmem:[%s48 + $0x5d0] sm:$0xff]
      %423 = vst [vmem:[%s49 + $0x5d0] sm:$0xff] %v422
      %v424 = vld [vmem:[%s48 + $0x5d8] sm:$0xff]
      %425 = vst [vmem:[%s49 + $0x5d8] sm:$0xff] %v424
      %v426 = vld [vmem:[%s48 + $0x5e0] sm:$0xff]
      %427 = vst [vmem:[%s49 + $0x5e0] sm:$0xff] %v426
      %v428 = vld [vmem:[%s48 + $0x5e8] sm:$0xff]
      %429 = vst [vmem:[%s49 + $0x5e8] sm:$0xff] %v428
      %v430 = vld [vmem:[%s48 + $0x5f0] sm:$0xff]
      %431 = vst [vmem:[%s49 + $0x5f0] sm:$0xff] %v430
      %v432 = vld [vmem:[%s48 + $0x5f8] sm:$0xff]
      %433 = vst [vmem:[%s49 + $0x5f8] sm:$0xff] %v432
      %v434 = vld [vmem:[%s48 + $0x600] sm:$0xff]
      %435 = vst [vmem:[%s49 + $0x600] sm:$0xff] %v434
      %v436 = vld [vmem:[%s48 + $0x608] sm:$0xff]
      %437 = vst [vmem:[%s49 + $0x608] sm:$0xff] %v436
      %v438 = vld [vmem:[%s48 + $0x610] sm:$0xff]
      %439 = vst [vmem:[%s49 + $0x610] sm:$0xff] %v438
      %v440 = vld [vmem:[%s48 + $0x618] sm:$0xff]
      %441 = vst [vmem:[%s49 + $0x618] sm:$0xff] %v440
      %v442 = vld [vmem:[%s48 + $0x620] sm:$0xff]
      %443 = vst [vmem:[%s49 + $0x620] sm:$0xff] %v442
      %v444 = vld [vmem:[%s48 + $0x628] sm:$0xff]
      %445 = vst [vmem:[%s49 + $0x628] sm:$0xff] %v444
      %v446 = vld [vmem:[%s48 + $0x630] sm:$0xff]
      %447 = vst [vmem:[%s49 + $0x630] sm:$0xff] %v446
      %v448 = vld [vmem:[%s48 + $0x638] sm:$0xff]
      %449 = vst [vmem:[%s49 + $0x638] sm:$0xff] %v448
      %v450 = vld [vmem:[%s48 + $0x640] sm:$0xff]
      %451 = vst [vmem:[%s49 + $0x640] sm:$0xff] %v450
      %v452 = vld [vmem:[%s48 + $0x648] sm:$0xff]
      %453 = vst [vmem:[%s49 + $0x648] sm:$0xff] %v452
      %v454 = vld [vmem:[%s48 + $0x650] sm:$0xff]
      %455 = vst [vmem:[%s49 + $0x650] sm:$0xff] %v454
      %v456 = vld [vmem:[%s48 + $0x658] sm:$0xff]
      %457 = vst [vmem:[%s49 + $0x658] sm:$0xff] %v456
      %v458 = vld [vmem:[%s48 + $0x660] sm:$0xff]
      %459 = vst [vmem:[%s49 + $0x660] sm:$0xff] %v458
      %v460 = vld [vmem:[%s48 + $0x668] sm:$0xff]
      %461 = vst [vmem:[%s49 + $0x668] sm:$0xff] %v460
      %v462 = vld [vmem:[%s48 + $0x670] sm:$0xff]
      %463 = vst [vmem:[%s49 + $0x670] sm:$0xff] %v462
      %v464 = vld [vmem:[%s48 + $0x678] sm:$0xff]
      %465 = vst [vmem:[%s49 + $0x678] sm:$0xff] %v464
      %v466 = vld [vmem:[%s48 + $0x680] sm:$0xff]
      %467 = vst [vmem:[%s49 + $0x680] sm:$0xff] %v466
      %v468 = vld [vmem:[%s48 + $0x688] sm:$0xff]
      %469 = vst [vmem:[%s49 + $0x688] sm:$0xff] %v468
      %v470 = vld [vmem:[%s48 + $0x690] sm:$0xff]
      %471 = vst [vmem:[%s49 + $0x690] sm:$0xff] %v470
      %v472 = vld [vmem:[%s48 + $0x698] sm:$0xff]
      %473 = vst [vmem:[%s49 + $0x698] sm:$0xff] %v472
      %v474 = vld [vmem:[%s48 + $0x6a0] sm:$0xff]
      %475 = vst [vmem:[%s49 + $0x6a0] sm:$0xff] %v474
      %v476 = vld [vmem:[%s48 + $0x6a8] sm:$0xff]
      %477 = vst [vmem:[%s49 + $0x6a8] sm:$0xff] %v476
      %v478 = vld [vmem:[%s48 + $0x6b0] sm:$0xff]
      %479 = vst [vmem:[%s49 + $0x6b0] sm:$0xff] %v478
      %v480 = vld [vmem:[%s48 + $0x6b8] sm:$0xff]
      %481 = vst [vmem:[%s49 + $0x6b8] sm:$0xff] %v480
      %v482 = vld [vmem:[%s48 + $0x6c0] sm:$0xff]
      %483 = vst [vmem:[%s49 + $0x6c0] sm:$0xff] %v482
      %v484 = vld [vmem:[%s48 + $0x6c8] sm:$0xff]
      %485 = vst [vmem:[%s49 + $0x6c8] sm:$0xff] %v484
      %v486 = vld [vmem:[%s48 + $0x6d0] sm:$0xff]
      %487 = vst [vmem:[%s49 + $0x6d0] sm:$0xff] %v486
      %v488 = vld [vmem:[%s48 + $0x6d8] sm:$0xff]
      %489 = vst [vmem:[%s49 + $0x6d8] sm:$0xff] %v488
      %v490 = vld [vmem:[%s48 + $0x6e0] sm:$0xff]
      %491 = vst [vmem:[%s49 + $0x6e0] sm:$0xff] %v490
      %v492 = vld [vmem:[%s48 + $0x6e8] sm:$0xff]
      %493 = vst [vmem:[%s49 + $0x6e8] sm:$0xff] %v492
      %v494 = vld [vmem:[%s48 + $0x6f0] sm:$0xff]
      %495 = vst [vmem:[%s49 + $0x6f0] sm:$0xff] %v494
      %v496 = vld [vmem:[%s48 + $0x6f8] sm:$0xff]
      %497 = vst [vmem:[%s49 + $0x6f8] sm:$0xff] %v496
      %v498 = vld [vmem:[%s48 + $0x700] sm:$0xff]
      %499 = vst [vmem:[%s49 + $0x700] sm:$0xff] %v498
      %v500 = vld [vmem:[%s48 + $0x708] sm:$0xff]
      %501 = vst [vmem:[%s49 + $0x708] sm:$0xff] %v500
      %v502 = vld [vmem:[%s48 + $0x710] sm:$0xff]
      %503 = vst [vmem:[%s49 + $0x710] sm:$0xff] %v502
      %v504 = vld [vmem:[%s48 + $0x718] sm:$0xff]
      %505 = vst [vmem:[%s49 + $0x718] sm:$0xff] %v504
      %v506 = vld [vmem:[%s48 + $0x720] sm:$0xff]
      %507 = vst [vmem:[%s49 + $0x720] sm:$0xff] %v506
      %v508 = vld [vmem:[%s48 + $0x728] sm:$0xff]
      %509 = vst [vmem:[%s49 + $0x728] sm:$0xff] %v508
      %v510 = vld [vmem:[%s48 + $0x730] sm:$0xff]
      %511 = vst [vmem:[%s49 + $0x730] sm:$0xff] %v510
      %v512 = vld [vmem:[%s48 + $0x738] sm:$0xff]
      %513 = vst [vmem:[%s49 + $0x738] sm:$0xff] %v512
      %v514 = vld [vmem:[%s48 + $0x740] sm:$0xff]
      %515 = vst [vmem:[%s49 + $0x740] sm:$0xff] %v514
      %v516 = vld [vmem:[%s48 + $0x748] sm:$0xff]
      %517 = vst [vmem:[%s49 + $0x748] sm:$0xff] %v516
      %v518 = vld [vmem:[%s48 + $0x750] sm:$0xff]
      %519 = vst [vmem:[%s49 + $0x750] sm:$0xff] %v518
      %v520 = vld [vmem:[%s48 + $0x758] sm:$0xff]
      %521 = vst [vmem:[%s49 + $0x758] sm:$0xff] %v520
      %v522 = vld [vmem:[%s48 + $0x760] sm:$0xff]
      %523 = vst [vmem:[%s49 + $0x760] sm:$0xff] %v522
      %v524 = vld [vmem:[%s48 + $0x768] sm:$0xff]
      %525 = vst [vmem:[%s49 + $0x768] sm:$0xff] %v524
      %v526 = vld [vmem:[%s48 + $0x770] sm:$0xff]
      %527 = vst [vmem:[%s49 + $0x770] sm:$0xff] %v526
      %v528 = vld [vmem:[%s48 + $0x778] sm:$0xff]
      %529 = vst [vmem:[%s49 + $0x778] sm:$0xff] %v528
      %v530 = vld [vmem:[%s48 + $0x780] sm:$0xff]
      %531 = vst [vmem:[%s49 + $0x780] sm:$0xff] %v530
      %v532 = vld [vmem:[%s48 + $0x788] sm:$0xff]
      %533 = vst [vmem:[%s49 + $0x788] sm:$0xff] %v532
      %v534 = vld [vmem:[%s48 + $0x790] sm:$0xff]
      %535 = vst [vmem:[%s49 + $0x790] sm:$0xff] %v534
      %v536 = vld [vmem:[%s48 + $0x798] sm:$0xff]
      %537 = vst [vmem:[%s49 + $0x798] sm:$0xff] %v536
      %v538 = vld [vmem:[%s48 + $0x7a0] sm:$0xff]
      %539 = vst [vmem:[%s49 + $0x7a0] sm:$0xff] %v538
      %v540 = vld [vmem:[%s48 + $0x7a8] sm:$0xff]
      %541 = vst [vmem:[%s49 + $0x7a8] sm:$0xff] %v540
      %v542 = vld [vmem:[%s48 + $0x7b0] sm:$0xff]
      %543 = vst [vmem:[%s49 + $0x7b0] sm:$0xff] %v542
      %v544 = vld [vmem:[%s48 + $0x7b8] sm:$0xff]
      %545 = vst [vmem:[%s49 + $0x7b8] sm:$0xff] %v544
      %v546 = vld [vmem:[%s48 + $0x7c0] sm:$0xff]
      %547 = vst [vmem:[%s49 + $0x7c0] sm:$0xff] %v546
      %v548 = vld [vmem:[%s48 + $0x7c8] sm:$0xff]
      %549 = vst [vmem:[%s49 + $0x7c8] sm:$0xff] %v548
      %v550 = vld [vmem:[%s48 + $0x7d0] sm:$0xff]
      %551 = vst [vmem:[%s49 + $0x7d0] sm:$0xff] %v550
      %v552 = vld [vmem:[%s48 + $0x7d8] sm:$0xff]
      %553 = vst [vmem:[%s49 + $0x7d8] sm:$0xff] %v552
      %v554 = vld [vmem:[%s48 + $0x7e0] sm:$0xff]
      %555 = vst [vmem:[%s49 + $0x7e0] sm:$0xff] %v554
      %v556 = vld [vmem:[%s48 + $0x7e8] sm:$0xff]
      %557 = vst [vmem:[%s49 + $0x7e8] sm:$0xff] %v556
      %v558 = vld [vmem:[%s48 + $0x7f0] sm:$0xff]
      %559 = vst [vmem:[%s49 + $0x7f0] sm:$0xff] %v558
      %v560 = vld [vmem:[%s48 + $0x7f8] sm:$0xff]
      %561 = vst [vmem:[%s49 + $0x7f8] sm:$0xff] %v560
      %v562 = vld [vmem:[%s48 + $0x800] sm:$0xff]
      %563 = vst [vmem:[%s49 + $0x800] sm:$0xff] %v562
      %v564 = vld [vmem:[%s48 + $0x808] sm:$0xff]
      %565 = vst [vmem:[%s49 + $0x808] sm:$0xff] %v564
      %v566 = vld [vmem:[%s48 + $0x810] sm:$0xff]
      %567 = vst [vmem:[%s49 + $0x810] sm:$0xff] %v566
      %v568 = vld [vmem:[%s48 + $0x818] sm:$0xff]
      %569 = vst [vmem:[%s49 + $0x818] sm:$0xff] %v568
      %v570 = vld [vmem:[%s48 + $0x820] sm:$0xff]
      %571 = vst [vmem:[%s49 + $0x820] sm:$0xff] %v570
      %v572 = vld [vmem:[%s48 + $0x828] sm:$0xff]
      %573 = vst [vmem:[%s49 + $0x828] sm:$0xff] %v572
      %v574 = vld [vmem:[%s48 + $0x830] sm:$0xff]
      %575 = vst [vmem:[%s49 + $0x830] sm:$0xff] %v574
      %v576 = vld [vmem:[%s48 + $0x838] sm:$0xff]
      %577 = vst [vmem:[%s49 + $0x838] sm:$0xff] %v576
      %v578 = vld [vmem:[%s48 + $0x840] sm:$0xff]
      %579 = vst [vmem:[%s49 + $0x840] sm:$0xff] %v578
      %v580 = vld [vmem:[%s48 + $0x848] sm:$0xff]
      %581 = vst [vmem:[%s49 + $0x848] sm:$0xff] %v580
      %v582 = vld [vmem:[%s48 + $0x850] sm:$0xff]
      %583 = vst [vmem:[%s49 + $0x850] sm:$0xff] %v582
      %v584 = vld [vmem:[%s48 + $0x858] sm:$0xff]
      %585 = vst [vmem:[%s49 + $0x858] sm:$0xff] %v584
      %v586 = vld [vmem:[%s48 + $0x860] sm:$0xff]
      %587 = vst [vmem:[%s49 + $0x860] sm:$0xff] %v586
      %v588 = vld [vmem:[%s48 + $0x868] sm:$0xff]
      %589 = vst [vmem:[%s49 + $0x868] sm:$0xff] %v588
      %v590 = vld [vmem:[%s48 + $0x870] sm:$0xff]
      %591 = vst [vmem:[%s49 + $0x870] sm:$0xff] %v590
      %v592 = vld [vmem:[%s48 + $0x878] sm:$0xff]
      %593 = vst [vmem:[%s49 + $0x878] sm:$0xff] %v592
      %v594 = vld [vmem:[%s48 + $0x880] sm:$0xff]
      %595 = vst [vmem:[%s49 + $0x880] sm:$0xff] %v594
      %v596 = vld [vmem:[%s48 + $0x888] sm:$0xff]
      %597 = vst [vmem:[%s49 + $0x888] sm:$0xff] %v596
      %v598 = vld [vmem:[%s48 + $0x890] sm:$0xff]
      %599 = vst [vmem:[%s49 + $0x890] sm:$0xff] %v598
      %v600 = vld [vmem:[%s48 + $0x898] sm:$0xff]
      %601 = vst [vmem:[%s49 + $0x898] sm:$0xff] %v600
      %v602 = vld [vmem:[%s48 + $0x8a0] sm:$0xff]
      %603 = vst [vmem:[%s49 + $0x8a0] sm:$0xff] %v602
      %v604 = vld [vmem:[%s48 + $0x8a8] sm:$0xff]
      %605 = vst [vmem:[%s49 + $0x8a8] sm:$0xff] %v604
      %v606 = vld [vmem:[%s48 + $0x8b0] sm:$0xff]
      %607 = vst [vmem:[%s49 + $0x8b0] sm:$0xff] %v606
      %v608 = vld [vmem:[%s48 + $0x8b8] sm:$0xff]
      %609 = vst [vmem:[%s49 + $0x8b8] sm:$0xff] %v608
      %v610 = vld [vmem:[%s48 + $0x8c0] sm:$0xff]
      %611 = vst [vmem:[%s49 + $0x8c0] sm:$0xff] %v610
      %v612 = vld [vmem:[%s48 + $0x8c8] sm:$0xff]
      %613 = vst [vmem:[%s49 + $0x8c8] sm:$0xff] %v612
      %v614 = vld [vmem:[%s48 + $0x8d0] sm:$0xff]
      %615 = vst [vmem:[%s49 + $0x8d0] sm:$0xff] %v614
      %v616 = vld [vmem:[%s48 + $0x8d8] sm:$0xff]
      %617 = vst [vmem:[%s49 + $0x8d8] sm:$0xff] %v616
      %v618 = vld [vmem:[%s48 + $0x8e0] sm:$0xff]
      %619 = vst [vmem:[%s49 + $0x8e0] sm:$0xff] %v618
      %v620 = vld [vmem:[%s48 + $0x8e8] sm:$0xff]
      %621 = vst [vmem:[%s49 + $0x8e8] sm:$0xff] %v620
      %v622 = vld [vmem:[%s48 + $0x8f0] sm:$0xff]
      %623 = vst [vmem:[%s49 + $0x8f0] sm:$0xff] %v622
      %v624 = vld [vmem:[%s48 + $0x8f8] sm:$0xff]
      %625 = vst [vmem:[%s49 + $0x8f8] sm:$0xff] %v624
    $region54: #{pallas_forward.1} parent=48 // loop_footer
      %s47 = sadd.s32 1, %s43
    $region55: #{pallas_forward.1} parent=48 // loop_footer_branch
      %42 = sbr.rel target = $region51
    $region56: #{pallas_forward.1} parent=48 // loop_exit
      _
  $region49: #{pallas_forward.1} parent=0 // pred_fallthru
    _
  // Predicated region
  $region57: #{pallas_forward.1} parent=0 // pred_check
    _
  $region58: #{pallas_forward.1} parent=0 // pred_check_branch
    %627 = sbr.rel target = $region60
  $region59: #{pallas_forward.1} parent=0 // pred_region
    _
  $region60: #{pallas_forward.1} parent=0 // pred_fallthru
    _
  // Predicated region
  $region61: #{pallas_forward.1} parent=0 // pred_check
    _
  $region62: #{pallas_forward.1} parent=0 // pred_check_branch
    %630 = sbr.rel (0) target = $region64
  $region63: #{pallas_forward.1} parent=0 // pred_region
    %631 = vsyncadd [#allocation5], 36864
  $region64: #{pallas_forward.1} parent=0 // pred_fallthru
    _
  %v632 = vld [vmem:[%s0] sm:$0xff]
  %v633 = vld [vmem:[%s0 + $0x8] sm:$0xff]
  %v634 = vld [vmem:[%s0 + $0x10] sm:$0xff]
  %v635 = vld [vmem:[%s0 + $0x18] sm:$0xff]
  %v636 = vld [vmem:[%s0 + $0x20] sm:$0xff]
  %v637 = vld [vmem:[%s0 + $0x28] sm:$0xff]
  %v638 = vld [vmem:[%s0 + $0x30] sm:$0xff]
  %v639 = vld [vmem:[%s0 + $0x38] sm:$0xff]
  %v640 = vld [vmem:[%s0 + $0x40] sm:$0xff]
  %v641 = vld [vmem:[%s0 + $0x48] sm:$0xff]
  %v642 = vld [vmem:[%s0 + $0x50] sm:$0xff]
  %v643 = vld [vmem:[%s0 + $0x58] sm:$0xff]
  %v644 = vld [vmem:[%s0 + $0x60] sm:$0xff]
  %v645 = vld [vmem:[%s0 + $0x68] sm:$0xff]
  %v646 = vld [vmem:[%s0 + $0x70] sm:$0xff]
  %v647 = vld [vmem:[%s0 + $0x78] sm:$0xff]
  %vm648 = vcmask 517120
  %649 = vst.msk [vmem:[#allocation2] sm:$0x3] %vm648, 0.0
  %650 = vst.msk [vmem:[#allocation2 + $0x82] sm:$0x3] %vm648, 0.0
  %vm651 = vcmask 523264
  %652 = vst.msk [vmem:[#allocation2 + $0x2] sm:$0xff] %vm651, %v632
  %653 = vst.msk [vmem:[#allocation2 + $0xa] sm:$0xff] %vm651, %v633
  %654 = vst.msk [vmem:[#allocation2 + $0x12] sm:$0xff] %vm651, %v634
  %655 = vst.msk [vmem:[#allocation2 + $0x1a] sm:$0xff] %vm651, %v635
  %656 = vst.msk [vmem:[#allocation2 + $0x22] sm:$0xff] %vm651, %v636
  %657 = vst.msk [vmem:[#allocation2 + $0x2a] sm:$0xff] %vm651, %v637
  %658 = vst.msk [vmem:[#allocation2 + $0x32] sm:$0xff] %vm651, %v638
  %659 = vst.msk [vmem:[#allocation2 + $0x3a] sm:$0xff] %vm651, %v639
  %660 = vst.msk [vmem:[#allocation2 + $0x42] sm:$0xff] %vm651, %v640
  %661 = vst.msk [vmem:[#allocation2 + $0x4a] sm:$0xff] %vm651, %v641
  %662 = vst.msk [vmem:[#allocation2 + $0x52] sm:$0xff] %vm651, %v642
  %663 = vst.msk [vmem:[#allocation2 + $0x5a] sm:$0xff] %vm651, %v643
  %664 = vst.msk [vmem:[#allocation2 + $0x62] sm:$0xff] %vm651, %v644
  %665 = vst.msk [vmem:[#allocation2 + $0x6a] sm:$0xff] %vm651, %v645
  %666 = vst.msk [vmem:[#allocation2 + $0x72] sm:$0xff] %vm651, %v646
  %667 = vst.msk [vmem:[#allocation2 + $0x7a] sm:$0xff] %vm651, %v647
  %v668 = vld [vmem:[#allocation2] ss:$4 sm:$0xff]
  %s669 = scalar_lea.vmem [#allocation2], 32
  %v670 = vld [vmem:[%s669] ss:$4 sm:$0xff]
  %s671 = scalar_lea.vmem [#allocation2], 64
  %v672 = vld [vmem:[%s671] ss:$4 sm:$0xff]
  %s673 = scalar_lea.vmem [#allocation2], 96
  %v674 = vld [vmem:[%s673] ss:$4 sm:$0xff]
  %s675 = scalar_lea.vmem [#allocation2], 1
  %v676 = vld [vmem:[%s675] ss:$4 sm:$0xff]
  %s677 = scalar_lea.vmem [#allocation2], 33
  %v678 = vld [vmem:[%s677] ss:$4 sm:$0xff]
  %s679 = scalar_lea.vmem [#allocation2], 65
  %v680 = vld [vmem:[%s679] ss:$4 sm:$0xff]
  %s681 = scalar_lea.vmem [#allocation2], 97
  %v682 = vld [vmem:[%s681] ss:$4 sm:$0xff]
  %s683 = scalar_lea.vmem [#allocation2], 2
  %v684 = vld [vmem:[%s683] ss:$4 sm:$0xff]
  %s685 = scalar_lea.vmem [#allocation2], 34
  %v686 = vld [vmem:[%s685] ss:$4 sm:$0xff]
  %s687 = scalar_lea.vmem [#allocation2], 66
  %v688 = vld [vmem:[%s687] ss:$4 sm:$0xff]
  %s689 = scalar_lea.vmem [#allocation2], 98
  %v690 = vld [vmem:[%s689] ss:$4 sm:$0xff]
  %s691 = scalar_lea.vmem [#allocation2], 3
  %v692 = vld [vmem:[%s691] ss:$4 sm:$0xff]
  %s693 = scalar_lea.vmem [#allocation2], 35
  %v694 = vld [vmem:[%s693] ss:$4 sm:$0xff]
  %s695 = scalar_lea.vmem [#allocation2], 67
  %v696 = vld [vmem:[%s695] ss:$4 sm:$0xff]
  %s697 = scalar_lea.vmem [#allocation2], 99
  %v698 = vld [vmem:[%s697] ss:$4 sm:$0xff]
  %s699 = scalar_lea.vmem [#allocation2], 4
  %v700 = vld [vmem:[%s699] ss:$4 sm:$0xff]
  %s701 = scalar_lea.vmem [#allocation2], 36
  %v702 = vld [vmem:[%s701] ss:$4 sm:$0xff]
  %s703 = scalar_lea.vmem [#allocation2], 68
  %v704 = vld [vmem:[%s703] ss:$4 sm:$0xff]
  %s705 = scalar_lea.vmem [#allocation2], 100
  %v706 = vld [vmem:[%s705] ss:$4 sm:$0xff]
  %711 = vrot.lane.b32.xlu0 %v676, 64
  %v712 = vpop.permute.xlu0 %711
  %713 = vrot.lane.b32.xlu0 %v678, 64
  %v714 = vpop.permute.xlu0 %713
  %715 = vrot.lane.b32.xlu0 %v680, 64
  %v716 = vpop.permute.xlu0 %715
  %717 = vrot.lane.b32.xlu0 %v682, 64
  %v718 = vpop.permute.xlu0 %717
  %727 = vrot.lane.b32.xlu0 %v692, 64
  %v728 = vpop.permute.xlu0 %727
  %729 = vrot.lane.b32.xlu0 %v694, 64
  %v730 = vpop.permute.xlu0 %729
  %731 = vrot.lane.b32.xlu0 %v696, 64
  %v732 = vpop.permute.xlu0 %731
  %733 = vrot.lane.b32.xlu0 %v698, 64
  %v734 = vpop.permute.xlu0 %733
  %v739 = vsel %vm651, %v668, %v712
  %v740 = vsel %vm651, %v670, %v714
  %v741 = vsel %vm651, %v672, %v716
  %v742 = vsel %vm651, %v674, %v718
  %v743 = vsel %vm651, %v684, %v728
  %v744 = vsel %vm651, %v686, %v730
  %v745 = vsel %vm651, %v688, %v732
  %v746 = vsel %vm651, %v690, %v734
  %v747 = vld [vmem:[%s2] sm:$0xf]
  %v748 = vld [vmem:[%s2 + $0x4] sm:$0xf]
  %v749 = vld [vmem:[%s2 + $0x8] sm:$0xf]
  %v750 = vld [vmem:[%s2 + $0xc] sm:$0xf]
  %v751 = vld [vmem:[%s2 + $0x10] sm:$0xf]
  %v752 = vld [vmem:[%s2 + $0x14] sm:$0xf]
  %v753 = vld [vmem:[%s2 + $0x18] sm:$0xf]
  %v754 = vld [vmem:[%s2 + $0x1c] sm:$0xf]
  %v755 = vld [vmem:[%s2 + $0x20] sm:$0xf]
  %v756 = vld [vmem:[%s2 + $0x24] sm:$0xf]
  %v757 = vld [vmem:[%s2 + $0x28] sm:$0xf]
  %v758 = vld [vmem:[%s2 + $0x2c] sm:$0xf]
  %v759 = vld [vmem:[%s2 + $0x30] sm:$0xf]
  %v760 = vld [vmem:[%s2 + $0x34] sm:$0xf]
  %v761 = vld [vmem:[%s2 + $0x38] sm:$0xf]
  %v762 = vld [vmem:[%s2 + $0x3c] sm:$0xf]
  %v763 = vld [vmem:[%s2 + $0x40] sm:$0xf]
  %v764 = vld [vmem:[%s2 + $0x44] sm:$0xf]
  %v765 = vld [vmem:[%s2 + $0x48] sm:$0xf]
  %v766 = vld [vmem:[%s2 + $0x4c] sm:$0xf]
  %v767 = vld [vmem:[%s2 + $0x50] sm:$0xf]
  %v768 = vld [vmem:[%s2 + $0x54] sm:$0xf]
  %v769 = vld [vmem:[%s2 + $0x58] sm:$0xf]
  %v770 = vld [vmem:[%s2 + $0x5c] sm:$0xf]
  %v771 = vld [vmem:[%s2 + $0x60] sm:$0xf]
  %v772 = vld [vmem:[%s2 + $0x64] sm:$0xf]
  %v773 = vld [vmem:[%s2 + $0x68] sm:$0xf]
  %v774 = vld [vmem:[%s2 + $0x6c] sm:$0xf]
  %v775 = vld [vmem:[%s2 + $0x70] sm:$0xf]
  %v776 = vld [vmem:[%s2 + $0x74] sm:$0xf]
  %v777 = vld [vmem:[%s2 + $0x78] sm:$0xf]
  %v778 = vld [vmem:[%s2 + $0x7c] sm:$0xf]
  %v779 = vld [vmem:[%s2 + $0x80] sm:$0xf]
  %v780 = vld [vmem:[%s2 + $0x84] sm:$0xf]
  %v781 = vld [vmem:[%s2 + $0x88] sm:$0xf]
  %v782 = vld [vmem:[%s2 + $0x8c] sm:$0xf]
  %v783 = vld [vmem:[%s2 + $0x90] sm:$0xf]
  %v784 = vld [vmem:[%s2 + $0x94] sm:$0xf]
  %v785 = vld [vmem:[%s2 + $0x98] sm:$0xf]
  %v786 = vld [vmem:[%s2 + $0x9c] sm:$0xf]
  %v787 = vpack.c.bf16 %v740, %v739
  %v788 = vpack.c.bf16 %v744, %v743
  %v789 = vpack.c.bf16 %v702, %v700
  %v790 = vpack.c.bf16 %v742, %v741
  %v791 = vpack.c.bf16 %v746, %v745
  %v792 = vpack.c.bf16 %v706, %v704
  %v793 = vld [vmem:[%s3] sm:$0x1]
  %v794 = vperm.slane %v793, 0
  %v835 = vunpack.c.l.b16 %v747
  %v836 = vunpack.c.l.b16 %v748
  %v837 = vunpack.c.l.b16 %v749
  %v838 = vunpack.c.l.b16 %v750
  %v839 = vunpack.c.l.b16 %v751
  %v840 = vunpack.c.l.b16 %v752
  %v841 = vunpack.c.l.b16 %v753
  %v842 = vunpack.c.l.b16 %v754
  %v843 = vunpack.c.l.b16 %v755
  %v844 = vunpack.c.l.b16 %v756
  %v845 = vunpack.c.l.b16 %v757
  %v846 = vunpack.c.l.b16 %v758
  %v847 = vunpack.c.l.b16 %v759
  %v848 = vunpack.c.l.b16 %v760
  %v849 = vunpack.c.l.b16 %v761
  %v850 = vunpack.c.l.b16 %v762
  %v851 = vunpack.c.l.b16 %v763
  %v852 = vunpack.c.l.b16 %v764
  %v853 = vunpack.c.l.b16 %v765
  %v854 = vunpack.c.l.b16 %v766
  %v855 = vunpack.c.l.b16 %v767
  %v856 = vunpack.c.l.b16 %v768
  %v857 = vunpack.c.l.b16 %v769
  %v858 = vunpack.c.l.b16 %v770
  %v859 = vunpack.c.l.b16 %v771
  %v860 = vunpack.c.l.b16 %v772
  %v861 = vunpack.c.l.b16 %v773
  %v862 = vunpack.c.l.b16 %v774
  %v863 = vunpack.c.l.b16 %v775
  %v864 = vunpack.c.l.b16 %v776
  %v865 = vunpack.c.l.b16 %v777
  %v866 = vunpack.c.l.b16 %v778
  %v867 = vunpack.c.l.b16 %v779
  %v868 = vunpack.c.l.b16 %v780
  %v869 = vunpack.c.l.b16 %v781
  %v870 = vunpack.c.l.b16 %v782
  %v871 = vunpack.c.l.b16 %v783
  %v872 = vunpack.c.l.b16 %v784
  %v873 = vunpack.c.l.b16 %v785
  %v874 = vunpack.c.l.b16 %v786
  %v875 = vpack.c.b16 %v836, %v835
  %v876 = vpack.c.b16 %v838, %v837
  %v877 = vpack.c.b16 %v840, %v839
  %v878 = vpack.c.b16 %v842, %v841
  %v879 = vpack.c.b16 %v844, %v843
  %v880 = vpack.c.b16 %v846, %v845
  %v881 = vpack.c.b16 %v848, %v847
  %v882 = vpack.c.b16 %v850, %v849
  %v883 = vpack.c.b16 %v852, %v851
  %v884 = vpack.c.b16 %v854, %v853
  %v885 = vpack.c.b16 %v856, %v855
  %v886 = vpack.c.b16 %v858, %v857
  %v887 = vpack.c.b16 %v860, %v859
  %v888 = vpack.c.b16 %v862, %v861
  %v889 = vpack.c.b16 %v864, %v863
  %v890 = vpack.c.b16 %v866, %v865
  %v891 = vpack.c.b16 %v868, %v867
  %v892 = vpack.c.b16 %v870, %v869
  %v893 = vpack.c.b16 %v872, %v871
  %v894 = vpack.c.b16 %v874, %v873
  %v916 = vsel %vm651, %v789, 0
  %v919 = vsel %vm651, %v792, 0
  %921 = vmatpush.bf16.msra.mxu0 %v882
  %922 = vmatpush.bf16.msra.mxu0 %v881
  %923 = vmatpush.bf16.msra.mxu0 %v880
  %924 = vmatpush.bf16.msra.mxu0 %v879
  %925 = vmatpush.bf16.msra.mxu0 %v878
  %926 = vmatpush.bf16.msra.mxu0 %v877
  %927 = vmatpush.bf16.msra.mxu0 %v876
  %928 = vmatpush.bf16.msra.mxu0 %v875
  %929 = vmatmul.bf16.gmra.mxu0 %v787
  %v930 = vpop.f32.mrf.mxu0
  %v931 = vadd.f32 %v794, %v930
  %v932 = vpop.f32.mrf.mxu0
  %v933 = vadd.f32 %v794, %v932
  %934 = vmatmul.bf16.gmra.mxu0 %v790
  %v935 = vpop.f32.mrf.mxu0
  %v936 = vadd.f32 %v794, %v935
  %v937 = vpop.f32.mrf.mxu0
  %v938 = vadd.f32 %v794, %v937
  %939 = vdwg.mxu0
  %940 = vmatpush.bf16.msra.mxu0 %v890
  %941 = vmatpush.bf16.msra.mxu0 %v889
  %942 = vmatpush.bf16.msra.mxu0 %v888
  %943 = vmatpush.bf16.msra.mxu0 %v887
  %944 = vmatpush.bf16.msra.mxu0 %v886
  %945 = vmatpush.bf16.msra.mxu0 %v885
  %946 = vmatpush.bf16.msra.mxu0 %v884
  %947 = vmatpush.bf16.msra.mxu0 %v883
  %948 = vmatmul.bf16.gmra.mxu0 %v788
  %v949 = vpop.f32.mrf.mxu0
  %v950 = vadd.f32 %v931, %v949
  %v951 = vpop.f32.mrf.mxu0
  %v952 = vadd.f32 %v933, %v951
  %953 = vmatmul.bf16.gmra.mxu0 %v791
  %v954 = vpop.f32.mrf.mxu0
  %v955 = vadd.f32 %v936, %v954
  %v956 = vpop.f32.mrf.mxu0
  %v957 = vadd.f32 %v938, %v956
  %958 = vdwg.mxu0
  %959 = vmatpush.bf16.msra.mxu0 0
  %960 = vmatpush.bf16.msra.mxu0 0
  %961 = vmatpush.bf16.msra.mxu0 0
  %962 = vmatpush.bf16.msra.mxu0 0
  %963 = vmatpush.bf16.msra.mxu0 %v894
  %964 = vmatpush.bf16.msra.mxu0 %v893
  %965 = vmatpush.bf16.msra.mxu0 %v892
  %966 = vmatpush.bf16.msra.mxu0 %v891
  %967 = vmatmul.bf16.gmra.mxu0 %v916
  %v968 = vpop.f32.mrf.mxu0
  %v969 = vadd.f32 %v950, %v968
  %v970 = vpop.f32.mrf.mxu0
  %v971 = vadd.f32 %v952, %v970
  %972 = vmatmul.bf16.gmra.mxu0 %v919
  %v973 = vpop.f32.mrf.mxu0
  %v974 = vadd.f32 %v955, %v973
  %v975 = vpop.f32.mrf.mxu0
  %v976 = vadd.f32 %v957, %v975
  %977 = vdwg.mxu0
  %v978 = vmax.f32 %v969, 0.0
  %v979 = vmax.f32 %v971, 0.0
  %v980 = vmax.f32 %v974, 0.0
  %v981 = vmax.f32 %v976, 0.0
  %vm982 = vcmask 516096
  %983 = vst.msk [vmem:[#allocation2] sm:$0x1] %vm982, 0.0
  %984 = vst.msk [vmem:[#allocation2 + $0x21] sm:$0x1] %vm982, 0.0
  %985 = vst.msk [vmem:[#allocation2 + $0x1] sm:$0xff] %vm651, %v978
  %986 = vst.msk [vmem:[#allocation2 + $0x9] sm:$0xff] %vm651, %v979
  %987 = vst.msk [vmem:[#allocation2 + $0x11] sm:$0xff] %vm651, %v980
  %988 = vst.msk [vmem:[#allocation2 + $0x19] sm:$0xff] %vm651, %v981
  %v989 = vld [vmem:[#allocation2] sm:$0xff]
  %v990 = vld [vmem:[#allocation2 + $0x8] sm:$0xff]
  %v991 = vld [vmem:[#allocation2 + $0x10] sm:$0xff]
  %v992 = vld [vmem:[#allocation2 + $0x18] sm:$0xff]
  %v993 = vld [vmem:[#allocation2 + $0x1] sm:$0xff]
  %v994 = vld [vmem:[#allocation2 + $0x9] sm:$0xff]
  %v995 = vld [vmem:[#allocation2 + $0x11] sm:$0xff]
  %v996 = vld [vmem:[#allocation2 + $0x19] sm:$0xff]
  %v997 = vld [vmem:[#allocation2 + $0x2] sm:$0xff]
  %v998 = vld [vmem:[#allocation2 + $0xa] sm:$0xff]
  %v999 = vld [vmem:[#allocation2 + $0x12] sm:$0xff]
  %v1000 = vld [vmem:[#allocation2 + $0x1a] sm:$0xff]
  %1005 = vrot.lane.b32.xlu0 %v993, 64
  %v1006 = vpop.permute.xlu0 %1005
  %1007 = vrot.lane.b32.xlu0 %v994, 64
  %v1008 = vpop.permute.xlu0 %1007
  %1009 = vrot.lane.b32.xlu0 %v995, 64
  %v1010 = vpop.permute.xlu0 %1009
  %1011 = vrot.lane.b32.xlu0 %v996, 64
  %v1012 = vpop.permute.xlu0 %1011
  %v1017 = vsel %vm651, %v989, %v1006
  %v1018 = vsel %vm651, %v990, %v1008
  %v1019 = vsel %vm651, %v991, %v1010
  %v1020 = vsel %vm651, %v992, %v1012
  %v1021 = vld [vmem:[%s2 + $0xa0] sm:$0xf]
  %v1022 = vld [vmem:[%s2 + $0xa4] sm:$0xf]
  %v1023 = vld [vmem:[%s2 + $0xa8] sm:$0xf]
  %v1024 = vld [vmem:[%s2 + $0xac] sm:$0xf]
  %v1025 = vld [vmem:[%s2 + $0xb0] sm:$0xf]
  %v1026 = vld [vmem:[%s2 + $0xb4] sm:$0xf]
  %v1027 = vld [vmem:[%s2 + $0xb8] sm:$0xf]
  %v1028 = vld [vmem:[%s2 + $0xbc] sm:$0xf]
  %v1029 = vld [vmem:[%s2 + $0xc0] sm:$0xf]
  %v1030 = vld [vmem:[%s2 + $0xc4] sm:$0xf]
  %v1031 = vld [vmem:[%s2 + $0xc8] sm:$0xf]
  %v1032 = vld [vmem:[%s2 + $0xcc] sm:$0xf]
  %v1033 = vld [vmem:[%s2 + $0xd0] sm:$0xf]
  %v1034 = vld [vmem:[%s2 + $0xd4] sm:$0xf]
  %v1035 = vld [vmem:[%s2 + $0xd8] sm:$0xf]
  %v1036 = vld [vmem:[%s2 + $0xdc] sm:$0xf]
  %v1037 = vld [vmem:[%s2 + $0xe0] sm:$0xf]
  %v1038 = vld [vmem:[%s2 + $0xe4] sm:$0xf]
  %v1039 = vld [vmem:[%s2 + $0xe8] sm:$0xf]
  %v1040 = vld [vmem:[%s2 + $0xec] sm:$0xf]
  %v1041 = vld [vmem:[%s2 + $0xf0] sm:$0xf]
  %v1042 = vld [vmem:[%s2 + $0xf4] sm:$0xf]
  %v1043 = vld [vmem:[%s2 + $0xf8] sm:$0xf]
  %v1044 = vld [vmem:[%s2 + $0xfc] sm:$0xf]
  %v1045 = vpack.c.bf16 %v1018, %v1017
  %v1046 = vpack.c.bf16 %v998, %v997
  %v1047 = vpack.c.bf16 %v1020, %v1019
  %v1048 = vpack.c.bf16 %v1000, %v999
  %v1049 = vld [vmem:[%s3 + $0x1] sm:$0x1]
  %v1050 = vperm.slane %v1049, 0
  %v1075 = vunpack.c.l.b16 %v1021
  %v1076 = vunpack.c.l.b16 %v1022
  %v1077 = vunpack.c.l.b16 %v1023
  %v1078 = vunpack.c.l.b16 %v1024
  %v1079 = vunpack.c.l.b16 %v1025
  %v1080 = vunpack.c.l.b16 %v1026
  %v1081 = vunpack.c.l.b16 %v1027
  %v1082 = vunpack.c.l.b16 %v1028
  %v1083 = vunpack.c.l.b16 %v1029
  %v1084 = vunpack.c.l.b16 %v1030
  %v1085 = vunpack.c.l.b16 %v1031
  %v1086 = vunpack.c.l.b16 %v1032
  %v1087 = vunpack.c.l.b16 %v1033
  %v1088 = vunpack.c.l.b16 %v1034
  %v1089 = vunpack.c.l.b16 %v1035
  %v1090 = vunpack.c.l.b16 %v1036
  %v1091 = vunpack.c.l.b16 %v1037
  %v1092 = vunpack.c.l.b16 %v1038
  %v1093 = vunpack.c.l.b16 %v1039
  %v1094 = vunpack.c.l.b16 %v1040
  %v1095 = vunpack.c.l.b16 %v1041
  %v1096 = vunpack.c.l.b16 %v1042
  %v1097 = vunpack.c.l.b16 %v1043
  %v1098 = vunpack.c.l.b16 %v1044
  %v1099 = vpack.c.b16 %v1076, %v1075
  %v1100 = vpack.c.b16 %v1078, %v1077
  %v1101 = vpack.c.b16 %v1080, %v1079
  %v1102 = vpack.c.b16 %v1082, %v1081
  %v1103 = vpack.c.b16 %v1084, %v1083
  %v1104 = vpack.c.b16 %v1086, %v1085
  %v1105 = vpack.c.b16 %v1088, %v1087
  %v1106 = vpack.c.b16 %v1090, %v1089
  %v1107 = vpack.c.b16 %v1092, %v1091
  %v1108 = vpack.c.b16 %v1094, %v1093
  %v1109 = vpack.c.b16 %v1096, %v1095
  %v1110 = vpack.c.b16 %v1098, %v1097
  %v1124 = vsel %vm651, %v1046, 0
  %v1127 = vsel %vm651, %v1048, 0
  %1129 = vmatpush.bf16.msra.mxu0 %v1106
  %1130 = vmatpush.bf16.msra.mxu0 %v1105
  %1131 = vmatpush.bf16.msra.mxu0 %v1104
  %1132 = vmatpush.bf16.msra.mxu0 %v1103
  %1133 = vmatpush.bf16.msra.mxu0 %v1102
  %1134 = vmatpush.bf16.msra.mxu0 %v1101
  %1135 = vmatpush.bf16.msra.mxu0 %v1100
  %1136 = vmatpush.bf16.msra.mxu0 %v1099
  %1137 = vmatmul.bf16.gmra.mxu0 %v1045
  %v1138 = vpop.f32.mrf.mxu0
  %v1139 = vadd.f32 %v1050, %v1138
  %v1140 = vpop.f32.mrf.mxu0
  %v1141 = vadd.f32 %v1050, %v1140
  %1142 = vmatmul.bf16.gmra.mxu0 %v1047
  %v1143 = vpop.f32.mrf.mxu0
  %v1144 = vadd.f32 %v1050, %v1143
  %v1145 = vpop.f32.mrf.mxu0
  %v1146 = vadd.f32 %v1050, %v1145
  %1147 = vdwg.mxu0
  %1148 = vmatpush.bf16.msra.mxu0 0
  %1149 = vmatpush.bf16.msra.mxu0 0
  %1150 = vmatpush.bf16.msra.mxu0 0
  %1151 = vmatpush.bf16.msra.mxu0 0
  %1152 = vmatpush.bf16.msra.mxu0 %v1110
  %1153 = vmatpush.bf16.msra.mxu0 %v1109
  %1154 = vmatpush.bf16.msra.mxu0 %v1108
  %1155 = vmatpush.bf16.msra.mxu0 %v1107
  %1156 = vmatmul.bf16.gmra.mxu0 %v1124
  %v1157 = vpop.f32.mrf.mxu0
  %v1158 = vadd.f32 %v1139, %v1157
  %v1159 = vpop.f32.mrf.mxu0
  %v1160 = vadd.f32 %v1141, %v1159
  %1161 = vmatmul.bf16.gmra.mxu0 %v1127
  %v1162 = vpop.f32.mrf.mxu0
  %v1163 = vadd.f32 %v1144, %v1162
  %v1164 = vpop.f32.mrf.mxu0
  %v1165 = vadd.f32 %v1146, %v1164
  %1166 = vdwg.mxu0
  %v1167 = vmax.f32 %v1158, 0.0
  %v1168 = vmax.f32 %v1160, 0.0
  %v1169 = vmax.f32 %v1163, 0.0
  %v1170 = vmax.f32 %v1165, 0.0
  %1171 = vst.msk [vmem:[#allocation2] sm:$0x1] %vm982, 0.0
  %1172 = vst.msk [vmem:[#allocation2 + $0x21] sm:$0x1] %vm982, 0.0
  %1173 = vst.msk [vmem:[#allocation2 + $0x1] sm:$0xff] %vm651, %v1167
  %1174 = vst.msk [vmem:[#allocation2 + $0x9] sm:$0xff] %vm651, %v1168
  %1175 = vst.msk [vmem:[#allocation2 + $0x11] sm:$0xff] %vm651, %v1169
  %1176 = vst.msk [vmem:[#allocation2 + $0x19] sm:$0xff] %vm651, %v1170
  %v1177 = vld [vmem:[#allocation2] sm:$0xff]
  %v1178 = vld [vmem:[#allocation2 + $0x8] sm:$0xff]
  %v1179 = vld [vmem:[#allocation2 + $0x10] sm:$0xff]
  %v1180 = vld [vmem:[#allocation2 + $0x18] sm:$0xff]
  %v1181 = vld [vmem:[#allocation2 + $0x1] sm:$0xff]
  %v1182 = vld [vmem:[#allocation2 + $0x9] sm:$0xff]
  %v1183 = vld [vmem:[#allocation2 + $0x11] sm:$0xff]
  %v1184 = vld [vmem:[#allocation2 + $0x19] sm:$0xff]
  %v1185 = vld [vmem:[#allocation2 + $0x2] sm:$0xff]
  %v1186 = vld [vmem:[#allocation2 + $0xa] sm:$0xff]
  %v1187 = vld [vmem:[#allocation2 + $0x12] sm:$0xff]
  %v1188 = vld [vmem:[#allocation2 + $0x1a] sm:$0xff]
  %1193 = vrot.lane.b32.xlu0 %v1181, 64
  %v1194 = vpop.permute.xlu0 %1193
  %1195 = vrot.lane.b32.xlu0 %v1182, 64
  %v1196 = vpop.permute.xlu0 %1195
  %1197 = vrot.lane.b32.xlu0 %v1183, 64
  %v1198 = vpop.permute.xlu0 %1197
  %1199 = vrot.lane.b32.xlu0 %v1184, 64
  %v1200 = vpop.permute.xlu0 %1199
  %v1205 = vsel %vm651, %v1177, %v1194
  %v1206 = vsel %vm651, %v1178, %v1196
  %v1207 = vsel %vm651, %v1179, %v1198
  %v1208 = vsel %vm651, %v1180, %v1200
  %v1209 = vld [vmem:[%s2 + $0x100] sm:$0xf]
  %v1210 = vld [vmem:[%s2 + $0x104] sm:$0xf]
  %v1211 = vld [vmem:[%s2 + $0x108] sm:$0xf]
  %v1212 = vld [vmem:[%s2 + $0x10c] sm:$0xf]
  %v1213 = vld [vmem:[%s2 + $0x110] sm:$0xf]
  %v1214 = vld [vmem:[%s2 + $0x114] sm:$0xf]
  %v1215 = vld [vmem:[%s2 + $0x118] sm:$0xf]
  %v1216 = vld [vmem:[%s2 + $0x11c] sm:$0xf]
  %v1217 = vld [vmem:[%s2 + $0x120] sm:$0xf]
  %v1218 = vld [vmem:[%s2 + $0x124] sm:$0xf]
  %v1219 = vld [vmem:[%s2 + $0x128] sm:$0xf]
  %v1220 = vld [vmem:[%s2 + $0x12c] sm:$0xf]
  %v1221 = vld [vmem:[%s2 + $0x130] sm:$0xf]
  %v1222 = vld [vmem:[%s2 + $0x134] sm:$0xf]
  %v1223 = vld [vmem:[%s2 + $0x138] sm:$0xf]
  %v1224 = vld [vmem:[%s2 + $0x13c] sm:$0xf]
  %v1225 = vld [vmem:[%s2 + $0x140] sm:$0xf]
  %v1226 = vld [vmem:[%s2 + $0x144] sm:$0xf]
  %v1227 = vld [vmem:[%s2 + $0x148] sm:$0xf]
  %v1228 = vld [vmem:[%s2 + $0x14c] sm:$0xf]
  %v1229 = vld [vmem:[%s2 + $0x150] sm:$0xf]
  %v1230 = vld [vmem:[%s2 + $0x154] sm:$0xf]
  %v1231 = vld [vmem:[%s2 + $0x158] sm:$0xf]
  %v1232 = vld [vmem:[%s2 + $0x15c] sm:$0xf]
  %v1233 = vpack.c.bf16 %v1206, %v1205
  %v1234 = vpack.c.bf16 %v1186, %v1185
  %v1235 = vpack.c.bf16 %v1208, %v1207
  %v1236 = vpack.c.bf16 %v1188, %v1187
  %v1237 = vld [vmem:[%s3 + $0x2] sm:$0x1]
  %v1238 = vperm.slane %v1237, 0
  %v1263 = vunpack.c.l.b16 %v1209
  %v1264 = vunpack.c.l.b16 %v1210
  %v1265 = vunpack.c.l.b16 %v1211
  %v1266 = vunpack.c.l.b16 %v1212
  %v1267 = vunpack.c.l.b16 %v1213
  %v1268 = vunpack.c.l.b16 %v1214
  %v1269 = vunpack.c.l.b16 %v1215
  %v1270 = vunpack.c.l.b16 %v1216
  %v1271 = vunpack.c.l.b16 %v1217
  %v1272 = vunpack.c.l.b16 %v1218
  %v1273 = vunpack.c.l.b16 %v1219
  %v1274 = vunpack.c.l.b16 %v1220
  %v1275 = vunpack.c.l.b16 %v1221
  %v1276 = vunpack.c.l.b16 %v1222
  %v1277 = vunpack.c.l.b16 %v1223
  %v1278 = vunpack.c.l.b16 %v1224
  %v1279 = vunpack.c.l.b16 %v1225
  %v1280 = vunpack.c.l.b16 %v1226
  %v1281 = vunpack.c.l.b16 %v1227
  %v1282 = vunpack.c.l.b16 %v1228
  %v1283 = vunpack.c.l.b16 %v1229
  %v1284 = vunpack.c.l.b16 %v1230
  %v1285 = vunpack.c.l.b16 %v1231
  %v1286 = vunpack.c.l.b16 %v1232
  %v1287 = vpack.c.b16 %v1264, %v1263
  %v1288 = vpack.c.b16 %v1266, %v1265
  %v1289 = vpack.c.b16 %v1268, %v1267
  %v1290 = vpack.c.b16 %v1270, %v1269
  %v1291 = vpack.c.b16 %v1272, %v1271
  %v1292 = vpack.c.b16 %v1274, %v1273
  %v1293 = vpack.c.b16 %v1276, %v1275
  %v1294 = vpack.c.b16 %v1278, %v1277
  %v1295 = vpack.c.b16 %v1280, %v1279
  %v1296 = vpack.c.b16 %v1282, %v1281
  %v1297 = vpack.c.b16 %v1284, %v1283
  %v1298 = vpack.c.b16 %v1286, %v1285
  %v1312 = vsel %vm651, %v1234, 0
  %v1315 = vsel %vm651, %v1236, 0
  %1317 = vmatpush.bf16.msra.mxu0 %v1294
  %1318 = vmatpush.bf16.msra.mxu0 %v1293
  %1319 = vmatpush.bf16.msra.mxu0 %v1292
  %1320 = vmatpush.bf16.msra.mxu0 %v1291
  %1321 = vmatpush.bf16.msra.mxu0 %v1290
  %1322 = vmatpush.bf16.msra.mxu0 %v1289
  %1323 = vmatpush.bf16.msra.mxu0 %v1288
  %1324 = vmatpush.bf16.msra.mxu0 %v1287
  %1325 = vmatmul.bf16.gmra.mxu0 %v1233
  %v1326 = vpop.f32.mrf.mxu0
  %v1327 = vadd.f32 %v1238, %v1326
  %v1328 = vpop.f32.mrf.mxu0
  %v1329 = vadd.f32 %v1238, %v1328
  %1330 = vmatmul.bf16.gmra.mxu0 %v1235
  %v1331 = vpop.f32.mrf.mxu0
  %v1332 = vadd.f32 %v1238, %v1331
  %v1333 = vpop.f32.mrf.mxu0
  %v1334 = vadd.f32 %v1238, %v1333
  %1335 = vdwg.mxu0
  %1336 = vmatpush.bf16.msra.mxu0 0
  %1337 = vmatpush.bf16.msra.mxu0 0
  %1338 = vmatpush.bf16.msra.mxu0 0
  %1339 = vmatpush.bf16.msra.mxu0 0
  %1340 = vmatpush.bf16.msra.mxu0 %v1298
  %1341 = vmatpush.bf16.msra.mxu0 %v1297
  %1342 = vmatpush.bf16.msra.mxu0 %v1296
  %1343 = vmatpush.bf16.msra.mxu0 %v1295
  %1344 = vmatmul.bf16.gmra.mxu0 %v1312
  %v1345 = vpop.f32.mrf.mxu0
  %v1346 = vadd.f32 %v1327, %v1345
  %v1347 = vpop.f32.mrf.mxu0
  %v1348 = vadd.f32 %v1329, %v1347
  %1349 = vmatmul.bf16.gmra.mxu0 %v1315
  %v1350 = vpop.f32.mrf.mxu0
  %v1351 = vadd.f32 %v1332, %v1350
  %v1352 = vpop.f32.mrf.mxu0
  %v1353 = vadd.f32 %v1334, %v1352
  %1354 = vdwg.mxu0
  %v1355 = vmax.f32 %v1346, 0.0
  %v1356 = vmax.f32 %v1348, 0.0
  %v1357 = vmax.f32 %v1351, 0.0
  %v1358 = vmax.f32 %v1353, 0.0
  %1359 = vst.msk [vmem:[#allocation2] sm:$0x3] %vm648, 0.0
  %1360 = vst.msk [vmem:[#allocation2 + $0x22] sm:$0x3] %vm648, 0.0
  %1361 = vst.msk [vmem:[#allocation2 + $0x2] sm:$0xff] %vm651, %v1355
  %1362 = vst.msk [vmem:[#allocation2 + $0xa] sm:$0xff] %vm651, %v1356
  %1363 = vst.msk [vmem:[#allocation2 + $0x12] sm:$0xff] %vm651, %v1357
  %1364 = vst.msk [vmem:[#allocation2 + $0x1a] sm:$0xff] %vm651, %v1358
  %v1365 = vld [vmem:[#allocation2] ss:$4 sm:$0xff]
  %v1366 = vld [vmem:[%s675] ss:$4 sm:$0xff]
  %v1367 = vld [vmem:[%s683] ss:$4 sm:$0xff]
  %v1368 = vld [vmem:[%s691] ss:$4 sm:$0xff]
  %v1369 = vld [vmem:[%s699] ss:$4 sm:$0xff]
  %1371 = vrot.lane.b32.xlu0 %v1366, 64
  %v1372 = vpop.permute.xlu0 %1371
  %1375 = vrot.lane.b32.xlu0 %v1368, 64
  %v1376 = vpop.permute.xlu0 %1375
  %v1378 = vsel %vm651, %v1365, %v1372
  %v1379 = vsel %vm651, %v1367, %v1376
  %v1380 = vld [vmem:[%s2 + $0x160] sm:$0xf]
  %v1381 = vld [vmem:[%s2 + $0x164] sm:$0xf]
  %v1382 = vld [vmem:[%s2 + $0x168] sm:$0xf]
  %v1383 = vld [vmem:[%s2 + $0x16c] sm:$0xf]
  %v1384 = vld [vmem:[%s2 + $0x170] sm:$0xf]
  %v1385 = vld [vmem:[%s2 + $0x174] sm:$0xf]
  %v1386 = vld [vmem:[%s2 + $0x178] sm:$0xf]
  %v1387 = vld [vmem:[%s2 + $0x17c] sm:$0xf]
  %v1388 = vld [vmem:[%s2 + $0x180] sm:$0xf]
  %v1389 = vld [vmem:[%s2 + $0x184] sm:$0xf]
  %v1390 = vld [vmem:[%s2 + $0x188] sm:$0xf]
  %v1391 = vld [vmem:[%s2 + $0x18c] sm:$0xf]
  %v1392 = vld [vmem:[%s2 + $0x190] sm:$0xf]
  %v1393 = vld [vmem:[%s2 + $0x194] sm:$0xf]
  %v1394 = vld [vmem:[%s2 + $0x198] sm:$0xf]
  %v1395 = vld [vmem:[%s2 + $0x19c] sm:$0xf]
  %v1396 = vld [vmem:[%s2 + $0x1a0] sm:$0xf]
  %v1397 = vld [vmem:[%s2 + $0x1a4] sm:$0xf]
  %v1398 = vld [vmem:[%s2 + $0x1a8] sm:$0xf]
  %v1399 = vld [vmem:[%s2 + $0x1ac] sm:$0xf]
  %v1400 = vld [vmem:[%s2 + $0x1b0] sm:$0xf]
  %v1401 = vld [vmem:[%s2 + $0x1b4] sm:$0xf]
  %v1402 = vld [vmem:[%s2 + $0x1b8] sm:$0xf]
  %v1403 = vld [vmem:[%s2 + $0x1bc] sm:$0xf]
  %v1404 = vld [vmem:[%s2 + $0x1c0] sm:$0xf]
  %v1405 = vld [vmem:[%s2 + $0x1c4] sm:$0xf]
  %v1406 = vld [vmem:[%s2 + $0x1c8] sm:$0xf]
  %v1407 = vld [vmem:[%s2 + $0x1cc] sm:$0xf]
  %v1408 = vld [vmem:[%s2 + $0x1d0] sm:$0xf]
  %v1409 = vld [vmem:[%s2 + $0x1d4] sm:$0xf]
  %v1410 = vld [vmem:[%s2 + $0x1d8] sm:$0xf]
  %v1411 = vld [vmem:[%s2 + $0x1dc] sm:$0xf]
  %v1412 = vld [vmem:[%s2 + $0x1e0] sm:$0xf]
  %v1413 = vld [vmem:[%s2 + $0x1e4] sm:$0xf]
  %v1414 = vld [vmem:[%s2 + $0x1e8] sm:$0xf]
  %v1415 = vld [vmem:[%s2 + $0x1ec] sm:$0xf]
  %v1416 = vld [vmem:[%s2 + $0x1f0] sm:$0xf]
  %v1417 = vld [vmem:[%s2 + $0x1f4] sm:$0xf]
  %v1418 = vld [vmem:[%s2 + $0x1f8] sm:$0xf]
  %v1419 = vld [vmem:[%s2 + $0x1fc] sm:$0xf]
  %v1420 = vpack.c.bf16 %v1378, %v1378
  %v1421 = vpack.c.bf16 %v1379, %v1379
  %v1422 = vpack.c.bf16 %v1369, %v1369
  %v1423 = vld [vmem:[%s3 + $0x3] sm:$0x1]
  %v1424 = vperm.slane %v1423, 0
  %v1465 = vunpack.c.l.b16 %v1380
  %v1466 = vunpack.c.l.b16 %v1381
  %v1467 = vunpack.c.l.b16 %v1382
  %v1468 = vunpack.c.l.b16 %v1383
  %v1469 = vunpack.c.l.b16 %v1384
  %v1470 = vunpack.c.l.b16 %v1385
  %v1471 = vunpack.c.l.b16 %v1386
  %v1472 = vunpack.c.l.b16 %v1387
  %v1473 = vunpack.c.l.b16 %v1388
  %v1474 = vunpack.c.l.b16 %v1389
  %v1475 = vunpack.c.l.b16 %v1390
  %v1476 = vunpack.c.l.b16 %v1391
  %v1477 = vunpack.c.l.b16 %v1392
  %v1478 = vunpack.c.l.b16 %v1393
  %v1479 = vunpack.c.l.b16 %v1394
  %v1480 = vunpack.c.l.b16 %v1395
  %v1481 = vunpack.c.l.b16 %v1396
  %v1482 = vunpack.c.l.b16 %v1397
  %v1483 = vunpack.c.l.b16 %v1398
  %v1484 = vunpack.c.l.b16 %v1399
  %v1485 = vunpack.c.l.b16 %v1400
  %v1486 = vunpack.c.l.b16 %v1401
  %v1487 = vunpack.c.l.b16 %v1402
  %v1488 = vunpack.c.l.b16 %v1403
  %v1489 = vunpack.c.l.b16 %v1404
  %v1490 = vunpack.c.l.b16 %v1405
  %v1491 = vunpack.c.l.b16 %v1406
  %v1492 = vunpack.c.l.b16 %v1407
  %v1493 = vunpack.c.l.b16 %v1408
  %v1494 = vunpack.c.l.b16 %v1409
  %v1495 = vunpack.c.l.b16 %v1410
  %v1496 = vunpack.c.l.b16 %v1411
  %v1497 = vunpack.c.l.b16 %v1412
  %v1498 = vunpack.c.l.b16 %v1413
  %v1499 = vunpack.c.l.b16 %v1414
  %v1500 = vunpack.c.l.b16 %v1415
  %v1501 = vunpack.c.l.b16 %v1416
  %v1502 = vunpack.c.l.b16 %v1417
  %v1503 = vunpack.c.l.b16 %v1418
  %v1504 = vunpack.c.l.b16 %v1419
  %v1505 = vpack.c.b16 %v1466, %v1465
  %v1506 = vpack.c.b16 %v1468, %v1467
  %v1507 = vpack.c.b16 %v1470, %v1469
  %v1508 = vpack.c.b16 %v1472, %v1471
  %v1509 = vpack.c.b16 %v1474, %v1473
  %v1510 = vpack.c.b16 %v1476, %v1475
  %v1511 = vpack.c.b16 %v1478, %v1477
  %v1512 = vpack.c.b16 %v1480, %v1479
  %v1513 = vpack.c.b16 %v1482, %v1481
  %v1514 = vpack.c.b16 %v1484, %v1483
  %v1515 = vpack.c.b16 %v1486, %v1485
  %v1516 = vpack.c.b16 %v1488, %v1487
  %v1517 = vpack.c.b16 %v1490, %v1489
  %v1518 = vpack.c.b16 %v1492, %v1491
  %v1519 = vpack.c.b16 %v1494, %v1493
  %v1520 = vpack.c.b16 %v1496, %v1495
  %v1521 = vpack.c.b16 %v1498, %v1497
  %v1522 = vpack.c.b16 %v1500, %v1499
  %v1523 = vpack.c.b16 %v1502, %v1501
  %v1524 = vpack.c.b16 %v1504, %v1503
  %v1546 = vsel %vm651, %v1422, 0
  %1548 = vmatpush.bf16.msra.mxu0 %v1512
  %1549 = vmatpush.bf16.msra.mxu0 %v1511
  %1550 = vmatpush.bf16.msra.mxu0 %v1510
  %1551 = vmatpush.bf16.msra.mxu0 %v1509
  %1552 = vmatpush.bf16.msra.mxu0 %v1508
  %1553 = vmatpush.bf16.msra.mxu0 %v1507
  %1554 = vmatpush.bf16.msra.mxu0 %v1506
  %1555 = vmatpush.bf16.msra.mxu0 %v1505
  %1556 = vmatmul.bf16.gmra.mxu0 %v1420
  %v1557 = vpop.f32.mrf.mxu0
  %v1558 = vadd.f32 %v1424, %v1557
  %v1559 = vpop.f32.mrf.mxu0
  %1560 = vdwg.mxu0
  %1561 = vmatpush.bf16.msra.mxu0 %v1520
  %1562 = vmatpush.bf16.msra.mxu0 %v1519
  %1563 = vmatpush.bf16.msra.mxu0 %v1518
  %1564 = vmatpush.bf16.msra.mxu0 %v1517
  %1565 = vmatpush.bf16.msra.mxu0 %v1516
  %1566 = vmatpush.bf16.msra.mxu0 %v1515
  %1567 = vmatpush.bf16.msra.mxu0 %v1514
  %1568 = vmatpush.bf16.msra.mxu0 %v1513
  %1569 = vmatmul.bf16.gmra.mxu0 %v1421
  %v1570 = vpop.f32.mrf.mxu0
  %v1571 = vadd.f32 %v1558, %v1570
  %v1572 = vpop.f32.mrf.mxu0
  %1573 = vdwg.mxu0
  %1574 = vmatpush.bf16.msra.mxu0 0
  %1575 = vmatpush.bf16.msra.mxu0 0
  %1576 = vmatpush.bf16.msra.mxu0 0
  %1577 = vmatpush.bf16.msra.mxu0 0
  %1578 = vmatpush.bf16.msra.mxu0 %v1524
  %1579 = vmatpush.bf16.msra.mxu0 %v1523
  %1580 = vmatpush.bf16.msra.mxu0 %v1522
  %1581 = vmatpush.bf16.msra.mxu0 %v1521
  %1582 = vmatmul.bf16.gmra.mxu0 %v1546
  %v1583 = vpop.f32.mrf.mxu0
  %v1584 = vadd.f32 %v1571, %v1583
  %v1585 = vpop.f32.mrf.mxu0
  %1586 = vdwg.mxu0
  %v1587 = vmax.f32 %v1584, 0.0
  %1588 = vst.msk [vmem:[#allocation2] sm:$0x1] %vm982, 0.0
  %1589 = vst.msk [vmem:[#allocation2 + $0x9] sm:$0x1] %vm982, 0.0
  %1590 = vst.msk [vmem:[#allocation2 + $0x1] sm:$0xff] %vm651, %v1587
  %v1591 = vld [vmem:[#allocation2] sm:$0xff]
  %v1592 = vld [vmem:[#allocation2 + $0x1] sm:$0xff]
  %v1593 = vld [vmem:[#allocation2 + $0x2] sm:$0xff]
  %1595 = vrot.lane.b32.xlu0 %v1592, 64
  %v1596 = vpop.permute.xlu0 %1595
  %v1598 = vsel %vm651, %v1591, %v1596
  %v1599 = vld [vmem:[%s2 + $0x200] sm:$0xf]
  %v1600 = vld [vmem:[%s2 + $0x204] sm:$0xf]
  %v1601 = vld [vmem:[%s2 + $0x208] sm:$0xf]
  %v1602 = vld [vmem:[%s2 + $0x20c] sm:$0xf]
  %v1603 = vld [vmem:[%s2 + $0x210] sm:$0xf]
  %v1604 = vld [vmem:[%s2 + $0x214] sm:$0xf]
  %v1605 = vld [vmem:[%s2 + $0x218] sm:$0xf]
  %v1606 = vld [vmem:[%s2 + $0x21c] sm:$0xf]
  %v1607 = vld [vmem:[%s2 + $0x220] sm:$0xf]
  %v1608 = vld [vmem:[%s2 + $0x224] sm:$0xf]
  %v1609 = vld [vmem:[%s2 + $0x228] sm:$0xf]
  %v1610 = vld [vmem:[%s2 + $0x22c] sm:$0xf]
  %v1611 = vld [vmem:[%s2 + $0x230] sm:$0xf]
  %v1612 = vld [vmem:[%s2 + $0x234] sm:$0xf]
  %v1613 = vld [vmem:[%s2 + $0x238] sm:$0xf]
  %v1614 = vld [vmem:[%s2 + $0x23c] sm:$0xf]
  %v1615 = vld [vmem:[%s2 + $0x240] sm:$0xf]
  %v1616 = vld [vmem:[%s2 + $0x244] sm:$0xf]
  %v1617 = vld [vmem:[%s2 + $0x248] sm:$0xf]
  %v1618 = vld [vmem:[%s2 + $0x24c] sm:$0xf]
  %v1619 = vld [vmem:[%s2 + $0x250] sm:$0xf]
  %v1620 = vld [vmem:[%s2 + $0x254] sm:$0xf]
  %v1621 = vld [vmem:[%s2 + $0x258] sm:$0xf]
  %v1622 = vld [vmem:[%s2 + $0x25c] sm:$0xf]
  %v1623 = vpack.c.bf16 %v1598, %v1598
  %v1624 = vpack.c.bf16 %v1593, %v1593
  %v1625 = vld [vmem:[%s3 + $0x4] sm:$0x1]
  %v1626 = vperm.slane %v1625, 0
  %v1651 = vunpack.c.l.b16 %v1599
  %v1652 = vunpack.c.l.b16 %v1600
  %v1653 = vunpack.c.l.b16 %v1601
  %v1654 = vunpack.c.l.b16 %v1602
  %v1655 = vunpack.c.l.b16 %v1603
  %v1656 = vunpack.c.l.b16 %v1604
  %v1657 = vunpack.c.l.b16 %v1605
  %v1658 = vunpack.c.l.b16 %v1606
  %v1659 = vunpack.c.l.b16 %v1607
  %v1660 = vunpack.c.l.b16 %v1608
  %v1661 = vunpack.c.l.b16 %v1609
  %v1662 = vunpack.c.l.b16 %v1610
  %v1663 = vunpack.c.l.b16 %v1611
  %v1664 = vunpack.c.l.b16 %v1612
  %v1665 = vunpack.c.l.b16 %v1613
  %v1666 = vunpack.c.l.b16 %v1614
  %v1667 = vunpack.c.l.b16 %v1615
  %v1668 = vunpack.c.l.b16 %v1616
  %v1669 = vunpack.c.l.b16 %v1617
  %v1670 = vunpack.c.l.b16 %v1618
  %v1671 = vunpack.c.l.b16 %v1619
  %v1672 = vunpack.c.l.b16 %v1620
  %v1673 = vunpack.c.l.b16 %v1621
  %v1674 = vunpack.c.l.b16 %v1622
  %v1675 = vpack.c.b16 %v1652, %v1651
  %v1676 = vpack.c.b16 %v1654, %v1653
  %v1677 = vpack.c.b16 %v1656, %v1655
  %v1678 = vpack.c.b16 %v1658, %v1657
  %v1679 = vpack.c.b16 %v1660, %v1659
  %v1680 = vpack.c.b16 %v1662, %v1661
  %v1681 = vpack.c.b16 %v1664, %v1663
  %v1682 = vpack.c.b16 %v1666, %v1665
  %v1683 = vpack.c.b16 %v1668, %v1667
  %v1684 = vpack.c.b16 %v1670, %v1669
  %v1685 = vpack.c.b16 %v1672, %v1671
  %v1686 = vpack.c.b16 %v1674, %v1673
  %v1700 = vsel %vm651, %v1624, 0
  %1702 = vmatpush.bf16.msra.mxu0 %v1682
  %1703 = vmatpush.bf16.msra.mxu0 %v1681
  %1704 = vmatpush.bf16.msra.mxu0 %v1680
  %1705 = vmatpush.bf16.msra.mxu0 %v1679
  %1706 = vmatpush.bf16.msra.mxu0 %v1678
  %1707 = vmatpush.bf16.msra.mxu0 %v1677
  %1708 = vmatpush.bf16.msra.mxu0 %v1676
  %1709 = vmatpush.bf16.msra.mxu0 %v1675
  %1710 = vmatmul.bf16.gmra.mxu0 %v1623
  %v1711 = vpop.f32.mrf.mxu0
  %v1712 = vadd.f32 %v1626, %v1711
  %v1713 = vpop.f32.mrf.mxu0
  %1714 = vdwg.mxu0
  %1715 = vmatpush.bf16.msra.mxu0 0
  %1716 = vmatpush.bf16.msra.mxu0 0
  %1717 = vmatpush.bf16.msra.mxu0 0
  %1718 = vmatpush.bf16.msra.mxu0 0
  %1719 = vmatpush.bf16.msra.mxu0 %v1686
  %1720 = vmatpush.bf16.msra.mxu0 %v1685
  %1721 = vmatpush.bf16.msra.mxu0 %v1684
  %1722 = vmatpush.bf16.msra.mxu0 %v1683
  %1723 = vmatmul.bf16.gmra.mxu0 %v1700
  %v1724 = vpop.f32.mrf.mxu0
  %v1725 = vadd.f32 %v1712, %v1724
  %v1726 = vpop.f32.mrf.mxu0
  %1727 = vdwg.mxu0
  %v1728 = vmax.f32 %v1725, 0.0
  %1729 = vst.msk [vmem:[#allocation2] sm:$0x1] %vm982, 0.0
  %1730 = vst.msk [vmem:[#allocation2 + $0x9] sm:$0x1] %vm982, 0.0
  %1731 = vst.msk [vmem:[#allocation2 + $0x1] sm:$0xff] %vm651, %v1728
  %v1732 = vld [vmem:[#allocation2] sm:$0xff]
  %v1733 = vld [vmem:[#allocation2 + $0x1] sm:$0xff]
  %v1734 = vld [vmem:[#allocation2 + $0x2] sm:$0xff]
  %1736 = vrot.lane.b32.xlu0 %v1733, 64
  %v1737 = vpop.permute.xlu0 %1736
  %v1739 = vsel %vm651, %v1732, %v1737
  %v1740 = vld [vmem:[%s2 + $0x260] sm:$0xf]
  %v1741 = vld [vmem:[%s2 + $0x264] sm:$0xf]
  %v1742 = vld [vmem:[%s2 + $0x268] sm:$0xf]
  %v1743 = vld [vmem:[%s2 + $0x26c] sm:$0xf]
  %v1744 = vld [vmem:[%s2 + $0x270] sm:$0xf]
  %v1745 = vld [vmem:[%s2 + $0x274] sm:$0xf]
  %v1746 = vld [vmem:[%s2 + $0x278] sm:$0xf]
  %v1747 = vld [vmem:[%s2 + $0x27c] sm:$0xf]
  %v1748 = vld [vmem:[%s2 + $0x280] sm:$0xf]
  %v1749 = vld [vmem:[%s2 + $0x284] sm:$0xf]
  %v1750 = vld [vmem:[%s2 + $0x288] sm:$0xf]
  %v1751 = vld [vmem:[%s2 + $0x28c] sm:$0xf]
  %v1752 = vld [vmem:[%s2 + $0x290] sm:$0xf]
  %v1753 = vld [vmem:[%s2 + $0x294] sm:$0xf]
  %v1754 = vld [vmem:[%s2 + $0x298] sm:$0xf]
  %v1755 = vld [vmem:[%s2 + $0x29c] sm:$0xf]
  %v1756 = vld [vmem:[%s2 + $0x2a0] sm:$0xf]
  %v1757 = vld [vmem:[%s2 + $0x2a4] sm:$0xf]
  %v1758 = vld [vmem:[%s2 + $0x2a8] sm:$0xf]
  %v1759 = vld [vmem:[%s2 + $0x2ac] sm:$0xf]
  %v1760 = vld [vmem:[%s2 + $0x2b0] sm:$0xf]
  %v1761 = vld [vmem:[%s2 + $0x2b4] sm:$0xf]
  %v1762 = vld [vmem:[%s2 + $0x2b8] sm:$0xf]
  %v1763 = vld [vmem:[%s2 + $0x2bc] sm:$0xf]
  %v1764 = vpack.c.bf16 %v1739, %v1739
  %v1765 = vpack.c.bf16 %v1734, %v1734
  %v1766 = vld [vmem:[%s3 + $0x5] sm:$0x1]
  %v1767 = vperm.slane %v1766, 0
  %v1792 = vunpack.c.l.b16 %v1740
  %v1793 = vunpack.c.l.b16 %v1741
  %v1794 = vunpack.c.l.b16 %v1742
  %v1795 = vunpack.c.l.b16 %v1743
  %v1796 = vunpack.c.l.b16 %v1744
  %v1797 = vunpack.c.l.b16 %v1745
  %v1798 = vunpack.c.l.b16 %v1746
  %v1799 = vunpack.c.l.b16 %v1747
  %v1800 = vunpack.c.l.b16 %v1748
  %v1801 = vunpack.c.l.b16 %v1749
  %v1802 = vunpack.c.l.b16 %v1750
  %v1803 = vunpack.c.l.b16 %v1751
  %v1804 = vunpack.c.l.b16 %v1752
  %v1805 = vunpack.c.l.b16 %v1753
  %v1806 = vunpack.c.l.b16 %v1754
  %v1807 = vunpack.c.l.b16 %v1755
  %v1808 = vunpack.c.l.b16 %v1756
  %v1809 = vunpack.c.l.b16 %v1757
  %v1810 = vunpack.c.l.b16 %v1758
  %v1811 = vunpack.c.l.b16 %v1759
  %v1812 = vunpack.c.l.b16 %v1760
  %v1813 = vunpack.c.l.b16 %v1761
  %v1814 = vunpack.c.l.b16 %v1762
  %v1815 = vunpack.c.l.b16 %v1763
  %v1816 = vpack.c.b16 %v1793, %v1792
  %v1817 = vpack.c.b16 %v1795, %v1794
  %v1818 = vpack.c.b16 %v1797, %v1796
  %v1819 = vpack.c.b16 %v1799, %v1798
  %v1820 = vpack.c.b16 %v1801, %v1800
  %v1821 = vpack.c.b16 %v1803, %v1802
  %v1822 = vpack.c.b16 %v1805, %v1804
  %v1823 = vpack.c.b16 %v1807, %v1806
  %v1824 = vpack.c.b16 %v1809, %v1808
  %v1825 = vpack.c.b16 %v1811, %v1810
  %v1826 = vpack.c.b16 %v1813, %v1812
  %v1827 = vpack.c.b16 %v1815, %v1814
  %v1841 = vsel %vm651, %v1765, 0
  %1843 = vmatpush.bf16.msra.mxu0 %v1823
  %1844 = vmatpush.bf16.msra.mxu0 %v1822
  %1845 = vmatpush.bf16.msra.mxu0 %v1821
  %1846 = vmatpush.bf16.msra.mxu0 %v1820
  %1847 = vmatpush.bf16.msra.mxu0 %v1819
  %1848 = vmatpush.bf16.msra.mxu0 %v1818
  %1849 = vmatpush.bf16.msra.mxu0 %v1817
  %1850 = vmatpush.bf16.msra.mxu0 %v1816
  %1851 = vmatmul.bf16.gmra.mxu0 %v1764
  %v1852 = vpop.f32.mrf.mxu0
  %v1853 = vadd.f32 %v1767, %v1852
  %v1854 = vpop.f32.mrf.mxu0
  %1855 = vdwg.mxu0
  %1856 = vmatpush.bf16.msra.mxu0 0
  %1857 = vmatpush.bf16.msra.mxu0 0
  %1858 = vmatpush.bf16.msra.mxu0 0
  %1859 = vmatpush.bf16.msra.mxu0 0
  %1860 = vmatpush.bf16.msra.mxu0 %v1827
  %1861 = vmatpush.bf16.msra.mxu0 %v1826
  %1862 = vmatpush.bf16.msra.mxu0 %v1825
  %1863 = vmatpush.bf16.msra.mxu0 %v1824
  %1864 = vmatmul.bf16.gmra.mxu0 %v1841
  %v1865 = vpop.f32.mrf.mxu0
  %v1866 = vadd.f32 %v1853, %v1865
  %v1867 = vpop.f32.mrf.mxu0
  %1868 = vdwg.mxu0
  %v1869 = vmax.f32 %v1866, 0.0
  %1870 = vst.msk [vmem:[#allocation2] sm:$0x1] %vm982, 0.0
  %1871 = vst.msk [vmem:[#allocation2 + $0x9] sm:$0x1] %vm982, 0.0
  %1872 = vst.msk [vmem:[#allocation2 + $0x1] sm:$0xff] %vm651, %v1869
  %v1873 = vld [vmem:[#allocation2] ss:$2 sm:$0xf]
  %v1874 = vld [vmem:[%s675] ss:$2 sm:$0xf]
  %v1875 = vld [vmem:[%s683] ss:$2 sm:$0xf]
  %1877 = vrot.lane.b32.xlu0 %v1874, 64
  %v1878 = vpop.permute.xlu0 %1877
  %v1880 = vsel %vm651, %v1873, %v1878
  %v1881 = vld [vmem:[%s2 + $0x2c0] sm:$0xf]
  %v1882 = vld [vmem:[%s2 + $0x2c4] sm:$0xf]
  %v1883 = vld [vmem:[%s2 + $0x2c8] sm:$0xf]
  %v1884 = vld [vmem:[%s2 + $0x2cc] sm:$0xf]
  %v1885 = vld [vmem:[%s2 + $0x2d0] sm:$0xf]
  %v1886 = vld [vmem:[%s2 + $0x2d4] sm:$0xf]
  %v1887 = vld [vmem:[%s2 + $0x2d8] sm:$0xf]
  %v1888 = vld [vmem:[%s2 + $0x2dc] sm:$0xf]
  %v1889 = vld [vmem:[%s2 + $0x2e0] sm:$0xf]
  %v1890 = vld [vmem:[%s2 + $0x2e4] sm:$0xf]
  %v1891 = vld [vmem:[%s2 + $0x2e8] sm:$0xf]
  %v1892 = vld [vmem:[%s2 + $0x2ec] sm:$0xf]
  %v1893 = vld [vmem:[%s2 + $0x2f0] sm:$0xf]
  %v1894 = vld [vmem:[%s2 + $0x2f4] sm:$0xf]
  %v1895 = vld [vmem:[%s2 + $0x2f8] sm:$0xf]
  %v1896 = vld [vmem:[%s2 + $0x2fc] sm:$0xf]
  %v1897 = vld [vmem:[%s2 + $0x300] sm:$0xf]
  %v1898 = vld [vmem:[%s2 + $0x304] sm:$0xf]
  %v1899 = vld [vmem:[%s2 + $0x308] sm:$0xf]
  %v1900 = vld [vmem:[%s2 + $0x30c] sm:$0xf]
  %v1901 = vld [vmem:[%s2 + $0x310] sm:$0xf]
  %v1902 = vld [vmem:[%s2 + $0x314] sm:$0xf]
  %v1903 = vld [vmem:[%s2 + $0x318] sm:$0xf]
  %v1904 = vld [vmem:[%s2 + $0x31c] sm:$0xf]
  %v1905 = vpack.c.bf16 %v1880, %v1880
  %v1906 = vpack.c.bf16 %v1875, %v1875
  %v1907 = vld [vmem:[%s3 + $0x6] sm:$0x1]
  %v1908 = vperm.slane %v1907, 0
  %v1933 = vunpack.c.l.b16 %v1881
  %v1934 = vunpack.c.l.b16 %v1882
  %v1935 = vunpack.c.l.b16 %v1883
  %v1936 = vunpack.c.l.b16 %v1884
  %v1937 = vunpack.c.l.b16 %v1885
  %v1938 = vunpack.c.l.b16 %v1886
  %v1939 = vunpack.c.l.b16 %v1887
  %v1940 = vunpack.c.l.b16 %v1888
  %v1941 = vunpack.c.l.b16 %v1889
  %v1942 = vunpack.c.l.b16 %v1890
  %v1943 = vunpack.c.l.b16 %v1891
  %v1944 = vunpack.c.l.b16 %v1892
  %v1945 = vunpack.c.l.b16 %v1893
  %v1946 = vunpack.c.l.b16 %v1894
  %v1947 = vunpack.c.l.b16 %v1895
  %v1948 = vunpack.c.l.b16 %v1896
  %v1949 = vunpack.c.l.b16 %v1897
  %v1950 = vunpack.c.l.b16 %v1898
  %v1951 = vunpack.c.l.b16 %v1899
  %v1952 = vunpack.c.l.b16 %v1900
  %v1953 = vunpack.c.l.b16 %v1901
  %v1954 = vunpack.c.l.b16 %v1902
  %v1955 = vunpack.c.l.b16 %v1903
  %v1956 = vunpack.c.l.b16 %v1904
  %v1957 = vpack.c.b16 %v1934, %v1933
  %v1958 = vpack.c.b16 %v1936, %v1935
  %v1959 = vpack.c.b16 %v1938, %v1937
  %v1960 = vpack.c.b16 %v1940, %v1939
  %v1961 = vpack.c.b16 %v1942, %v1941
  %v1962 = vpack.c.b16 %v1944, %v1943
  %v1963 = vpack.c.b16 %v1946, %v1945
  %v1964 = vpack.c.b16 %v1948, %v1947
  %v1965 = vpack.c.b16 %v1950, %v1949
  %v1966 = vpack.c.b16 %v1952, %v1951
  %v1967 = vpack.c.b16 %v1954, %v1953
  %v1968 = vpack.c.b16 %v1956, %v1955
  %v1982 = vsel %vm651, %v1906, 0
  %1984 = vmatpush.bf16.msra.mxu0 %v1964
  %1985 = vmatpush.bf16.msra.mxu0 %v1963
  %1986 = vmatpush.bf16.msra.mxu0 %v1962
  %1987 = vmatpush.bf16.msra.mxu0 %v1961
  %1988 = vmatpush.bf16.msra.mxu0 %v1960
  %1989 = vmatpush.bf16.msra.mxu0 %v1959
  %1990 = vmatpush.bf16.msra.mxu0 %v1958
  %1991 = vmatpush.bf16.msra.mxu0 %v1957
  %1992 = vmatmul.bf16.gmra.mxu0 %v1905
  %v1993 = vpop.f32.mrf.mxu0
  %v1994 = vadd.f32 %v1908, %v1993
  %v1995 = vpop.f32.mrf.mxu0
  %1996 = vdwg.mxu0
  %1997 = vmatpush.bf16.msra.mxu0 0
  %1998 = vmatpush.bf16.msra.mxu0 0
  %1999 = vmatpush.bf16.msra.mxu0 0
  %2000 = vmatpush.bf16.msra.mxu0 0
  %2001 = vmatpush.bf16.msra.mxu0 %v1968
  %2002 = vmatpush.bf16.msra.mxu0 %v1967
  %2003 = vmatpush.bf16.msra.mxu0 %v1966
  %2004 = vmatpush.bf16.msra.mxu0 %v1965
  %2005 = vmatmul.bf16.gmra.mxu0 %v1982
  %v2006 = vpop.f32.mrf.mxu0
  %v2007 = vadd.f32 %v1994, %v2006
  %v2008 = vpop.f32.mrf.mxu0
  %2009 = vdwg.mxu0
  %v2010 = vmax.f32 %v2007, 0.0
  %2011 = vst.msk [vmem:[#allocation2] sm:$0x1] %vm982, 0.0
  %2012 = vst.msk [vmem:[#allocation2 + $0x5] sm:$0x1] %vm982, 0.0
  %vm2013 = vcmask 519168
  %2014 = vst.msk [vmem:[#allocation2 + $0x1] sm:$0xf] %vm2013, %v2010
  %v2015 = vld [vmem:[#allocation2] sm:$0xf]
  %v2016 = vld [vmem:[#allocation2 + $0x1] sm:$0xf]
  %v2017 = vld [vmem:[#allocation2 + $0x2] sm:$0xf]
  %2019 = vrot.lane.b32.xlu0 %v2016, 64
  %v2020 = vpop.permute.xlu0 %2019
  %v2022 = vsel %vm651, %v2015, %v2020
  %v2023 = vld [vmem:[%s2 + $0x320] sm:$0xf]
  %v2024 = vld [vmem:[%s2 + $0x324] sm:$0xf]
  %v2025 = vld [vmem:[%s2 + $0x328] sm:$0xf]
  %v2026 = vld [vmem:[%s2 + $0x32c] sm:$0xf]
  %v2027 = vld [vmem:[%s2 + $0x330] sm:$0xf]
  %v2028 = vld [vmem:[%s2 + $0x334] sm:$0xf]
  %v2029 = vld [vmem:[%s2 + $0x338] sm:$0xf]
  %v2030 = vld [vmem:[%s2 + $0x33c] sm:$0xf]
  %v2031 = vld [vmem:[%s2 + $0x340] sm:$0xf]
  %v2032 = vld [vmem:[%s2 + $0x344] sm:$0xf]
  %v2033 = vld [vmem:[%s2 + $0x348] sm:$0xf]
  %v2034 = vld [vmem:[%s2 + $0x34c] sm:$0xf]
  %v2035 = vld [vmem:[%s2 + $0x350] sm:$0xf]
  %v2036 = vld [vmem:[%s2 + $0x354] sm:$0xf]
  %v2037 = vld [vmem:[%s2 + $0x358] sm:$0xf]
  %v2038 = vld [vmem:[%s2 + $0x35c] sm:$0xf]
  %v2039 = vld [vmem:[%s2 + $0x360] sm:$0xf]
  %v2040 = vld [vmem:[%s2 + $0x364] sm:$0xf]
  %v2041 = vld [vmem:[%s2 + $0x368] sm:$0xf]
  %v2042 = vld [vmem:[%s2 + $0x36c] sm:$0xf]
  %v2043 = vld [vmem:[%s2 + $0x370] sm:$0xf]
  %v2044 = vld [vmem:[%s2 + $0x374] sm:$0xf]
  %v2045 = vld [vmem:[%s2 + $0x378] sm:$0xf]
  %v2046 = vld [vmem:[%s2 + $0x37c] sm:$0xf]
  %v2047 = vpack.c.bf16 %v2022, %v2022
  %v2048 = vpack.c.bf16 %v2017, %v2017
  %v2049 = vld [vmem:[%s3 + $0x7] sm:$0x1]
  %v2050 = vperm.slane %v2049, 0
  %v2075 = vunpack.c.l.b16 %v2023
  %v2076 = vunpack.c.l.b16 %v2024
  %v2077 = vunpack.c.l.b16 %v2025
  %v2078 = vunpack.c.l.b16 %v2026
  %v2079 = vunpack.c.l.b16 %v2027
  %v2080 = vunpack.c.l.b16 %v2028
  %v2081 = vunpack.c.l.b16 %v2029
  %v2082 = vunpack.c.l.b16 %v2030
  %v2083 = vunpack.c.l.b16 %v2031
  %v2084 = vunpack.c.l.b16 %v2032
  %v2085 = vunpack.c.l.b16 %v2033
  %v2086 = vunpack.c.l.b16 %v2034
  %v2087 = vunpack.c.l.b16 %v2035
  %v2088 = vunpack.c.l.b16 %v2036
  %v2089 = vunpack.c.l.b16 %v2037
  %v2090 = vunpack.c.l.b16 %v2038
  %v2091 = vunpack.c.l.b16 %v2039
  %v2092 = vunpack.c.l.b16 %v2040
  %v2093 = vunpack.c.l.b16 %v2041
  %v2094 = vunpack.c.l.b16 %v2042
  %v2095 = vunpack.c.l.b16 %v2043
  %v2096 = vunpack.c.l.b16 %v2044
  %v2097 = vunpack.c.l.b16 %v2045
  %v2098 = vunpack.c.l.b16 %v2046
  %v2099 = vpack.c.b16 %v2076, %v2075
  %v2100 = vpack.c.b16 %v2078, %v2077
  %v2101 = vpack.c.b16 %v2080, %v2079
  %v2102 = vpack.c.b16 %v2082, %v2081
  %v2103 = vpack.c.b16 %v2084, %v2083
  %v2104 = vpack.c.b16 %v2086, %v2085
  %v2105 = vpack.c.b16 %v2088, %v2087
  %v2106 = vpack.c.b16 %v2090, %v2089
  %v2107 = vpack.c.b16 %v2092, %v2091
  %v2108 = vpack.c.b16 %v2094, %v2093
  %v2109 = vpack.c.b16 %v2096, %v2095
  %v2110 = vpack.c.b16 %v2098, %v2097
  %v2124 = vsel %vm651, %v2048, 0
  %2126 = vmatpush.bf16.msra.mxu0 %v2106
  %2127 = vmatpush.bf16.msra.mxu0 %v2105
  %2128 = vmatpush.bf16.msra.mxu0 %v2104
  %2129 = vmatpush.bf16.msra.mxu0 %v2103
  %2130 = vmatpush.bf16.msra.mxu0 %v2102
  %2131 = vmatpush.bf16.msra.mxu0 %v2101
  %2132 = vmatpush.bf16.msra.mxu0 %v2100
  %2133 = vmatpush.bf16.msra.mxu0 %v2099
  %2134 = vmatmul.bf16.gmra.mxu0 %v2047
  %v2135 = vpop.f32.mrf.mxu0
  %v2136 = vadd.f32 %v2050, %v2135
  %v2137 = vpop.f32.mrf.mxu0
  %2138 = vdwg.mxu0
  %2139 = vmatpush.bf16.msra.mxu0 0
  %2140 = vmatpush.bf16.msra.mxu0 0
  %2141 = vmatpush.bf16.msra.mxu0 0
  %2142 = vmatpush.bf16.msra.mxu0 0
  %2143 = vmatpush.bf16.msra.mxu0 %v2110
  %2144 = vmatpush.bf16.msra.mxu0 %v2109
  %2145 = vmatpush.bf16.msra.mxu0 %v2108
  %2146 = vmatpush.bf16.msra.mxu0 %v2107
  %2147 = vmatmul.bf16.gmra.mxu0 %v2124
  %v2148 = vpop.f32.mrf.mxu0
  %v2149 = vadd.f32 %v2136, %v2148
  %v2150 = vpop.f32.mrf.mxu0
  %2151 = vdwg.mxu0
  %v2152 = vmax.f32 %v2149, 0.0
  %2153 = vst.msk [vmem:[#allocation2] sm:$0x1] %vm982, 0.0
  %2154 = vst.msk [vmem:[#allocation2 + $0x5] sm:$0x1] %vm982, 0.0
  %2155 = vst.msk [vmem:[#allocation2 + $0x1] sm:$0xf] %vm2013, %v2152
  %v2156 = vld [vmem:[#allocation2] sm:$0xf]
  %v2157 = vld [vmem:[#allocation2 + $0x1] sm:$0xf]
  %v2158 = vld [vmem:[#allocation2 + $0x2] sm:$0xf]
  %2160 = vrot.lane.b32.xlu0 %v2157, 64
  %v2161 = vpop.permute.xlu0 %2160
  %v2163 = vsel %vm651, %v2156, %v2161
  %v2164 = vld [vmem:[%s2 + $0x380] sm:$0xf]
  %v2165 = vld [vmem:[%s2 + $0x384] sm:$0xf]
  %v2166 = vld [vmem:[%s2 + $0x388] sm:$0xf]
  %v2167 = vld [vmem:[%s2 + $0x38c] sm:$0xf]
  %v2168 = vld [vmem:[%s2 + $0x390] sm:$0xf]
  %v2169 = vld [vmem:[%s2 + $0x394] sm:$0xf]
  %v2170 = vld [vmem:[%s2 + $0x398] sm:$0xf]
  %v2171 = vld [vmem:[%s2 + $0x39c] sm:$0xf]
  %v2172 = vld [vmem:[%s2 + $0x3a0] sm:$0xf]
  %v2173 = vld [vmem:[%s2 + $0x3a4] sm:$0xf]
  %v2174 = vld [vmem:[%s2 + $0x3a8] sm:$0xf]
  %v2175 = vld [vmem:[%s2 + $0x3ac] sm:$0xf]
  %v2176 = vld [vmem:[%s2 + $0x3b0] sm:$0xf]
  %v2177 = vld [vmem:[%s2 + $0x3b4] sm:$0xf]
  %v2178 = vld [vmem:[%s2 + $0x3b8] sm:$0xf]
  %v2179 = vld [vmem:[%s2 + $0x3bc] sm:$0xf]
  %v2180 = vld [vmem:[%s2 + $0x3c0] sm:$0xf]
  %v2181 = vld [vmem:[%s2 + $0x3c4] sm:$0xf]
  %v2182 = vld [vmem:[%s2 + $0x3c8] sm:$0xf]
  %v2183 = vld [vmem:[%s2 + $0x3cc] sm:$0xf]
  %v2184 = vld [vmem:[%s2 + $0x3d0] sm:$0xf]
  %v2185 = vld [vmem:[%s2 + $0x3d4] sm:$0xf]
  %v2186 = vld [vmem:[%s2 + $0x3d8] sm:$0xf]
  %v2187 = vld [vmem:[%s2 + $0x3dc] sm:$0xf]
  %v2188 = vpack.c.bf16 %v2163, %v2163
  %v2189 = vpack.c.bf16 %v2158, %v2158
  %v2190 = vld [vmem:[%s3 + $0x8] sm:$0x1]
  %v2191 = vperm.slane %v2190, 0
  %v2216 = vunpack.c.l.b16 %v2164
  %v2217 = vunpack.c.l.b16 %v2165
  %v2218 = vunpack.c.l.b16 %v2166
  %v2219 = vunpack.c.l.b16 %v2167
  %v2220 = vunpack.c.l.b16 %v2168
  %v2221 = vunpack.c.l.b16 %v2169
  %v2222 = vunpack.c.l.b16 %v2170
  %v2223 = vunpack.c.l.b16 %v2171
  %v2224 = vunpack.c.l.b16 %v2172
  %v2225 = vunpack.c.l.b16 %v2173
  %v2226 = vunpack.c.l.b16 %v2174
  %v2227 = vunpack.c.l.b16 %v2175
  %v2228 = vunpack.c.l.b16 %v2176
  %v2229 = vunpack.c.l.b16 %v2177
  %v2230 = vunpack.c.l.b16 %v2178
  %v2231 = vunpack.c.l.b16 %v2179
  %v2232 = vunpack.c.l.b16 %v2180
  %v2233 = vunpack.c.l.b16 %v2181
  %v2234 = vunpack.c.l.b16 %v2182
  %v2235 = vunpack.c.l.b16 %v2183
  %v2236 = vunpack.c.l.b16 %v2184
  %v2237 = vunpack.c.l.b16 %v2185
  %v2238 = vunpack.c.l.b16 %v2186
  %v2239 = vunpack.c.l.b16 %v2187
  %v2240 = vpack.c.b16 %v2217, %v2216
  %v2241 = vpack.c.b16 %v2219, %v2218
  %v2242 = vpack.c.b16 %v2221, %v2220
  %v2243 = vpack.c.b16 %v2223, %v2222
  %v2244 = vpack.c.b16 %v2225, %v2224
  %v2245 = vpack.c.b16 %v2227, %v2226
  %v2246 = vpack.c.b16 %v2229, %v2228
  %v2247 = vpack.c.b16 %v2231, %v2230
  %v2248 = vpack.c.b16 %v2233, %v2232
  %v2249 = vpack.c.b16 %v2235, %v2234
  %v2250 = vpack.c.b16 %v2237, %v2236
  %v2251 = vpack.c.b16 %v2239, %v2238
  %v2265 = vsel %vm651, %v2189, 0
  %2267 = vmatpush.bf16.msra.mxu0 %v2247
  %2268 = vmatpush.bf16.msra.mxu0 %v2246
  %2269 = vmatpush.bf16.msra.mxu0 %v2245
  %2270 = vmatpush.bf16.msra.mxu0 %v2244
  %2271 = vmatpush.bf16.msra.mxu0 %v2243
  %2272 = vmatpush.bf16.msra.mxu0 %v2242
  %2273 = vmatpush.bf16.msra.mxu0 %v2241
  %2274 = vmatpush.bf16.msra.mxu0 %v2240
  %2275 = vmatmul.bf16.gmra.mxu0 %v2188
  %v2276 = vpop.f32.mrf.mxu0
  %v2277 = vadd.f32 %v2191, %v2276
  %v2278 = vpop.f32.mrf.mxu0
  %2279 = vdwg.mxu0
  %2280 = vmatpush.bf16.msra.mxu0 0
  %2281 = vmatpush.bf16.msra.mxu0 0
  %2282 = vmatpush.bf16.msra.mxu0 0
  %2283 = vmatpush.bf16.msra.mxu0 0
  %2284 = vmatpush.bf16.msra.mxu0 %v2251
  %2285 = vmatpush.bf16.msra.mxu0 %v2250
  %2286 = vmatpush.bf16.msra.mxu0 %v2249
  %2287 = vmatpush.bf16.msra.mxu0 %v2248
  %2288 = vmatmul.bf16.gmra.mxu0 %v2265
  %v2289 = vpop.f32.mrf.mxu0
  %v2290 = vadd.f32 %v2277, %v2289
  %v2291 = vpop.f32.mrf.mxu0
  %2292 = vdwg.mxu0
  %v2293 = vmax.f32 %v2290, 0.0
  %2294 = vst.msk [vmem:[#allocation2] sm:$0x1] %vm982, 0.0
  %2295 = vst.msk [vmem:[#allocation2 + $0x5] sm:$0x1] %vm982, 0.0
  %2296 = vst.msk [vmem:[#allocation2 + $0x1] sm:$0xf] %vm2013, %v2293
  %v2297 = vld [vmem:[#allocation2] ss:$2 sm:$0x3]
  %v2298 = vld [vmem:[%s675] ss:$2 sm:$0x3]
  %v2299 = vld [vmem:[%s683] ss:$2 sm:$0x3]
  %2301 = vrot.lane.b32.xlu0 %v2298, 64
  %v2302 = vpop.permute.xlu0 %2301
  %v2304 = vsel %vm651, %v2297, %v2302
  %v2305 = vld [vmem:[%s2 + $0x3e0] sm:$0xf]
  %v2306 = vld [vmem:[%s2 + $0x3e4] sm:$0xf]
  %v2307 = vld [vmem:[%s2 + $0x3e8] sm:$0xf]
  %v2308 = vld [vmem:[%s2 + $0x3ec] sm:$0xf]
  %v2309 = vld [vmem:[%s2 + $0x3f0] sm:$0xf]
  %v2310 = vld [vmem:[%s2 + $0x3f4] sm:$0xf]
  %v2311 = vld [vmem:[%s2 + $0x3f8] sm:$0xf]
  %v2312 = vld [vmem:[%s2 + $0x3fc] sm:$0xf]
  %v2313 = vld [vmem:[%s2 + $0x400] sm:$0xf]
  %v2314 = vld [vmem:[%s2 + $0x404] sm:$0xf]
  %v2315 = vld [vmem:[%s2 + $0x408] sm:$0xf]
  %v2316 = vld [vmem:[%s2 + $0x40c] sm:$0xf]
  %v2317 = vld [vmem:[%s2 + $0x410] sm:$0xf]
  %v2318 = vld [vmem:[%s2 + $0x414] sm:$0xf]
  %v2319 = vld [vmem:[%s2 + $0x418] sm:$0xf]
  %v2320 = vld [vmem:[%s2 + $0x41c] sm:$0xf]
  %v2321 = vld [vmem:[%s2 + $0x420] sm:$0xf]
  %v2322 = vld [vmem:[%s2 + $0x424] sm:$0xf]
  %v2323 = vld [vmem:[%s2 + $0x428] sm:$0xf]
  %v2324 = vld [vmem:[%s2 + $0x42c] sm:$0xf]
  %v2325 = vld [vmem:[%s2 + $0x430] sm:$0xf]
  %v2326 = vld [vmem:[%s2 + $0x434] sm:$0xf]
  %v2327 = vld [vmem:[%s2 + $0x438] sm:$0xf]
  %v2328 = vld [vmem:[%s2 + $0x43c] sm:$0xf]
  %v2329 = vpack.c.bf16 %v2304, %v2304
  %v2330 = vpack.c.bf16 %v2299, %v2299
  %v2331 = vld [vmem:[%s3 + $0x9] sm:$0x1]
  %v2332 = vperm.slane %v2331, 0
  %v2357 = vunpack.c.l.b16 %v2305
  %v2358 = vunpack.c.l.b16 %v2306
  %v2359 = vunpack.c.l.b16 %v2307
  %v2360 = vunpack.c.l.b16 %v2308
  %v2361 = vunpack.c.l.b16 %v2309
  %v2362 = vunpack.c.l.b16 %v2310
  %v2363 = vunpack.c.l.b16 %v2311
  %v2364 = vunpack.c.l.b16 %v2312
  %v2365 = vunpack.c.l.b16 %v2313
  %v2366 = vunpack.c.l.b16 %v2314
  %v2367 = vunpack.c.l.b16 %v2315
  %v2368 = vunpack.c.l.b16 %v2316
  %v2369 = vunpack.c.l.b16 %v2317
  %v2370 = vunpack.c.l.b16 %v2318
  %v2371 = vunpack.c.l.b16 %v2319
  %v2372 = vunpack.c.l.b16 %v2320
  %v2373 = vunpack.c.l.b16 %v2321
  %v2374 = vunpack.c.l.b16 %v2322
  %v2375 = vunpack.c.l.b16 %v2323
  %v2376 = vunpack.c.l.b16 %v2324
  %v2377 = vunpack.c.l.b16 %v2325
  %v2378 = vunpack.c.l.b16 %v2326
  %v2379 = vunpack.c.l.b16 %v2327
  %v2380 = vunpack.c.l.b16 %v2328
  %v2381 = vpack.c.b16 %v2358, %v2357
  %v2382 = vpack.c.b16 %v2360, %v2359
  %v2383 = vpack.c.b16 %v2362, %v2361
  %v2384 = vpack.c.b16 %v2364, %v2363
  %v2385 = vpack.c.b16 %v2366, %v2365
  %v2386 = vpack.c.b16 %v2368, %v2367
  %v2387 = vpack.c.b16 %v2370, %v2369
  %v2388 = vpack.c.b16 %v2372, %v2371
  %v2389 = vpack.c.b16 %v2374, %v2373
  %v2390 = vpack.c.b16 %v2376, %v2375
  %v2391 = vpack.c.b16 %v2378, %v2377
  %v2392 = vpack.c.b16 %v2380, %v2379
  %v2406 = vsel %vm651, %v2330, 0
  %2408 = vmatpush.bf16.msra.mxu0 %v2388
  %2409 = vmatpush.bf16.msra.mxu0 %v2387
  %2410 = vmatpush.bf16.msra.mxu0 %v2386
  %2411 = vmatpush.bf16.msra.mxu0 %v2385
  %2412 = vmatpush.bf16.msra.mxu0 %v2384
  %2413 = vmatpush.bf16.msra.mxu0 %v2383
  %2414 = vmatpush.bf16.msra.mxu0 %v2382
  %2415 = vmatpush.bf16.msra.mxu0 %v2381
  %2416 = vmatmul.bf16.gmra.mxu0 %v2329
  %v2417 = vpop.f32.mrf.mxu0
  %v2418 = vadd.f32 %v2332, %v2417
  %v2419 = vpop.f32.mrf.mxu0
  %2420 = vdwg.mxu0
  %2421 = vmatpush.bf16.msra.mxu0 0
  %2422 = vmatpush.bf16.msra.mxu0 0
  %2423 = vmatpush.bf16.msra.mxu0 0
  %2424 = vmatpush.bf16.msra.mxu0 0
  %2425 = vmatpush.bf16.msra.mxu0 %v2392
  %2426 = vmatpush.bf16.msra.mxu0 %v2391
  %2427 = vmatpush.bf16.msra.mxu0 %v2390
  %2428 = vmatpush.bf16.msra.mxu0 %v2389
  %2429 = vmatmul.bf16.gmra.mxu0 %v2406
  %v2430 = vpop.f32.mrf.mxu0
  %v2431 = vadd.f32 %v2418, %v2430
  %v2432 = vpop.f32.mrf.mxu0
  %2433 = vdwg.mxu0
  %v2434 = vmax.f32 %v2431, 0.0
  %2435 = vst.msk [vmem:[#allocation2] sm:$0x1] %vm982, 0.0
  %2436 = vst.msk [vmem:[#allocation2 + $0x3] sm:$0x1] %vm982, 0.0
  %2437 = vst.msk [vmem:[#allocation2 + $0x1] sm:$0x3] %vm648, %v2434
  %v2438 = vld [vmem:[#allocation2] sm:$0x3]
  %v2439 = vld [vmem:[#allocation2 + $0x1] sm:$0x3]
  %v2440 = vld [vmem:[#allocation2 + $0x2] sm:$0x3]
  %2442 = vrot.lane.b32.xlu0 %v2439, 64
  %v2443 = vpop.permute.xlu0 %2442
  %v2445 = vsel %vm651, %v2438, %v2443
  %v2446 = vld [vmem:[%s2 + $0x440] sm:$0xf]
  %v2447 = vld [vmem:[%s2 + $0x444] sm:$0xf]
  %v2448 = vld [vmem:[%s2 + $0x448] sm:$0xf]
  %v2449 = vld [vmem:[%s2 + $0x44c] sm:$0xf]
  %v2450 = vld [vmem:[%s2 + $0x450] sm:$0xf]
  %v2451 = vld [vmem:[%s2 + $0x454] sm:$0xf]
  %v2452 = vld [vmem:[%s2 + $0x458] sm:$0xf]
  %v2453 = vld [vmem:[%s2 + $0x45c] sm:$0xf]
  %v2454 = vld [vmem:[%s2 + $0x460] sm:$0xf]
  %v2455 = vld [vmem:[%s2 + $0x464] sm:$0xf]
  %v2456 = vld [vmem:[%s2 + $0x468] sm:$0xf]
  %v2457 = vld [vmem:[%s2 + $0x46c] sm:$0xf]
  %v2458 = vld [vmem:[%s2 + $0x470] sm:$0xf]
  %v2459 = vld [vmem:[%s2 + $0x474] sm:$0xf]
  %v2460 = vld [vmem:[%s2 + $0x478] sm:$0xf]
  %v2461 = vld [vmem:[%s2 + $0x47c] sm:$0xf]
  %v2462 = vld [vmem:[%s2 + $0x480] sm:$0xf]
  %v2463 = vld [vmem:[%s2 + $0x484] sm:$0xf]
  %v2464 = vld [vmem:[%s2 + $0x488] sm:$0xf]
  %v2465 = vld [vmem:[%s2 + $0x48c] sm:$0xf]
  %v2466 = vld [vmem:[%s2 + $0x490] sm:$0xf]
  %v2467 = vld [vmem:[%s2 + $0x494] sm:$0xf]
  %v2468 = vld [vmem:[%s2 + $0x498] sm:$0xf]
  %v2469 = vld [vmem:[%s2 + $0x49c] sm:$0xf]
  %v2470 = vpack.c.bf16 %v2445, %v2445
  %v2471 = vpack.c.bf16 %v2440, %v2440
  %v2472 = vld [vmem:[%s3 + $0xa] sm:$0x1]
  %v2473 = vperm.slane %v2472, 0
  %v2498 = vunpack.c.l.b16 %v2446
  %v2499 = vunpack.c.l.b16 %v2447
  %v2500 = vunpack.c.l.b16 %v2448
  %v2501 = vunpack.c.l.b16 %v2449
  %v2502 = vunpack.c.l.b16 %v2450
  %v2503 = vunpack.c.l.b16 %v2451
  %v2504 = vunpack.c.l.b16 %v2452
  %v2505 = vunpack.c.l.b16 %v2453
  %v2506 = vunpack.c.l.b16 %v2454
  %v2507 = vunpack.c.l.b16 %v2455
  %v2508 = vunpack.c.l.b16 %v2456
  %v2509 = vunpack.c.l.b16 %v2457
  %v2510 = vunpack.c.l.b16 %v2458
  %v2511 = vunpack.c.l.b16 %v2459
  %v2512 = vunpack.c.l.b16 %v2460
  %v2513 = vunpack.c.l.b16 %v2461
  %v2514 = vunpack.c.l.b16 %v2462
  %v2515 = vunpack.c.l.b16 %v2463
  %v2516 = vunpack.c.l.b16 %v2464
  %v2517 = vunpack.c.l.b16 %v2465
  %v2518 = vunpack.c.l.b16 %v2466
  %v2519 = vunpack.c.l.b16 %v2467
  %v2520 = vunpack.c.l.b16 %v2468
  %v2521 = vunpack.c.l.b16 %v2469
  %v2522 = vpack.c.b16 %v2499, %v2498
  %v2523 = vpack.c.b16 %v2501, %v2500
  %v2524 = vpack.c.b16 %v2503, %v2502
  %v2525 = vpack.c.b16 %v2505, %v2504
  %v2526 = vpack.c.b16 %v2507, %v2506
  %v2527 = vpack.c.b16 %v2509, %v2508
  %v2528 = vpack.c.b16 %v2511, %v2510
  %v2529 = vpack.c.b16 %v2513, %v2512
  %v2530 = vpack.c.b16 %v2515, %v2514
  %v2531 = vpack.c.b16 %v2517, %v2516
  %v2532 = vpack.c.b16 %v2519, %v2518
  %v2533 = vpack.c.b16 %v2521, %v2520
  %v2547 = vsel %vm651, %v2471, 0
  %2549 = vmatpush.bf16.msra.mxu0 %v2529
  %2550 = vmatpush.bf16.msra.mxu0 %v2528
  %2551 = vmatpush.bf16.msra.mxu0 %v2527
  %2552 = vmatpush.bf16.msra.mxu0 %v2526
  %2553 = vmatpush.bf16.msra.mxu0 %v2525
  %2554 = vmatpush.bf16.msra.mxu0 %v2524
  %2555 = vmatpush.bf16.msra.mxu0 %v2523
  %2556 = vmatpush.bf16.msra.mxu0 %v2522
  %2557 = vmatmul.bf16.gmra.mxu0 %v2470
  %v2558 = vpop.f32.mrf.mxu0
  %v2559 = vadd.f32 %v2473, %v2558
  %v2560 = vpop.f32.mrf.mxu0
  %2561 = vdwg.mxu0
  %2562 = vmatpush.bf16.msra.mxu0 0
  %2563 = vmatpush.bf16.msra.mxu0 0
  %2564 = vmatpush.bf16.msra.mxu0 0
  %2565 = vmatpush.bf16.msra.mxu0 0
  %2566 = vmatpush.bf16.msra.mxu0 %v2533
  %2567 = vmatpush.bf16.msra.mxu0 %v2532
  %2568 = vmatpush.bf16.msra.mxu0 %v2531
  %2569 = vmatpush.bf16.msra.mxu0 %v2530
  %2570 = vmatmul.bf16.gmra.mxu0 %v2547
  %v2571 = vpop.f32.mrf.mxu0
  %v2572 = vadd.f32 %v2559, %v2571
  %v2573 = vpop.f32.mrf.mxu0
  %2574 = vdwg.mxu0
  %v2575 = vmax.f32 %v2572, 0.0
  %2576 = vst.msk [vmem:[#allocation2] sm:$0x1] %vm982, 0.0
  %2577 = vst.msk [vmem:[#allocation2 + $0x3] sm:$0x1] %vm982, 0.0
  %2578 = vst.msk [vmem:[#allocation2 + $0x1] sm:$0x3] %vm648, %v2575
  %v2579 = vld [vmem:[#allocation2] sm:$0x3]
  %v2580 = vld [vmem:[#allocation2 + $0x1] sm:$0x3]
  %v2581 = vld [vmem:[#allocation2 + $0x2] sm:$0x3]
  %2583 = vrot.lane.b32.xlu0 %v2580, 64
  %v2584 = vpop.permute.xlu0 %2583
  %v2586 = vsel %vm651, %v2579, %v2584
  %v2587 = vld [vmem:[%s2 + $0x4a0] sm:$0xf]
  %v2588 = vld [vmem:[%s2 + $0x4a4] sm:$0xf]
  %v2589 = vld [vmem:[%s2 + $0x4a8] sm:$0xf]
  %v2590 = vld [vmem:[%s2 + $0x4ac] sm:$0xf]
  %v2591 = vld [vmem:[%s2 + $0x4b0] sm:$0xf]
  %v2592 = vld [vmem:[%s2 + $0x4b4] sm:$0xf]
  %v2593 = vld [vmem:[%s2 + $0x4b8] sm:$0xf]
  %v2594 = vld [vmem:[%s2 + $0x4bc] sm:$0xf]
  %v2595 = vld [vmem:[%s2 + $0x4c0] sm:$0xf]
  %v2596 = vld [vmem:[%s2 + $0x4c4] sm:$0xf]
  %v2597 = vld [vmem:[%s2 + $0x4c8] sm:$0xf]
  %v2598 = vld [vmem:[%s2 + $0x4cc] sm:$0xf]
  %v2599 = vld [vmem:[%s2 + $0x4d0] sm:$0xf]
  %v2600 = vld [vmem:[%s2 + $0x4d4] sm:$0xf]
  %v2601 = vld [vmem:[%s2 + $0x4d8] sm:$0xf]
  %v2602 = vld [vmem:[%s2 + $0x4dc] sm:$0xf]
  %v2603 = vld [vmem:[%s2 + $0x4e0] sm:$0xf]
  %v2604 = vld [vmem:[%s2 + $0x4e4] sm:$0xf]
  %v2605 = vld [vmem:[%s2 + $0x4e8] sm:$0xf]
  %v2606 = vld [vmem:[%s2 + $0x4ec] sm:$0xf]
  %v2607 = vld [vmem:[%s2 + $0x4f0] sm:$0xf]
  %v2608 = vld [vmem:[%s2 + $0x4f4] sm:$0xf]
  %v2609 = vld [vmem:[%s2 + $0x4f8] sm:$0xf]
  %v2610 = vld [vmem:[%s2 + $0x4fc] sm:$0xf]
  %v2611 = vpack.c.bf16 %v2586, %v2586
  %v2612 = vpack.c.bf16 %v2581, %v2581
  %v2613 = vld [vmem:[%s3 + $0xb] sm:$0x1]
  %v2614 = vperm.slane %v2613, 0
  %v2639 = vunpack.c.l.b16 %v2587
  %v2640 = vunpack.c.l.b16 %v2588
  %v2641 = vunpack.c.l.b16 %v2589
  %v2642 = vunpack.c.l.b16 %v2590
  %v2643 = vunpack.c.l.b16 %v2591
  %v2644 = vunpack.c.l.b16 %v2592
  %v2645 = vunpack.c.l.b16 %v2593
  %v2646 = vunpack.c.l.b16 %v2594
  %v2647 = vunpack.c.l.b16 %v2595
  %v2648 = vunpack.c.l.b16 %v2596
  %v2649 = vunpack.c.l.b16 %v2597
  %v2650 = vunpack.c.l.b16 %v2598
  %v2651 = vunpack.c.l.b16 %v2599
  %v2652 = vunpack.c.l.b16 %v2600
  %v2653 = vunpack.c.l.b16 %v2601
  %v2654 = vunpack.c.l.b16 %v2602
  %v2655 = vunpack.c.l.b16 %v2603
  %v2656 = vunpack.c.l.b16 %v2604
  %v2657 = vunpack.c.l.b16 %v2605
  %v2658 = vunpack.c.l.b16 %v2606
  %v2659 = vunpack.c.l.b16 %v2607
  %v2660 = vunpack.c.l.b16 %v2608
  %v2661 = vunpack.c.l.b16 %v2609
  %v2662 = vunpack.c.l.b16 %v2610
  %v2663 = vpack.c.b16 %v2640, %v2639
  %v2664 = vpack.c.b16 %v2642, %v2641
  %v2665 = vpack.c.b16 %v2644, %v2643
  %v2666 = vpack.c.b16 %v2646, %v2645
  %v2667 = vpack.c.b16 %v2648, %v2647
  %v2668 = vpack.c.b16 %v2650, %v2649
  %v2669 = vpack.c.b16 %v2652, %v2651
  %v2670 = vpack.c.b16 %v2654, %v2653
  %v2671 = vpack.c.b16 %v2656, %v2655
  %v2672 = vpack.c.b16 %v2658, %v2657
  %v2673 = vpack.c.b16 %v2660, %v2659
  %v2674 = vpack.c.b16 %v2662, %v2661
  %v2688 = vsel %vm651, %v2612, 0
  %2690 = vmatpush.bf16.msra.mxu0 %v2670
  %2691 = vmatpush.bf16.msra.mxu0 %v2669
  %2692 = vmatpush.bf16.msra.mxu0 %v2668
  %2693 = vmatpush.bf16.msra.mxu0 %v2667
  %2694 = vmatpush.bf16.msra.mxu0 %v2666
  %2695 = vmatpush.bf16.msra.mxu0 %v2665
  %2696 = vmatpush.bf16.msra.mxu0 %v2664
  %2697 = vmatpush.bf16.msra.mxu0 %v2663
  %2698 = vmatmul.bf16.gmra.mxu0 %v2611
  %v2699 = vpop.f32.mrf.mxu0
  %v2700 = vadd.f32 %v2614, %v2699
  %v2701 = vpop.f32.mrf.mxu0
  %2702 = vdwg.mxu0
  %2703 = vmatpush.bf16.msra.mxu0 0
  %2704 = vmatpush.bf16.msra.mxu0 0
  %2705 = vmatpush.bf16.msra.mxu0 0
  %2706 = vmatpush.bf16.msra.mxu0 0
  %2707 = vmatpush.bf16.msra.mxu0 %v2674
  %2708 = vmatpush.bf16.msra.mxu0 %v2673
  %2709 = vmatpush.bf16.msra.mxu0 %v2672
  %2710 = vmatpush.bf16.msra.mxu0 %v2671
  %2711 = vmatmul.bf16.gmra.mxu0 %v2688
  %v2712 = vpop.f32.mrf.mxu0
  %v2713 = vadd.f32 %v2700, %v2712
  %v2714 = vpop.f32.mrf.mxu0
  %2715 = vdwg.mxu0
  %v2716 = vmax.f32 %v2713, 0.0
  %v2717 = vsel %vm648, %v2716, 0.0
  %v2718 = vrot.slane %v2717, 4
  %v2719 = vadd.f32 %v2717, %v2718
  %v2720 = vrot.slane %v2719, 2
  %v2721 = vadd.f32 %v2719, %v2720
  %v2722 = vrot.slane %v2721, 1
  %v2723 = vadd.f32 %v2721, %v2722
  %v2724 = vmul.f32 %v2723, 0.5
  %s2725 = smul.u32 4, 576
  %s2726 = smul.u32 %s2725, 1
  %s2727 = sshll.u32 %s2726, 4
  %2728 = dma.done [#allocation5], %s2727
  %v2729 = vld [vmem:[%s1] sm:$0xff]
  %v2730 = vld [vmem:[%s1 + $0x8] sm:$0xff]
  %v2731 = vld [vmem:[%s1 + $0x10] sm:$0xff]
  %v2732 = vld [vmem:[%s1 + $0x18] sm:$0xff]
  %2733 = vst [vmem:[#allocation3] sm:$0x1] 0.0
  %2734 = vst [vmem:[#allocation3 + $0x21] sm:$0x1] 0.0
  %2735 = vst [vmem:[#allocation3 + $0x1] sm:$0xff] %v2729
  %2736 = vst [vmem:[#allocation3 + $0x9] sm:$0xff] %v2730
  %2737 = vst [vmem:[#allocation3 + $0x11] sm:$0xff] %v2731
  %2738 = vst [vmem:[#allocation3 + $0x19] sm:$0xff] %v2732
  %v2739 = vld [vmem:[#allocation3] ss:$2 sm:$0xff]
  %s2740 = scalar_lea.vmem [#allocation3], 16
  %v2741 = vld [vmem:[%s2740] ss:$2 sm:$0xff]
  %s2742 = scalar_lea.vmem [#allocation3], 1
  %v2743 = vld [vmem:[%s2742] ss:$2 sm:$0xff]
  %s2744 = scalar_lea.vmem [#allocation3], 17
  %v2745 = vld [vmem:[%s2744] ss:$2 sm:$0xff]
  %s2746 = scalar_lea.vmem [#allocation3], 2
  %v2747 = vld [vmem:[%s2746] ss:$2 sm:$0xff]
  %s2748 = scalar_lea.vmem [#allocation3], 18
  %v2749 = vld [vmem:[%s2748] ss:$2 sm:$0xff]
  %v2750 = vld [vmem:[#allocation4] sm:$0xf]
  %v2751 = vld [vmem:[#allocation4 + $0x4] sm:$0xf]
  %v2752 = vld [vmem:[#allocation4 + $0x8] sm:$0xf]
  %v2753 = vld [vmem:[#allocation4 + $0xc] sm:$0xf]
  %v2754 = vld [vmem:[#allocation4 + $0x10] sm:$0xf]
  %v2755 = vld [vmem:[#allocation4 + $0x14] sm:$0xf]
  %v2756 = vld [vmem:[#allocation4 + $0x18] sm:$0xf]
  %v2757 = vld [vmem:[#allocation4 + $0x1c] sm:$0xf]
  %v2758 = vld [vmem:[#allocation4 + $0x20] sm:$0xf]
  %v2759 = vld [vmem:[#allocation4 + $0x24] sm:$0xf]
  %v2760 = vld [vmem:[#allocation4 + $0x28] sm:$0xf]
  %v2761 = vld [vmem:[#allocation4 + $0x2c] sm:$0xf]
  %v2762 = vld [vmem:[#allocation4 + $0x30] sm:$0xf]
  %v2763 = vld [vmem:[#allocation4 + $0x34] sm:$0xf]
  %v2764 = vld [vmem:[#allocation4 + $0x38] sm:$0xf]
  %v2765 = vld [vmem:[#allocation4 + $0x3c] sm:$0xf]
  %v2766 = vld [vmem:[#allocation4 + $0x40] sm:$0xf]
  %v2767 = vld [vmem:[#allocation4 + $0x44] sm:$0xf]
  %v2768 = vld [vmem:[#allocation4 + $0x48] sm:$0xf]
  %v2769 = vld [vmem:[#allocation4 + $0x4c] sm:$0xf]
  %v2770 = vld [vmem:[#allocation4 + $0x50] sm:$0xf]
  %v2771 = vld [vmem:[#allocation4 + $0x54] sm:$0xf]
  %v2772 = vld [vmem:[#allocation4 + $0x58] sm:$0xf]
  %v2773 = vld [vmem:[#allocation4 + $0x5c] sm:$0xf]
  %v2774 = vld [vmem:[#allocation4 + $0x60] sm:$0xf]
  %v2775 = vld [vmem:[#allocation4 + $0x64] sm:$0xf]
  %v2776 = vld [vmem:[#allocation4 + $0x68] sm:$0xf]
  %v2777 = vld [vmem:[#allocation4 + $0x6c] sm:$0xf]
  %v2778 = vld [vmem:[#allocation4 + $0x70] sm:$0xf]
  %v2779 = vld [vmem:[#allocation4 + $0x74] sm:$0xf]
  %v2780 = vld [vmem:[#allocation4 + $0x78] sm:$0xf]
  %v2781 = vld [vmem:[#allocation4 + $0x7c] sm:$0xf]
  %v2782 = vld [vmem:[#allocation4 + $0x80] sm:$0xf]
  %v2783 = vld [vmem:[#allocation4 + $0x84] sm:$0xf]
  %v2784 = vld [vmem:[#allocation4 + $0x88] sm:$0xf]
  %v2785 = vld [vmem:[#allocation4 + $0x8c] sm:$0xf]
  %v2786 = vld [vmem:[#allocation4 + $0x90] sm:$0xf]
  %v2787 = vld [vmem:[#allocation4 + $0x94] sm:$0xf]
  %v2788 = vld [vmem:[#allocation4 + $0x98] sm:$0xf]
  %v2789 = vld [vmem:[#allocation4 + $0x9c] sm:$0xf]
  %v2790 = vld [vmem:[#allocation4 + $0xa0] sm:$0xf]
  %v2791 = vld [vmem:[#allocation4 + $0xa4] sm:$0xf]
  %v2792 = vld [vmem:[#allocation4 + $0xa8] sm:$0xf]
  %v2793 = vld [vmem:[#allocation4 + $0xac] sm:$0xf]
  %v2794 = vld [vmem:[#allocation4 + $0xb0] sm:$0xf]
  %v2795 = vld [vmem:[#allocation4 + $0xb4] sm:$0xf]
  %v2796 = vld [vmem:[#allocation4 + $0xb8] sm:$0xf]
  %v2797 = vld [vmem:[#allocation4 + $0xbc] sm:$0xf]
  %v2798 = vpack.c.bf16 %v2741, %v2739
  %v2799 = vpack.c.bf16 %v2745, %v2743
  %v2800 = vpack.c.bf16 %v2749, %v2747
  %v2801 = vld [vmem:[%s5] sm:$0x1]
  %v2802 = vperm.slane %v2801, 0
  %v2851 = vunpack.c.l.b16 %v2750
  %v2852 = vunpack.c.l.b16 %v2751
  %v2853 = vunpack.c.l.b16 %v2752
  %v2854 = vunpack.c.l.b16 %v2753
  %v2855 = vunpack.c.l.b16 %v2754
  %v2856 = vunpack.c.l.b16 %v2755
  %v2857 = vunpack.c.l.b16 %v2756
  %v2858 = vunpack.c.l.b16 %v2757
  %v2859 = vunpack.c.l.b16 %v2758
  %v2860 = vunpack.c.l.b16 %v2759
  %v2861 = vunpack.c.l.b16 %v2760
  %v2862 = vunpack.c.l.b16 %v2761
  %v2863 = vunpack.c.l.b16 %v2762
  %v2864 = vunpack.c.l.b16 %v2763
  %v2865 = vunpack.c.l.b16 %v2764
  %v2866 = vunpack.c.l.b16 %v2765
  %v2867 = vunpack.c.l.b16 %v2766
  %v2868 = vunpack.c.l.b16 %v2767
  %v2869 = vunpack.c.l.b16 %v2768
  %v2870 = vunpack.c.l.b16 %v2769
  %v2871 = vunpack.c.l.b16 %v2770
  %v2872 = vunpack.c.l.b16 %v2771
  %v2873 = vunpack.c.l.b16 %v2772
  %v2874 = vunpack.c.l.b16 %v2773
  %v2875 = vunpack.c.l.b16 %v2774
  %v2876 = vunpack.c.l.b16 %v2775
  %v2877 = vunpack.c.l.b16 %v2776
  %v2878 = vunpack.c.l.b16 %v2777
  %v2879 = vunpack.c.l.b16 %v2778
  %v2880 = vunpack.c.l.b16 %v2779
  %v2881 = vunpack.c.l.b16 %v2780
  %v2882 = vunpack.c.l.b16 %v2781
  %v2883 = vunpack.c.l.b16 %v2782
  %v2884 = vunpack.c.l.b16 %v2783
  %v2885 = vunpack.c.l.b16 %v2784
  %v2886 = vunpack.c.l.b16 %v2785
  %v2887 = vunpack.c.l.b16 %v2786
  %v2888 = vunpack.c.l.b16 %v2787
  %v2889 = vunpack.c.l.b16 %v2788
  %v2890 = vunpack.c.l.b16 %v2789
  %v2891 = vunpack.c.l.b16 %v2790
  %v2892 = vunpack.c.l.b16 %v2791
  %v2893 = vunpack.c.l.b16 %v2792
  %v2894 = vunpack.c.l.b16 %v2793
  %v2895 = vunpack.c.l.b16 %v2794
  %v2896 = vunpack.c.l.b16 %v2795
  %v2897 = vunpack.c.l.b16 %v2796
  %v2898 = vunpack.c.l.b16 %v2797
  %v2899 = vpack.c.b16 %v2852, %v2851
  %v2900 = vpack.c.b16 %v2854, %v2853
  %v2901 = vpack.c.b16 %v2856, %v2855
  %v2902 = vpack.c.b16 %v2858, %v2857
  %v2903 = vpack.c.b16 %v2860, %v2859
  %v2904 = vpack.c.b16 %v2862, %v2861
  %v2905 = vpack.c.b16 %v2864, %v2863
  %v2906 = vpack.c.b16 %v2866, %v2865
  %v2907 = vpack.c.b16 %v2868, %v2867
  %v2908 = vpack.c.b16 %v2870, %v2869
  %v2909 = vpack.c.b16 %v2872, %v2871
  %v2910 = vpack.c.b16 %v2874, %v2873
  %v2911 = vpack.c.b16 %v2876, %v2875
  %v2912 = vpack.c.b16 %v2878, %v2877
  %v2913 = vpack.c.b16 %v2880, %v2879
  %v2914 = vpack.c.b16 %v2882, %v2881
  %v2915 = vpack.c.b16 %v2884, %v2883
  %v2916 = vpack.c.b16 %v2886, %v2885
  %v2917 = vpack.c.b16 %v2888, %v2887
  %v2918 = vpack.c.b16 %v2890, %v2889
  %v2919 = vpack.c.b16 %v2892, %v2891
  %v2920 = vpack.c.b16 %v2894, %v2893
  %v2921 = vpack.c.b16 %v2896, %v2895
  %v2922 = vpack.c.b16 %v2898, %v2897
  %2947 = vmatpush.bf16.msra.mxu0 %v2906
  %2948 = vmatpush.bf16.msra.mxu0 %v2905
  %2949 = vmatpush.bf16.msra.mxu0 %v2904
  %2950 = vmatpush.bf16.msra.mxu0 %v2903
  %2951 = vmatpush.bf16.msra.mxu0 %v2902
  %2952 = vmatpush.bf16.msra.mxu0 %v2901
  %2953 = vmatpush.bf16.msra.mxu0 %v2900
  %2954 = vmatpush.bf16.msra.mxu0 %v2899
  %2955 = vmatmul.bf16.gmra.mxu0 %v2798
  %v2956 = vpop.f32.mrf.mxu0
  %v2957 = vadd.f32 %v2802, %v2956
  %v2958 = vpop.f32.mrf.mxu0
  %v2959 = vadd.f32 %v2802, %v2958
  %2960 = vdwg.mxu0
  %2961 = vmatpush.bf16.msra.mxu0 %v2914
  %2962 = vmatpush.bf16.msra.mxu0 %v2913
  %2963 = vmatpush.bf16.msra.mxu0 %v2912
  %2964 = vmatpush.bf16.msra.mxu0 %v2911
  %2965 = vmatpush.bf16.msra.mxu0 %v2910
  %2966 = vmatpush.bf16.msra.mxu0 %v2909
  %2967 = vmatpush.bf16.msra.mxu0 %v2908
  %2968 = vmatpush.bf16.msra.mxu0 %v2907
  %2969 = vmatmul.bf16.gmra.mxu0 %v2799
  %v2970 = vpop.f32.mrf.mxu0
  %v2971 = vadd.f32 %v2957, %v2970
  %v2972 = vpop.f32.mrf.mxu0
  %v2973 = vadd.f32 %v2959, %v2972
  %2974 = vdwg.mxu0
  %2975 = vmatpush.bf16.msra.mxu0 %v2922
  %2976 = vmatpush.bf16.msra.mxu0 %v2921
  %2977 = vmatpush.bf16.msra.mxu0 %v2920
  %2978 = vmatpush.bf16.msra.mxu0 %v2919
  %2979 = vmatpush.bf16.msra.mxu0 %v2918
  %2980 = vmatpush.bf16.msra.mxu0 %v2917
  %2981 = vmatpush.bf16.msra.mxu0 %v2916
  %2982 = vmatpush.bf16.msra.mxu0 %v2915
  %2983 = vmatmul.bf16.gmra.mxu0 %v2800
  %v2984 = vpop.f32.mrf.mxu0
  %v2985 = vadd.f32 %v2971, %v2984
  %v2986 = vpop.f32.mrf.mxu0
  %v2987 = vadd.f32 %v2973, %v2986
  %2988 = vdwg.mxu0
  %v2989 = vmax.f32 %v2985, 0.0
  %v2990 = vmax.f32 %v2987, 0.0
  %2991 = vst [vmem:[#allocation3] sm:$0x1] 0.0
  %2992 = vst [vmem:[#allocation3 + $0x11] sm:$0x1] 0.0
  %2993 = vst [vmem:[#allocation3 + $0x1] sm:$0xff] %v2989
  %2994 = vst [vmem:[#allocation3 + $0x9] sm:$0xff] %v2990
  %v2995 = vld [vmem:[#allocation3] sm:$0xff]
  %v2996 = vld [vmem:[#allocation3 + $0x8] sm:$0xff]
  %v2997 = vld [vmem:[#allocation3 + $0x1] sm:$0xff]
  %v2998 = vld [vmem:[#allocation3 + $0x9] sm:$0xff]
  %v2999 = vld [vmem:[#allocation3 + $0x2] sm:$0xff]
  %v3000 = vld [vmem:[#allocation3 + $0xa] sm:$0xff]
  %v3001 = vld [vmem:[#allocation4 + $0xc0] sm:$0xf]
  %v3002 = vld [vmem:[#allocation4 + $0xc4] sm:$0xf]
  %v3003 = vld [vmem:[#allocation4 + $0xc8] sm:$0xf]
  %v3004 = vld [vmem:[#allocation4 + $0xcc] sm:$0xf]
  %v3005 = vld [vmem:[#allocation4 + $0xd0] sm:$0xf]
  %v3006 = vld [vmem:[#allocation4 + $0xd4] sm:$0xf]
  %v3007 = vld [vmem:[#allocation4 + $0xd8] sm:$0xf]
  %v3008 = vld [vmem:[#allocation4 + $0xdc] sm:$0xf]
  %v3009 = vld [vmem:[#allocation4 + $0xe0] sm:$0xf]
  %v3010 = vld [vmem:[#allocation4 + $0xe4] sm:$0xf]
  %v3011 = vld [vmem:[#allocation4 + $0xe8] sm:$0xf]
  %v3012 = vld [vmem:[#allocation4 + $0xec] sm:$0xf]
  %v3013 = vld [vmem:[#allocation4 + $0xf0] sm:$0xf]
  %v3014 = vld [vmem:[#allocation4 + $0xf4] sm:$0xf]
  %v3015 = vld [vmem:[#allocation4 + $0xf8] sm:$0xf]
  %v3016 = vld [vmem:[#allocation4 + $0xfc] sm:$0xf]
  %v3017 = vld [vmem:[#allocation4 + $0x100] sm:$0xf]
  %v3018 = vld [vmem:[#allocation4 + $0x104] sm:$0xf]
  %v3019 = vld [vmem:[#allocation4 + $0x108] sm:$0xf]
  %v3020 = vld [vmem:[#allocation4 + $0x10c] sm:$0xf]
  %v3021 = vld [vmem:[#allocation4 + $0x110] sm:$0xf]
  %v3022 = vld [vmem:[#allocation4 + $0x114] sm:$0xf]
  %v3023 = vld [vmem:[#allocation4 + $0x118] sm:$0xf]
  %v3024 = vld [vmem:[#allocation4 + $0x11c] sm:$0xf]
  %v3025 = vld [vmem:[#allocation4 + $0x120] sm:$0xf]
  %v3026 = vld [vmem:[#allocation4 + $0x124] sm:$0xf]
  %v3027 = vld [vmem:[#allocation4 + $0x128] sm:$0xf]
  %v3028 = vld [vmem:[#allocation4 + $0x12c] sm:$0xf]
  %v3029 = vld [vmem:[#allocation4 + $0x130] sm:$0xf]
  %v3030 = vld [vmem:[#allocation4 + $0x134] sm:$0xf]
  %v3031 = vld [vmem:[#allocation4 + $0x138] sm:$0xf]
  %v3032 = vld [vmem:[#allocation4 + $0x13c] sm:$0xf]
  %v3033 = vld [vmem:[#allocation4 + $0x140] sm:$0xf]
  %v3034 = vld [vmem:[#allocation4 + $0x144] sm:$0xf]
  %v3035 = vld [vmem:[#allocation4 + $0x148] sm:$0xf]
  %v3036 = vld [vmem:[#allocation4 + $0x14c] sm:$0xf]
  %v3037 = vld [vmem:[#allocation4 + $0x150] sm:$0xf]
  %v3038 = vld [vmem:[#allocation4 + $0x154] sm:$0xf]
  %v3039 = vld [vmem:[#allocation4 + $0x158] sm:$0xf]
  %v3040 = vld [vmem:[#allocation4 + $0x15c] sm:$0xf]
  %v3041 = vld [vmem:[#allocation4 + $0x160] sm:$0xf]
  %v3042 = vld [vmem:[#allocation4 + $0x164] sm:$0xf]
  %v3043 = vld [vmem:[#allocation4 + $0x168] sm:$0xf]
  %v3044 = vld [vmem:[#allocation4 + $0x16c] sm:$0xf]
  %v3045 = vld [vmem:[#allocation4 + $0x170] sm:$0xf]
  %v3046 = vld [vmem:[#allocation4 + $0x174] sm:$0xf]
  %v3047 = vld [vmem:[#allocation4 + $0x178] sm:$0xf]
  %v3048 = vld [vmem:[#allocation4 + $0x17c] sm:$0xf]
  %v3049 = vpack.c.bf16 %v2996, %v2995
  %v3050 = vpack.c.bf16 %v2998, %v2997
  %v3051 = vpack.c.bf16 %v3000, %v2999
  %v3052 = vld [vmem:[%s5 + $0x1] sm:$0x1]
  %v3053 = vperm.slane %v3052, 0
  %v3102 = vunpack.c.l.b16 %v3001
  %v3103 = vunpack.c.l.b16 %v3002
  %v3104 = vunpack.c.l.b16 %v3003
  %v3105 = vunpack.c.l.b16 %v3004
  %v3106 = vunpack.c.l.b16 %v3005
  %v3107 = vunpack.c.l.b16 %v3006
  %v3108 = vunpack.c.l.b16 %v3007
  %v3109 = vunpack.c.l.b16 %v3008
  %v3110 = vunpack.c.l.b16 %v3009
  %v3111 = vunpack.c.l.b16 %v3010
  %v3112 = vunpack.c.l.b16 %v3011
  %v3113 = vunpack.c.l.b16 %v3012
  %v3114 = vunpack.c.l.b16 %v3013
  %v3115 = vunpack.c.l.b16 %v3014
  %v3116 = vunpack.c.l.b16 %v3015
  %v3117 = vunpack.c.l.b16 %v3016
  %v3118 = vunpack.c.l.b16 %v3017
  %v3119 = vunpack.c.l.b16 %v3018
  %v3120 = vunpack.c.l.b16 %v3019
  %v3121 = vunpack.c.l.b16 %v3020
  %v3122 = vunpack.c.l.b16 %v3021
  %v3123 = vunpack.c.l.b16 %v3022
  %v3124 = vunpack.c.l.b16 %v3023
  %v3125 = vunpack.c.l.b16 %v3024
  %v3126 = vunpack.c.l.b16 %v3025
  %v3127 = vunpack.c.l.b16 %v3026
  %v3128 = vunpack.c.l.b16 %v3027
  %v3129 = vunpack.c.l.b16 %v3028
  %v3130 = vunpack.c.l.b16 %v3029
  %v3131 = vunpack.c.l.b16 %v3030
  %v3132 = vunpack.c.l.b16 %v3031
  %v3133 = vunpack.c.l.b16 %v3032
  %v3134 = vunpack.c.l.b16 %v3033
  %v3135 = vunpack.c.l.b16 %v3034
  %v3136 = vunpack.c.l.b16 %v3035
  %v3137 = vunpack.c.l.b16 %v3036
  %v3138 = vunpack.c.l.b16 %v3037
  %v3139 = vunpack.c.l.b16 %v3038
  %v3140 = vunpack.c.l.b16 %v3039
  %v3141 = vunpack.c.l.b16 %v3040
  %v3142 = vunpack.c.l.b16 %v3041
  %v3143 = vunpack.c.l.b16 %v3042
  %v3144 = vunpack.c.l.b16 %v3043
  %v3145 = vunpack.c.l.b16 %v3044
  %v3146 = vunpack.c.l.b16 %v3045
  %v3147 = vunpack.c.l.b16 %v3046
  %v3148 = vunpack.c.l.b16 %v3047
  %v3149 = vunpack.c.l.b16 %v3048
  %v3150 = vpack.c.b16 %v3103, %v3102
  %v3151 = vpack.c.b16 %v3105, %v3104
  %v3152 = vpack.c.b16 %v3107, %v3106
  %v3153 = vpack.c.b16 %v3109, %v3108
  %v3154 = vpack.c.b16 %v3111, %v3110
  %v3155 = vpack.c.b16 %v3113, %v3112
  %v3156 = vpack.c.b16 %v3115, %v3114
  %v3157 = vpack.c.b16 %v3117, %v3116
  %v3158 = vpack.c.b16 %v3119, %v3118
  %v3159 = vpack.c.b16 %v3121, %v3120
  %v3160 = vpack.c.b16 %v3123, %v3122
  %v3161 = vpack.c.b16 %v3125, %v3124
  %v3162 = vpack.c.b16 %v3127, %v3126
  %v3163 = vpack.c.b16 %v3129, %v3128
  %v3164 = vpack.c.b16 %v3131, %v3130
  %v3165 = vpack.c.b16 %v3133, %v3132
  %v3166 = vpack.c.b16 %v3135, %v3134
  %v3167 = vpack.c.b16 %v3137, %v3136
  %v3168 = vpack.c.b16 %v3139, %v3138
  %v3169 = vpack.c.b16 %v3141, %v3140
  %v3170 = vpack.c.b16 %v3143, %v3142
  %v3171 = vpack.c.b16 %v3145, %v3144
  %v3172 = vpack.c.b16 %v3147, %v3146
  %v3173 = vpack.c.b16 %v3149, %v3148
  %3198 = vmatpush.bf16.msra.mxu0 %v3157
  %3199 = vmatpush.bf16.msra.mxu0 %v3156
  %3200 = vmatpush.bf16.msra.mxu0 %v3155
  %3201 = vmatpush.bf16.msra.mxu0 %v3154
  %3202 = vmatpush.bf16.msra.mxu0 %v3153
  %3203 = vmatpush.bf16.msra.mxu0 %v3152
  %3204 = vmatpush.bf16.msra.mxu0 %v3151
  %3205 = vmatpush.bf16.msra.mxu0 %v3150
  %3206 = vmatmul.bf16.gmra.mxu0 %v3049
  %v3207 = vpop.f32.mrf.mxu0
  %v3208 = vadd.f32 %v3053, %v3207
  %v3209 = vpop.f32.mrf.mxu0
  %v3210 = vadd.f32 %v3053, %v3209
  %3211 = vdwg.mxu0
  %3212 = vmatpush.bf16.msra.mxu0 %v3165
  %3213 = vmatpush.bf16.msra.mxu0 %v3164
  %3214 = vmatpush.bf16.msra.mxu0 %v3163
  %3215 = vmatpush.bf16.msra.mxu0 %v3162
  %3216 = vmatpush.bf16.msra.mxu0 %v3161
  %3217 = vmatpush.bf16.msra.mxu0 %v3160
  %3218 = vmatpush.bf16.msra.mxu0 %v3159
  %3219 = vmatpush.bf16.msra.mxu0 %v3158
  %3220 = vmatmul.bf16.gmra.mxu0 %v3050
  %v3221 = vpop.f32.mrf.mxu0
  %v3222 = vadd.f32 %v3208, %v3221
  %v3223 = vpop.f32.mrf.mxu0
  %v3224 = vadd.f32 %v3210, %v3223
  %3225 = vdwg.mxu0
  %3226 = vmatpush.bf16.msra.mxu0 %v3173
  %3227 = vmatpush.bf16.msra.mxu0 %v3172
  %3228 = vmatpush.bf16.msra.mxu0 %v3171
  %3229 = vmatpush.bf16.msra.mxu0 %v3170
  %3230 = vmatpush.bf16.msra.mxu0 %v3169
  %3231 = vmatpush.bf16.msra.mxu0 %v3168
  %3232 = vmatpush.bf16.msra.mxu0 %v3167
  %3233 = vmatpush.bf16.msra.mxu0 %v3166
  %3234 = vmatmul.bf16.gmra.mxu0 %v3051
  %v3235 = vpop.f32.mrf.mxu0
  %v3236 = vadd.f32 %v3222, %v3235
  %v3237 = vpop.f32.mrf.mxu0
  %v3238 = vadd.f32 %v3224, %v3237
  %3239 = vdwg.mxu0
  %v3240 = vmax.f32 %v3236, 0.0
  %v3241 = vmax.f32 %v3238, 0.0
  %3242 = vst [vmem:[#allocation3] sm:$0x1] 0.0
  %3243 = vst [vmem:[#allocation3 + $0x11] sm:$0x1] 0.0
  %3244 = vst [vmem:[#allocation3 + $0x1] sm:$0xff] %v3240
  %3245 = vst [vmem:[#allocation3 + $0x9] sm:$0xff] %v3241
  %v3246 = vld [vmem:[#allocation3] sm:$0xff]
  %v3247 = vld [vmem:[#allocation3 + $0x8] sm:$0xff]
  %v3248 = vld [vmem:[#allocation3 + $0x1] sm:$0xff]
  %v3249 = vld [vmem:[#allocation3 + $0x9] sm:$0xff]
  %v3250 = vld [vmem:[#allocation3 + $0x2] sm:$0xff]
  %v3251 = vld [vmem:[#allocation3 + $0xa] sm:$0xff]
  %v3252 = vld [vmem:[#allocation4 + $0x180] sm:$0xf]
  %v3253 = vld [vmem:[#allocation4 + $0x184] sm:$0xf]
  %v3254 = vld [vmem:[#allocation4 + $0x188] sm:$0xf]
  %v3255 = vld [vmem:[#allocation4 + $0x18c] sm:$0xf]
  %v3256 = vld [vmem:[#allocation4 + $0x190] sm:$0xf]
  %v3257 = vld [vmem:[#allocation4 + $0x194] sm:$0xf]
  %v3258 = vld [vmem:[#allocation4 + $0x198] sm:$0xf]
  %v3259 = vld [vmem:[#allocation4 + $0x19c] sm:$0xf]
  %v3260 = vld [vmem:[#allocation4 + $0x1a0] sm:$0xf]
  %v3261 = vld [vmem:[#allocation4 + $0x1a4] sm:$0xf]
  %v3262 = vld [vmem:[#allocation4 + $0x1a8] sm:$0xf]
  %v3263 = vld [vmem:[#allocation4 + $0x1ac] sm:$0xf]
  %v3264 = vld [vmem:[#allocation4 + $0x1b0] sm:$0xf]
  %v3265 = vld [vmem:[#allocation4 + $0x1b4] sm:$0xf]
  %v3266 = vld [vmem:[#allocation4 + $0x1b8] sm:$0xf]
  %v3267 = vld [vmem:[#allocation4 + $0x1bc] sm:$0xf]
  %v3268 = vld [vmem:[#allocation4 + $0x1c0] sm:$0xf]
  %v3269 = vld [vmem:[#allocation4 + $0x1c4] sm:$0xf]
  %v3270 = vld [vmem:[#allocation4 + $0x1c8] sm:$0xf]
  %v3271 = vld [vmem:[#allocation4 + $0x1cc] sm:$0xf]
  %v3272 = vld [vmem:[#allocation4 + $0x1d0] sm:$0xf]
  %v3273 = vld [vmem:[#allocation4 + $0x1d4] sm:$0xf]
  %v3274 = vld [vmem:[#allocation4 + $0x1d8] sm:$0xf]
  %v3275 = vld [vmem:[#allocation4 + $0x1dc] sm:$0xf]
  %v3276 = vld [vmem:[#allocation4 + $0x1e0] sm:$0xf]
  %v3277 = vld [vmem:[#allocation4 + $0x1e4] sm:$0xf]
  %v3278 = vld [vmem:[#allocation4 + $0x1e8] sm:$0xf]
  %v3279 = vld [vmem:[#allocation4 + $0x1ec] sm:$0xf]
  %v3280 = vld [vmem:[#allocation4 + $0x1f0] sm:$0xf]
  %v3281 = vld [vmem:[#allocation4 + $0x1f4] sm:$0xf]
  %v3282 = vld [vmem:[#allocation4 + $0x1f8] sm:$0xf]
  %v3283 = vld [vmem:[#allocation4 + $0x1fc] sm:$0xf]
  %v3284 = vld [vmem:[#allocation4 + $0x200] sm:$0xf]
  %v3285 = vld [vmem:[#allocation4 + $0x204] sm:$0xf]
  %v3286 = vld [vmem:[#allocation4 + $0x208] sm:$0xf]
  %v3287 = vld [vmem:[#allocation4 + $0x20c] sm:$0xf]
  %v3288 = vld [vmem:[#allocation4 + $0x210] sm:$0xf]
  %v3289 = vld [vmem:[#allocation4 + $0x214] sm:$0xf]
  %v3290 = vld [vmem:[#allocation4 + $0x218] sm:$0xf]
  %v3291 = vld [vmem:[#allocation4 + $0x21c] sm:$0xf]
  %v3292 = vld [vmem:[#allocation4 + $0x220] sm:$0xf]
  %v3293 = vld [vmem:[#allocation4 + $0x224] sm:$0xf]
  %v3294 = vld [vmem:[#allocation4 + $0x228] sm:$0xf]
  %v3295 = vld [vmem:[#allocation4 + $0x22c] sm:$0xf]
  %v3296 = vld [vmem:[#allocation4 + $0x230] sm:$0xf]
  %v3297 = vld [vmem:[#allocation4 + $0x234] sm:$0xf]
  %v3298 = vld [vmem:[#allocation4 + $0x238] sm:$0xf]
  %v3299 = vld [vmem:[#allocation4 + $0x23c] sm:$0xf]
  %v3300 = vpack.c.bf16 %v3247, %v3246
  %v3301 = vpack.c.bf16 %v3249, %v3248
  %v3302 = vpack.c.bf16 %v3251, %v3250
  %v3303 = vld [vmem:[%s5 + $0x2] sm:$0x1]
  %v3304 = vperm.slane %v3303, 0
  %v3353 = vunpack.c.l.b16 %v3252
  %v3354 = vunpack.c.l.b16 %v3253
  %v3355 = vunpack.c.l.b16 %v3254
  %v3356 = vunpack.c.l.b16 %v3255
  %v3357 = vunpack.c.l.b16 %v3256
  %v3358 = vunpack.c.l.b16 %v3257
  %v3359 = vunpack.c.l.b16 %v3258
  %v3360 = vunpack.c.l.b16 %v3259
  %v3361 = vunpack.c.l.b16 %v3260
  %v3362 = vunpack.c.l.b16 %v3261
  %v3363 = vunpack.c.l.b16 %v3262
  %v3364 = vunpack.c.l.b16 %v3263
  %v3365 = vunpack.c.l.b16 %v3264
  %v3366 = vunpack.c.l.b16 %v3265
  %v3367 = vunpack.c.l.b16 %v3266
  %v3368 = vunpack.c.l.b16 %v3267
  %v3369 = vunpack.c.l.b16 %v3268
  %v3370 = vunpack.c.l.b16 %v3269
  %v3371 = vunpack.c.l.b16 %v3270
  %v3372 = vunpack.c.l.b16 %v3271
  %v3373 = vunpack.c.l.b16 %v3272
  %v3374 = vunpack.c.l.b16 %v3273
  %v3375 = vunpack.c.l.b16 %v3274
  %v3376 = vunpack.c.l.b16 %v3275
  %v3377 = vunpack.c.l.b16 %v3276
  %v3378 = vunpack.c.l.b16 %v3277
  %v3379 = vunpack.c.l.b16 %v3278
  %v3380 = vunpack.c.l.b16 %v3279
  %v3381 = vunpack.c.l.b16 %v3280
  %v3382 = vunpack.c.l.b16 %v3281
  %v3383 = vunpack.c.l.b16 %v3282
  %v3384 = vunpack.c.l.b16 %v3283
  %v3385 = vunpack.c.l.b16 %v3284
  %v3386 = vunpack.c.l.b16 %v3285
  %v3387 = vunpack.c.l.b16 %v3286
  %v3388 = vunpack.c.l.b16 %v3287
  %v3389 = vunpack.c.l.b16 %v3288
  %v3390 = vunpack.c.l.b16 %v3289
  %v3391 = vunpack.c.l.b16 %v3290
  %v3392 = vunpack.c.l.b16 %v3291
  %v3393 = vunpack.c.l.b16 %v3292
  %v3394 = vunpack.c.l.b16 %v3293
  %v3395 = vunpack.c.l.b16 %v3294
  %v3396 = vunpack.c.l.b16 %v3295
  %v3397 = vunpack.c.l.b16 %v3296
  %v3398 = vunpack.c.l.b16 %v3297
  %v3399 = vunpack.c.l.b16 %v3298
  %v3400 = vunpack.c.l.b16 %v3299
  %v3401 = vpack.c.b16 %v3354, %v3353
  %v3402 = vpack.c.b16 %v3356, %v3355
  %v3403 = vpack.c.b16 %v3358, %v3357
  %v3404 = vpack.c.b16 %v3360, %v3359
  %v3405 = vpack.c.b16 %v3362, %v3361
  %v3406 = vpack.c.b16 %v3364, %v3363
  %v3407 = vpack.c.b16 %v3366, %v3365
  %v3408 = vpack.c.b16 %v3368, %v3367
  %v3409 = vpack.c.b16 %v3370, %v3369
  %v3410 = vpack.c.b16 %v3372, %v3371
  %v3411 = vpack.c.b16 %v3374, %v3373
  %v3412 = vpack.c.b16 %v3376, %v3375
  %v3413 = vpack.c.b16 %v3378, %v3377
  %v3414 = vpack.c.b16 %v3380, %v3379
  %v3415 = vpack.c.b16 %v3382, %v3381
  %v3416 = vpack.c.b16 %v3384, %v3383
  %v3417 = vpack.c.b16 %v3386, %v3385
  %v3418 = vpack.c.b16 %v3388, %v3387
  %v3419 = vpack.c.b16 %v3390, %v3389
  %v3420 = vpack.c.b16 %v3392, %v3391
  %v3421 = vpack.c.b16 %v3394, %v3393
  %v3422 = vpack.c.b16 %v3396, %v3395
  %v3423 = vpack.c.b16 %v3398, %v3397
  %v3424 = vpack.c.b16 %v3400, %v3399
  %3449 = vmatpush.bf16.msra.mxu0 %v3408
  %3450 = vmatpush.bf16.msra.mxu0 %v3407
  %3451 = vmatpush.bf16.msra.mxu0 %v3406
  %3452 = vmatpush.bf16.msra.mxu0 %v3405
  %3453 = vmatpush.bf16.msra.mxu0 %v3404
  %3454 = vmatpush.bf16.msra.mxu0 %v3403
  %3455 = vmatpush.bf16.msra.mxu0 %v3402
  %3456 = vmatpush.bf16.msra.mxu0 %v3401
  %3457 = vmatmul.bf16.gmra.mxu0 %v3300
  %v3458 = vpop.f32.mrf.mxu0
  %v3459 = vadd.f32 %v3304, %v3458
  %v3460 = vpop.f32.mrf.mxu0
  %v3461 = vadd.f32 %v3304, %v3460
  %3462 = vdwg.mxu0
  %3463 = vmatpush.bf16.msra.mxu0 %v3416
  %3464 = vmatpush.bf16.msra.mxu0 %v3415
  %3465 = vmatpush.bf16.msra.mxu0 %v3414
  %3466 = vmatpush.bf16.msra.mxu0 %v3413
  %3467 = vmatpush.bf16.msra.mxu0 %v3412
  %3468 = vmatpush.bf16.msra.mxu0 %v3411
  %3469 = vmatpush.bf16.msra.mxu0 %v3410
  %3470 = vmatpush.bf16.msra.mxu0 %v3409
  %3471 = vmatmul.bf16.gmra.mxu0 %v3301
  %v3472 = vpop.f32.mrf.mxu0
  %v3473 = vadd.f32 %v3459, %v3472
  %v3474 = vpop.f32.mrf.mxu0
  %v3475 = vadd.f32 %v3461, %v3474
  %3476 = vdwg.mxu0
  %3477 = vmatpush.bf16.msra.mxu0 %v3424
  %3478 = vmatpush.bf16.msra.mxu0 %v3423
  %3479 = vmatpush.bf16.msra.mxu0 %v3422
  %3480 = vmatpush.bf16.msra.mxu0 %v3421
  %3481 = vmatpush.bf16.msra.mxu0 %v3420
  %3482 = vmatpush.bf16.msra.mxu0 %v3419
  %3483 = vmatpush.bf16.msra.mxu0 %v3418
  %3484 = vmatpush.bf16.msra.mxu0 %v3417
  %3485 = vmatmul.bf16.gmra.mxu0 %v3302
  %v3486 = vpop.f32.mrf.mxu0
  %v3487 = vadd.f32 %v3473, %v3486
  %v3488 = vpop.f32.mrf.mxu0
  %v3489 = vadd.f32 %v3475, %v3488
  %3490 = vdwg.mxu0
  %v3491 = vmax.f32 %v3487, 0.0
  %v3492 = vmax.f32 %v3489, 0.0
  %3493 = vst [vmem:[#allocation3] sm:$0x1] 0.0
  %3494 = vst [vmem:[#allocation3 + $0x11] sm:$0x1] 0.0
  %3495 = vst [vmem:[#allocation3 + $0x1] sm:$0xff] %v3491
  %3496 = vst [vmem:[#allocation3 + $0x9] sm:$0xff] %v3492
  %v3497 = vld [vmem:[#allocation3] sm:$0xff]
  %v3498 = vld [vmem:[#allocation3 + $0x8] sm:$0xff]
  %v3499 = vld [vmem:[#allocation3 + $0x1] sm:$0xff]
  %v3500 = vld [vmem:[#allocation3 + $0x9] sm:$0xff]
  %v3501 = vld [vmem:[#allocation3 + $0x2] sm:$0xff]
  %v3502 = vld [vmem:[#allocation3 + $0xa] sm:$0xff]
  %v3503 = vld [vmem:[#allocation4 + $0x240] sm:$0xf]
  %v3504 = vld [vmem:[#allocation4 + $0x244] sm:$0xf]
  %v3505 = vld [vmem:[#allocation4 + $0x248] sm:$0xf]
  %v3506 = vld [vmem:[#allocation4 + $0x24c] sm:$0xf]
  %v3507 = vld [vmem:[#allocation4 + $0x250] sm:$0xf]
  %v3508 = vld [vmem:[#allocation4 + $0x254] sm:$0xf]
  %v3509 = vld [vmem:[#allocation4 + $0x258] sm:$0xf]
  %v3510 = vld [vmem:[#allocation4 + $0x25c] sm:$0xf]
  %v3511 = vld [vmem:[#allocation4 + $0x260] sm:$0xf]
  %v3512 = vld [vmem:[#allocation4 + $0x264] sm:$0xf]
  %v3513 = vld [vmem:[#allocation4 + $0x268] sm:$0xf]
  %v3514 = vld [vmem:[#allocation4 + $0x26c] sm:$0xf]
  %v3515 = vld [vmem:[#allocation4 + $0x270] sm:$0xf]
  %v3516 = vld [vmem:[#allocation4 + $0x274] sm:$0xf]
  %v3517 = vld [vmem:[#allocation4 + $0x278] sm:$0xf]
  %v3518 = vld [vmem:[#allocation4 + $0x27c] sm:$0xf]
  %v3519 = vld [vmem:[#allocation4 + $0x280] sm:$0xf]
  %v3520 = vld [vmem:[#allocation4 + $0x284] sm:$0xf]
  %v3521 = vld [vmem:[#allocation4 + $0x288] sm:$0xf]
  %v3522 = vld [vmem:[#allocation4 + $0x28c] sm:$0xf]
  %v3523 = vld [vmem:[#allocation4 + $0x290] sm:$0xf]
  %v3524 = vld [vmem:[#allocation4 + $0x294] sm:$0xf]
  %v3525 = vld [vmem:[#allocation4 + $0x298] sm:$0xf]
  %v3526 = vld [vmem:[#allocation4 + $0x29c] sm:$0xf]
  %v3527 = vld [vmem:[#allocation4 + $0x2a0] sm:$0xf]
  %v3528 = vld [vmem:[#allocation4 + $0x2a4] sm:$0xf]
  %v3529 = vld [vmem:[#allocation4 + $0x2a8] sm:$0xf]
  %v3530 = vld [vmem:[#allocation4 + $0x2ac] sm:$0xf]
  %v3531 = vld [vmem:[#allocation4 + $0x2b0] sm:$0xf]
  %v3532 = vld [vmem:[#allocation4 + $0x2b4] sm:$0xf]
  %v3533 = vld [vmem:[#allocation4 + $0x2b8] sm:$0xf]
  %v3534 = vld [vmem:[#allocation4 + $0x2bc] sm:$0xf]
  %v3535 = vld [vmem:[#allocation4 + $0x2c0] sm:$0xf]
  %v3536 = vld [vmem:[#allocation4 + $0x2c4] sm:$0xf]
  %v3537 = vld [vmem:[#allocation4 + $0x2c8] sm:$0xf]
  %v3538 = vld [vmem:[#allocation4 + $0x2cc] sm:$0xf]
  %v3539 = vld [vmem:[#allocation4 + $0x2d0] sm:$0xf]
  %v3540 = vld [vmem:[#allocation4 + $0x2d4] sm:$0xf]
  %v3541 = vld [vmem:[#allocation4 + $0x2d8] sm:$0xf]
  %v3542 = vld [vmem:[#allocation4 + $0x2dc] sm:$0xf]
  %v3543 = vld [vmem:[#allocation4 + $0x2e0] sm:$0xf]
  %v3544 = vld [vmem:[#allocation4 + $0x2e4] sm:$0xf]
  %v3545 = vld [vmem:[#allocation4 + $0x2e8] sm:$0xf]
  %v3546 = vld [vmem:[#allocation4 + $0x2ec] sm:$0xf]
  %v3547 = vld [vmem:[#allocation4 + $0x2f0] sm:$0xf]
  %v3548 = vld [vmem:[#allocation4 + $0x2f4] sm:$0xf]
  %v3549 = vld [vmem:[#allocation4 + $0x2f8] sm:$0xf]
  %v3550 = vld [vmem:[#allocation4 + $0x2fc] sm:$0xf]
  %v3551 = vpack.c.bf16 %v3498, %v3497
  %v3552 = vpack.c.bf16 %v3500, %v3499
  %v3553 = vpack.c.bf16 %v3502, %v3501
  %v3554 = vld [vmem:[%s5 + $0x3] sm:$0x1]
  %v3555 = vperm.slane %v3554, 0
  %v3604 = vunpack.c.l.b16 %v3503
  %v3605 = vunpack.c.l.b16 %v3504
  %v3606 = vunpack.c.l.b16 %v3505
  %v3607 = vunpack.c.l.b16 %v3506
  %v3608 = vunpack.c.l.b16 %v3507
  %v3609 = vunpack.c.l.b16 %v3508
  %v3610 = vunpack.c.l.b16 %v3509
  %v3611 = vunpack.c.l.b16 %v3510
  %v3612 = vunpack.c.l.b16 %v3511
  %v3613 = vunpack.c.l.b16 %v3512
  %v3614 = vunpack.c.l.b16 %v3513
  %v3615 = vunpack.c.l.b16 %v3514
  %v3616 = vunpack.c.l.b16 %v3515
  %v3617 = vunpack.c.l.b16 %v3516
  %v3618 = vunpack.c.l.b16 %v3517
  %v3619 = vunpack.c.l.b16 %v3518
  %v3620 = vunpack.c.l.b16 %v3519
  %v3621 = vunpack.c.l.b16 %v3520
  %v3622 = vunpack.c.l.b16 %v3521
  %v3623 = vunpack.c.l.b16 %v3522
  %v3624 = vunpack.c.l.b16 %v3523
  %v3625 = vunpack.c.l.b16 %v3524
  %v3626 = vunpack.c.l.b16 %v3525
  %v3627 = vunpack.c.l.b16 %v3526
  %v3628 = vunpack.c.l.b16 %v3527
  %v3629 = vunpack.c.l.b16 %v3528
  %v3630 = vunpack.c.l.b16 %v3529
  %v3631 = vunpack.c.l.b16 %v3530
  %v3632 = vunpack.c.l.b16 %v3531
  %v3633 = vunpack.c.l.b16 %v3532
  %v3634 = vunpack.c.l.b16 %v3533
  %v3635 = vunpack.c.l.b16 %v3534
  %v3636 = vunpack.c.l.b16 %v3535
  %v3637 = vunpack.c.l.b16 %v3536
  %v3638 = vunpack.c.l.b16 %v3537
  %v3639 = vunpack.c.l.b16 %v3538
  %v3640 = vunpack.c.l.b16 %v3539
  %v3641 = vunpack.c.l.b16 %v3540
  %v3642 = vunpack.c.l.b16 %v3541
  %v3643 = vunpack.c.l.b16 %v3542
  %v3644 = vunpack.c.l.b16 %v3543
  %v3645 = vunpack.c.l.b16 %v3544
  %v3646 = vunpack.c.l.b16 %v3545
  %v3647 = vunpack.c.l.b16 %v3546
  %v3648 = vunpack.c.l.b16 %v3547
  %v3649 = vunpack.c.l.b16 %v3548
  %v3650 = vunpack.c.l.b16 %v3549
  %v3651 = vunpack.c.l.b16 %v3550
  %v3652 = vpack.c.b16 %v3605, %v3604
  %v3653 = vpack.c.b16 %v3607, %v3606
  %v3654 = vpack.c.b16 %v3609, %v3608
  %v3655 = vpack.c.b16 %v3611, %v3610
  %v3656 = vpack.c.b16 %v3613, %v3612
  %v3657 = vpack.c.b16 %v3615, %v3614
  %v3658 = vpack.c.b16 %v3617, %v3616
  %v3659 = vpack.c.b16 %v3619, %v3618
  %v3660 = vpack.c.b16 %v3621, %v3620
  %v3661 = vpack.c.b16 %v3623, %v3622
  %v3662 = vpack.c.b16 %v3625, %v3624
  %v3663 = vpack.c.b16 %v3627, %v3626
  %v3664 = vpack.c.b16 %v3629, %v3628
  %v3665 = vpack.c.b16 %v3631, %v3630
  %v3666 = vpack.c.b16 %v3633, %v3632
  %v3667 = vpack.c.b16 %v3635, %v3634
  %v3668 = vpack.c.b16 %v3637, %v3636
  %v3669 = vpack.c.b16 %v3639, %v3638
  %v3670 = vpack.c.b16 %v3641, %v3640
  %v3671 = vpack.c.b16 %v3643, %v3642
  %v3672 = vpack.c.b16 %v3645, %v3644
  %v3673 = vpack.c.b16 %v3647, %v3646
  %v3674 = vpack.c.b16 %v3649, %v3648
  %v3675 = vpack.c.b16 %v3651, %v3650
  %3700 = vmatpush.bf16.msra.mxu0 %v3659
  %3701 = vmatpush.bf16.msra.mxu0 %v3658
  %3702 = vmatpush.bf16.msra.mxu0 %v3657
  %3703 = vmatpush.bf16.msra.mxu0 %v3656
  %3704 = vmatpush.bf16.msra.mxu0 %v3655
  %3705 = vmatpush.bf16.msra.mxu0 %v3654
  %3706 = vmatpush.bf16.msra.mxu0 %v3653
  %3707 = vmatpush.bf16.msra.mxu0 %v3652
  %3708 = vmatmul.bf16.gmra.mxu0 %v3551
  %v3709 = vpop.f32.mrf.mxu0
  %v3710 = vadd.f32 %v3555, %v3709
  %v3711 = vpop.f32.mrf.mxu0
  %v3712 = vadd.f32 %v3555, %v3711
  %3713 = vdwg.mxu0
  %3714 = vmatpush.bf16.msra.mxu0 %v3667
  %3715 = vmatpush.bf16.msra.mxu0 %v3666
  %3716 = vmatpush.bf16.msra.mxu0 %v3665
  %3717 = vmatpush.bf16.msra.mxu0 %v3664
  %3718 = vmatpush.bf16.msra.mxu0 %v3663
  %3719 = vmatpush.bf16.msra.mxu0 %v3662
  %3720 = vmatpush.bf16.msra.mxu0 %v3661
  %3721 = vmatpush.bf16.msra.mxu0 %v3660
  %3722 = vmatmul.bf16.gmra.mxu0 %v3552
  %v3723 = vpop.f32.mrf.mxu0
  %v3724 = vadd.f32 %v3710, %v3723
  %v3725 = vpop.f32.mrf.mxu0
  %v3726 = vadd.f32 %v3712, %v3725
  %3727 = vdwg.mxu0
  %3728 = vmatpush.bf16.msra.mxu0 %v3675
  %3729 = vmatpush.bf16.msra.mxu0 %v3674
  %3730 = vmatpush.bf16.msra.mxu0 %v3673
  %3731 = vmatpush.bf16.msra.mxu0 %v3672
  %3732 = vmatpush.bf16.msra.mxu0 %v3671
  %3733 = vmatpush.bf16.msra.mxu0 %v3670
  %3734 = vmatpush.bf16.msra.mxu0 %v3669
  %3735 = vmatpush.bf16.msra.mxu0 %v3668
  %3736 = vmatmul.bf16.gmra.mxu0 %v3553
  %v3737 = vpop.f32.mrf.mxu0
  %v3738 = vadd.f32 %v3724, %v3737
  %v3739 = vpop.f32.mrf.mxu0
  %v3740 = vadd.f32 %v3726, %v3739
  %3741 = vdwg.mxu0
  %v3742 = vmax.f32 %v3738, 0.0
  %v3743 = vmax.f32 %v3740, 0.0
  %3744 = vst [vmem:[#allocation3] sm:$0x1] 0.0
  %3745 = vst [vmem:[#allocation3 + $0x11] sm:$0x1] 0.0
  %3746 = vst [vmem:[#allocation3 + $0x1] sm:$0xff] %v3742
  %3747 = vst [vmem:[#allocation3 + $0x9] sm:$0xff] %v3743
  %v3748 = vld [vmem:[#allocation3] sm:$0xff]
  %v3749 = vld [vmem:[#allocation3 + $0x8] sm:$0xff]
  %v3750 = vld [vmem:[#allocation3 + $0x1] sm:$0xff]
  %v3751 = vld [vmem:[#allocation3 + $0x9] sm:$0xff]
  %v3752 = vld [vmem:[#allocation3 + $0x2] sm:$0xff]
  %v3753 = vld [vmem:[#allocation3 + $0xa] sm:$0xff]
  %v3754 = vld [vmem:[#allocation4 + $0x300] sm:$0xf]
  %v3755 = vld [vmem:[#allocation4 + $0x304] sm:$0xf]
  %v3756 = vld [vmem:[#allocation4 + $0x308] sm:$0xf]
  %v3757 = vld [vmem:[#allocation4 + $0x30c] sm:$0xf]
  %v3758 = vld [vmem:[#allocation4 + $0x310] sm:$0xf]
  %v3759 = vld [vmem:[#allocation4 + $0x314] sm:$0xf]
  %v3760 = vld [vmem:[#allocation4 + $0x318] sm:$0xf]
  %v3761 = vld [vmem:[#allocation4 + $0x31c] sm:$0xf]
  %v3762 = vld [vmem:[#allocation4 + $0x320] sm:$0xf]
  %v3763 = vld [vmem:[#allocation4 + $0x324] sm:$0xf]
  %v3764 = vld [vmem:[#allocation4 + $0x328] sm:$0xf]
  %v3765 = vld [vmem:[#allocation4 + $0x32c] sm:$0xf]
  %v3766 = vld [vmem:[#allocation4 + $0x330] sm:$0xf]
  %v3767 = vld [vmem:[#allocation4 + $0x334] sm:$0xf]
  %v3768 = vld [vmem:[#allocation4 + $0x338] sm:$0xf]
  %v3769 = vld [vmem:[#allocation4 + $0x33c] sm:$0xf]
  %v3770 = vld [vmem:[#allocation4 + $0x340] sm:$0xf]
  %v3771 = vld [vmem:[#allocation4 + $0x344] sm:$0xf]
  %v3772 = vld [vmem:[#allocation4 + $0x348] sm:$0xf]
  %v3773 = vld [vmem:[#allocation4 + $0x34c] sm:$0xf]
  %v3774 = vld [vmem:[#allocation4 + $0x350] sm:$0xf]
  %v3775 = vld [vmem:[#allocation4 + $0x354] sm:$0xf]
  %v3776 = vld [vmem:[#allocation4 + $0x358] sm:$0xf]
  %v3777 = vld [vmem:[#allocation4 + $0x35c] sm:$0xf]
  %v3778 = vld [vmem:[#allocation4 + $0x360] sm:$0xf]
  %v3779 = vld [vmem:[#allocation4 + $0x364] sm:$0xf]
  %v3780 = vld [vmem:[#allocation4 + $0x368] sm:$0xf]
  %v3781 = vld [vmem:[#allocation4 + $0x36c] sm:$0xf]
  %v3782 = vld [vmem:[#allocation4 + $0x370] sm:$0xf]
  %v3783 = vld [vmem:[#allocation4 + $0x374] sm:$0xf]
  %v3784 = vld [vmem:[#allocation4 + $0x378] sm:$0xf]
  %v3785 = vld [vmem:[#allocation4 + $0x37c] sm:$0xf]
  %v3786 = vld [vmem:[#allocation4 + $0x380] sm:$0xf]
  %v3787 = vld [vmem:[#allocation4 + $0x384] sm:$0xf]
  %v3788 = vld [vmem:[#allocation4 + $0x388] sm:$0xf]
  %v3789 = vld [vmem:[#allocation4 + $0x38c] sm:$0xf]
  %v3790 = vld [vmem:[#allocation4 + $0x390] sm:$0xf]
  %v3791 = vld [vmem:[#allocation4 + $0x394] sm:$0xf]
  %v3792 = vld [vmem:[#allocation4 + $0x398] sm:$0xf]
  %v3793 = vld [vmem:[#allocation4 + $0x39c] sm:$0xf]
  %v3794 = vld [vmem:[#allocation4 + $0x3a0] sm:$0xf]
  %v3795 = vld [vmem:[#allocation4 + $0x3a4] sm:$0xf]
  %v3796 = vld [vmem:[#allocation4 + $0x3a8] sm:$0xf]
  %v3797 = vld [vmem:[#allocation4 + $0x3ac] sm:$0xf]
  %v3798 = vld [vmem:[#allocation4 + $0x3b0] sm:$0xf]
  %v3799 = vld [vmem:[#allocation4 + $0x3b4] sm:$0xf]
  %v3800 = vld [vmem:[#allocation4 + $0x3b8] sm:$0xf]
  %v3801 = vld [vmem:[#allocation4 + $0x3bc] sm:$0xf]
  %v3802 = vpack.c.bf16 %v3749, %v3748
  %v3803 = vpack.c.bf16 %v3751, %v3750
  %v3804 = vpack.c.bf16 %v3753, %v3752
  %v3805 = vld [vmem:[%s5 + $0x4] sm:$0x1]
  %v3806 = vperm.slane %v3805, 0
  %v3855 = vunpack.c.l.b16 %v3754
  %v3856 = vunpack.c.l.b16 %v3755
  %v3857 = vunpack.c.l.b16 %v3756
  %v3858 = vunpack.c.l.b16 %v3757
  %v3859 = vunpack.c.l.b16 %v3758
  %v3860 = vunpack.c.l.b16 %v3759
  %v3861 = vunpack.c.l.b16 %v3760
  %v3862 = vunpack.c.l.b16 %v3761
  %v3863 = vunpack.c.l.b16 %v3762
  %v3864 = vunpack.c.l.b16 %v3763
  %v3865 = vunpack.c.l.b16 %v3764
  %v3866 = vunpack.c.l.b16 %v3765
  %v3867 = vunpack.c.l.b16 %v3766
  %v3868 = vunpack.c.l.b16 %v3767
  %v3869 = vunpack.c.l.b16 %v3768
  %v3870 = vunpack.c.l.b16 %v3769
  %v3871 = vunpack.c.l.b16 %v3770
  %v3872 = vunpack.c.l.b16 %v3771
  %v3873 = vunpack.c.l.b16 %v3772
  %v3874 = vunpack.c.l.b16 %v3773
  %v3875 = vunpack.c.l.b16 %v3774
  %v3876 = vunpack.c.l.b16 %v3775
  %v3877 = vunpack.c.l.b16 %v3776
  %v3878 = vunpack.c.l.b16 %v3777
  %v3879 = vunpack.c.l.b16 %v3778
  %v3880 = vunpack.c.l.b16 %v3779
  %v3881 = vunpack.c.l.b16 %v3780
  %v3882 = vunpack.c.l.b16 %v3781
  %v3883 = vunpack.c.l.b16 %v3782
  %v3884 = vunpack.c.l.b16 %v3783
  %v3885 = vunpack.c.l.b16 %v3784
  %v3886 = vunpack.c.l.b16 %v3785
  %v3887 = vunpack.c.l.b16 %v3786
  %v3888 = vunpack.c.l.b16 %v3787
  %v3889 = vunpack.c.l.b16 %v3788
  %v3890 = vunpack.c.l.b16 %v3789
  %v3891 = vunpack.c.l.b16 %v3790
  %v3892 = vunpack.c.l.b16 %v3791
  %v3893 = vunpack.c.l.b16 %v3792
  %v3894 = vunpack.c.l.b16 %v3793
  %v3895 = vunpack.c.l.b16 %v3794
  %v3896 = vunpack.c.l.b16 %v3795
  %v3897 = vunpack.c.l.b16 %v3796
  %v3898 = vunpack.c.l.b16 %v3797
  %v3899 = vunpack.c.l.b16 %v3798
  %v3900 = vunpack.c.l.b16 %v3799
  %v3901 = vunpack.c.l.b16 %v3800
  %v3902 = vunpack.c.l.b16 %v3801
  %v3903 = vpack.c.b16 %v3856, %v3855
  %v3904 = vpack.c.b16 %v3858, %v3857
  %v3905 = vpack.c.b16 %v3860, %v3859
  %v3906 = vpack.c.b16 %v3862, %v3861
  %v3907 = vpack.c.b16 %v3864, %v3863
  %v3908 = vpack.c.b16 %v3866, %v3865
  %v3909 = vpack.c.b16 %v3868, %v3867
  %v3910 = vpack.c.b16 %v3870, %v3869
  %v3911 = vpack.c.b16 %v3872, %v3871
  %v3912 = vpack.c.b16 %v3874, %v3873
  %v3913 = vpack.c.b16 %v3876, %v3875
  %v3914 = vpack.c.b16 %v3878, %v3877
  %v3915 = vpack.c.b16 %v3880, %v3879
  %v3916 = vpack.c.b16 %v3882, %v3881
  %v3917 = vpack.c.b16 %v3884, %v3883
  %v3918 = vpack.c.b16 %v3886, %v3885
  %v3919 = vpack.c.b16 %v3888, %v3887
  %v3920 = vpack.c.b16 %v3890, %v3889
  %v3921 = vpack.c.b16 %v3892, %v3891
  %v3922 = vpack.c.b16 %v3894, %v3893
  %v3923 = vpack.c.b16 %v3896, %v3895
  %v3924 = vpack.c.b16 %v3898, %v3897
  %v3925 = vpack.c.b16 %v3900, %v3899
  %v3926 = vpack.c.b16 %v3902, %v3901
  %3951 = vmatpush.bf16.msra.mxu0 %v3910
  %3952 = vmatpush.bf16.msra.mxu0 %v3909
  %3953 = vmatpush.bf16.msra.mxu0 %v3908
  %3954 = vmatpush.bf16.msra.mxu0 %v3907
  %3955 = vmatpush.bf16.msra.mxu0 %v3906
  %3956 = vmatpush.bf16.msra.mxu0 %v3905
  %3957 = vmatpush.bf16.msra.mxu0 %v3904
  %3958 = vmatpush.bf16.msra.mxu0 %v3903
  %3959 = vmatmul.bf16.gmra.mxu0 %v3802
  %v3960 = vpop.f32.mrf.mxu0
  %v3961 = vadd.f32 %v3806, %v3960
  %v3962 = vpop.f32.mrf.mxu0
  %v3963 = vadd.f32 %v3806, %v3962
  %3964 = vdwg.mxu0
  %3965 = vmatpush.bf16.msra.mxu0 %v3918
  %3966 = vmatpush.bf16.msra.mxu0 %v3917
  %3967 = vmatpush.bf16.msra.mxu0 %v3916
  %3968 = vmatpush.bf16.msra.mxu0 %v3915
  %3969 = vmatpush.bf16.msra.mxu0 %v3914
  %3970 = vmatpush.bf16.msra.mxu0 %v3913
  %3971 = vmatpush.bf16.msra.mxu0 %v3912
  %3972 = vmatpush.bf16.msra.mxu0 %v3911
  %3973 = vmatmul.bf16.gmra.mxu0 %v3803
  %v3974 = vpop.f32.mrf.mxu0
  %v3975 = vadd.f32 %v3961, %v3974
  %v3976 = vpop.f32.mrf.mxu0
  %v3977 = vadd.f32 %v3963, %v3976
  %3978 = vdwg.mxu0
  %3979 = vmatpush.bf16.msra.mxu0 %v3926
  %3980 = vmatpush.bf16.msra.mxu0 %v3925
  %3981 = vmatpush.bf16.msra.mxu0 %v3924
  %3982 = vmatpush.bf16.msra.mxu0 %v3923
  %3983 = vmatpush.bf16.msra.mxu0 %v3922
  %3984 = vmatpush.bf16.msra.mxu0 %v3921
  %3985 = vmatpush.bf16.msra.mxu0 %v3920
  %3986 = vmatpush.bf16.msra.mxu0 %v3919
  %3987 = vmatmul.bf16.gmra.mxu0 %v3804
  %v3988 = vpop.f32.mrf.mxu0
  %v3989 = vadd.f32 %v3975, %v3988
  %v3990 = vpop.f32.mrf.mxu0
  %v3991 = vadd.f32 %v3977, %v3990
  %3992 = vdwg.mxu0
  %v3993 = vmax.f32 %v3989, 0.0
  %v3994 = vmax.f32 %v3991, 0.0
  %3995 = vst [vmem:[#allocation3] sm:$0x1] 0.0
  %3996 = vst [vmem:[#allocation3 + $0x11] sm:$0x1] 0.0
  %3997 = vst [vmem:[#allocation3 + $0x1] sm:$0xff] %v3993
  %3998 = vst [vmem:[#allocation3 + $0x9] sm:$0xff] %v3994
  %v3999 = vld [vmem:[#allocation3] sm:$0xff]
  %v4000 = vld [vmem:[#allocation3 + $0x8] sm:$0xff]
  %v4001 = vld [vmem:[#allocation3 + $0x1] sm:$0xff]
  %v4002 = vld [vmem:[#allocation3 + $0x9] sm:$0xff]
  %v4003 = vld [vmem:[#allocation3 + $0x2] sm:$0xff]
  %v4004 = vld [vmem:[#allocation3 + $0xa] sm:$0xff]
  %v4005 = vld [vmem:[#allocation4 + $0x3c0] sm:$0xf]
  %v4006 = vld [vmem:[#allocation4 + $0x3c4] sm:$0xf]
  %v4007 = vld [vmem:[#allocation4 + $0x3c8] sm:$0xf]
  %v4008 = vld [vmem:[#allocation4 + $0x3cc] sm:$0xf]
  %v4009 = vld [vmem:[#allocation4 + $0x3d0] sm:$0xf]
  %v4010 = vld [vmem:[#allocation4 + $0x3d4] sm:$0xf]
  %v4011 = vld [vmem:[#allocation4 + $0x3d8] sm:$0xf]
  %v4012 = vld [vmem:[#allocation4 + $0x3dc] sm:$0xf]
  %v4013 = vld [vmem:[#allocation4 + $0x3e0] sm:$0xf]
  %v4014 = vld [vmem:[#allocation4 + $0x3e4] sm:$0xf]
  %v4015 = vld [vmem:[#allocation4 + $0x3e8] sm:$0xf]
  %v4016 = vld [vmem:[#allocation4 + $0x3ec] sm:$0xf]
  %v4017 = vld [vmem:[#allocation4 + $0x3f0] sm:$0xf]
  %v4018 = vld [vmem:[#allocation4 + $0x3f4] sm:$0xf]
  %v4019 = vld [vmem:[#allocation4 + $0x3f8] sm:$0xf]
  %v4020 = vld [vmem:[#allocation4 + $0x3fc] sm:$0xf]
  %v4021 = vld [vmem:[#allocation4 + $0x400] sm:$0xf]
  %v4022 = vld [vmem:[#allocation4 + $0x404] sm:$0xf]
  %v4023 = vld [vmem:[#allocation4 + $0x408] sm:$0xf]
  %v4024 = vld [vmem:[#allocation4 + $0x40c] sm:$0xf]
  %v4025 = vld [vmem:[#allocation4 + $0x410] sm:$0xf]
  %v4026 = vld [vmem:[#allocation4 + $0x414] sm:$0xf]
  %v4027 = vld [vmem:[#allocation4 + $0x418] sm:$0xf]
  %v4028 = vld [vmem:[#allocation4 + $0x41c] sm:$0xf]
  %v4029 = vld [vmem:[#allocation4 + $0x420] sm:$0xf]
  %v4030 = vld [vmem:[#allocation4 + $0x424] sm:$0xf]
  %v4031 = vld [vmem:[#allocation4 + $0x428] sm:$0xf]
  %v4032 = vld [vmem:[#allocation4 + $0x42c] sm:$0xf]
  %v4033 = vld [vmem:[#allocation4 + $0x430] sm:$0xf]
  %v4034 = vld [vmem:[#allocation4 + $0x434] sm:$0xf]
  %v4035 = vld [vmem:[#allocation4 + $0x438] sm:$0xf]
  %v4036 = vld [vmem:[#allocation4 + $0x43c] sm:$0xf]
  %v4037 = vld [vmem:[#allocation4 + $0x440] sm:$0xf]
  %v4038 = vld [vmem:[#allocation4 + $0x444] sm:$0xf]
  %v4039 = vld [vmem:[#allocation4 + $0x448] sm:$0xf]
  %v4040 = vld [vmem:[#allocation4 + $0x44c] sm:$0xf]
  %v4041 = vld [vmem:[#allocation4 + $0x450] sm:$0xf]
  %v4042 = vld [vmem:[#allocation4 + $0x454] sm:$0xf]
  %v4043 = vld [vmem:[#allocation4 + $0x458] sm:$0xf]
  %v4044 = vld [vmem:[#allocation4 + $0x45c] sm:$0xf]
  %v4045 = vld [vmem:[#allocation4 + $0x460] sm:$0xf]
  %v4046 = vld [vmem:[#allocation4 + $0x464] sm:$0xf]
  %v4047 = vld [vmem:[#allocation4 + $0x468] sm:$0xf]
  %v4048 = vld [vmem:[#allocation4 + $0x46c] sm:$0xf]
  %v4049 = vld [vmem:[#allocation4 + $0x470] sm:$0xf]
  %v4050 = vld [vmem:[#allocation4 + $0x474] sm:$0xf]
  %v4051 = vld [vmem:[#allocation4 + $0x478] sm:$0xf]
  %v4052 = vld [vmem:[#allocation4 + $0x47c] sm:$0xf]
  %v4053 = vpack.c.bf16 %v4000, %v3999
  %v4054 = vpack.c.bf16 %v4002, %v4001
  %v4055 = vpack.c.bf16 %v4004, %v4003
  %v4056 = vld [vmem:[%s5 + $0x5] sm:$0x1]
  %v4057 = vperm.slane %v4056, 0
  %v4106 = vunpack.c.l.b16 %v4005
  %v4107 = vunpack.c.l.b16 %v4006
  %v4108 = vunpack.c.l.b16 %v4007
  %v4109 = vunpack.c.l.b16 %v4008
  %v4110 = vunpack.c.l.b16 %v4009
  %v4111 = vunpack.c.l.b16 %v4010
  %v4112 = vunpack.c.l.b16 %v4011
  %v4113 = vunpack.c.l.b16 %v4012
  %v4114 = vunpack.c.l.b16 %v4013
  %v4115 = vunpack.c.l.b16 %v4014
  %v4116 = vunpack.c.l.b16 %v4015
  %v4117 = vunpack.c.l.b16 %v4016
  %v4118 = vunpack.c.l.b16 %v4017
  %v4119 = vunpack.c.l.b16 %v4018
  %v4120 = vunpack.c.l.b16 %v4019
  %v4121 = vunpack.c.l.b16 %v4020
  %v4122 = vunpack.c.l.b16 %v4021
  %v4123 = vunpack.c.l.b16 %v4022
  %v4124 = vunpack.c.l.b16 %v4023
  %v4125 = vunpack.c.l.b16 %v4024
  %v4126 = vunpack.c.l.b16 %v4025
  %v4127 = vunpack.c.l.b16 %v4026
  %v4128 = vunpack.c.l.b16 %v4027
  %v4129 = vunpack.c.l.b16 %v4028
  %v4130 = vunpack.c.l.b16 %v4029
  %v4131 = vunpack.c.l.b16 %v4030
  %v4132 = vunpack.c.l.b16 %v4031
  %v4133 = vunpack.c.l.b16 %v4032
  %v4134 = vunpack.c.l.b16 %v4033
  %v4135 = vunpack.c.l.b16 %v4034
  %v4136 = vunpack.c.l.b16 %v4035
  %v4137 = vunpack.c.l.b16 %v4036
  %v4138 = vunpack.c.l.b16 %v4037
  %v4139 = vunpack.c.l.b16 %v4038
  %v4140 = vunpack.c.l.b16 %v4039
  %v4141 = vunpack.c.l.b16 %v4040
  %v4142 = vunpack.c.l.b16 %v4041
  %v4143 = vunpack.c.l.b16 %v4042
  %v4144 = vunpack.c.l.b16 %v4043
  %v4145 = vunpack.c.l.b16 %v4044
  %v4146 = vunpack.c.l.b16 %v4045
  %v4147 = vunpack.c.l.b16 %v4046
  %v4148 = vunpack.c.l.b16 %v4047
  %v4149 = vunpack.c.l.b16 %v4048
  %v4150 = vunpack.c.l.b16 %v4049
  %v4151 = vunpack.c.l.b16 %v4050
  %v4152 = vunpack.c.l.b16 %v4051
  %v4153 = vunpack.c.l.b16 %v4052
  %v4154 = vpack.c.b16 %v4107, %v4106
  %v4155 = vpack.c.b16 %v4109, %v4108
  %v4156 = vpack.c.b16 %v4111, %v4110
  %v4157 = vpack.c.b16 %v4113, %v4112
  %v4158 = vpack.c.b16 %v4115, %v4114
  %v4159 = vpack.c.b16 %v4117, %v4116
  %v4160 = vpack.c.b16 %v4119, %v4118
  %v4161 = vpack.c.b16 %v4121, %v4120
  %v4162 = vpack.c.b16 %v4123, %v4122
  %v4163 = vpack.c.b16 %v4125, %v4124
  %v4164 = vpack.c.b16 %v4127, %v4126
  %v4165 = vpack.c.b16 %v4129, %v4128
  %v4166 = vpack.c.b16 %v4131, %v4130
  %v4167 = vpack.c.b16 %v4133, %v4132
  %v4168 = vpack.c.b16 %v4135, %v4134
  %v4169 = vpack.c.b16 %v4137, %v4136
  %v4170 = vpack.c.b16 %v4139, %v4138
  %v4171 = vpack.c.b16 %v4141, %v4140
  %v4172 = vpack.c.b16 %v4143, %v4142
  %v4173 = vpack.c.b16 %v4145, %v4144
  %v4174 = vpack.c.b16 %v4147, %v4146
  %v4175 = vpack.c.b16 %v4149, %v4148
  %v4176 = vpack.c.b16 %v4151, %v4150
  %v4177 = vpack.c.b16 %v4153, %v4152
  %4202 = vmatpush.bf16.msra.mxu0 %v4161
  %4203 = vmatpush.bf16.msra.mxu0 %v4160
  %4204 = vmatpush.bf16.msra.mxu0 %v4159
  %4205 = vmatpush.bf16.msra.mxu0 %v4158
  %4206 = vmatpush.bf16.msra.mxu0 %v4157
  %4207 = vmatpush.bf16.msra.mxu0 %v4156
  %4208 = vmatpush.bf16.msra.mxu0 %v4155
  %4209 = vmatpush.bf16.msra.mxu0 %v4154
  %4210 = vmatmul.bf16.gmra.mxu0 %v4053
  %v4211 = vpop.f32.mrf.mxu0
  %v4212 = vadd.f32 %v4057, %v4211
  %v4213 = vpop.f32.mrf.mxu0
  %v4214 = vadd.f32 %v4057, %v4213
  %4215 = vdwg.mxu0
  %4216 = vmatpush.bf16.msra.mxu0 %v4169
  %4217 = vmatpush.bf16.msra.mxu0 %v4168
  %4218 = vmatpush.bf16.msra.mxu0 %v4167
  %4219 = vmatpush.bf16.msra.mxu0 %v4166
  %4220 = vmatpush.bf16.msra.mxu0 %v4165
  %4221 = vmatpush.bf16.msra.mxu0 %v4164
  %4222 = vmatpush.bf16.msra.mxu0 %v4163
  %4223 = vmatpush.bf16.msra.mxu0 %v4162
  %4224 = vmatmul.bf16.gmra.mxu0 %v4054
  %v4225 = vpop.f32.mrf.mxu0
  %v4226 = vadd.f32 %v4212, %v4225
  %v4227 = vpop.f32.mrf.mxu0
  %v4228 = vadd.f32 %v4214, %v4227
  %4229 = vdwg.mxu0
  %4230 = vmatpush.bf16.msra.mxu0 %v4177
  %4231 = vmatpush.bf16.msra.mxu0 %v4176
  %4232 = vmatpush.bf16.msra.mxu0 %v4175
  %4233 = vmatpush.bf16.msra.mxu0 %v4174
  %4234 = vmatpush.bf16.msra.mxu0 %v4173
  %4235 = vmatpush.bf16.msra.mxu0 %v4172
  %4236 = vmatpush.bf16.msra.mxu0 %v4171
  %4237 = vmatpush.bf16.msra.mxu0 %v4170
  %4238 = vmatmul.bf16.gmra.mxu0 %v4055
  %v4239 = vpop.f32.mrf.mxu0
  %v4240 = vadd.f32 %v4226, %v4239
  %v4241 = vpop.f32.mrf.mxu0
  %v4242 = vadd.f32 %v4228, %v4241
  %4243 = vdwg.mxu0
  %v4244 = vmax.f32 %v4240, 0.0
  %v4245 = vmax.f32 %v4242, 0.0
  %4246 = vst [vmem:[#allocation3] sm:$0x1] 0.0
  %4247 = vst [vmem:[#allocation3 + $0x11] sm:$0x1] 0.0
  %4248 = vst [vmem:[#allocation3 + $0x1] sm:$0xff] %v4244
  %4249 = vst [vmem:[#allocation3 + $0x9] sm:$0xff] %v4245
  %v4250 = vld [vmem:[#allocation3] ss:$2 sm:$0xff]
  %v4251 = vld [vmem:[%s2742] ss:$2 sm:$0xff]
  %v4252 = vld [vmem:[%s2746] ss:$2 sm:$0xff]
  %v4253 = vld [vmem:[#allocation4 + $0x480] sm:$0xf]
  %v4254 = vld [vmem:[#allocation4 + $0x484] sm:$0xf]
  %v4255 = vld [vmem:[#allocation4 + $0x488] sm:$0xf]
  %v4256 = vld [vmem:[#allocation4 + $0x48c] sm:$0xf]
  %v4257 = vld [vmem:[#allocation4 + $0x490] sm:$0xf]
  %v4258 = vld [vmem:[#allocation4 + $0x494] sm:$0xf]
  %v4259 = vld [vmem:[#allocation4 + $0x498] sm:$0xf]
  %v4260 = vld [vmem:[#allocation4 + $0x49c] sm:$0xf]
  %v4261 = vld [vmem:[#allocation4 + $0x4a0] sm:$0xf]
  %v4262 = vld [vmem:[#allocation4 + $0x4a4] sm:$0xf]
  %v4263 = vld [vmem:[#allocation4 + $0x4a8] sm:$0xf]
  %v4264 = vld [vmem:[#allocation4 + $0x4ac] sm:$0xf]
  %v4265 = vld [vmem:[#allocation4 + $0x4b0] sm:$0xf]
  %v4266 = vld [vmem:[#allocation4 + $0x4b4] sm:$0xf]
  %v4267 = vld [vmem:[#allocation4 + $0x4b8] sm:$0xf]
  %v4268 = vld [vmem:[#allocation4 + $0x4bc] sm:$0xf]
  %v4269 = vld [vmem:[#allocation4 + $0x4c0] sm:$0xf]
  %v4270 = vld [vmem:[#allocation4 + $0x4c4] sm:$0xf]
  %v4271 = vld [vmem:[#allocation4 + $0x4c8] sm:$0xf]
  %v4272 = vld [vmem:[#allocation4 + $0x4cc] sm:$0xf]
  %v4273 = vld [vmem:[#allocation4 + $0x4d0] sm:$0xf]
  %v4274 = vld [vmem:[#allocation4 + $0x4d4] sm:$0xf]
  %v4275 = vld [vmem:[#allocation4 + $0x4d8] sm:$0xf]
  %v4276 = vld [vmem:[#allocation4 + $0x4dc] sm:$0xf]
  %v4277 = vld [vmem:[#allocation4 + $0x4e0] sm:$0xf]
  %v4278 = vld [vmem:[#allocation4 + $0x4e4] sm:$0xf]
  %v4279 = vld [vmem:[#allocation4 + $0x4e8] sm:$0xf]
  %v4280 = vld [vmem:[#allocation4 + $0x4ec] sm:$0xf]
  %v4281 = vld [vmem:[#allocation4 + $0x4f0] sm:$0xf]
  %v4282 = vld [vmem:[#allocation4 + $0x4f4] sm:$0xf]
  %v4283 = vld [vmem:[#allocation4 + $0x4f8] sm:$0xf]
  %v4284 = vld [vmem:[#allocation4 + $0x4fc] sm:$0xf]
  %v4285 = vld [vmem:[#allocation4 + $0x500] sm:$0xf]
  %v4286 = vld [vmem:[#allocation4 + $0x504] sm:$0xf]
  %v4287 = vld [vmem:[#allocation4 + $0x508] sm:$0xf]
  %v4288 = vld [vmem:[#allocation4 + $0x50c] sm:$0xf]
  %v4289 = vld [vmem:[#allocation4 + $0x510] sm:$0xf]
  %v4290 = vld [vmem:[#allocation4 + $0x514] sm:$0xf]
  %v4291 = vld [vmem:[#allocation4 + $0x518] sm:$0xf]
  %v4292 = vld [vmem:[#allocation4 + $0x51c] sm:$0xf]
  %v4293 = vld [vmem:[#allocation4 + $0x520] sm:$0xf]
  %v4294 = vld [vmem:[#allocation4 + $0x524] sm:$0xf]
  %v4295 = vld [vmem:[#allocation4 + $0x528] sm:$0xf]
  %v4296 = vld [vmem:[#allocation4 + $0x52c] sm:$0xf]
  %v4297 = vld [vmem:[#allocation4 + $0x530] sm:$0xf]
  %v4298 = vld [vmem:[#allocation4 + $0x534] sm:$0xf]
  %v4299 = vld [vmem:[#allocation4 + $0x538] sm:$0xf]
  %v4300 = vld [vmem:[#allocation4 + $0x53c] sm:$0xf]
  %v4301 = vpack.c.bf16 %v4250, %v4250
  %v4302 = vpack.c.bf16 %v4251, %v4251
  %v4303 = vpack.c.bf16 %v4252, %v4252
  %v4304 = vld [vmem:[%s5 + $0x6] sm:$0x1]
  %v4305 = vperm.slane %v4304, 0
  %v4354 = vunpack.c.l.b16 %v4253
  %v4355 = vunpack.c.l.b16 %v4254
  %v4356 = vunpack.c.l.b16 %v4255
  %v4357 = vunpack.c.l.b16 %v4256
  %v4358 = vunpack.c.l.b16 %v4257
  %v4359 = vunpack.c.l.b16 %v4258
  %v4360 = vunpack.c.l.b16 %v4259
  %v4361 = vunpack.c.l.b16 %v4260
  %v4362 = vunpack.c.l.b16 %v4261
  %v4363 = vunpack.c.l.b16 %v4262
  %v4364 = vunpack.c.l.b16 %v4263
  %v4365 = vunpack.c.l.b16 %v4264
  %v4366 = vunpack.c.l.b16 %v4265
  %v4367 = vunpack.c.l.b16 %v4266
  %v4368 = vunpack.c.l.b16 %v4267
  %v4369 = vunpack.c.l.b16 %v4268
  %v4370 = vunpack.c.l.b16 %v4269
  %v4371 = vunpack.c.l.b16 %v4270
  %v4372 = vunpack.c.l.b16 %v4271
  %v4373 = vunpack.c.l.b16 %v4272
  %v4374 = vunpack.c.l.b16 %v4273
  %v4375 = vunpack.c.l.b16 %v4274
  %v4376 = vunpack.c.l.b16 %v4275
  %v4377 = vunpack.c.l.b16 %v4276
  %v4378 = vunpack.c.l.b16 %v4277
  %v4379 = vunpack.c.l.b16 %v4278
  %v4380 = vunpack.c.l.b16 %v4279
  %v4381 = vunpack.c.l.b16 %v4280
  %v4382 = vunpack.c.l.b16 %v4281
  %v4383 = vunpack.c.l.b16 %v4282
  %v4384 = vunpack.c.l.b16 %v4283
  %v4385 = vunpack.c.l.b16 %v4284
  %v4386 = vunpack.c.l.b16 %v4285
  %v4387 = vunpack.c.l.b16 %v4286
  %v4388 = vunpack.c.l.b16 %v4287
  %v4389 = vunpack.c.l.b16 %v4288
  %v4390 = vunpack.c.l.b16 %v4289
  %v4391 = vunpack.c.l.b16 %v4290
  %v4392 = vunpack.c.l.b16 %v4291
  %v4393 = vunpack.c.l.b16 %v4292
  %v4394 = vunpack.c.l.b16 %v4293
  %v4395 = vunpack.c.l.b16 %v4294
  %v4396 = vunpack.c.l.b16 %v4295
  %v4397 = vunpack.c.l.b16 %v4296
  %v4398 = vunpack.c.l.b16 %v4297
  %v4399 = vunpack.c.l.b16 %v4298
  %v4400 = vunpack.c.l.b16 %v4299
  %v4401 = vunpack.c.l.b16 %v4300
  %v4402 = vpack.c.b16 %v4355, %v4354
  %v4403 = vpack.c.b16 %v4357, %v4356
  %v4404 = vpack.c.b16 %v4359, %v4358
  %v4405 = vpack.c.b16 %v4361, %v4360
  %v4406 = vpack.c.b16 %v4363, %v4362
  %v4407 = vpack.c.b16 %v4365, %v4364
  %v4408 = vpack.c.b16 %v4367, %v4366
  %v4409 = vpack.c.b16 %v4369, %v4368
  %v4410 = vpack.c.b16 %v4371, %v4370
  %v4411 = vpack.c.b16 %v4373, %v4372
  %v4412 = vpack.c.b16 %v4375, %v4374
  %v4413 = vpack.c.b16 %v4377, %v4376
  %v4414 = vpack.c.b16 %v4379, %v4378
  %v4415 = vpack.c.b16 %v4381, %v4380
  %v4416 = vpack.c.b16 %v4383, %v4382
  %v4417 = vpack.c.b16 %v4385, %v4384
  %v4418 = vpack.c.b16 %v4387, %v4386
  %v4419 = vpack.c.b16 %v4389, %v4388
  %v4420 = vpack.c.b16 %v4391, %v4390
  %v4421 = vpack.c.b16 %v4393, %v4392
  %v4422 = vpack.c.b16 %v4395, %v4394
  %v4423 = vpack.c.b16 %v4397, %v4396
  %v4424 = vpack.c.b16 %v4399, %v4398
  %v4425 = vpack.c.b16 %v4401, %v4400
  %4450 = vmatpush.bf16.msra.mxu0 %v4409
  %4451 = vmatpush.bf16.msra.mxu0 %v4408
  %4452 = vmatpush.bf16.msra.mxu0 %v4407
  %4453 = vmatpush.bf16.msra.mxu0 %v4406
  %4454 = vmatpush.bf16.msra.mxu0 %v4405
  %4455 = vmatpush.bf16.msra.mxu0 %v4404
  %4456 = vmatpush.bf16.msra.mxu0 %v4403
  %4457 = vmatpush.bf16.msra.mxu0 %v4402
  %4458 = vmatmul.bf16.gmra.mxu0 %v4301
  %v4459 = vpop.f32.mrf.mxu0
  %v4460 = vadd.f32 %v4305, %v4459
  %v4461 = vpop.f32.mrf.mxu0
  %4462 = vdwg.mxu0
  %4463 = vmatpush.bf16.msra.mxu0 %v4417
  %4464 = vmatpush.bf16.msra.mxu0 %v4416
  %4465 = vmatpush.bf16.msra.mxu0 %v4415
  %4466 = vmatpush.bf16.msra.mxu0 %v4414
  %4467 = vmatpush.bf16.msra.mxu0 %v4413
  %4468 = vmatpush.bf16.msra.mxu0 %v4412
  %4469 = vmatpush.bf16.msra.mxu0 %v4411
  %4470 = vmatpush.bf16.msra.mxu0 %v4410
  %4471 = vmatmul.bf16.gmra.mxu0 %v4302
  %v4472 = vpop.f32.mrf.mxu0
  %v4473 = vadd.f32 %v4460, %v4472
  %v4474 = vpop.f32.mrf.mxu0
  %4475 = vdwg.mxu0
  %4476 = vmatpush.bf16.msra.mxu0 %v4425
  %4477 = vmatpush.bf16.msra.mxu0 %v4424
  %4478 = vmatpush.bf16.msra.mxu0 %v4423
  %4479 = vmatpush.bf16.msra.mxu0 %v4422
  %4480 = vmatpush.bf16.msra.mxu0 %v4421
  %4481 = vmatpush.bf16.msra.mxu0 %v4420
  %4482 = vmatpush.bf16.msra.mxu0 %v4419
  %4483 = vmatpush.bf16.msra.mxu0 %v4418
  %4484 = vmatmul.bf16.gmra.mxu0 %v4303
  %v4485 = vpop.f32.mrf.mxu0
  %v4486 = vadd.f32 %v4473, %v4485
  %v4487 = vpop.f32.mrf.mxu0
  %4488 = vdwg.mxu0
  %v4489 = vmax.f32 %v4486, 0.0
  %4490 = vst [vmem:[#allocation3] sm:$0x1] 0.0
  %4491 = vst [vmem:[#allocation3 + $0x9] sm:$0x1] 0.0
  %4492 = vst [vmem:[#allocation3 + $0x1] sm:$0xff] %v4489
  %v4493 = vld [vmem:[#allocation3] sm:$0xff]
  %v4494 = vld [vmem:[#allocation3 + $0x1] sm:$0xff]
  %v4495 = vld [vmem:[#allocation3 + $0x2] sm:$0xff]
  %v4496 = vld [vmem:[#allocation4 + $0x540] sm:$0xf]
  %v4497 = vld [vmem:[#allocation4 + $0x544] sm:$0xf]
  %v4498 = vld [vmem:[#allocation4 + $0x548] sm:$0xf]
  %v4499 = vld [vmem:[#allocation4 + $0x54c] sm:$0xf]
  %v4500 = vld [vmem:[#allocation4 + $0x550] sm:$0xf]
  %v4501 = vld [vmem:[#allocation4 + $0x554] sm:$0xf]
  %v4502 = vld [vmem:[#allocation4 + $0x558] sm:$0xf]
  %v4503 = vld [vmem:[#allocation4 + $0x55c] sm:$0xf]
  %v4504 = vld [vmem:[#allocation4 + $0x560] sm:$0xf]
  %v4505 = vld [vmem:[#allocation4 + $0x564] sm:$0xf]
  %v4506 = vld [vmem:[#allocation4 + $0x568] sm:$0xf]
  %v4507 = vld [vmem:[#allocation4 + $0x56c] sm:$0xf]
  %v4508 = vld [vmem:[#allocation4 + $0x570] sm:$0xf]
  %v4509 = vld [vmem:[#allocation4 + $0x574] sm:$0xf]
  %v4510 = vld [vmem:[#allocation4 + $0x578] sm:$0xf]
  %v4511 = vld [vmem:[#allocation4 + $0x57c] sm:$0xf]
  %v4512 = vld [vmem:[#allocation4 + $0x580] sm:$0xf]
  %v4513 = vld [vmem:[#allocation4 + $0x584] sm:$0xf]
  %v4514 = vld [vmem:[#allocation4 + $0x588] sm:$0xf]
  %v4515 = vld [vmem:[#allocation4 + $0x58c] sm:$0xf]
  %v4516 = vld [vmem:[#allocation4 + $0x590] sm:$0xf]
  %v4517 = vld [vmem:[#allocation4 + $0x594] sm:$0xf]
  %v4518 = vld [vmem:[#allocation4 + $0x598] sm:$0xf]
  %v4519 = vld [vmem:[#allocation4 + $0x59c] sm:$0xf]
  %v4520 = vld [vmem:[#allocation4 + $0x5a0] sm:$0xf]
  %v4521 = vld [vmem:[#allocation4 + $0x5a4] sm:$0xf]
  %v4522 = vld [vmem:[#allocation4 + $0x5a8] sm:$0xf]
  %v4523 = vld [vmem:[#allocation4 + $0x5ac] sm:$0xf]
  %v4524 = vld [vmem:[#allocation4 + $0x5b0] sm:$0xf]
  %v4525 = vld [vmem:[#allocation4 + $0x5b4] sm:$0xf]
  %v4526 = vld [vmem:[#allocation4 + $0x5b8] sm:$0xf]
  %v4527 = vld [vmem:[#allocation4 + $0x5bc] sm:$0xf]
  %v4528 = vld [vmem:[#allocation4 + $0x5c0] sm:$0xf]
  %v4529 = vld [vmem:[#allocation4 + $0x5c4] sm:$0xf]
  %v4530 = vld [vmem:[#allocation4 + $0x5c8] sm:$0xf]
  %v4531 = vld [vmem:[#allocation4 + $0x5cc] sm:$0xf]
  %v4532 = vld [vmem:[#allocation4 + $0x5d0] sm:$0xf]
  %v4533 = vld [vmem:[#allocation4 + $0x5d4] sm:$0xf]
  %v4534 = vld [vmem:[#allocation4 + $0x5d8] sm:$0xf]
  %v4535 = vld [vmem:[#allocation4 + $0x5dc] sm:$0xf]
  %v4536 = vld [vmem:[#allocation4 + $0x5e0] sm:$0xf]
  %v4537 = vld [vmem:[#allocation4 + $0x5e4] sm:$0xf]
  %v4538 = vld [vmem:[#allocation4 + $0x5e8] sm:$0xf]
  %v4539 = vld [vmem:[#allocation4 + $0x5ec] sm:$0xf]
  %v4540 = vld [vmem:[#allocation4 + $0x5f0] sm:$0xf]
  %v4541 = vld [vmem:[#allocation4 + $0x5f4] sm:$0xf]
  %v4542 = vld [vmem:[#allocation4 + $0x5f8] sm:$0xf]
  %v4543 = vld [vmem:[#allocation4 + $0x5fc] sm:$0xf]
  %v4544 = vpack.c.bf16 %v4493, %v4493
  %v4545 = vpack.c.bf16 %v4494, %v4494
  %v4546 = vpack.c.bf16 %v4495, %v4495
  %v4547 = vld [vmem:[%s5 + $0x7] sm:$0x1]
  %v4548 = vperm.slane %v4547, 0
  %v4597 = vunpack.c.l.b16 %v4496
  %v4598 = vunpack.c.l.b16 %v4497
  %v4599 = vunpack.c.l.b16 %v4498
  %v4600 = vunpack.c.l.b16 %v4499
  %v4601 = vunpack.c.l.b16 %v4500
  %v4602 = vunpack.c.l.b16 %v4501
  %v4603 = vunpack.c.l.b16 %v4502
  %v4604 = vunpack.c.l.b16 %v4503
  %v4605 = vunpack.c.l.b16 %v4504
  %v4606 = vunpack.c.l.b16 %v4505
  %v4607 = vunpack.c.l.b16 %v4506
  %v4608 = vunpack.c.l.b16 %v4507
  %v4609 = vunpack.c.l.b16 %v4508
  %v4610 = vunpack.c.l.b16 %v4509
  %v4611 = vunpack.c.l.b16 %v4510
  %v4612 = vunpack.c.l.b16 %v4511
  %v4613 = vunpack.c.l.b16 %v4512
  %v4614 = vunpack.c.l.b16 %v4513
  %v4615 = vunpack.c.l.b16 %v4514
  %v4616 = vunpack.c.l.b16 %v4515
  %v4617 = vunpack.c.l.b16 %v4516
  %v4618 = vunpack.c.l.b16 %v4517
  %v4619 = vunpack.c.l.b16 %v4518
  %v4620 = vunpack.c.l.b16 %v4519
  %v4621 = vunpack.c.l.b16 %v4520
  %v4622 = vunpack.c.l.b16 %v4521
  %v4623 = vunpack.c.l.b16 %v4522
  %v4624 = vunpack.c.l.b16 %v4523
  %v4625 = vunpack.c.l.b16 %v4524
  %v4626 = vunpack.c.l.b16 %v4525
  %v4627 = vunpack.c.l.b16 %v4526
  %v4628 = vunpack.c.l.b16 %v4527
  %v4629 = vunpack.c.l.b16 %v4528
  %v4630 = vunpack.c.l.b16 %v4529
  %v4631 = vunpack.c.l.b16 %v4530
  %v4632 = vunpack.c.l.b16 %v4531
  %v4633 = vunpack.c.l.b16 %v4532
  %v4634 = vunpack.c.l.b16 %v4533
  %v4635 = vunpack.c.l.b16 %v4534
  %v4636 = vunpack.c.l.b16 %v4535
  %v4637 = vunpack.c.l.b16 %v4536
  %v4638 = vunpack.c.l.b16 %v4537
  %v4639 = vunpack.c.l.b16 %v4538
  %v4640 = vunpack.c.l.b16 %v4539
  %v4641 = vunpack.c.l.b16 %v4540
  %v4642 = vunpack.c.l.b16 %v4541
  %v4643 = vunpack.c.l.b16 %v4542
  %v4644 = vunpack.c.l.b16 %v4543
  %v4645 = vpack.c.b16 %v4598, %v4597
  %v4646 = vpack.c.b16 %v4600, %v4599
  %v4647 = vpack.c.b16 %v4602, %v4601
  %v4648 = vpack.c.b16 %v4604, %v4603
  %v4649 = vpack.c.b16 %v4606, %v4605
  %v4650 = vpack.c.b16 %v4608, %v4607
  %v4651 = vpack.c.b16 %v4610, %v4609
  %v4652 = vpack.c.b16 %v4612, %v4611
  %v4653 = vpack.c.b16 %v4614, %v4613
  %v4654 = vpack.c.b16 %v4616, %v4615
  %v4655 = vpack.c.b16 %v4618, %v4617
  %v4656 = vpack.c.b16 %v4620, %v4619
  %v4657 = vpack.c.b16 %v4622, %v4621
  %v4658 = vpack.c.b16 %v4624, %v4623
  %v4659 = vpack.c.b16 %v4626, %v4625
  %v4660 = vpack.c.b16 %v4628, %v4627
  %v4661 = vpack.c.b16 %v4630, %v4629
  %v4662 = vpack.c.b16 %v4632, %v4631
  %v4663 = vpack.c.b16 %v4634, %v4633
  %v4664 = vpack.c.b16 %v4636, %v4635
  %v4665 = vpack.c.b16 %v4638, %v4637
  %v4666 = vpack.c.b16 %v4640, %v4639
  %v4667 = vpack.c.b16 %v4642, %v4641
  %v4668 = vpack.c.b16 %v4644, %v4643
  %4693 = vmatpush.bf16.msra.mxu0 %v4652
  %4694 = vmatpush.bf16.msra.mxu0 %v4651
  %4695 = vmatpush.bf16.msra.mxu0 %v4650
  %4696 = vmatpush.bf16.msra.mxu0 %v4649
  %4697 = vmatpush.bf16.msra.mxu0 %v4648
  %4698 = vmatpush.bf16.msra.mxu0 %v4647
  %4699 = vmatpush.bf16.msra.mxu0 %v4646
  %4700 = vmatpush.bf16.msra.mxu0 %v4645
  %4701 = vmatmul.bf16.gmra.mxu0 %v4544
  %v4702 = vpop.f32.mrf.mxu0
  %v4703 = vadd.f32 %v4548, %v4702
  %v4704 = vpop.f32.mrf.mxu0
  %4705 = vdwg.mxu0
  %4706 = vmatpush.bf16.msra.mxu0 %v4660
  %4707 = vmatpush.bf16.msra.mxu0 %v4659
  %4708 = vmatpush.bf16.msra.mxu0 %v4658
  %4709 = vmatpush.bf16.msra.mxu0 %v4657
  %4710 = vmatpush.bf16.msra.mxu0 %v4656
  %4711 = vmatpush.bf16.msra.mxu0 %v4655
  %4712 = vmatpush.bf16.msra.mxu0 %v4654
  %4713 = vmatpush.bf16.msra.mxu0 %v4653
  %4714 = vmatmul.bf16.gmra.mxu0 %v4545
  %v4715 = vpop.f32.mrf.mxu0
  %v4716 = vadd.f32 %v4703, %v4715
  %v4717 = vpop.f32.mrf.mxu0
  %4718 = vdwg.mxu0
  %4719 = vmatpush.bf16.msra.mxu0 %v4668
  %4720 = vmatpush.bf16.msra.mxu0 %v4667
  %4721 = vmatpush.bf16.msra.mxu0 %v4666
  %4722 = vmatpush.bf16.msra.mxu0 %v4665
  %4723 = vmatpush.bf16.msra.mxu0 %v4664
  %4724 = vmatpush.bf16.msra.mxu0 %v4663
  %4725 = vmatpush.bf16.msra.mxu0 %v4662
  %4726 = vmatpush.bf16.msra.mxu0 %v4661
  %4727 = vmatmul.bf16.gmra.mxu0 %v4546
  %v4728 = vpop.f32.mrf.mxu0
  %v4729 = vadd.f32 %v4716, %v4728
  %v4730 = vpop.f32.mrf.mxu0
  %4731 = vdwg.mxu0
  %v4732 = vmax.f32 %v4729, 0.0
  %4733 = vst [vmem:[#allocation3] sm:$0x1] 0.0
  %4734 = vst [vmem:[#allocation3 + $0x9] sm:$0x1] 0.0
  %4735 = vst [vmem:[#allocation3 + $0x1] sm:$0xff] %v4732
  %v4736 = vld [vmem:[#allocation3] sm:$0xff]
  %v4737 = vld [vmem:[#allocation3 + $0x1] sm:$0xff]
  %v4738 = vld [vmem:[#allocation3 + $0x2] sm:$0xff]
  %v4739 = vld [vmem:[#allocation4 + $0x600] sm:$0xf]
  %v4740 = vld [vmem:[#allocation4 + $0x604] sm:$0xf]
  %v4741 = vld [vmem:[#allocation4 + $0x608] sm:$0xf]
  %v4742 = vld [vmem:[#allocation4 + $0x60c] sm:$0xf]
  %v4743 = vld [vmem:[#allocation4 + $0x610] sm:$0xf]
  %v4744 = vld [vmem:[#allocation4 + $0x614] sm:$0xf]
  %v4745 = vld [vmem:[#allocation4 + $0x618] sm:$0xf]
  %v4746 = vld [vmem:[#allocation4 + $0x61c] sm:$0xf]
  %v4747 = vld [vmem:[#allocation4 + $0x620] sm:$0xf]
  %v4748 = vld [vmem:[#allocation4 + $0x624] sm:$0xf]
  %v4749 = vld [vmem:[#allocation4 + $0x628] sm:$0xf]
  %v4750 = vld [vmem:[#allocation4 + $0x62c] sm:$0xf]
  %v4751 = vld [vmem:[#allocation4 + $0x630] sm:$0xf]
  %v4752 = vld [vmem:[#allocation4 + $0x634] sm:$0xf]
  %v4753 = vld [vmem:[#allocation4 + $0x638] sm:$0xf]
  %v4754 = vld [vmem:[#allocation4 + $0x63c] sm:$0xf]
  %v4755 = vld [vmem:[#allocation4 + $0x640] sm:$0xf]
  %v4756 = vld [vmem:[#allocation4 + $0x644] sm:$0xf]
  %v4757 = vld [vmem:[#allocation4 + $0x648] sm:$0xf]
  %v4758 = vld [vmem:[#allocation4 + $0x64c] sm:$0xf]
  %v4759 = vld [vmem:[#allocation4 + $0x650] sm:$0xf]
  %v4760 = vld [vmem:[#allocation4 + $0x654] sm:$0xf]
  %v4761 = vld [vmem:[#allocation4 + $0x658] sm:$0xf]
  %v4762 = vld [vmem:[#allocation4 + $0x65c] sm:$0xf]
  %v4763 = vld [vmem:[#allocation4 + $0x660] sm:$0xf]
  %v4764 = vld [vmem:[#allocation4 + $0x664] sm:$0xf]
  %v4765 = vld [vmem:[#allocation4 + $0x668] sm:$0xf]
  %v4766 = vld [vmem:[#allocation4 + $0x66c] sm:$0xf]
  %v4767 = vld [vmem:[#allocation4 + $0x670] sm:$0xf]
  %v4768 = vld [vmem:[#allocation4 + $0x674] sm:$0xf]
  %v4769 = vld [vmem:[#allocation4 + $0x678] sm:$0xf]
  %v4770 = vld [vmem:[#allocation4 + $0x67c] sm:$0xf]
  %v4771 = vld [vmem:[#allocation4 + $0x680] sm:$0xf]
  %v4772 = vld [vmem:[#allocation4 + $0x684] sm:$0xf]
  %v4773 = vld [vmem:[#allocation4 + $0x688] sm:$0xf]
  %v4774 = vld [vmem:[#allocation4 + $0x68c] sm:$0xf]
  %v4775 = vld [vmem:[#allocation4 + $0x690] sm:$0xf]
  %v4776 = vld [vmem:[#allocation4 + $0x694] sm:$0xf]
  %v4777 = vld [vmem:[#allocation4 + $0x698] sm:$0xf]
  %v4778 = vld [vmem:[#allocation4 + $0x69c] sm:$0xf]
  %v4779 = vld [vmem:[#allocation4 + $0x6a0] sm:$0xf]
  %v4780 = vld [vmem:[#allocation4 + $0x6a4] sm:$0xf]
  %v4781 = vld [vmem:[#allocation4 + $0x6a8] sm:$0xf]
  %v4782 = vld [vmem:[#allocation4 + $0x6ac] sm:$0xf]
  %v4783 = vld [vmem:[#allocation4 + $0x6b0] sm:$0xf]
  %v4784 = vld [vmem:[#allocation4 + $0x6b4] sm:$0xf]
  %v4785 = vld [vmem:[#allocation4 + $0x6b8] sm:$0xf]
  %v4786 = vld [vmem:[#allocation4 + $0x6bc] sm:$0xf]
  %v4787 = vpack.c.bf16 %v4736, %v4736
  %v4788 = vpack.c.bf16 %v4737, %v4737
  %v4789 = vpack.c.bf16 %v4738, %v4738
  %v4790 = vld [vmem:[%s5 + $0x8] sm:$0x1]
  %v4791 = vperm.slane %v4790, 0
  %v4840 = vunpack.c.l.b16 %v4739
  %v4841 = vunpack.c.l.b16 %v4740
  %v4842 = vunpack.c.l.b16 %v4741
  %v4843 = vunpack.c.l.b16 %v4742
  %v4844 = vunpack.c.l.b16 %v4743
  %v4845 = vunpack.c.l.b16 %v4744
  %v4846 = vunpack.c.l.b16 %v4745
  %v4847 = vunpack.c.l.b16 %v4746
  %v4848 = vunpack.c.l.b16 %v4747
  %v4849 = vunpack.c.l.b16 %v4748
  %v4850 = vunpack.c.l.b16 %v4749
  %v4851 = vunpack.c.l.b16 %v4750
  %v4852 = vunpack.c.l.b16 %v4751
  %v4853 = vunpack.c.l.b16 %v4752
  %v4854 = vunpack.c.l.b16 %v4753
  %v4855 = vunpack.c.l.b16 %v4754
  %v4856 = vunpack.c.l.b16 %v4755
  %v4857 = vunpack.c.l.b16 %v4756
  %v4858 = vunpack.c.l.b16 %v4757
  %v4859 = vunpack.c.l.b16 %v4758
  %v4860 = vunpack.c.l.b16 %v4759
  %v4861 = vunpack.c.l.b16 %v4760
  %v4862 = vunpack.c.l.b16 %v4761
  %v4863 = vunpack.c.l.b16 %v4762
  %v4864 = vunpack.c.l.b16 %v4763
  %v4865 = vunpack.c.l.b16 %v4764
  %v4866 = vunpack.c.l.b16 %v4765
  %v4867 = vunpack.c.l.b16 %v4766
  %v4868 = vunpack.c.l.b16 %v4767
  %v4869 = vunpack.c.l.b16 %v4768
  %v4870 = vunpack.c.l.b16 %v4769
  %v4871 = vunpack.c.l.b16 %v4770
  %v4872 = vunpack.c.l.b16 %v4771
  %v4873 = vunpack.c.l.b16 %v4772
  %v4874 = vunpack.c.l.b16 %v4773
  %v4875 = vunpack.c.l.b16 %v4774
  %v4876 = vunpack.c.l.b16 %v4775
  %v4877 = vunpack.c.l.b16 %v4776
  %v4878 = vunpack.c.l.b16 %v4777
  %v4879 = vunpack.c.l.b16 %v4778
  %v4880 = vunpack.c.l.b16 %v4779
  %v4881 = vunpack.c.l.b16 %v4780
  %v4882 = vunpack.c.l.b16 %v4781
  %v4883 = vunpack.c.l.b16 %v4782
  %v4884 = vunpack.c.l.b16 %v4783
  %v4885 = vunpack.c.l.b16 %v4784
  %v4886 = vunpack.c.l.b16 %v4785
  %v4887 = vunpack.c.l.b16 %v4786
  %v4888 = vpack.c.b16 %v4841, %v4840
  %v4889 = vpack.c.b16 %v4843, %v4842
  %v4890 = vpack.c.b16 %v4845, %v4844
  %v4891 = vpack.c.b16 %v4847, %v4846
  %v4892 = vpack.c.b16 %v4849, %v4848
  %v4893 = vpack.c.b16 %v4851, %v4850
  %v4894 = vpack.c.b16 %v4853, %v4852
  %v4895 = vpack.c.b16 %v4855, %v4854
  %v4896 = vpack.c.b16 %v4857, %v4856
  %v4897 = vpack.c.b16 %v4859, %v4858
  %v4898 = vpack.c.b16 %v4861, %v4860
  %v4899 = vpack.c.b16 %v4863, %v4862
  %v4900 = vpack.c.b16 %v4865, %v4864
  %v4901 = vpack.c.b16 %v4867, %v4866
  %v4902 = vpack.c.b16 %v4869, %v4868
  %v4903 = vpack.c.b16 %v4871, %v4870
  %v4904 = vpack.c.b16 %v4873, %v4872
  %v4905 = vpack.c.b16 %v4875, %v4874
  %v4906 = vpack.c.b16 %v4877, %v4876
  %v4907 = vpack.c.b16 %v4879, %v4878
  %v4908 = vpack.c.b16 %v4881, %v4880
  %v4909 = vpack.c.b16 %v4883, %v4882
  %v4910 = vpack.c.b16 %v4885, %v4884
  %v4911 = vpack.c.b16 %v4887, %v4886
  %4936 = vmatpush.bf16.msra.mxu0 %v4895
  %4937 = vmatpush.bf16.msra.mxu0 %v4894
  %4938 = vmatpush.bf16.msra.mxu0 %v4893
  %4939 = vmatpush.bf16.msra.mxu0 %v4892
  %4940 = vmatpush.bf16.msra.mxu0 %v4891
  %4941 = vmatpush.bf16.msra.mxu0 %v4890
  %4942 = vmatpush.bf16.msra.mxu0 %v4889
  %4943 = vmatpush.bf16.msra.mxu0 %v4888
  %4944 = vmatmul.bf16.gmra.mxu0 %v4787
  %v4945 = vpop.f32.mrf.mxu0
  %v4946 = vadd.f32 %v4791, %v4945
  %v4947 = vpop.f32.mrf.mxu0
  %4948 = vdwg.mxu0
  %4949 = vmatpush.bf16.msra.mxu0 %v4903
  %4950 = vmatpush.bf16.msra.mxu0 %v4902
  %4951 = vmatpush.bf16.msra.mxu0 %v4901
  %4952 = vmatpush.bf16.msra.mxu0 %v4900
  %4953 = vmatpush.bf16.msra.mxu0 %v4899
  %4954 = vmatpush.bf16.msra.mxu0 %v4898
  %4955 = vmatpush.bf16.msra.mxu0 %v4897
  %4956 = vmatpush.bf16.msra.mxu0 %v4896
  %4957 = vmatmul.bf16.gmra.mxu0 %v4788
  %v4958 = vpop.f32.mrf.mxu0
  %v4959 = vadd.f32 %v4946, %v4958
  %v4960 = vpop.f32.mrf.mxu0
  %4961 = vdwg.mxu0
  %4962 = vmatpush.bf16.msra.mxu0 %v4911
  %4963 = vmatpush.bf16.msra.mxu0 %v4910
  %4964 = vmatpush.bf16.msra.mxu0 %v4909
  %4965 = vmatpush.bf16.msra.mxu0 %v4908
  %4966 = vmatpush.bf16.msra.mxu0 %v4907
  %4967 = vmatpush.bf16.msra.mxu0 %v4906
  %4968 = vmatpush.bf16.msra.mxu0 %v4905
  %4969 = vmatpush.bf16.msra.mxu0 %v4904
  %4970 = vmatmul.bf16.gmra.mxu0 %v4789
  %v4971 = vpop.f32.mrf.mxu0
  %v4972 = vadd.f32 %v4959, %v4971
  %v4973 = vpop.f32.mrf.mxu0
  %4974 = vdwg.mxu0
  %v4975 = vmax.f32 %v4972, 0.0
  %4976 = vst [vmem:[#allocation3] sm:$0x1] 0.0
  %4977 = vst [vmem:[#allocation3 + $0x9] sm:$0x1] 0.0
  %4978 = vst [vmem:[#allocation3 + $0x1] sm:$0xff] %v4975
  %v4979 = vld [vmem:[#allocation3] sm:$0xff]
  %v4980 = vld [vmem:[#allocation3 + $0x1] sm:$0xff]
  %v4981 = vld [vmem:[#allocation3 + $0x2] sm:$0xff]
  %v4982 = vld [vmem:[#allocation4 + $0x6c0] sm:$0xf]
  %v4983 = vld [vmem:[#allocation4 + $0x6c4] sm:$0xf]
  %v4984 = vld [vmem:[#allocation4 + $0x6c8] sm:$0xf]
  %v4985 = vld [vmem:[#allocation4 + $0x6cc] sm:$0xf]
  %v4986 = vld [vmem:[#allocation4 + $0x6d0] sm:$0xf]
  %v4987 = vld [vmem:[#allocation4 + $0x6d4] sm:$0xf]
  %v4988 = vld [vmem:[#allocation4 + $0x6d8] sm:$0xf]
  %v4989 = vld [vmem:[#allocation4 + $0x6dc] sm:$0xf]
  %v4990 = vld [vmem:[#allocation4 + $0x6e0] sm:$0xf]
  %v4991 = vld [vmem:[#allocation4 + $0x6e4] sm:$0xf]
  %v4992 = vld [vmem:[#allocation4 + $0x6e8] sm:$0xf]
  %v4993 = vld [vmem:[#allocation4 + $0x6ec] sm:$0xf]
  %v4994 = vld [vmem:[#allocation4 + $0x6f0] sm:$0xf]
  %v4995 = vld [vmem:[#allocation4 + $0x6f4] sm:$0xf]
  %v4996 = vld [vmem:[#allocation4 + $0x6f8] sm:$0xf]
  %v4997 = vld [vmem:[#allocation4 + $0x6fc] sm:$0xf]
  %v4998 = vld [vmem:[#allocation4 + $0x700] sm:$0xf]
  %v4999 = vld [vmem:[#allocation4 + $0x704] sm:$0xf]
  %v5000 = vld [vmem:[#allocation4 + $0x708] sm:$0xf]
  %v5001 = vld [vmem:[#allocation4 + $0x70c] sm:$0xf]
  %v5002 = vld [vmem:[#allocation4 + $0x710] sm:$0xf]
  %v5003 = vld [vmem:[#allocation4 + $0x714] sm:$0xf]
  %v5004 = vld [vmem:[#allocation4 + $0x718] sm:$0xf]
  %v5005 = vld [vmem:[#allocation4 + $0x71c] sm:$0xf]
  %v5006 = vld [vmem:[#allocation4 + $0x720] sm:$0xf]
  %v5007 = vld [vmem:[#allocation4 + $0x724] sm:$0xf]
  %v5008 = vld [vmem:[#allocation4 + $0x728] sm:$0xf]
  %v5009 = vld [vmem:[#allocation4 + $0x72c] sm:$0xf]
  %v5010 = vld [vmem:[#allocation4 + $0x730] sm:$0xf]
  %v5011 = vld [vmem:[#allocation4 + $0x734] sm:$0xf]
  %v5012 = vld [vmem:[#allocation4 + $0x738] sm:$0xf]
  %v5013 = vld [vmem:[#allocation4 + $0x73c] sm:$0xf]
  %v5014 = vld [vmem:[#allocation4 + $0x740] sm:$0xf]
  %v5015 = vld [vmem:[#allocation4 + $0x744] sm:$0xf]
  %v5016 = vld [vmem:[#allocation4 + $0x748] sm:$0xf]
  %v5017 = vld [vmem:[#allocation4 + $0x74c] sm:$0xf]
  %v5018 = vld [vmem:[#allocation4 + $0x750] sm:$0xf]
  %v5019 = vld [vmem:[#allocation4 + $0x754] sm:$0xf]
  %v5020 = vld [vmem:[#allocation4 + $0x758] sm:$0xf]
  %v5021 = vld [vmem:[#allocation4 + $0x75c] sm:$0xf]
  %v5022 = vld [vmem:[#allocation4 + $0x760] sm:$0xf]
  %v5023 = vld [vmem:[#allocation4 + $0x764] sm:$0xf]
  %v5024 = vld [vmem:[#allocation4 + $0x768] sm:$0xf]
  %v5025 = vld [vmem:[#allocation4 + $0x76c] sm:$0xf]
  %v5026 = vld [vmem:[#allocation4 + $0x770] sm:$0xf]
  %v5027 = vld [vmem:[#allocation4 + $0x774] sm:$0xf]
  %v5028 = vld [vmem:[#allocation4 + $0x778] sm:$0xf]
  %v5029 = vld [vmem:[#allocation4 + $0x77c] sm:$0xf]
  %v5030 = vpack.c.bf16 %v4979, %v4979
  %v5031 = vpack.c.bf16 %v4980, %v4980
  %v5032 = vpack.c.bf16 %v4981, %v4981
  %v5033 = vld [vmem:[%s5 + $0x9] sm:$0x1]
  %v5034 = vperm.slane %v5033, 0
  %v5083 = vunpack.c.l.b16 %v4982
  %v5084 = vunpack.c.l.b16 %v4983
  %v5085 = vunpack.c.l.b16 %v4984
  %v5086 = vunpack.c.l.b16 %v4985
  %v5087 = vunpack.c.l.b16 %v4986
  %v5088 = vunpack.c.l.b16 %v4987
  %v5089 = vunpack.c.l.b16 %v4988
  %v5090 = vunpack.c.l.b16 %v4989
  %v5091 = vunpack.c.l.b16 %v4990
  %v5092 = vunpack.c.l.b16 %v4991
  %v5093 = vunpack.c.l.b16 %v4992
  %v5094 = vunpack.c.l.b16 %v4993
  %v5095 = vunpack.c.l.b16 %v4994
  %v5096 = vunpack.c.l.b16 %v4995
  %v5097 = vunpack.c.l.b16 %v4996
  %v5098 = vunpack.c.l.b16 %v4997
  %v5099 = vunpack.c.l.b16 %v4998
  %v5100 = vunpack.c.l.b16 %v4999
  %v5101 = vunpack.c.l.b16 %v5000
  %v5102 = vunpack.c.l.b16 %v5001
  %v5103 = vunpack.c.l.b16 %v5002
  %v5104 = vunpack.c.l.b16 %v5003
  %v5105 = vunpack.c.l.b16 %v5004
  %v5106 = vunpack.c.l.b16 %v5005
  %v5107 = vunpack.c.l.b16 %v5006
  %v5108 = vunpack.c.l.b16 %v5007
  %v5109 = vunpack.c.l.b16 %v5008
  %v5110 = vunpack.c.l.b16 %v5009
  %v5111 = vunpack.c.l.b16 %v5010
  %v5112 = vunpack.c.l.b16 %v5011
  %v5113 = vunpack.c.l.b16 %v5012
  %v5114 = vunpack.c.l.b16 %v5013
  %v5115 = vunpack.c.l.b16 %v5014
  %v5116 = vunpack.c.l.b16 %v5015
  %v5117 = vunpack.c.l.b16 %v5016
  %v5118 = vunpack.c.l.b16 %v5017
  %v5119 = vunpack.c.l.b16 %v5018
  %v5120 = vunpack.c.l.b16 %v5019
  %v5121 = vunpack.c.l.b16 %v5020
  %v5122 = vunpack.c.l.b16 %v5021
  %v5123 = vunpack.c.l.b16 %v5022
  %v5124 = vunpack.c.l.b16 %v5023
  %v5125 = vunpack.c.l.b16 %v5024
  %v5126 = vunpack.c.l.b16 %v5025
  %v5127 = vunpack.c.l.b16 %v5026
  %v5128 = vunpack.c.l.b16 %v5027
  %v5129 = vunpack.c.l.b16 %v5028
  %v5130 = vunpack.c.l.b16 %v5029
  %v5131 = vpack.c.b16 %v5084, %v5083
  %v5132 = vpack.c.b16 %v5086, %v5085
  %v5133 = vpack.c.b16 %v5088, %v5087
  %v5134 = vpack.c.b16 %v5090, %v5089
  %v5135 = vpack.c.b16 %v5092, %v5091
  %v5136 = vpack.c.b16 %v5094, %v5093
  %v5137 = vpack.c.b16 %v5096, %v5095
  %v5138 = vpack.c.b16 %v5098, %v5097
  %v5139 = vpack.c.b16 %v5100, %v5099
  %v5140 = vpack.c.b16 %v5102, %v5101
  %v5141 = vpack.c.b16 %v5104, %v5103
  %v5142 = vpack.c.b16 %v5106, %v5105
  %v5143 = vpack.c.b16 %v5108, %v5107
  %v5144 = vpack.c.b16 %v5110, %v5109
  %v5145 = vpack.c.b16 %v5112, %v5111
  %v5146 = vpack.c.b16 %v5114, %v5113
  %v5147 = vpack.c.b16 %v5116, %v5115
  %v5148 = vpack.c.b16 %v5118, %v5117
  %v5149 = vpack.c.b16 %v5120, %v5119
  %v5150 = vpack.c.b16 %v5122, %v5121
  %v5151 = vpack.c.b16 %v5124, %v5123
  %v5152 = vpack.c.b16 %v5126, %v5125
  %v5153 = vpack.c.b16 %v5128, %v5127
  %v5154 = vpack.c.b16 %v5130, %v5129
  %5179 = vmatpush.bf16.msra.mxu0 %v5138
  %5180 = vmatpush.bf16.msra.mxu0 %v5137
  %5181 = vmatpush.bf16.msra.mxu0 %v5136
  %5182 = vmatpush.bf16.msra.mxu0 %v5135
  %5183 = vmatpush.bf16.msra.mxu0 %v5134
  %5184 = vmatpush.bf16.msra.mxu0 %v5133
  %5185 = vmatpush.bf16.msra.mxu0 %v5132
  %5186 = vmatpush.bf16.msra.mxu0 %v5131
  %5187 = vmatmul.bf16.gmra.mxu0 %v5030
  %v5188 = vpop.f32.mrf.mxu0
  %v5189 = vadd.f32 %v5034, %v5188
  %v5190 = vpop.f32.mrf.mxu0
  %5191 = vdwg.mxu0
  %5192 = vmatpush.bf16.msra.mxu0 %v5146
  %5193 = vmatpush.bf16.msra.mxu0 %v5145
  %5194 = vmatpush.bf16.msra.mxu0 %v5144
  %5195 = vmatpush.bf16.msra.mxu0 %v5143
  %5196 = vmatpush.bf16.msra.mxu0 %v5142
  %5197 = vmatpush.bf16.msra.mxu0 %v5141
  %5198 = vmatpush.bf16.msra.mxu0 %v5140
  %5199 = vmatpush.bf16.msra.mxu0 %v5139
  %5200 = vmatmul.bf16.gmra.mxu0 %v5031
  %v5201 = vpop.f32.mrf.mxu0
  %v5202 = vadd.f32 %v5189, %v5201
  %v5203 = vpop.f32.mrf.mxu0
  %5204 = vdwg.mxu0
  %5205 = vmatpush.bf16.msra.mxu0 %v5154
  %5206 = vmatpush.bf16.msra.mxu0 %v5153
  %5207 = vmatpush.bf16.msra.mxu0 %v5152
  %5208 = vmatpush.bf16.msra.mxu0 %v5151
  %5209 = vmatpush.bf16.msra.mxu0 %v5150
  %5210 = vmatpush.bf16.msra.mxu0 %v5149
  %5211 = vmatpush.bf16.msra.mxu0 %v5148
  %5212 = vmatpush.bf16.msra.mxu0 %v5147
  %5213 = vmatmul.bf16.gmra.mxu0 %v5032
  %v5214 = vpop.f32.mrf.mxu0
  %v5215 = vadd.f32 %v5202, %v5214
  %v5216 = vpop.f32.mrf.mxu0
  %5217 = vdwg.mxu0
  %v5218 = vmax.f32 %v5215, 0.0
  %5219 = vst [vmem:[#allocation3] sm:$0x1] 0.0
  %5220 = vst [vmem:[#allocation3 + $0x9] sm:$0x1] 0.0
  %5221 = vst [vmem:[#allocation3 + $0x1] sm:$0xff] %v5218
  %v5222 = vld [vmem:[#allocation3] sm:$0xff]
  %v5223 = vld [vmem:[#allocation3 + $0x1] sm:$0xff]
  %v5224 = vld [vmem:[#allocation3 + $0x2] sm:$0xff]
  %v5225 = vld [vmem:[#allocation4 + $0x780] sm:$0xf]
  %v5226 = vld [vmem:[#allocation4 + $0x784] sm:$0xf]
  %v5227 = vld [vmem:[#allocation4 + $0x788] sm:$0xf]
  %v5228 = vld [vmem:[#allocation4 + $0x78c] sm:$0xf]
  %v5229 = vld [vmem:[#allocation4 + $0x790] sm:$0xf]
  %v5230 = vld [vmem:[#allocation4 + $0x794] sm:$0xf]
  %v5231 = vld [vmem:[#allocation4 + $0x798] sm:$0xf]
  %v5232 = vld [vmem:[#allocation4 + $0x79c] sm:$0xf]
  %v5233 = vld [vmem:[#allocation4 + $0x7a0] sm:$0xf]
  %v5234 = vld [vmem:[#allocation4 + $0x7a4] sm:$0xf]
  %v5235 = vld [vmem:[#allocation4 + $0x7a8] sm:$0xf]
  %v5236 = vld [vmem:[#allocation4 + $0x7ac] sm:$0xf]
  %v5237 = vld [vmem:[#allocation4 + $0x7b0] sm:$0xf]
  %v5238 = vld [vmem:[#allocation4 + $0x7b4] sm:$0xf]
  %v5239 = vld [vmem:[#allocation4 + $0x7b8] sm:$0xf]
  %v5240 = vld [vmem:[#allocation4 + $0x7bc] sm:$0xf]
  %v5241 = vld [vmem:[#allocation4 + $0x7c0] sm:$0xf]
  %v5242 = vld [vmem:[#allocation4 + $0x7c4] sm:$0xf]
  %v5243 = vld [vmem:[#allocation4 + $0x7c8] sm:$0xf]
  %v5244 = vld [vmem:[#allocation4 + $0x7cc] sm:$0xf]
  %v5245 = vld [vmem:[#allocation4 + $0x7d0] sm:$0xf]
  %v5246 = vld [vmem:[#allocation4 + $0x7d4] sm:$0xf]
  %v5247 = vld [vmem:[#allocation4 + $0x7d8] sm:$0xf]
  %v5248 = vld [vmem:[#allocation4 + $0x7dc] sm:$0xf]
  %v5249 = vld [vmem:[#allocation4 + $0x7e0] sm:$0xf]
  %v5250 = vld [vmem:[#allocation4 + $0x7e4] sm:$0xf]
  %v5251 = vld [vmem:[#allocation4 + $0x7e8] sm:$0xf]
  %v5252 = vld [vmem:[#allocation4 + $0x7ec] sm:$0xf]
  %v5253 = vld [vmem:[#allocation4 + $0x7f0] sm:$0xf]
  %v5254 = vld [vmem:[#allocation4 + $0x7f4] sm:$0xf]
  %v5255 = vld [vmem:[#allocation4 + $0x7f8] sm:$0xf]
  %v5256 = vld [vmem:[#allocation4 + $0x7fc] sm:$0xf]
  %v5257 = vld [vmem:[#allocation4 + $0x800] sm:$0xf]
  %v5258 = vld [vmem:[#allocation4 + $0x804] sm:$0xf]
  %v5259 = vld [vmem:[#allocation4 + $0x808] sm:$0xf]
  %v5260 = vld [vmem:[#allocation4 + $0x80c] sm:$0xf]
  %v5261 = vld [vmem:[#allocation4 + $0x810] sm:$0xf]
  %v5262 = vld [vmem:[#allocation4 + $0x814] sm:$0xf]
  %v5263 = vld [vmem:[#allocation4 + $0x818] sm:$0xf]
  %v5264 = vld [vmem:[#allocation4 + $0x81c] sm:$0xf]
  %v5265 = vld [vmem:[#allocation4 + $0x820] sm:$0xf]
  %v5266 = vld [vmem:[#allocation4 + $0x824] sm:$0xf]
  %v5267 = vld [vmem:[#allocation4 + $0x828] sm:$0xf]
  %v5268 = vld [vmem:[#allocation4 + $0x82c] sm:$0xf]
  %v5269 = vld [vmem:[#allocation4 + $0x830] sm:$0xf]
  %v5270 = vld [vmem:[#allocation4 + $0x834] sm:$0xf]
  %v5271 = vld [vmem:[#allocation4 + $0x838] sm:$0xf]
  %v5272 = vld [vmem:[#allocation4 + $0x83c] sm:$0xf]
  %v5273 = vpack.c.bf16 %v5222, %v5222
  %v5274 = vpack.c.bf16 %v5223, %v5223
  %v5275 = vpack.c.bf16 %v5224, %v5224
  %v5276 = vld [vmem:[%s5 + $0xa] sm:$0x1]
  %v5277 = vperm.slane %v5276, 0
  %v5326 = vunpack.c.l.b16 %v5225
  %v5327 = vunpack.c.l.b16 %v5226
  %v5328 = vunpack.c.l.b16 %v5227
  %v5329 = vunpack.c.l.b16 %v5228
  %v5330 = vunpack.c.l.b16 %v5229
  %v5331 = vunpack.c.l.b16 %v5230
  %v5332 = vunpack.c.l.b16 %v5231
  %v5333 = vunpack.c.l.b16 %v5232
  %v5334 = vunpack.c.l.b16 %v5233
  %v5335 = vunpack.c.l.b16 %v5234
  %v5336 = vunpack.c.l.b16 %v5235
  %v5337 = vunpack.c.l.b16 %v5236
  %v5338 = vunpack.c.l.b16 %v5237
  %v5339 = vunpack.c.l.b16 %v5238
  %v5340 = vunpack.c.l.b16 %v5239
  %v5341 = vunpack.c.l.b16 %v5240
  %v5342 = vunpack.c.l.b16 %v5241
  %v5343 = vunpack.c.l.b16 %v5242
  %v5344 = vunpack.c.l.b16 %v5243
  %v5345 = vunpack.c.l.b16 %v5244
  %v5346 = vunpack.c.l.b16 %v5245
  %v5347 = vunpack.c.l.b16 %v5246
  %v5348 = vunpack.c.l.b16 %v5247
  %v5349 = vunpack.c.l.b16 %v5248
  %v5350 = vunpack.c.l.b16 %v5249
  %v5351 = vunpack.c.l.b16 %v5250
  %v5352 = vunpack.c.l.b16 %v5251
  %v5353 = vunpack.c.l.b16 %v5252
  %v5354 = vunpack.c.l.b16 %v5253
  %v5355 = vunpack.c.l.b16 %v5254
  %v5356 = vunpack.c.l.b16 %v5255
  %v5357 = vunpack.c.l.b16 %v5256
  %v5358 = vunpack.c.l.b16 %v5257
  %v5359 = vunpack.c.l.b16 %v5258
  %v5360 = vunpack.c.l.b16 %v5259
  %v5361 = vunpack.c.l.b16 %v5260
  %v5362 = vunpack.c.l.b16 %v5261
  %v5363 = vunpack.c.l.b16 %v5262
  %v5364 = vunpack.c.l.b16 %v5263
  %v5365 = vunpack.c.l.b16 %v5264
  %v5366 = vunpack.c.l.b16 %v5265
  %v5367 = vunpack.c.l.b16 %v5266
  %v5368 = vunpack.c.l.b16 %v5267
  %v5369 = vunpack.c.l.b16 %v5268
  %v5370 = vunpack.c.l.b16 %v5269
  %v5371 = vunpack.c.l.b16 %v5270
  %v5372 = vunpack.c.l.b16 %v5271
  %v5373 = vunpack.c.l.b16 %v5272
  %v5374 = vpack.c.b16 %v5327, %v5326
  %v5375 = vpack.c.b16 %v5329, %v5328
  %v5376 = vpack.c.b16 %v5331, %v5330
  %v5377 = vpack.c.b16 %v5333, %v5332
  %v5378 = vpack.c.b16 %v5335, %v5334
  %v5379 = vpack.c.b16 %v5337, %v5336
  %v5380 = vpack.c.b16 %v5339, %v5338
  %v5381 = vpack.c.b16 %v5341, %v5340
  %v5382 = vpack.c.b16 %v5343, %v5342
  %v5383 = vpack.c.b16 %v5345, %v5344
  %v5384 = vpack.c.b16 %v5347, %v5346
  %v5385 = vpack.c.b16 %v5349, %v5348
  %v5386 = vpack.c.b16 %v5351, %v5350
  %v5387 = vpack.c.b16 %v5353, %v5352
  %v5388 = vpack.c.b16 %v5355, %v5354
  %v5389 = vpack.c.b16 %v5357, %v5356
  %v5390 = vpack.c.b16 %v5359, %v5358
  %v5391 = vpack.c.b16 %v5361, %v5360
  %v5392 = vpack.c.b16 %v5363, %v5362
  %v5393 = vpack.c.b16 %v5365, %v5364
  %v5394 = vpack.c.b16 %v5367, %v5366
  %v5395 = vpack.c.b16 %v5369, %v5368
  %v5396 = vpack.c.b16 %v5371, %v5370
  %v5397 = vpack.c.b16 %v5373, %v5372
  %5422 = vmatpush.bf16.msra.mxu0 %v5381
  %5423 = vmatpush.bf16.msra.mxu0 %v5380
  %5424 = vmatpush.bf16.msra.mxu0 %v5379
  %5425 = vmatpush.bf16.msra.mxu0 %v5378
  %5426 = vmatpush.bf16.msra.mxu0 %v5377
  %5427 = vmatpush.bf16.msra.mxu0 %v5376
  %5428 = vmatpush.bf16.msra.mxu0 %v5375
  %5429 = vmatpush.bf16.msra.mxu0 %v5374
  %5430 = vmatmul.bf16.gmra.mxu0 %v5273
  %v5431 = vpop.f32.mrf.mxu0
  %v5432 = vadd.f32 %v5277, %v5431
  %v5433 = vpop.f32.mrf.mxu0
  %5434 = vdwg.mxu0
  %5435 = vmatpush.bf16.msra.mxu0 %v5389
  %5436 = vmatpush.bf16.msra.mxu0 %v5388
  %5437 = vmatpush.bf16.msra.mxu0 %v5387
  %5438 = vmatpush.bf16.msra.mxu0 %v5386
  %5439 = vmatpush.bf16.msra.mxu0 %v5385
  %5440 = vmatpush.bf16.msra.mxu0 %v5384
  %5441 = vmatpush.bf16.msra.mxu0 %v5383
  %5442 = vmatpush.bf16.msra.mxu0 %v5382
  %5443 = vmatmul.bf16.gmra.mxu0 %v5274
  %v5444 = vpop.f32.mrf.mxu0
  %v5445 = vadd.f32 %v5432, %v5444
  %v5446 = vpop.f32.mrf.mxu0
  %5447 = vdwg.mxu0
  %5448 = vmatpush.bf16.msra.mxu0 %v5397
  %5449 = vmatpush.bf16.msra.mxu0 %v5396
  %5450 = vmatpush.bf16.msra.mxu0 %v5395
  %5451 = vmatpush.bf16.msra.mxu0 %v5394
  %5452 = vmatpush.bf16.msra.mxu0 %v5393
  %5453 = vmatpush.bf16.msra.mxu0 %v5392
  %5454 = vmatpush.bf16.msra.mxu0 %v5391
  %5455 = vmatpush.bf16.msra.mxu0 %v5390
  %5456 = vmatmul.bf16.gmra.mxu0 %v5275
  %v5457 = vpop.f32.mrf.mxu0
  %v5458 = vadd.f32 %v5445, %v5457
  %v5459 = vpop.f32.mrf.mxu0
  %5460 = vdwg.mxu0
  %v5461 = vmax.f32 %v5458, 0.0
  %5462 = vst [vmem:[#allocation3] sm:$0x1] 0.0
  %5463 = vst [vmem:[#allocation3 + $0x9] sm:$0x1] 0.0
  %5464 = vst [vmem:[#allocation3 + $0x1] sm:$0xff] %v5461
  %v5465 = vld [vmem:[#allocation3] sm:$0xff]
  %v5466 = vld [vmem:[#allocation3 + $0x1] sm:$0xff]
  %v5467 = vld [vmem:[#allocation3 + $0x2] sm:$0xff]
  %v5468 = vld [vmem:[#allocation4 + $0x840] sm:$0xf]
  %v5469 = vld [vmem:[#allocation4 + $0x844] sm:$0xf]
  %v5470 = vld [vmem:[#allocation4 + $0x848] sm:$0xf]
  %v5471 = vld [vmem:[#allocation4 + $0x84c] sm:$0xf]
  %v5472 = vld [vmem:[#allocation4 + $0x850] sm:$0xf]
  %v5473 = vld [vmem:[#allocation4 + $0x854] sm:$0xf]
  %v5474 = vld [vmem:[#allocation4 + $0x858] sm:$0xf]
  %v5475 = vld [vmem:[#allocation4 + $0x85c] sm:$0xf]
  %v5476 = vld [vmem:[#allocation4 + $0x860] sm:$0xf]
  %v5477 = vld [vmem:[#allocation4 + $0x864] sm:$0xf]
  %v5478 = vld [vmem:[#allocation4 + $0x868] sm:$0xf]
  %v5479 = vld [vmem:[#allocation4 + $0x86c] sm:$0xf]
  %v5480 = vld [vmem:[#allocation4 + $0x870] sm:$0xf]
  %v5481 = vld [vmem:[#allocation4 + $0x874] sm:$0xf]
  %v5482 = vld [vmem:[#allocation4 + $0x878] sm:$0xf]
  %v5483 = vld [vmem:[#allocation4 + $0x87c] sm:$0xf]
  %v5484 = vld [vmem:[#allocation4 + $0x880] sm:$0xf]
  %v5485 = vld [vmem:[#allocation4 + $0x884] sm:$0xf]
  %v5486 = vld [vmem:[#allocation4 + $0x888] sm:$0xf]
  %v5487 = vld [vmem:[#allocation4 + $0x88c] sm:$0xf]
  %v5488 = vld [vmem:[#allocation4 + $0x890] sm:$0xf]
  %v5489 = vld [vmem:[#allocation4 + $0x894] sm:$0xf]
  %v5490 = vld [vmem:[#allocation4 + $0x898] sm:$0xf]
  %v5491 = vld [vmem:[#allocation4 + $0x89c] sm:$0xf]
  %v5492 = vld [vmem:[#allocation4 + $0x8a0] sm:$0xf]
  %v5493 = vld [vmem:[#allocation4 + $0x8a4] sm:$0xf]
  %v5494 = vld [vmem:[#allocation4 + $0x8a8] sm:$0xf]
  %v5495 = vld [vmem:[#allocation4 + $0x8ac] sm:$0xf]
  %v5496 = vld [vmem:[#allocation4 + $0x8b0] sm:$0xf]
  %v5497 = vld [vmem:[#allocation4 + $0x8b4] sm:$0xf]
  %v5498 = vld [vmem:[#allocation4 + $0x8b8] sm:$0xf]
  %v5499 = vld [vmem:[#allocation4 + $0x8bc] sm:$0xf]
  %v5500 = vld [vmem:[#allocation4 + $0x8c0] sm:$0xf]
  %v5501 = vld [vmem:[#allocation4 + $0x8c4] sm:$0xf]
  %v5502 = vld [vmem:[#allocation4 + $0x8c8] sm:$0xf]
  %v5503 = vld [vmem:[#allocation4 + $0x8cc] sm:$0xf]
  %v5504 = vld [vmem:[#allocation4 + $0x8d0] sm:$0xf]
  %v5505 = vld [vmem:[#allocation4 + $0x8d4] sm:$0xf]
  %v5506 = vld [vmem:[#allocation4 + $0x8d8] sm:$0xf]
  %v5507 = vld [vmem:[#allocation4 + $0x8dc] sm:$0xf]
  %v5508 = vld [vmem:[#allocation4 + $0x8e0] sm:$0xf]
  %v5509 = vld [vmem:[#allocation4 + $0x8e4] sm:$0xf]
  %v5510 = vld [vmem:[#allocation4 + $0x8e8] sm:$0xf]
  %v5511 = vld [vmem:[#allocation4 + $0x8ec] sm:$0xf]
  %v5512 = vld [vmem:[#allocation4 + $0x8f0] sm:$0xf]
  %v5513 = vld [vmem:[#allocation4 + $0x8f4] sm:$0xf]
  %v5514 = vld [vmem:[#allocation4 + $0x8f8] sm:$0xf]
  %v5515 = vld [vmem:[#allocation4 + $0x8fc] sm:$0xf]
  %v5516 = vpack.c.bf16 %v5465, %v5465
  %v5517 = vpack.c.bf16 %v5466, %v5466
  %v5518 = vpack.c.bf16 %v5467, %v5467
  %v5519 = vld [vmem:[%s5 + $0xb] sm:$0x1]
  %v5520 = vperm.slane %v5519, 0
  %v5569 = vunpack.c.l.b16 %v5468
  %v5570 = vunpack.c.l.b16 %v5469
  %v5571 = vunpack.c.l.b16 %v5470
  %v5572 = vunpack.c.l.b16 %v5471
  %v5573 = vunpack.c.l.b16 %v5472
  %v5574 = vunpack.c.l.b16 %v5473
  %v5575 = vunpack.c.l.b16 %v5474
  %v5576 = vunpack.c.l.b16 %v5475
  %v5577 = vunpack.c.l.b16 %v5476
  %v5578 = vunpack.c.l.b16 %v5477
  %v5579 = vunpack.c.l.b16 %v5478
  %v5580 = vunpack.c.l.b16 %v5479
  %v5581 = vunpack.c.l.b16 %v5480
  %v5582 = vunpack.c.l.b16 %v5481
  %v5583 = vunpack.c.l.b16 %v5482
  %v5584 = vunpack.c.l.b16 %v5483
  %v5585 = vunpack.c.l.b16 %v5484
  %v5586 = vunpack.c.l.b16 %v5485
  %v5587 = vunpack.c.l.b16 %v5486
  %v5588 = vunpack.c.l.b16 %v5487
  %v5589 = vunpack.c.l.b16 %v5488
  %v5590 = vunpack.c.l.b16 %v5489
  %v5591 = vunpack.c.l.b16 %v5490
  %v5592 = vunpack.c.l.b16 %v5491
  %v5593 = vunpack.c.l.b16 %v5492
  %v5594 = vunpack.c.l.b16 %v5493
  %v5595 = vunpack.c.l.b16 %v5494
  %v5596 = vunpack.c.l.b16 %v5495
  %v5597 = vunpack.c.l.b16 %v5496
  %v5598 = vunpack.c.l.b16 %v5497
  %v5599 = vunpack.c.l.b16 %v5498
  %v5600 = vunpack.c.l.b16 %v5499
  %v5601 = vunpack.c.l.b16 %v5500
  %v5602 = vunpack.c.l.b16 %v5501
  %v5603 = vunpack.c.l.b16 %v5502
  %v5604 = vunpack.c.l.b16 %v5503
  %v5605 = vunpack.c.l.b16 %v5504
  %v5606 = vunpack.c.l.b16 %v5505
  %v5607 = vunpack.c.l.b16 %v5506
  %v5608 = vunpack.c.l.b16 %v5507
  %v5609 = vunpack.c.l.b16 %v5508
  %v5610 = vunpack.c.l.b16 %v5509
  %v5611 = vunpack.c.l.b16 %v5510
  %v5612 = vunpack.c.l.b16 %v5511
  %v5613 = vunpack.c.l.b16 %v5512
  %v5614 = vunpack.c.l.b16 %v5513
  %v5615 = vunpack.c.l.b16 %v5514
  %v5616 = vunpack.c.l.b16 %v5515
  %v5617 = vpack.c.b16 %v5570, %v5569
  %v5618 = vpack.c.b16 %v5572, %v5571
  %v5619 = vpack.c.b16 %v5574, %v5573
  %v5620 = vpack.c.b16 %v5576, %v5575
  %v5621 = vpack.c.b16 %v5578, %v5577
  %v5622 = vpack.c.b16 %v5580, %v5579
  %v5623 = vpack.c.b16 %v5582, %v5581
  %v5624 = vpack.c.b16 %v5584, %v5583
  %v5625 = vpack.c.b16 %v5586, %v5585
  %v5626 = vpack.c.b16 %v5588, %v5587
  %v5627 = vpack.c.b16 %v5590, %v5589
  %v5628 = vpack.c.b16 %v5592, %v5591
  %v5629 = vpack.c.b16 %v5594, %v5593
  %v5630 = vpack.c.b16 %v5596, %v5595
  %v5631 = vpack.c.b16 %v5598, %v5597
  %v5632 = vpack.c.b16 %v5600, %v5599
  %v5633 = vpack.c.b16 %v5602, %v5601
  %v5634 = vpack.c.b16 %v5604, %v5603
  %v5635 = vpack.c.b16 %v5606, %v5605
  %v5636 = vpack.c.b16 %v5608, %v5607
  %v5637 = vpack.c.b16 %v5610, %v5609
  %v5638 = vpack.c.b16 %v5612, %v5611
  %v5639 = vpack.c.b16 %v5614, %v5613
  %v5640 = vpack.c.b16 %v5616, %v5615
  %5665 = vmatpush.bf16.msra.mxu0 %v5624
  %5666 = vmatpush.bf16.msra.mxu0 %v5623
  %5667 = vmatpush.bf16.msra.mxu0 %v5622
  %5668 = vmatpush.bf16.msra.mxu0 %v5621
  %5669 = vmatpush.bf16.msra.mxu0 %v5620
  %5670 = vmatpush.bf16.msra.mxu0 %v5619
  %5671 = vmatpush.bf16.msra.mxu0 %v5618
  %5672 = vmatpush.bf16.msra.mxu0 %v5617
  %5673 = vmatmul.bf16.gmra.mxu0 %v5516
  %v5674 = vpop.f32.mrf.mxu0
  %v5675 = vadd.f32 %v5520, %v5674
  %v5676 = vpop.f32.mrf.mxu0
  %5677 = vdwg.mxu0
  %5678 = vmatpush.bf16.msra.mxu0 %v5632
  %5679 = vmatpush.bf16.msra.mxu0 %v5631
  %5680 = vmatpush.bf16.msra.mxu0 %v5630
  %5681 = vmatpush.bf16.msra.mxu0 %v5629
  %5682 = vmatpush.bf16.msra.mxu0 %v5628
  %5683 = vmatpush.bf16.msra.mxu0 %v5627
  %5684 = vmatpush.bf16.msra.mxu0 %v5626
  %5685 = vmatpush.bf16.msra.mxu0 %v5625
  %5686 = vmatmul.bf16.gmra.mxu0 %v5517
  %v5687 = vpop.f32.mrf.mxu0
  %v5688 = vadd.f32 %v5675, %v5687
  %v5689 = vpop.f32.mrf.mxu0
  %5690 = vdwg.mxu0
  %5691 = vmatpush.bf16.msra.mxu0 %v5640
  %5692 = vmatpush.bf16.msra.mxu0 %v5639
  %5693 = vmatpush.bf16.msra.mxu0 %v5638
  %5694 = vmatpush.bf16.msra.mxu0 %v5637
  %5695 = vmatpush.bf16.msra.mxu0 %v5636
  %5696 = vmatpush.bf16.msra.mxu0 %v5635
  %5697 = vmatpush.bf16.msra.mxu0 %v5634
  %5698 = vmatpush.bf16.msra.mxu0 %v5633
  %5699 = vmatmul.bf16.gmra.mxu0 %v5518
  %v5700 = vpop.f32.mrf.mxu0
  %v5701 = vadd.f32 %v5688, %v5700
  %v5702 = vpop.f32.mrf.mxu0
  %5703 = vdwg.mxu0
  %v5704 = vmax.f32 %v5701, 0.0
  %v5705 = vrot.slane %v5704, 4
  %v5706 = vadd.f32 %v5704, %v5705
  %v5707 = vrot.slane %v5706, 2
  %v5708 = vadd.f32 %v5706, %v5707
  %v5709 = vrot.slane %v5708, 1
  %v5710 = vadd.f32 %v5708, %v5709
  %v5711 = vmul.f32 %v5710, 0.125
  %v5712 = vld [vmem:[%s6] sm:$0xff]
  %v5713 = vld [vmem:[%s6 + $0x8] sm:$0xff]
  %v5714 = vld [vmem:[%s6 + $0x10] sm:$0xff]
  %v5715 = vld [vmem:[%s6 + $0x18] sm:$0xff]
  %v5716 = vld [vmem:[%s6 + $0x20] sm:$0xff]
  %v5717 = vld [vmem:[%s6 + $0x28] sm:$0xff]
  %v5718 = vld [vmem:[%s6 + $0x30] sm:$0xff]
  %v5719 = vld [vmem:[%s6 + $0x38] sm:$0xff]
  %v5720 = vld [vmem:[%s6 + $0x40] sm:$0xff]
  %v5721 = vld [vmem:[%s6 + $0x48] sm:$0xff]
  %v5722 = vld [vmem:[%s6 + $0x50] sm:$0xff]
  %v5723 = vld [vmem:[%s6 + $0x58] sm:$0xff]
  %v5724 = vld [vmem:[%s6 + $0x60] sm:$0xff]
  %v5725 = vld [vmem:[%s6 + $0x68] sm:$0xff]
  %v5726 = vld [vmem:[%s6 + $0x70] sm:$0xff]
  %v5727 = vld [vmem:[%s6 + $0x78] sm:$0xff]
  %v5728 = vld [vmem:[%s7] sm:$0xff]
  %v5729 = vld [vmem:[%s7 + $0x8] sm:$0xff]
  %v5730 = vld [vmem:[%s7 + $0x10] sm:$0xff]
  %v5731 = vld [vmem:[%s7 + $0x18] sm:$0xff]
  %v5732 = vld [vmem:[%s7 + $0x20] sm:$0xff]
  %v5733 = vld [vmem:[%s7 + $0x28] sm:$0xff]
  %v5734 = vld [vmem:[%s7 + $0x30] sm:$0xff]
  %v5735 = vld [vmem:[%s7 + $0x38] sm:$0xff]
  %v5736 = vld [vmem:[%s7 + $0x40] sm:$0xff]
  %v5737 = vld [vmem:[%s7 + $0x48] sm:$0xff]
  %v5738 = vld [vmem:[%s7 + $0x50] sm:$0xff]
  %v5739 = vld [vmem:[%s7 + $0x58] sm:$0xff]
  %v5740 = vld [vmem:[%s7 + $0x60] sm:$0xff]
  %v5741 = vld [vmem:[%s7 + $0x68] sm:$0xff]
  %v5742 = vld [vmem:[%s7 + $0x70] sm:$0xff]
  %v5743 = vld [vmem:[%s7 + $0x78] sm:$0xff]
  %v5744 = vld [vmem:[%s7 + $0x80] sm:$0xff]
  %v5745 = vld [vmem:[%s7 + $0x88] sm:$0xff]
  %v5746 = vld [vmem:[%s7 + $0x90] sm:$0xff]
  %v5747 = vld [vmem:[%s7 + $0x98] sm:$0xff]
  %v5748 = vld [vmem:[%s7 + $0xa0] sm:$0xff]
  %v5749 = vld [vmem:[%s7 + $0xa8] sm:$0xff]
  %v5750 = vld [vmem:[%s7 + $0xb0] sm:$0xff]
  %v5751 = vld [vmem:[%s7 + $0xb8] sm:$0xff]
  %v5752 = vld [vmem:[%s7 + $0xc0] sm:$0xff]
  %v5753 = vld [vmem:[%s7 + $0xc8] sm:$0xff]
  %v5754 = vld [vmem:[%s7 + $0xd0] sm:$0xff]
  %v5755 = vld [vmem:[%s7 + $0xd8] sm:$0xff]
  %v5756 = vld [vmem:[%s7 + $0xe0] sm:$0xff]
  %v5757 = vld [vmem:[%s7 + $0xe8] sm:$0xff]
  %v5758 = vld [vmem:[%s7 + $0xf0] sm:$0xff]
  %v5759 = vld [vmem:[%s7 + $0xf8] sm:$0xff]
  %5760 = vmatpush.msra.mxu0 %v5758
  %5761 = vmatpush.msra.mxu0 %v5756
  %5762 = vmatpush.msra.mxu0 %v5754
  %5763 = vmatpush.msra.mxu0 %v5752
  %5764 = vmatpush.msra.mxu0 %v5750
  %5765 = vmatpush.msra.mxu0 %v5748
  %5766 = vmatpush.msra.mxu0 %v5746
  %5767 = vmatpush.msra.mxu0 %v5744
  %5768 = vmatpush.msra.mxu0 %v5742
  %5769 = vmatpush.msra.mxu0 %v5740
  %5770 = vmatpush.msra.mxu0 %v5738
  %5771 = vmatpush.msra.mxu0 %v5736
  %5772 = vmatpush.msra.mxu0 %v5734
  %5773 = vmatpush.msra.mxu0 %v5732
  %5774 = vmatpush.msra.mxu0 %v5730
  %5775 = vmatpush.msra.mxu0 %v5728
  %5776 = vmatmul.f32.gmra.mxu0 %v5711
  %v5777 = vpop.f32.mrf.mxu0
  %v5778 = vadd.f32 0.0, %v5777
  %5779 = vdwg.mxu0
  %5780 = vmatpush.msra.mxu0 %v5759
  %5781 = vmatpush.msra.mxu0 %v5757
  %5782 = vmatpush.msra.mxu0 %v5755
  %5783 = vmatpush.msra.mxu0 %v5753
  %5784 = vmatpush.msra.mxu0 %v5751
  %5785 = vmatpush.msra.mxu0 %v5749
  %5786 = vmatpush.msra.mxu0 %v5747
  %5787 = vmatpush.msra.mxu0 %v5745
  %5788 = vmatpush.msra.mxu0 %v5743
  %5789 = vmatpush.msra.mxu0 %v5741
  %5790 = vmatpush.msra.mxu0 %v5739
  %5791 = vmatpush.msra.mxu0 %v5737
  %5792 = vmatpush.msra.mxu0 %v5735
  %5793 = vmatpush.msra.mxu0 %v5733
  %5794 = vmatpush.msra.mxu0 %v5731
  %5795 = vmatpush.msra.mxu0 %v5729
  %5796 = vmatmul.f32.gmra.mxu0 %v5711
  %v5797 = vpop.f32.mrf.mxu0
  %v5798 = vadd.f32 0.0, %v5797
  %5799 = vdwg.mxu0
  %v5801 = vsel %vm651, %v2724, 0
  %5803 = vmatpush.msra.mxu0 0.0
  %5804 = vmatpush.msra.mxu0 0.0
  %5805 = vmatpush.msra.mxu0 0.0
  %5806 = vmatpush.msra.mxu0 0.0
  %5807 = vmatpush.msra.mxu0 0.0
  %5808 = vmatpush.msra.mxu0 0.0
  %5809 = vmatpush.msra.mxu0 0.0
  %5810 = vmatpush.msra.mxu0 0.0
  %5811 = vmatpush.msra.mxu0 %v5726
  %5812 = vmatpush.msra.mxu0 %v5724
  %5813 = vmatpush.msra.mxu0 %v5722
  %5814 = vmatpush.msra.mxu0 %v5720
  %5815 = vmatpush.msra.mxu0 %v5718
  %5816 = vmatpush.msra.mxu0 %v5716
  %5817 = vmatpush.msra.mxu0 %v5714
  %5818 = vmatpush.msra.mxu0 %v5712
  %5819 = vmatmul.f32.gmra.mxu0 %v5801
  %v5820 = vpop.f32.mrf.mxu0
  %v5821 = vadd.f32 %v5778, %v5820
  %5822 = vdwg.mxu0
  %5823 = vmatpush.msra.mxu0 0.0
  %5824 = vmatpush.msra.mxu0 0.0
  %5825 = vmatpush.msra.mxu0 0.0
  %5826 = vmatpush.msra.mxu0 0.0
  %5827 = vmatpush.msra.mxu0 0.0
  %5828 = vmatpush.msra.mxu0 0.0
  %5829 = vmatpush.msra.mxu0 0.0
  %5830 = vmatpush.msra.mxu0 0.0
  %5831 = vmatpush.msra.mxu0 %v5727
  %5832 = vmatpush.msra.mxu0 %v5725
  %5833 = vmatpush.msra.mxu0 %v5723
  %5834 = vmatpush.msra.mxu0 %v5721
  %5835 = vmatpush.msra.mxu0 %v5719
  %5836 = vmatpush.msra.mxu0 %v5717
  %5837 = vmatpush.msra.mxu0 %v5715
  %5838 = vmatpush.msra.mxu0 %v5713
  %5839 = vmatmul.f32.gmra.mxu0 %v5801
  %v5840 = vpop.f32.mrf.mxu0
  %v5841 = vadd.f32 %v5798, %v5840
  %5842 = vdwg.mxu0
  %v5843 = vld [vmem:[%s8] sm:$0x3]
  %v5845 = vperm.slane %v5843, 0
  %v5846 = vperm.slane %v5843, 1
  %v5849 = vadd.f32 %v5821, %v5845
  %v5850 = vadd.f32 %v5841, %v5846
  %v5851 = vmax.f32 %v5849, 0.0
  %v5852 = vmax.f32 %v5850, 0.0
  %v5853 = vld [vmem:[%s9] sm:$0xff]
  %v5854 = vld [vmem:[%s9 + $0x8] sm:$0xff]
  %v5855 = vld [vmem:[%s9 + $0x10] sm:$0xff]
  %v5856 = vld [vmem:[%s9 + $0x18] sm:$0xff]
  %v5857 = vld [vmem:[%s9 + $0x20] sm:$0xff]
  %v5858 = vld [vmem:[%s9 + $0x28] sm:$0xff]
  %v5859 = vld [vmem:[%s9 + $0x30] sm:$0xff]
  %v5860 = vld [vmem:[%s9 + $0x38] sm:$0xff]
  %v5861 = vld [vmem:[%s9 + $0x40] sm:$0xff]
  %v5862 = vld [vmem:[%s9 + $0x48] sm:$0xff]
  %v5863 = vld [vmem:[%s9 + $0x50] sm:$0xff]
  %v5864 = vld [vmem:[%s9 + $0x58] sm:$0xff]
  %v5865 = vld [vmem:[%s9 + $0x60] sm:$0xff]
  %v5866 = vld [vmem:[%s9 + $0x68] sm:$0xff]
  %v5867 = vld [vmem:[%s9 + $0x70] sm:$0xff]
  %v5868 = vld [vmem:[%s9 + $0x78] sm:$0xff]
  %v5869 = vld [vmem:[%s9 + $0x80] sm:$0xff]
  %v5870 = vld [vmem:[%s9 + $0x88] sm:$0xff]
  %v5871 = vld [vmem:[%s9 + $0x90] sm:$0xff]
  %v5872 = vld [vmem:[%s9 + $0x98] sm:$0xff]
  %v5873 = vld [vmem:[%s9 + $0xa0] sm:$0xff]
  %v5874 = vld [vmem:[%s9 + $0xa8] sm:$0xff]
  %v5875 = vld [vmem:[%s9 + $0xb0] sm:$0xff]
  %v5876 = vld [vmem:[%s9 + $0xb8] sm:$0xff]
  %v5877 = vld [vmem:[%s9 + $0xc0] sm:$0xff]
  %v5878 = vld [vmem:[%s9 + $0xc8] sm:$0xff]
  %v5879 = vld [vmem:[%s9 + $0xd0] sm:$0xff]
  %v5880 = vld [vmem:[%s9 + $0xd8] sm:$0xff]
  %v5881 = vld [vmem:[%s9 + $0xe0] sm:$0xff]
  %v5882 = vld [vmem:[%s9 + $0xe8] sm:$0xff]
  %v5883 = vld [vmem:[%s9 + $0xf0] sm:$0xff]
  %v5884 = vld [vmem:[%s9 + $0xf8] sm:$0xff]
  %v5885 = vld [vmem:[%s10] sm:$0x1]
  %5886 = vmatpush.msra.mxu0 %v5868
  %5887 = vmatpush.msra.mxu0 %v5867
  %5888 = vmatpush.msra.mxu0 %v5866
  %5889 = vmatpush.msra.mxu0 %v5865
  %5890 = vmatpush.msra.mxu0 %v5864
  %5891 = vmatpush.msra.mxu0 %v5863
  %5892 = vmatpush.msra.mxu0 %v5862
  %5893 = vmatpush.msra.mxu0 %v5861
  %5894 = vmatpush.msra.mxu0 %v5860
  %5895 = vmatpush.msra.mxu0 %v5859
  %5896 = vmatpush.msra.mxu0 %v5858
  %5897 = vmatpush.msra.mxu0 %v5857
  %5898 = vmatpush.msra.mxu0 %v5856
  %5899 = vmatpush.msra.mxu0 %v5855
  %5900 = vmatpush.msra.mxu0 %v5854
  %5901 = vmatpush.msra.mxu0 %v5853
  %5902 = vmatmul.f32.gmra.mxu0 %v5851
  %v5903 = vpop.f32.mrf.mxu0
  %v5904 = vadd.f32 %v5885, %v5903
  %5905 = vdwg.mxu0
  %5906 = vmatpush.msra.mxu0 %v5884
  %5907 = vmatpush.msra.mxu0 %v5883
  %5908 = vmatpush.msra.mxu0 %v5882
  %5909 = vmatpush.msra.mxu0 %v5881
  %5910 = vmatpush.msra.mxu0 %v5880
  %5911 = vmatpush.msra.mxu0 %v5879
  %5912 = vmatpush.msra.mxu0 %v5878
  %5913 = vmatpush.msra.mxu0 %v5877
  %5914 = vmatpush.msra.mxu0 %v5876
  %5915 = vmatpush.msra.mxu0 %v5875
  %5916 = vmatpush.msra.mxu0 %v5874
  %5917 = vmatpush.msra.mxu0 %v5873
  %5918 = vmatpush.msra.mxu0 %v5872
  %5919 = vmatpush.msra.mxu0 %v5871
  %5920 = vmatpush.msra.mxu0 %v5870
  %5921 = vmatpush.msra.mxu0 %v5869
  %5922 = vmatmul.f32.gmra.mxu0 %v5852
  %v5923 = vpop.f32.mrf.mxu0
  %v5924 = vadd.f32 %v5904, %v5923
  %5925 = vdwg.mxu0
  %vm5926 = vcmask 24576
  %v5927 = vsel %vm5926, %v5924, -inf
  %5928 = vmax.xlane.f32.xlu0 %v5927
  %v5929 = vpop.xlane.xlu0 %5928
  %v5930 = vsub.f32 %v5924, %v5929
  %v5931 = vmul.f32 %v5930, 1.442695
  %v5932 = vpow.pop %v5931
  %v5933 = vld [vmem:[%s11] sm:$0xf]
  %vm5934 = vcmask 31744
  %v5936 = vsel %vm5934, %v5932, 0
  %vm5938 = vcmask 1043456
  %v5940 = vsel %vm5938, %v5933, 0
  %5942 = vmatpush.msra.mxu0 0.0
  %5943 = vmatpush.msra.mxu0 0.0
  %5944 = vmatpush.msra.mxu0 0.0
  %5945 = vmatpush.msra.mxu0 0.0
  %5946 = vmatpush.msra.mxu0 0.0
  %5947 = vmatpush.msra.mxu0 0.0
  %5948 = vmatpush.msra.mxu0 0.0
  %5949 = vmatpush.msra.mxu0 0.0
  %5950 = vmatpush.msra.mxu0 0.0
  %5951 = vmatpush.msra.mxu0 0.0
  %5952 = vmatpush.msra.mxu0 0.0
  %5953 = vmatpush.msra.mxu0 0.0
  %5954 = vmatpush.msra.mxu0 0.0
  %5955 = vmatpush.msra.mxu0 0.0
  %5956 = vmatpush.msra.mxu0 0.0
  %5957 = vmatpush.msra.mxu0 %v5940
  %5958 = vmatmul.f32.gmra.mxu0 %v5936
  %v5959 = vpop.f32.mrf.mxu0
  %v5960 = vadd.f32 0.0, %v5959
  %5961 = vdwg.mxu0
  %v5962 = vrcp.pop %v5960
  %v5963 = vmul.f32 %v5932, %v5962
  %5964 = vst.msk [vmem:[%s12] sm:$0x1] %vm5926, %v5963
  // Predicated region
  $region65: #{pallas_forward.1} parent=0 // pred_check
    _
  $region66: #{pallas_forward.1} parent=0 // pred_check_branch
    %5966 = sbr.rel (0) target = $region68
  $region67: #{pallas_forward.1} parent=0 // pred_region
    _
  $region68: #{pallas_forward.1} parent=0 // pred_fallthru
    _
  // Predicated region
  $region69: #{pallas_forward.1} parent=0 // pred_check
    _
  $region70: #{pallas_forward.1} parent=0 // pred_check_branch
    %5968 = sbr.rel (0) target = $region72
  $region71: #{pallas_forward.1} parent=0 // pred_region
    _
  $region72: #{pallas_forward.1} parent=0 // pred_fallthru
    _
  %5969 = vsyncmov [#allocation5]
  %s5970 = vpop.sfrf %5969
  %p5971 = scmp.eq.s32.totalorder %s5970, 0
  %p5972 = pneg %p5971
  %5974 = shalt.err (%p5972)

</llo_original>
